<compile_context>
chip_gen: v6e
topology: v6e:2x2x1
jax: 0.10.0
libtpu: 0.0.40
codegen_flags: <defaults>
</compile_context>

<pallas_src>
import functools

import jax
import jax.numpy as jnp
from jax.experimental import pallas as pl
from jax.experimental.pallas import tpu as pltpu

F32 = jnp.float32
BF16 = jnp.bfloat16

# -------------------- config (small synthetic sizes) --------------------
VOCAB = 64
HIDDEN = 32
NUM_HEADS = 4
HEAD_DIM = HIDDEN // NUM_HEADS
INTERMEDIATE = 64
MAX_POS = 32
NUM_LAYERS = 2
TYPE_VOCAB = 2
IMG_CH = 3
IMG_SIZE = 32
V_CHANNELS = [16, 32, 64]       # encoder.v_feats_size_list
HEAD_PLANES = 32                # config.head_planes
HEAD_PAD = 128                  # lane-dense padded width of the fused head output
DECODER_MODE = "FCN"            # config.decoder_mode


# ============================ in-kernel helpers ============================

def _dot(a, b):
    """bf16 MXU matmul with f32 accumulation (operands cast in-kernel)."""
    return jnp.dot(a.astype(BF16), b.astype(BF16), preferred_element_type=jnp.float32)


def _dot_t(a, b):
    """a:(M,K) @ b:(N,K)^T -> (M,N)  (MXU trans_b via dot_general)."""
    return jax.lax.dot_general(a.astype(BF16), b.astype(BF16),
                               (((1,), (1,)), ((), ())),
                               preferred_element_type=jnp.float32)


def _layernorm(x, g, b, eps=1e-12):
    mu = jnp.mean(x, axis=-1, keepdims=True)
    var = jnp.mean((x - mu) * (x - mu), axis=-1, keepdims=True)
    return (x - mu) * jax.lax.rsqrt(var + eps) * g + b


def _gelu(x):
    # tanh approximation (gelu_new).  TODO(synk): exact BERT act not specified in the
    # reference file; switch to erf-based gelu if the reference uses nn.GELU defaults.
    return 0.5 * x * (1.0 + jnp.tanh(0.7978845608028654 * (x + 0.044715 * x * x * x)))


# ============================ Pallas kernels ============================

def _ln_kernel(x_ref, g_ref, b_ref, o_ref):
    o_ref[...] = _layernorm(x_ref[...], g_ref[...], b_ref[...]).astype(o_ref.dtype)


def layernorm(x2d, g, b):
    """x2d:(M,H), g/b:(H,)"""
    M, H = x2d.shape
    return pl.pallas_call(
        _ln_kernel,
        out_shape=jax.ShapeDtypeStruct((M, H), F32),
        grid=(1,),
        in_specs=[
            pl.BlockSpec((M, H), lambda i: (0, 0)),
            pl.BlockSpec((1, H), lambda i: (0, 0)),
            pl.BlockSpec((1, H), lambda i: (0, 0)),
        ],
        out_specs=pl.BlockSpec((M, H), lambda i: (0, 0)),
    )(x2d, g.reshape(1, H), b.reshape(1, H))


def _bert_layer_kernel(h_ref, m_ref, wqkv_ref, bqkv_ref, wo_ref, bo_ref,
                       ln1g_ref, ln1b_ref, wi_ref, bi_ref, wo2_ref, bo2_ref,
                       ln2g_ref, ln2b_ref, o_ref, *, num_heads, scale):
    """One full BERT layer for a single batch element (grid axis = batch)."""
    h = h_ref[0]                         # (S, H) f32
    S, H = h.shape
    dh = H // num_heads
    m = m_ref[0]                         # (1, S) additive mask, broadcast over queries

    # fused Q/K/V projection (single MXU pass)
    qkv = _dot(h, wqkv_ref[...]) + bqkv_ref[...]        # (S, 3H) f32
    wo = wo_ref[...]

    # per-head attention; output projection accumulated per head (no concat needed)
    attn = None
    for hh in range(num_heads):
        q = qkv[:, hh * dh:(hh + 1) * dh]
        k = qkv[:, H + hh * dh:H + (hh + 1) * dh]
        v = qkv[:, 2 * H + hh * dh:2 * H + (hh + 1) * dh]
        s = _dot_t(q, k) * scale + m                     # (S, S)
        s = s - jnp.max(s, axis=-1, keepdims=True)
        p = jnp.exp(s)
        p = p * pl.reciprocal(jnp.sum(p, axis=-1, keepdims=True), approx=True)
        ctx = _dot(p, v)                                 # (S, dh)
        part = _dot(ctx, wo[hh * dh:(hh + 1) * dh, :])   # (S, H)
        attn = part if attn is None else attn + part
    attn = attn + bo_ref[...]

    # residual + LayerNorm (fused epilogue, f32)
    h1 = _layernorm(h + attn, ln1g_ref[...], ln1b_ref[...])

    # FFN: up-proj + gelu + down-proj + residual + LayerNorm (all fused)
    f = _gelu(_dot(h1, wi_ref[...]) + bi_ref[...])
    f = _dot(f, wo2_ref[...]) + bo2_ref[...]
    h2 = _layernorm(h1 + f, ln2g_ref[...], ln2b_ref[...])

    o_ref[0] = h2.astype(o_ref.dtype)


def bert_layer(p, hidden, add_mask):
    """hidden:(B,S,H), add_mask:(B,1,S) additive."""
    B, S, H = hidden.shape
    wqkv = jnp.concatenate([p["wq"], p["wk"], p["wv"]], axis=1)            # (H, 3H)
    bqkv = jnp.concatenate([p["bq"], p["bk"], p["bv"]]).reshape(1, 3 * H)
    row = lambda v: v.reshape(1, -1)

    kernel = functools.partial(_bert_layer_kernel, num_heads=NUM_HEADS,
                               scale=1.0 / float(HEAD_DIM) ** 0.5)
    return pl.pallas_call(
        kernel,
        out_shape=jax.ShapeDtypeStruct((B, S, H), F32),
        grid=(B,),
        in_specs=[
            pl.BlockSpec((1, S, H), lambda b: (b, 0, 0)),        # hidden
            pl.BlockSpec((1, 1, S), lambda b: (b, 0, 0)),        # mask
            pl.BlockSpec((H, 3 * H), lambda b: (0, 0)),          # wqkv
            pl.BlockSpec((1, 3 * H), lambda b: (0, 0)),          # bqkv
            pl.BlockSpec((H, H), lambda b: (0, 0)),              # wo
            pl.BlockSpec((1, H), lambda b: (0, 0)),              # bo
            pl.BlockSpec((1, H), lambda b: (0, 0)),              # ln1_g
            pl.BlockSpec((1, H), lambda b: (0, 0)),              # ln1_b
            pl.BlockSpec((H, INTERMEDIATE), lambda b: (0, 0)),   # wi
            pl.BlockSpec((1, INTERMEDIATE), lambda b: (0, 0)),   # bi
            pl.BlockSpec((INTERMEDIATE, H), lambda b: (0, 0)),   # wo2
            pl.BlockSpec((1, H), lambda b: (0, 0)),              # bo2
            pl.BlockSpec((1, H), lambda b: (0, 0)),              # ln2_g
            pl.BlockSpec((1, H), lambda b: (0, 0)),              # ln2_b
        ],
        out_specs=pl.BlockSpec((1, S, H), lambda b: (b, 0, 0)),
        compiler_params=pltpu.CompilerParams(dimension_semantics=("parallel",)),
    )(hidden, add_mask, wqkv, bqkv, p["wo"], row(p["bo"]),
      row(p["ln1_g"]), row(p["ln1_b"]), p["wi"], row(p["bi"]),
      p["wo2"], row(p["bo2"]), row(p["ln2_g"]), row(p["ln2_b"]))


def _pool_kernel(h_ref, m_ref, o_ref):
    h = h_ref[...]                                 # (B,S,H)
    m = m_ref[...]                                 # (B,S,1)
    num = jnp.sum(h * m, axis=1)                   # (B,H)
    den = jnp.maximum(jnp.sum(m, axis=1), 1.0)     # (B,1)
    o_ref[...] = (num * pl.reciprocal(den, approx=True)).astype(o_ref.dtype)


def masked_pool(hidden, mask_bs1):
    """hidden:(B,S,H), mask_bs1:(B,S,1) -> (B,H) masked mean."""
    B, S, H = hidden.shape
    return pl.pallas_call(
        _pool_kernel,
        out_shape=jax.ShapeDtypeStruct((B, H), F32),
        grid=(1,),
        in_specs=[
            pl.BlockSpec((B, S, H), lambda i: (0, 0, 0)),
            pl.BlockSpec((B, S, 1), lambda i: (0, 0, 0)),
        ],
        out_specs=pl.BlockSpec((B, H), lambda i: (0, 0)),
    )(hidden, mask_bs1)


def _conv_stage_kernel(cols_ref, w_ref, b_ref, lang_ref, lgw_ref, lgb_ref, o_ref):
    """conv-as-matmul + bias + relu + language FiLM gate, one batch element."""
    x = cols_ref[0]                                            # (HW, 9*Cin) f32
    y = jnp.maximum(_dot(x, w_ref[...]) + b_ref[...], 0.0)     # conv + bias + relu
    # language gate fused in the epilogue: sigmoid(lang @ lg_w + lg_b)
    g = _dot(lang_ref[0], lgw_ref[...]) + lgb_ref[...]         # (1, Cout)
    gate = pl.reciprocal(1.0 + jnp.exp(-g), approx=True)
    o_ref[0] = (y * gate).astype(o_ref.dtype)


def conv_stage(cols3d, w, b, lang3d, lg_w, lg_b):
    """cols3d:(B,HW,9C) w:(9C,Cout) lang3d:(B,1,H) -> (B,HW,Cout)"""
    B, HW, KC = cols3d.shape
    Cout = w.shape[1]
    H = lang3d.shape[-1]
    return pl.pallas_call(
        _conv_stage_kernel,
        out_shape=jax.ShapeDtypeStruct((B, HW, Cout), F32),
        grid=(B,),
        in_specs=[
            pl.BlockSpec((1, HW, KC), lambda b: (b, 0, 0)),
            pl.BlockSpec((KC, Cout), lambda b: (0, 0)),
            pl.BlockSpec((1, Cout), lambda b: (0, 0)),
            pl.BlockSpec((1, 1, H), lambda b: (b, 0, 0)),
            pl.BlockSpec((H, Cout), lambda b: (0, 0)),
            pl.BlockSpec((1, Cout), lambda b: (0, 0)),
        ],
        out_specs=pl.BlockSpec((1, HW, Cout), lambda b: (b, 0, 0)),
        compiler_params=pltpu.CompilerParams(dimension_semantics=("parallel",)),
    )(cols3d, w, b.reshape(1, Cout), lang3d, lg_w, lg_b.reshape(1, Cout))


def _mm_relu_res_kernel(x_ref, w_ref, b_ref, res_ref, o_ref):
    y = jnp.maximum(_dot(x_ref[0], w_ref[...]) + b_ref[...], 0.0)
    o_ref[0] = (y + res_ref[0]).astype(o_ref.dtype)


def conv1x1_relu_add(x3d, w, b, res3d):
    """relu(x @ w + b) + res, per-batch grid.  x3d:(B,HW,Cin) res3d:(B,HW,Cout)."""
    B, HW, Cin = x3d.shape
    Cout = w.shape[1]
    return pl.pallas_call(
        _mm_relu_res_kernel,
        out_shape=jax.ShapeDtypeStruct((B, HW, Cout), F32),
        grid=(B,),
        in_specs=[
            pl.BlockSpec((1, HW, Cin), lambda b: (b, 0, 0)),
            pl.BlockSpec((Cin, Cout), lambda b: (0, 0)),
            pl.BlockSpec((1, Cout), lambda b: (0, 0)),
            pl.BlockSpec((1, HW, Cout), lambda b: (b, 0, 0)),
        ],
        out_specs=pl.BlockSpec((1, HW, Cout), lambda b: (b, 0, 0)),
        compiler_params=pltpu.CompilerParams(dimension_semantics=("parallel",)),
    )(x3d, w, b.reshape(1, Cout), res3d)


def _head_kernel(x_ref, w1_ref, b1_ref, w2_ref, b2_ref, o_ref):
    h1 = jnp.maximum(_dot(x_ref[0], w1_ref[...]) + b1_ref[...], 0.0)
    o_ref[0] = (_dot(h1, w2_ref[...]) + b2_ref[...]).astype(o_ref.dtype)


def grounding_heads(x3d, w1, b1, w2, b2):
    """Fused ct|wh|rg heads; output padded to HEAD_PAD lanes (split in JAX)."""
    B, HW, Cin = x3d.shape
    N1 = w1.shape[1]
    N2 = w2.shape[1]
    return pl.pallas_call(
        _head_kernel,
        out_shape=jax.ShapeDtypeStruct((B, HW, N2), F32),
        grid=(B,),
        in_specs=[
            pl.BlockSpec((1, HW, Cin), lambda b: (b, 0, 0)),
            pl.BlockSpec((Cin, N1), lambda b: (0, 0)),
            pl.BlockSpec((1, N1), lambda b: (0, 0)),
            pl.BlockSpec((N1, N2), lambda b: (0, 0)),
            pl.BlockSpec((1, N2), lambda b: (0, 0)),
        ],
        out_specs=pl.BlockSpec((1, HW, N2), lambda b: (b, 0, 0)),
        compiler_params=pltpu.CompilerParams(dimension_semantics=("parallel",)),
    )(x3d, w1, b1, w2, b2)


# ============================ JAX glue ============================

def im2col(x_nhwc, ksize=3, stride=2, pad=1):
    """3x3 patches -> (B, Ho*Wo, k*k*C).  TODO(synk): for real image sizes, replace
    with an in-kernel conv accumulating 9 shifted matmuls in VMEM (avoids 9x HBM)."""
    B, H, W, C = x_nhwc.shape
    xp = jnp.pad(x_nhwc, ((0, 0), (pad, pad), (pad, pad), (0, 0)))
    Ho = (H + 2 * pad - ksize) // stride + 1
    Wo = (W + 2 * pad - ksize) // stride + 1
    patches = []
    for dy in range(ksize):
        for dx in range(ksize):
            patches.append(xp[:, dy:dy + stride * Ho:stride, dx:dx + stride * Wo:stride, :])
    cols = jnp.concatenate(patches, axis=-1)                   # (B,Ho,Wo,k*k*C)
    return cols.reshape(B, Ho * Wo, ksize * ksize * C), (Ho, Wo)


def upsample2(x_nhwc):
    return jnp.repeat(jnp.repeat(x_nhwc, 2, axis=1), 2, axis=2)


# ============================ parameters ============================

def make_params(key):
    keys = iter(jax.random.split(key, 64))

    def nrm(shape, scale=0.02):
        return (scale * jax.random.normal(next(keys), shape)).astype(F32)

    p = {}
    # BertEmbeddings
    p["word_emb"] = nrm((VOCAB, HIDDEN))
    p["pos_emb"] = nrm((MAX_POS, HIDDEN))
    p["type_emb"] = nrm((TYPE_VOCAB, HIDDEN))
    p["emb_ln_g"] = jnp.ones((HIDDEN,), F32)
    p["emb_ln_b"] = jnp.zeros((HIDDEN,), F32)

    # PLVEncoder: text (BERT layers)
    layers = []
    for _ in range(NUM_LAYERS):
        layers.append({
            "wq": nrm((HIDDEN, HIDDEN)), "bq": jnp.zeros((HIDDEN,), F32),
            "wk": nrm((HIDDEN, HIDDEN)), "bk": jnp.zeros((HIDDEN,), F32),
            "wv": nrm((HIDDEN, HIDDEN)), "bv": jnp.zeros((HIDDEN,), F32),
            "wo": nrm((HIDDEN, HIDDEN)), "bo": jnp.zeros((HIDDEN,), F32),
            "ln1_g": jnp.ones((HIDDEN,), F32), "ln1_b": jnp.zeros((HIDDEN,), F32),
            "wi": nrm((HIDDEN, INTERMEDIATE)), "bi": jnp.zeros((INTERMEDIATE,), F32),
            "wo2": nrm((INTERMEDIATE, HIDDEN)), "bo2": jnp.zeros((HIDDEN,), F32),
            "ln2_g": jnp.ones((HIDDEN,), F32), "ln2_b": jnp.zeros((HIDDEN,), F32),
        })
    p["bert_layers"] = layers

    # PLVEncoder: vision stages (3x3 stride-2 convs) + language gating
    stages = []
    in_c = IMG_CH
    for out_c in V_CHANNELS:
        stages.append({
            "w": nrm((9 * in_c, out_c), scale=0.05), "b": jnp.zeros((out_c,), F32),
            "lg_w": nrm((HIDDEN, out_c)), "lg_b": jnp.zeros((out_c,), F32),
        })
        in_c = out_c
    p["v_stages"] = stages

    # Decoder (FCN): 1x1 lateral convs after upsampling
    p["dec"] = [
        {"w": nrm((V_CHANNELS[2], V_CHANNELS[1]), scale=0.05), "b": jnp.zeros((V_CHANNELS[1],), F32)},
        {"w": nrm((V_CHANNELS[1], V_CHANNELS[0]), scale=0.05), "b": jnp.zeros((V_CHANNELS[0],), F32)},
    ]

    # GroundingHead: ct(1), wh(2), rg(2)
    heads = {}
    for name, out_c in (("ct", 1), ("wh", 2), ("rg", 2)):
        heads[name] = {
            "w1": nrm((V_CHANNELS[0], HEAD_PLANES), scale=0.05), "b1": jnp.zeros((HEAD_PLANES,), F32),
            "w2": nrm((HEAD_PLANES, out_c), scale=0.05), "b2": jnp.zeros((out_c,), F32),
        }
    p["head"] = heads
    return p


# ============================ model forward ============================

def plv_forward(params, input_txt, input_imgs, token_type_ids=None, attention_mask=None):
    B, S = input_txt.shape
    if attention_mask is None:
        attention_mask = jnp.ones_like(input_txt)
    if token_type_ids is None:
        token_type_ids = jnp.zeros_like(input_txt)

    am = attention_mask.astype(F32)
    add_mask = ((1.0 - am) * -10000.0)[:, None, :]     # (B,1,S), broadcast inside kernel
    pool_mask = am[:, :, None]                         # (B,S,1)

    # ---- BertEmbeddings (gathers in JAX, sum + LayerNorm in one kernel) ----
    we = params["word_emb"][input_txt]
    pe = params["pos_emb"][jnp.arange(S)][None, :, :]
    te = params["type_emb"][token_type_ids]
    emb = (we + pe + te).reshape(B * S, HIDDEN)
    hidden = layernorm(emb, params["emb_ln_g"], params["emb_ln_b"]).reshape(B, S, HIDDEN)

    # ---- PLVEncoder: text transformer (one fused kernel per layer) ----
    for layer in params["bert_layers"]:
        hidden = bert_layer(layer, hidden, add_mask)

    # language vector via masked mean pooling (uses extended_attention_mask_1)
    lang = masked_pool(hidden, pool_mask)              # (B,H)
    lang3d = lang[:, None, :]                          # (B,1,H)

    # ---- PLVEncoder: vision stages, language-modulated (fused conv+gate) ----
    x = jnp.transpose(input_imgs, (0, 2, 3, 1))        # NCHW -> NHWC
    feats = []
    for stage in params["v_stages"]:
        cols, (Ho, Wo) = im2col(x, ksize=3, stride=2, pad=1)
        out_c = stage["w"].shape[1]
        y = conv_stage(cols, stage["w"], stage["b"], lang3d, stage["lg_w"], stage["lg_b"])
        y_img = y.reshape(B, Ho, Wo, out_c)
        feats.append(y_img)
        x = y_img

    # ---- Decoder (FCN): upsample + (1x1 conv + relu + skip-add fused) ----
    f1, f2, f3 = feats
    u = upsample2(f3)                                  # (B,8,8,64)
    _, H2, W2, _ = u.shape
    u = conv1x1_relu_add(u.reshape(B, H2 * W2, -1),
                         params["dec"][0]["w"], params["dec"][0]["b"],
                         f2.reshape(B, H2 * W2, -1))
    u = u.reshape(B, H2, W2, -1)
    u = upsample2(u)                                   # (B,16,16,32)
    _, H3, W3, _ = u.shape
    x_up = conv1x1_relu_add(u.reshape(B, H3 * W3, -1),
                            params["dec"][1]["w"], params["dec"][1]["b"],
                            f1.reshape(B, H3 * W3, -1))        # (B,256,16)

    # ---- GroundingHead: ct/wh/rg fused into one kernel (lane-padded output) ----
    hp = params["head"]
    w1 = jnp.concatenate([hp["ct"]["w1"], hp["wh"]["w1"], hp["rg"]["w1"]], axis=1)   # (16,96)
    b1 = jnp.concatenate([hp["ct"]["b1"], hp["wh"]["b1"], hp["rg"]["b1"]]).reshape(1, -1)
    w2 = jnp.zeros((3 * HEAD_PLANES, HEAD_PAD), F32)
    w2 = w2.at[0:HEAD_PLANES, 0:1].set(hp["ct"]["w2"])
    w2 = w2.at[HEAD_PLANES:2 * HEAD_PLANES, 1:3].set(hp["wh"]["w2"])
    w2 = w2.at[2 * HEAD_PLANES:3 * HEAD_PLANES, 3:5].set(hp["rg"]["w2"])
    b2 = jnp.zeros((1, HEAD_PAD), F32)
    b2 = b2.at[0, 0:1].set(hp["ct"]["b2"])
    b2 = b2.at[0, 1:3].set(hp["wh"]["b2"])
    b2 = b2.at[0, 3:5].set(hp["rg"]["b2"])

    out = grounding_heads(x_up, w1, b1, w2, b2)        # (B,256,128)
    out_img = out.reshape(B, H3, W3, HEAD_PAD)
    ct = out_img[..., 0:1].transpose(0, 3, 1, 2)       # back to NCHW
    wh = out_img[..., 1:3].transpose(0, 3, 1, 2)
    rg = out_img[..., 3:5].transpose(0, 3, 1, 2)
    return ct, wh, rg
    # TODO(synk): exact BertEmbeddings/PLVEncoder/Decoder/GroundingHead internals are not
    # given in the reference file; this is a faithful synthetic reconstruction.


# ============================ main ============================

if __name__ == "__main__":
    key = jax.random.PRNGKey(0)
    pkey, tkey, ikey = jax.random.split(key, 3)

    params = make_params(pkey)

    B, S = 2, 8
    input_txt = jax.random.randint(tkey, (B, S), 0, VOCAB, dtype=jnp.int32)
    input_imgs = jax.random.normal(ikey, (B, IMG_CH, IMG_SIZE, IMG_SIZE), dtype=F32)

    fwd = jax.jit(plv_forward)
    ct, wh, rg = fwd(params, input_txt, input_imgs)
    jax.block_until_ready((ct, wh, rg))

    assert ct.shape == (B, 1, IMG_SIZE // 2, IMG_SIZE // 2)
    assert wh.shape == (B, 2, IMG_SIZE // 2, IMG_SIZE // 2)
    assert rg.shape == (B, 2, IMG_SIZE // 2, IMG_SIZE // 2)
    assert bool(jnp.all(jnp.isfinite(ct)))
    assert bool(jnp.all(jnp.isfinite(wh)))
    assert bool(jnp.all(jnp.isfinite(rg)))
    print("KERNEL_OK")
</pallas_src>

<mosaic_0001>
module attributes {stable_mosaic.version = 11 : i64} {
  func.func @_ln_kernel(%arg0: i32, %arg1: memref<16x32xf32, #tpu.memory_space<vmem>>, %arg2: memref<1x32xf32, #tpu.memory_space<vmem>>, %arg3: memref<1x32xf32, #tpu.memory_space<vmem>>, %arg4: memref<16x32xf32, #tpu.memory_space<vmem>>) attributes {dimension_semantics = [#tpu.dimension_semantics<arbitrary>], iteration_bounds = array<i64: 1>, scalar_prefetch = 0 : i64, scratch_operands = 0 : i64, tpu.core_type = #tpu.core_type<tc>, window_params = [{pipeline_mode = #tpu.pipeline_mode<synchronous>, transform_indices = @transform_0, window_bounds = array<i64: 16, 32>}, {pipeline_mode = #tpu.pipeline_mode<synchronous>, transform_indices = @transform_1, window_bounds = array<i64: 1, 32>}, {pipeline_mode = #tpu.pipeline_mode<synchronous>, transform_indices = @transform_2, window_bounds = array<i64: 1, 32>}, {pipeline_mode = #tpu.pipeline_mode<synchronous>, transform_indices = @transform_3, window_bounds = array<i64: 16, 32>}]} {
    %c0 = arith.constant 0 : index
    %c0_0 = arith.constant 0 : index
    %0 = vector.load %arg1[%c0, %c0_0] : memref<16x32xf32, #tpu.memory_space<vmem>>, vector<16x32xf32>
    %c0_1 = arith.constant 0 : index
    %c0_2 = arith.constant 0 : index
    %1 = vector.load %arg2[%c0_1, %c0_2] : memref<1x32xf32, #tpu.memory_space<vmem>>, vector<1x32xf32>
    %c0_3 = arith.constant 0 : index
    %c0_4 = arith.constant 0 : index
    %2 = vector.load %arg3[%c0_3, %c0_4] : memref<1x32xf32, #tpu.memory_space<vmem>>, vector<1x32xf32>
    %cst = arith.constant dense<0.000000e+00> : vector<16xf32>
    %3 = vector.multi_reduction <add>, %0, %cst [1] : vector<16x32xf32> to vector<16xf32>
    %4 = vector.shape_cast %3 : vector<16xf32> to vector<16x1xf32>
    %cst_5 = arith.constant 3.200000e+01 : f32
    %5 = vector.broadcast %cst_5 : f32 to vector<16x1xf32>
    %6 = arith.divf %4, %5 : vector<16x1xf32>
    %7 = vector.broadcast %6 : vector<16x1xf32> to vector<16x32xf32>
    %8 = arith.subf %0, %7 : vector<16x32xf32>
    %9 = vector.broadcast %6 : vector<16x1xf32> to vector<16x32xf32>
    %10 = arith.subf %0, %9 : vector<16x32xf32>
    %11 = arith.mulf %8, %10 : vector<16x32xf32>
    %cst_6 = arith.constant dense<0.000000e+00> : vector<16xf32>
    %12 = vector.multi_reduction <add>, %11, %cst_6 [1] : vector<16x32xf32> to vector<16xf32>
    %13 = vector.shape_cast %12 : vector<16xf32> to vector<16x1xf32>
    %cst_7 = arith.constant 3.200000e+01 : f32
    %14 = vector.broadcast %cst_7 : f32 to vector<16x1xf32>
    %15 = arith.divf %13, %14 : vector<16x1xf32>
    %16 = vector.broadcast %6 : vector<16x1xf32> to vector<16x32xf32>
    %17 = arith.subf %0, %16 : vector<16x32xf32>
    %cst_8 = arith.constant 9.99999996E-13 : f32
    %18 = vector.broadcast %cst_8 : f32 to vector<16x1xf32>
    %19 = arith.addf %15, %18 : vector<16x1xf32>
    %20 = math.rsqrt %19 : vector<16x1xf32>
    %21 = vector.broadcast %20 : vector<16x1xf32> to vector<16x32xf32>
    %22 = arith.mulf %17, %21 : vector<16x32xf32>
    %23 = vector.broadcast %1 : vector<1x32xf32> to vector<16x32xf32>
    %24 = arith.mulf %22, %23 : vector<16x32xf32>
    %25 = vector.broadcast %2 : vector<1x32xf32> to vector<16x32xf32>
    %26 = arith.addf %24, %25 : vector<16x32xf32>
    %c0_9 = arith.constant 0 : index
    %c0_10 = arith.constant 0 : index
    %27 = vector.load %arg4[%c0_9, %c0_10] : memref<16x32xf32, #tpu.memory_space<vmem>>, vector<16x32xf32>
    tpu.vector_store %arg4[%c0_9, %c0_10], %26 {strides = array<i32>} : memref<16x32xf32, #tpu.memory_space<vmem>>, vector<16x32xf32>,
    return
  }
  func.func @transform_0(%arg0: i32) -> (i32, i32) {
    %c0_i32 = arith.constant 0 : i32
    %c0_i32_0 = arith.constant 0 : i32
    %c0_i32_1 = arith.constant 0 : i32
    return %c0_i32, %c0_i32_0 : i32, i32
  }
  func.func @transform_1(%arg0: i32) -> (i32, i32) {
    %c0_i32 = arith.constant 0 : i32
    %c0_i32_0 = arith.constant 0 : i32
    %c0_i32_1 = arith.constant 0 : i32
    return %c0_i32, %c0_i32_0 : i32, i32
  }
  func.func @transform_2(%arg0: i32) -> (i32, i32) {
    %c0_i32 = arith.constant 0 : i32
    %c0_i32_0 = arith.constant 0 : i32
    %c0_i32_1 = arith.constant 0 : i32
    return %c0_i32, %c0_i32_0 : i32, i32
  }
  func.func @transform_3(%arg0: i32) -> (i32, i32) {
    %c0_i32 = arith.constant 0 : i32
    %c0_i32_0 = arith.constant 0 : i32
    %c0_i32_1 = arith.constant 0 : i32
    return %c0_i32, %c0_i32_0 : i32, i32
  }
}

module attributes {stable_mosaic.version = 11 : i64} {
  func.func @_bert_layer_kernel(%arg0: i32, %arg1: memref<1x8x32xf32, #tpu.memory_space<vmem>>, %arg2: memref<1x1x8xf32, #tpu.memory_space<vmem>>, %arg3: memref<32x96xf32, #tpu.memory_space<vmem>>, %arg4: memref<1x96xf32, #tpu.memory_space<vmem>>, %arg5: memref<32x32xf32, #tpu.memory_space<vmem>>, %arg6: memref<1x32xf32, #tpu.memory_space<vmem>>, %arg7: memref<1x32xf32, #tpu.memory_space<vmem>>, %arg8: memref<1x32xf32, #tpu.memory_space<vmem>>, %arg9: memref<32x64xf32, #tpu.memory_space<vmem>>, %arg10: memref<1x64xf32, #tpu.memory_space<vmem>>, %arg11: memref<64x32xf32, #tpu.memory_space<vmem>>, %arg12: memref<1x32xf32, #tpu.memory_space<vmem>>, %arg13: memref<1x32xf32, #tpu.memory_space<vmem>>, %arg14: memref<1x32xf32, #tpu.memory_space<vmem>>, %arg15: memref<1x8x32xf32, #tpu.memory_space<vmem>>) attributes {dimension_semantics = [#tpu.dimension_semantics<parallel>], iteration_bounds = array<i64: 2>, scalar_prefetch = 0 : i64, scratch_operands = 0 : i64, tpu.core_type = #tpu.core_type<tc>, window_params = [{transform_indices = @transform_0, window_bounds = array<i64: 1, 8, 32>}, {transform_indices = @transform_1, window_bounds = array<i64: 1, 1, 8>}, {pipeline_mode = #tpu.pipeline_mode<synchronous>, transform_indices = @transform_2, window_bounds = array<i64: 32, 96>}, {pipeline_mode = #tpu.pipeline_mode<synchronous>, transform_indices = @transform_3, window_bounds = array<i64: 1, 96>}, {pipeline_mode = #tpu.pipeline_mode<synchronous>, transform_indices = @transform_4, window_bounds = array<i64: 32, 32>}, {pipeline_mode = #tpu.pipeline_mode<synchronous>, transform_indices = @transform_5, window_bounds = array<i64: 1, 32>}, {pipeline_mode = #tpu.pipeline_mode<synchronous>, transform_indices = @transform_6, window_bounds = array<i64: 1, 32>}, {pipeline_mode = #tpu.pipeline_mode<synchronous>, transform_indices = @transform_7, window_bounds = array<i64: 1, 32>}, {pipeline_mode = #tpu.pipeline_mode<synchronous>, transform_indices = @transform_8, window_bounds = array<i64: 32, 64>}, {pipeline_mode = #tpu.pipeline_mode<synchronous>, transform_indices = @transform_9, window_bounds = array<i64: 1, 64>}, {pipeline_mode = #tpu.pipeline_mode<synchronous>, transform_indices = @transform_10, window_bounds = array<i64: 64, 32>}, {pipeline_mode = #tpu.pipeline_mode<synchronous>, transform_indices = @transform_11, window_bounds = array<i64: 1, 32>}, {pipeline_mode = #tpu.pipeline_mode<synchronous>, transform_indices = @transform_12, window_bounds = array<i64: 1, 32>}, {pipeline_mode = #tpu.pipeline_mode<synchronous>, transform_indices = @transform_13, window_bounds = array<i64: 1, 32>}, {transform_indices = @transform_14, window_bounds = array<i64: 1, 8, 32>}]} {
    %c0 = arith.constant 0 : index
    %c0_0 = arith.constant 0 : index
    %c0_1 = arith.constant 0 : index
    %0 = vector.load %arg1[%c0, %c0_0, %c0_1] : memref<1x8x32xf32, #tpu.memory_space<vmem>>, vector<1x8x32xf32>
    %1 = vector.shape_cast %0 : vector<1x8x32xf32> to vector<8x32xf32>
    %c0_2 = arith.constant 0 : index
    %c0_3 = arith.constant 0 : index
    %c0_4 = arith.constant 0 : index
    %2 = vector.load %arg2[%c0_2, %c0_3, %c0_4] : memref<1x1x8xf32, #tpu.memory_space<vmem>>, vector<1x1x8xf32>
    %3 = vector.shape_cast %2 : vector<1x1x8xf32> to vector<1x8xf32>
    %c0_5 = arith.constant 0 : index
    %c0_6 = arith.constant 0 : index
    %4 = vector.load %arg3[%c0_5, %c0_6] : memref<32x96xf32, #tpu.memory_space<vmem>>, vector<32x96xf32>
    %5 = arith.truncf %1 : vector<8x32xf32> to vector<8x32xbf16>
    %6 = arith.truncf %4 : vector<32x96xf32> to vector<32x96xbf16>
    %cst = arith.constant dense<0.000000e+00> : vector<8x96xf32>
    %7 = tpu.matmul %5, %6, %cst {dimension_numbers = #tpu.dot_dimension_numbers<[1], [0], [0], [1], [0, 0, 1, 1], [], []>} : vector<8x32xbf16>, vector<32x96xbf16>, vector<8x96xf32> -> vector<8x96xf32>
    %c0_7 = arith.constant 0 : index
    %c0_8 = arith.constant 0 : index
    %8 = vector.load %arg4[%c0_7, %c0_8] : memref<1x96xf32, #tpu.memory_space<vmem>>, vector<1x96xf32>
    %9 = vector.broadcast %8 : vector<1x96xf32> to vector<8x96xf32>
    %10 = arith.addf %7, %9 : vector<8x96xf32>
    %c0_9 = arith.constant 0 : index
    %c0_10 = arith.constant 0 : index
    %11 = vector.load %arg5[%c0_9, %c0_10] : memref<32x32xf32, #tpu.memory_space<vmem>>, vector<32x32xf32>
    %12 = vector.extract_strided_slice %10 {offsets = [0, 0], sizes = [8, 8], strides = [1, 1]} : vector<8x96xf32> to vector<8x8xf32>
    %13 = vector.extract_strided_slice %10 {offsets = [0, 32], sizes = [8, 8], strides = [1, 1]} : vector<8x96xf32> to vector<8x8xf32>
    %14 = vector.extract_strided_slice %10 {offsets = [0, 64], sizes = [8, 8], strides = [1, 1]} : vector<8x96xf32> to vector<8x8xf32>
    %15 = arith.truncf %12 : vector<8x8xf32> to vector<8x8xbf16>
    %16 = arith.truncf %13 : vector<8x8xf32> to vector<8x8xbf16>
    %cst_11 = arith.constant dense<0.000000e+00> : vector<8x8xf32>
    %17 = tpu.matmul %15, %16, %cst_11 {dimension_numbers = #tpu.dot_dimension_numbers<[1], [1], [0], [0], [0, 0, 1, 0], [], []>} : vector<8x8xbf16>, vector<8x8xbf16>, vector<8x8xf32> -> vector<8x8xf32>
    %cst_12 = arith.constant 0.353553385 : f32
    %18 = vector.broadcast %cst_12 : f32 to vector<8x8xf32>
    %19 = arith.mulf %17, %18 : vector<8x8xf32>
    %20 = vector.broadcast %3 : vector<1x8xf32> to vector<8x8xf32>
    %21 = arith.addf %19, %20 : vector<8x8xf32>
    %cst_13 = arith.constant dense<0xFF800000> : vector<8xf32>
    %22 = vector.multi_reduction <maximumf>, %21, %cst_13 [1] : vector<8x8xf32> to vector<8xf32>
    %23 = vector.shape_cast %22 : vector<8xf32> to vector<8x1xf32>
    %24 = vector.broadcast %23 : vector<8x1xf32> to vector<8x8xf32>
    %25 = arith.subf %21, %24 : vector<8x8xf32>
    %26 = math.exp %25 : vector<8x8xf32>
    %cst_14 = arith.constant dense<0.000000e+00> : vector<8xf32>
    %27 = vector.multi_reduction <add>, %26, %cst_14 [1] : vector<8x8xf32> to vector<8xf32>
    %28 = vector.shape_cast %27 : vector<8xf32> to vector<8x1xf32>
    %29 = tpu.reciprocal %28 {approx = true} : vector<8x1xf32> -> vector<8x1xf32>
    %30 = vector.broadcast %29 : vector<8x1xf32> to vector<8x8xf32>
    %31 = arith.mulf %26, %30 : vector<8x8xf32>
    %32 = arith.truncf %31 : vector<8x8xf32> to vector<8x8xbf16>
    %33 = arith.truncf %14 : vector<8x8xf32> to vector<8x8xbf16>
    %cst_15 = arith.constant dense<0.000000e+00> : vector<8x8xf32>
    %34 = tpu.matmul %32, %33, %cst_15 {dimension_numbers = #tpu.dot_dimension_numbers<[1], [0], [0], [1], [0, 0, 1, 1], [], []>} : vector<8x8xbf16>, vector<8x8xbf16>, vector<8x8xf32> -> vector<8x8xf32>
    %35 = vector.extract_strided_slice %11 {offsets = [0, 0], sizes = [8, 32], strides = [1, 1]} : vector<32x32xf32> to vector<8x32xf32>
    %36 = arith.truncf %34 : vector<8x8xf32> to vector<8x8xbf16>
    %37 = arith.truncf %35 : vector<8x32xf32> to vector<8x32xbf16>
    %cst_16 = arith.constant dense<0.000000e+00> : vector<8x32xf32>
    %38 = tpu.matmul %36, %37, %cst_16 {dimension_numbers = #tpu.dot_dimension_numbers<[1], [0], [0], [1], [0, 0, 1, 1], [], []>} : vector<8x8xbf16>, vector<8x32xbf16>, vector<8x32xf32> -> vector<8x32xf32>
    %39 = vector.extract_strided_slice %10 {offsets = [0, 8], sizes = [8, 8], strides = [1, 1]} : vector<8x96xf32> to vector<8x8xf32>
    %40 = vector.extract_strided_slice %10 {offsets = [0, 40], sizes = [8, 8], strides = [1, 1]} : vector<8x96xf32> to vector<8x8xf32>
    %41 = vector.extract_strided_slice %10 {offsets = [0, 72], sizes = [8, 8], strides = [1, 1]} : vector<8x96xf32> to vector<8x8xf32>
    %42 = arith.truncf %39 : vector<8x8xf32> to vector<8x8xbf16>
    %43 = arith.truncf %40 : vector<8x8xf32> to vector<8x8xbf16>
    %cst_17 = arith.constant dense<0.000000e+00> : vector<8x8xf32>
    %44 = tpu.matmul %42, %43, %cst_17 {dimension_numbers = #tpu.dot_dimension_numbers<[1], [1], [0], [0], [0, 0, 1, 0], [], []>} : vector<8x8xbf16>, vector<8x8xbf16>, vector<8x8xf32> -> vector<8x8xf32>
    %cst_18 = arith.constant 0.353553385 : f32
    %45 = vector.broadcast %cst_18 : f32 to vector<8x8xf32>
    %46 = arith.mulf %44, %45 : vector<8x8xf32>
    %47 = vector.broadcast %3 : vector<1x8xf32> to vector<8x8xf32>
    %48 = arith.addf %46, %47 : vector<8x8xf32>
    %cst_19 = arith.constant dense<0xFF800000> : vector<8xf32>
    %49 = vector.multi_reduction <maximumf>, %48, %cst_19 [1] : vector<8x8xf32> to vector<8xf32>
    %50 = vector.shape_cast %49 : vector<8xf32> to vector<8x1xf32>
    %51 = vector.broadcast %50 : vector<8x1xf32> to vector<8x8xf32>
    %52 = arith.subf %48, %51 : vector<8x8xf32>
    %53 = math.exp %52 : vector<8x8xf32>
    %cst_20 = arith.constant dense<0.000000e+00> : vector<8xf32>
    %54 = vector.multi_reduction <add>, %53, %cst_20 [1] : vector<8x8xf32> to vector<8xf32>
    %55 = vector.shape_cast %54 : vector<8xf32> to vector<8x1xf32>
    %56 = tpu.reciprocal %55 {approx = true} : vector<8x1xf32> -> vector<8x1xf32>
    %57 = vector.broadcast %56 : vector<8x1xf32> to vector<8x8xf32>
    %58 = arith.mulf %53, %57 : vector<8x8xf32>
    %59 = arith.truncf %58 : vector<8x8xf32> to vector<8x8xbf16>
    %60 = arith.truncf %41 : vector<8x8xf32> to vector<8x8xbf16>
    %cst_21 = arith.constant dense<0.000000e+00> : vector<8x8xf32>
    %61 = tpu.matmul %59, %60, %cst_21 {dimension_numbers = #tpu.dot_dimension_numbers<[1], [0], [0], [1], [0, 0, 1, 1], [], []>} : vector<8x8xbf16>, vector<8x8xbf16>, vector<8x8xf32> -> vector<8x8xf32>
    %62 = vector.extract_strided_slice %11 {offsets = [8, 0], sizes = [8, 32], strides = [1, 1]} : vector<32x32xf32> to vector<8x32xf32>
    %63 = arith.truncf %61 : vector<8x8xf32> to vector<8x8xbf16>
    %64 = arith.truncf %62 : vector<8x32xf32> to vector<8x32xbf16>
    %cst_22 = arith.constant dense<0.000000e+00> : vector<8x32xf32>
    %65 = tpu.matmul %63, %64, %cst_22 {dimension_numbers = #tpu.dot_dimension_numbers<[1], [0], [0], [1], [0, 0, 1, 1], [], []>} : vector<8x8xbf16>, vector<8x32xbf16>, vector<8x32xf32> -> vector<8x32xf32>
    %66 = arith.addf %38, %65 : vector<8x32xf32>
    %67 = vector.extract_strided_slice %10 {offsets = [0, 16], sizes = [8, 8], strides = [1, 1]} : vector<8x96xf32> to vector<8x8xf32>
    %68 = vector.extract_strided_slice %10 {offsets = [0, 48], sizes = [8, 8], strides = [1, 1]} : vector<8x96xf32> to vector<8x8xf32>
    %69 = vector.extract_strided_slice %10 {offsets = [0, 80], sizes = [8, 8], strides = [1, 1]} : vector<8x96xf32> to vector<8x8xf32>
    %70 = arith.truncf %67 : vector<8x8xf32> to vector<8x8xbf16>
    %71 = arith.truncf %68 : vector<8x8xf32> to vector<8x8xbf16>
    %cst_23 = arith.constant dense<0.000000e+00> : vector<8x8xf32>
    %72 = tpu.matmul %70, %71, %cst_23 {dimension_numbers = #tpu.dot_dimension_numbers<[1], [1], [0], [0], [0, 0, 1, 0], [], []>} : vector<8x8xbf16>, vector<8x8xbf16>, vector<8x8xf32> -> vector<8x8xf32>
    %cst_24 = arith.constant 0.353553385 : f32
    %73 = vector.broadcast %cst_24 : f32 to vector<8x8xf32>
    %74 = arith.mulf %72, %73 : vector<8x8xf32>
    %75 = vector.broadcast %3 : vector<1x8xf32> to vector<8x8xf32>
    %76 = arith.addf %74, %75 : vector<8x8xf32>
    %cst_25 = arith.constant dense<0xFF800000> : vector<8xf32>
    %77 = vector.multi_reduction <maximumf>, %76, %cst_25 [1] : vector<8x8xf32> to vector<8xf32>
    %78 = vector.shape_cast %77 : vector<8xf32> to vector<8x1xf32>
    %79 = vector.broadcast %78 : vector<8x1xf32> to vector<8x8xf32>
    %80 = arith.subf %76, %79 : vector<8x8xf32>
    %81 = math.exp %80 : vector<8x8xf32>
    %cst_26 = arith.constant dense<0.000000e+00> : vector<8xf32>
    %82 = vector.multi_reduction <add>, %81, %cst_26 [1] : vector<8x8xf32> to vector<8xf32>
    %83 = vector.shape_cast %82 : vector<8xf32> to vector<8x1xf32>
    %84 = tpu.reciprocal %83 {approx = true} : vector<8x1xf32> -> vector<8x1xf32>
    %85 = vector.broadcast %84 : vector<8x1xf32> to vector<8x8xf32>
    %86 = arith.mulf %81, %85 : vector<8x8xf32>
    %87 = arith.truncf %86 : vector<8x8xf32> to vector<8x8xbf16>
    %88 = arith.truncf %69 : vector<8x8xf32> to vector<8x8xbf16>
    %cst_27 = arith.constant dense<0.000000e+00> : vector<8x8xf32>
    %89 = tpu.matmul %87, %88, %cst_27 {dimension_numbers = #tpu.dot_dimension_numbers<[1], [0], [0], [1], [0, 0, 1, 1], [], []>} : vector<8x8xbf16>, vector<8x8xbf16>, vector<8x8xf32> -> vector<8x8xf32>
    %90 = vector.extract_strided_slice %11 {offsets = [16, 0], sizes = [8, 32], strides = [1, 1]} : vector<32x32xf32> to vector<8x32xf32>
    %91 = arith.truncf %89 : vector<8x8xf32> to vector<8x8xbf16>
    %92 = arith.truncf %90 : vector<8x32xf32> to vector<8x32xbf16>
    %cst_28 = arith.constant dense<0.000000e+00> : vector<8x32xf32>
    %93 = tpu.matmul %91, %92, %cst_28 {dimension_numbers = #tpu.dot_dimension_numbers<[1], [0], [0], [1], [0, 0, 1, 1], [], []>} : vector<8x8xbf16>, vector<8x32xbf16>, vector<8x32xf32> -> vector<8x32xf32>
    %94 = arith.addf %66, %93 : vector<8x32xf32>
    %95 = vector.extract_strided_slice %10 {offsets = [0, 24], sizes = [8, 8], strides = [1, 1]} : vector<8x96xf32> to vector<8x8xf32>
    %96 = vector.extract_strided_slice %10 {offsets = [0, 56], sizes = [8, 8], strides = [1, 1]} : vector<8x96xf32> to vector<8x8xf32>
    %97 = vector.extract_strided_slice %10 {offsets = [0, 88], sizes = [8, 8], strides = [1, 1]} : vector<8x96xf32> to vector<8x8xf32>
    %98 = arith.truncf %95 : vector<8x8xf32> to vector<8x8xbf16>
    %99 = arith.truncf %96 : vector<8x8xf32> to vector<8x8xbf16>
    %cst_29 = arith.constant dense<0.000000e+00> : vector<8x8xf32>
    %100 = tpu.matmul %98, %99, %cst_29 {dimension_numbers = #tpu.dot_dimension_numbers<[1], [1], [0], [0], [0, 0, 1, 0], [], []>} : vector<8x8xbf16>, vector<8x8xbf16>, vector<8x8xf32> -> vector<8x8xf32>
    %cst_30 = arith.constant 0.353553385 : f32
    %101 = vector.broadcast %cst_30 : f32 to vector<8x8xf32>
    %102 = arith.mulf %100, %101 : vector<8x8xf32>
    %103 = vector.broadcast %3 : vector<1x8xf32> to vector<8x8xf32>
    %104 = arith.addf %102, %103 : vector<8x8xf32>
    %cst_31 = arith.constant dense<0xFF800000> : vector<8xf32>
    %105 = vector.multi_reduction <maximumf>, %104, %cst_31 [1] : vector<8x8xf32> to vector<8xf32>
    %106 = vector.shape_cast %105 : vector<8xf32> to vector<8x1xf32>
    %107 = vector.broadcast %106 : vector<8x1xf32> to vector<8x8xf32>
    %108 = arith.subf %104, %107 : vector<8x8xf32>
    %109 = math.exp %108 : vector<8x8xf32>
    %cst_32 = arith.constant dense<0.000000e+00> : vector<8xf32>
    %110 = vector.multi_reduction <add>, %109, %cst_32 [1] : vector<8x8xf32> to vector<8xf32>
    %111 = vector.shape_cast %110 : vector<8xf32> to vector<8x1xf32>
    %112 = tpu.reciprocal %111 {approx = true} : vector<8x1xf32> -> vector<8x1xf32>
    %113 = vector.broadcast %112 : vector<8x1xf32> to vector<8x8xf32>
    %114 = arith.mulf %109, %113 : vector<8x8xf32>
    %115 = arith.truncf %114 : vector<8x8xf32> to vector<8x8xbf16>
    %116 = arith.truncf %97 : vector<8x8xf32> to vector<8x8xbf16>
    %cst_33 = arith.constant dense<0.000000e+00> : vector<8x8xf32>
    %117 = tpu.matmul %115, %116, %cst_33 {dimension_numbers = #tpu.dot_dimension_numbers<[1], [0], [0], [1], [0, 0, 1, 1], [], []>} : vector<8x8xbf16>, vector<8x8xbf16>, vector<8x8xf32> -> vector<8x8xf32>
    %118 = vector.extract_strided_slice %11 {offsets = [24, 0], sizes = [8, 32], strides = [1, 1]} : vector<32x32xf32> to vector<8x32xf32>
    %119 = arith.truncf %117 : vector<8x8xf32> to vector<8x8xbf16>
    %120 = arith.truncf %118 : vector<8x32xf32> to vector<8x32xbf16>
    %cst_34 = arith.constant dense<0.000000e+00> : vector<8x32xf32>
    %121 = tpu.matmul %119, %120, %cst_34 {dimension_numbers = #tpu.dot_dimension_numbers<[1], [0], [0], [1], [0, 0, 1, 1], [], []>} : vector<8x8xbf16>, vector<8x32xbf16>, vector<8x32xf32> -> vector<8x32xf32>
    %122 = arith.addf %94, %121 : vector<8x32xf32>
    %c0_35 = arith.constant 0 : index
    %c0_36 = arith.constant 0 : index
    %123 = vector.load %arg6[%c0_35, %c0_36] : memref<1x32xf32, #tpu.memory_space<vmem>>, vector<1x32xf32>
    %124 = vector.broadcast %123 : vector<1x32xf32> to vector<8x32xf32>
    %125 = arith.addf %122, %124 : vector<8x32xf32>
    %126 = arith.addf %1, %125 : vector<8x32xf32>
    %c0_37 = arith.constant 0 : index
    %c0_38 = arith.constant 0 : index
    %127 = vector.load %arg7[%c0_37, %c0_38] : memref<1x32xf32, #tpu.memory_space<vmem>>, vector<1x32xf32>
    %c0_39 = arith.constant 0 : index
    %c0_40 = arith.constant 0 : index
    %128 = vector.load %arg8[%c0_39, %c0_40] : memref<1x32xf32, #tpu.memory_space<vmem>>, vector<1x32xf32>
    %cst_41 = arith.constant dense<0.000000e+00> : vector<8xf32>
    %129 = vector.multi_reduction <add>, %126, %cst_41 [1] : vector<8x32xf32> to vector<8xf32>
    %130 = vector.shape_cast %129 : vector<8xf32> to vector<8x1xf32>
    %cst_42 = arith.constant 3.200000e+01 : f32
    %131 = vector.broadcast %cst_42 : f32 to vector<8x1xf32>
    %132 = arith.divf %130, %131 : vector<8x1xf32>
    %133 = vector.broadcast %132 : vector<8x1xf32> to vector<8x32xf32>
    %134 = arith.subf %126, %133 : vector<8x32xf32>
    %135 = vector.broadcast %132 : vector<8x1xf32> to vector<8x32xf32>
    %136 = arith.subf %126, %135 : vector<8x32xf32>
    %137 = arith.mulf %134, %136 : vector<8x32xf32>
    %cst_43 = arith.constant dense<0.000000e+00> : vector<8xf32>
    %138 = vector.multi_reduction <add>, %137, %cst_43 [1] : vector<8x32xf32> to vector<8xf32>
    %139 = vector.shape_cast %138 : vector<8xf32> to vector<8x1xf32>
    %cst_44 = arith.constant 3.200000e+01 : f32
    %140 = vector.broadcast %cst_44 : f32 to vector<8x1xf32>
    %141 = arith.divf %139, %140 : vector<8x1xf32>
    %142 = vector.broadcast %132 : vector<8x1xf32> to vector<8x32xf32>
    %143 = arith.subf %126, %142 : vector<8x32xf32>
    %cst_45 = arith.constant 9.99999996E-13 : f32
    %144 = vector.broadcast %cst_45 : f32 to vector<8x1xf32>
    %145 = arith.addf %141, %144 : vector<8x1xf32>
    %146 = math.rsqrt %145 : vector<8x1xf32>
    %147 = vector.broadcast %146 : vector<8x1xf32> to vector<8x32xf32>
    %148 = arith.mulf %143, %147 : vector<8x32xf32>
    %149 = vector.broadcast %127 : vector<1x32xf32> to vector<8x32xf32>
    %150 = arith.mulf %148, %149 : vector<8x32xf32>
    %151 = vector.broadcast %128 : vector<1x32xf32> to vector<8x32xf32>
    %152 = arith.addf %150, %151 : vector<8x32xf32>
    %c0_46 = arith.constant 0 : index
    %c0_47 = arith.constant 0 : index
    %153 = vector.load %arg9[%c0_46, %c0_47] : memref<32x64xf32, #tpu.memory_space<vmem>>, vector<32x64xf32>
    %154 = arith.truncf %152 : vector<8x32xf32> to vector<8x32xbf16>
    %155 = arith.truncf %153 : vector<32x64xf32> to vector<32x64xbf16>
    %cst_48 = arith.constant dense<0.000000e+00> : vector<8x64xf32>
    %156 = tpu.matmul %154, %155, %cst_48 {dimension_numbers = #tpu.dot_dimension_numbers<[1], [0], [0], [1], [0, 0, 1, 1], [], []>} : vector<8x32xbf16>, vector<32x64xbf16>, vector<8x64xf32> -> vector<8x64xf32>
    %c0_49 = arith.constant 0 : index
    %c0_50 = arith.constant 0 : index
    %157 = vector.load %arg10[%c0_49, %c0_50] : memref<1x64xf32, #tpu.memory_space<vmem>>, vector<1x64xf32>
    %158 = vector.broadcast %157 : vector<1x64xf32> to vector<8x64xf32>
    %159 = arith.addf %156, %158 : vector<8x64xf32>
    %cst_51 = arith.constant 5.000000e-01 : f32
    %160 = vector.broadcast %cst_51 : f32 to vector<8x64xf32>
    %161 = arith.mulf %160, %159 : vector<8x64xf32>
    %cst_52 = arith.constant 4.471500e-02 : f32
    %162 = vector.broadcast %cst_52 : f32 to vector<8x64xf32>
    %163 = arith.mulf %162, %159 : vector<8x64xf32>
    %164 = arith.mulf %163, %159 : vector<8x64xf32>
    %165 = arith.mulf %164, %159 : vector<8x64xf32>
    %166 = arith.addf %159, %165 : vector<8x64xf32>
    %cst_53 = arith.constant 0.797884583 : f32
    %167 = vector.broadcast %cst_53 : f32 to vector<8x64xf32>
    %168 = arith.mulf %167, %166 : vector<8x64xf32>
    %169 = math.tanh %168 : vector<8x64xf32>
    %cst_54 = arith.constant 1.000000e+00 : f32
    %170 = vector.broadcast %cst_54 : f32 to vector<8x64xf32>
    %171 = arith.addf %170, %169 : vector<8x64xf32>
    %172 = arith.mulf %161, %171 : vector<8x64xf32>
    %c0_55 = arith.constant 0 : index
    %c0_56 = arith.constant 0 : index
    %173 = vector.load %arg11[%c0_55, %c0_56] : memref<64x32xf32, #tpu.memory_space<vmem>>, vector<64x32xf32>
    %174 = arith.truncf %172 : vector<8x64xf32> to vector<8x64xbf16>
    %175 = arith.truncf %173 : vector<64x32xf32> to vector<64x32xbf16>
    %cst_57 = arith.constant dense<0.000000e+00> : vector<8x32xf32>
    %176 = tpu.matmul %174, %175, %cst_57 {dimension_numbers = #tpu.dot_dimension_numbers<[1], [0], [0], [1], [0, 0, 1, 1], [], []>} : vector<8x64xbf16>, vector<64x32xbf16>, vector<8x32xf32> -> vector<8x32xf32>
    %c0_58 = arith.constant 0 : index
    %c0_59 = arith.constant 0 : index
    %177 = vector.load %arg12[%c0_58, %c0_59] : memref<1x32xf32, #tpu.memory_space<vmem>>, vector<1x32xf32>
    %178 = vector.broadcast %177 : vector<1x32xf32> to vector<8x32xf32>
    %179 = arith.addf %176, %178 : vector<8x32xf32>
    %180 = arith.addf %152, %179 : vector<8x32xf32>
    %c0_60 = arith.constant 0 : index
    %c0_61 = arith.constant 0 : index
    %181 = vector.load %arg13[%c0_60, %c0_61] : memref<1x32xf32, #tpu.memory_space<vmem>>, vector<1x32xf32>
    %c0_62 = arith.constant 0 : index
    %c0_63 = arith.constant 0 : index
    %182 = vector.load %arg14[%c0_62, %c0_63] : memref<1x32xf32, #tpu.memory_space<vmem>>, vector<1x32xf32>
    %cst_64 = arith.constant dense<0.000000e+00> : vector<8xf32>
    %183 = vector.multi_reduction <add>, %180, %cst_64 [1] : vector<8x32xf32> to vector<8xf32>
    %184 = vector.shape_cast %183 : vector<8xf32> to vector<8x1xf32>
    %cst_65 = arith.constant 3.200000e+01 : f32
    %185 = vector.broadcast %cst_65 : f32 to vector<8x1xf32>
    %186 = arith.divf %184, %185 : vector<8x1xf32>
    %187 = vector.broadcast %186 : vector<8x1xf32> to vector<8x32xf32>
    %188 = arith.subf %180, %187 : vector<8x32xf32>
    %189 = vector.broadcast %186 : vector<8x1xf32> to vector<8x32xf32>
    %190 = arith.subf %180, %189 : vector<8x32xf32>
    %191 = arith.mulf %188, %190 : vector<8x32xf32>
    %cst_66 = arith.constant dense<0.000000e+00> : vector<8xf32>
    %192 = vector.multi_reduction <add>, %191, %cst_66 [1] : vector<8x32xf32> to vector<8xf32>
    %193 = vector.shape_cast %192 : vector<8xf32> to vector<8x1xf32>
    %cst_67 = arith.constant 3.200000e+01 : f32
    %194 = vector.broadcast %cst_67 : f32 to vector<8x1xf32>
    %195 = arith.divf %193, %194 : vector<8x1xf32>
    %196 = vector.broadcast %186 : vector<8x1xf32> to vector<8x32xf32>
    %197 = arith.subf %180, %196 : vector<8x32xf32>
    %cst_68 = arith.constant 9.99999996E-13 : f32
    %198 = vector.broadcast %cst_68 : f32 to vector<8x1xf32>
    %199 = arith.addf %195, %198 : vector<8x1xf32>
    %200 = math.rsqrt %199 : vector<8x1xf32>
    %201 = vector.broadcast %200 : vector<8x1xf32> to vector<8x32xf32>
    %202 = arith.mulf %197, %201 : vector<8x32xf32>
    %203 = vector.broadcast %181 : vector<1x32xf32> to vector<8x32xf32>
    %204 = arith.mulf %202, %203 : vector<8x32xf32>
    %205 = vector.broadcast %182 : vector<1x32xf32> to vector<8x32xf32>
    %206 = arith.addf %204, %205 : vector<8x32xf32>
    %c0_69 = arith.constant 0 : index
    %c0_70 = arith.constant 0 : index
    %c0_71 = arith.constant 0 : index
    %207 = vector.load %arg15[%c0_69, %c0_70, %c0_71] : memref<1x8x32xf32, #tpu.memory_space<vmem>>, vector<1x8x32xf32>
    %208 = vector.shape_cast %207 : vector<1x8x32xf32> to vector<8x32xf32>
    %209 = vector.shape_cast %206 : vector<8x32xf32> to vector<1x8x32xf32>
    tpu.vector_store %arg15[%c0_69, %c0_70, %c0_71], %209 {strides = array<i32>} : memref<1x8x32xf32, #tpu.memory_space<vmem>>, vector<1x8x32xf32>,
    return
  }
  func.func @transform_0(%arg0: i32) -> (i32, i32, i32) {
    %c0_i32 = arith.constant 0 : i32
    %c0_i32_0 = arith.constant 0 : i32
    %c0_i32_1 = arith.constant 0 : i32
    return %arg0, %c0_i32, %c0_i32_0 : i32, i32, i32
  }
  func.func @transform_1(%arg0: i32) -> (i32, i32, i32) {
    %c0_i32 = arith.constant 0 : i32
    %c0_i32_0 = arith.constant 0 : i32
    %c0_i32_1 = arith.constant 0 : i32
    return %arg0, %c0_i32, %c0_i32_0 : i32, i32, i32
  }
  func.func @transform_2(%arg0: i32) -> (i32, i32) {
    %c0_i32 = arith.constant 0 : i32
    %c0_i32_0 = arith.constant 0 : i32
    %c0_i32_1 = arith.constant 0 : i32
    return %c0_i32, %c0_i32_0 : i32, i32
  }
  func.func @transform_3(%arg0: i32) -> (i32, i32) {
    %c0_i32 = arith.constant 0 : i32
    %c0_i32_0 = arith.constant 0 : i32
    %c0_i32_1 = arith.constant 0 : i32
    return %c0_i32, %c0_i32_0 : i32, i32
  }
  func.func @transform_4(%arg0: i32) -> (i32, i32) {
    %c0_i32 = arith.constant 0 : i32
    %c0_i32_0 = arith.constant 0 : i32
    %c0_i32_1 = arith.constant 0 : i32
    return %c0_i32, %c0_i32_0 : i32, i32
  }
  func.func @transform_5(%arg0: i32) -> (i32, i32) {
    %c0_i32 = arith.constant 0 : i32
    %c0_i32_0 = arith.constant 0 : i32
    %c0_i32_1 = arith.constant 0 : i32
    return %c0_i32, %c0_i32_0 : i32, i32
  }
  func.func @transform_6(%arg0: i32) -> (i32, i32) {
    %c0_i32 = arith.constant 0 : i32
    %c0_i32_0 = arith.constant 0 : i32
    %c0_i32_1 = arith.constant 0 : i32
    return %c0_i32, %c0_i32_0 : i32, i32
  }
  func.func @transform_7(%arg0: i32) -> (i32, i32) {
    %c0_i32 = arith.constant 0 : i32
    %c0_i32_0 = arith.constant 0 : i32
    %c0_i32_1 = arith.constant 0 : i32
    return %c0_i32, %c0_i32_0 : i32, i32
  }
  func.func @transform_8(%arg0: i32) -> (i32, i32) {
    %c0_i32 = arith.constant 0 : i32
    %c0_i32_0 = arith.constant 0 : i32
    %c0_i32_1 = arith.constant 0 : i32
    return %c0_i32, %c0_i32_0 : i32, i32
  }
  func.func @transform_9(%arg0: i32) -> (i32, i32) {
    %c0_i32 = arith.constant 0 : i32
    %c0_i32_0 = arith.constant 0 : i32
    %c0_i32_1 = arith.constant 0 : i32
    return %c0_i32, %c0_i32_0 : i32, i32
  }
  func.func @transform_10(%arg0: i32) -> (i32, i32) {
    %c0_i32 = arith.constant 0 : i32
    %c0_i32_0 = arith.constant 0 : i32
    %c0_i32_1 = arith.constant 0 : i32
    return %c0_i32, %c0_i32_0 : i32, i32
  }
  func.func @transform_11(%arg0: i32) -> (i32, i32) {
    %c0_i32 = arith.constant 0 : i32
    %c0_i32_0 = arith.constant 0 : i32
    %c0_i32_1 = arith.constant 0 : i32
    return %c0_i32, %c0_i32_0 : i32, i32
  }
  func.func @transform_12(%arg0: i32) -> (i32, i32) {
    %c0_i32 = arith.constant 0 : i32
    %c0_i32_0 = arith.constant 0 : i32
    %c0_i32_1 = arith.constant 0 : i32
    return %c0_i32, %c0_i32_0 : i32, i32
  }
  func.func @transform_13(%arg0: i32) -> (i32, i32) {
    %c0_i32 = arith.constant 0 : i32
    %c0_i32_0 = arith.constant 0 : i32
    %c0_i32_1 = arith.constant 0 : i32
    return %c0_i32, %c0_i32_0 : i32, i32
  }
  func.func @transform_14(%arg0: i32) -> (i32, i32, i32) {
    %c0_i32 = arith.constant 0 : i32
    %c0_i32_0 = arith.constant 0 : i32
    %c0_i32_1 = arith.constant 0 : i32
    return %arg0, %c0_i32, %c0_i32_0 : i32, i32, i32
  }
}

module attributes {stable_mosaic.version = 11 : i64} {
  func.func @_conv_stage_kernel(%arg0: i32, %arg1: memref<1x256x27xf32, #tpu.memory_space<vmem>>, %arg2: memref<27x16xf32, #tpu.memory_space<vmem>>, %arg3: memref<1x16xf32, #tpu.memory_space<vmem>>, %arg4: memref<1x1x32xf32, #tpu.memory_space<vmem>>, %arg5: memref<32x16xf32, #tpu.memory_space<vmem>>, %arg6: memref<1x16xf32, #tpu.memory_space<vmem>>, %arg7: memref<1x256x16xf32, #tpu.memory_space<vmem>>) attributes {dimension_semantics = [#tpu.dimension_semantics<parallel>], iteration_bounds = array<i64: 2>, scalar_prefetch = 0 : i64, scratch_operands = 0 : i64, tpu.core_type = #tpu.core_type<tc>, window_params = [{transform_indices = @transform_0, window_bounds = array<i64: 1, 256, 27>}, {pipeline_mode = #tpu.pipeline_mode<synchronous>, transform_indices = @transform_1, window_bounds = array<i64: 27, 16>}, {pipeline_mode = #tpu.pipeline_mode<synchronous>, transform_indices = @transform_2, window_bounds = array<i64: 1, 16>}, {transform_indices = @transform_3, window_bounds = array<i64: 1, 1, 32>}, {pipeline_mode = #tpu.pipeline_mode<synchronous>, transform_indices = @transform_4, window_bounds = array<i64: 32, 16>}, {pipeline_mode = #tpu.pipeline_mode<synchronous>, transform_indices = @transform_5, window_bounds = array<i64: 1, 16>}, {transform_indices = @transform_6, window_bounds = array<i64: 1, 256, 16>}]} {
    %c0 = arith.constant 0 : index
    %c0_0 = arith.constant 0 : index
    %c0_1 = arith.constant 0 : index
    %0 = vector.load %arg1[%c0, %c0_0, %c0_1] : memref<1x256x27xf32, #tpu.memory_space<vmem>>, vector<1x256x27xf32>
    %1 = vector.shape_cast %0 : vector<1x256x27xf32> to vector<256x27xf32>
    %c0_2 = arith.constant 0 : index
    %c0_3 = arith.constant 0 : index
    %2 = vector.load %arg2[%c0_2, %c0_3] : memref<27x16xf32, #tpu.memory_space<vmem>>, vector<27x16xf32>
    %3 = arith.truncf %1 : vector<256x27xf32> to vector<256x27xbf16>
    %4 = arith.truncf %2 : vector<27x16xf32> to vector<27x16xbf16>
    %cst = arith.constant dense<0.000000e+00> : vector<256x16xf32>
    %5 = tpu.matmul %3, %4, %cst {dimension_numbers = #tpu.dot_dimension_numbers<[1], [0], [0], [1], [0, 0, 1, 1], [], []>} : vector<256x27xbf16>, vector<27x16xbf16>, vector<256x16xf32> -> vector<256x16xf32>
    %c0_4 = arith.constant 0 : index
    %c0_5 = arith.constant 0 : index
    %6 = vector.load %arg3[%c0_4, %c0_5] : memref<1x16xf32, #tpu.memory_space<vmem>>, vector<1x16xf32>
    %7 = vector.broadcast %6 : vector<1x16xf32> to vector<256x16xf32>
    %8 = arith.addf %5, %7 : vector<256x16xf32>
    %cst_6 = arith.constant 0.000000e+00 : f32
    %9 = vector.broadcast %cst_6 : f32 to vector<256x16xf32>
    %10 = arith.maximumf %8, %9 : vector<256x16xf32>
    %c0_7 = arith.constant 0 : index
    %c0_8 = arith.constant 0 : index
    %c0_9 = arith.constant 0 : index
    %11 = vector.load %arg4[%c0_7, %c0_8, %c0_9] : memref<1x1x32xf32, #tpu.memory_space<vmem>>, vector<1x1x32xf32>
    %12 = vector.shape_cast %11 : vector<1x1x32xf32> to vector<1x32xf32>
    %c0_10 = arith.constant 0 : index
    %c0_11 = arith.constant 0 : index
    %13 = vector.load %arg5[%c0_10, %c0_11] : memref<32x16xf32, #tpu.memory_space<vmem>>, vector<32x16xf32>
    %14 = arith.truncf %12 : vector<1x32xf32> to vector<1x32xbf16>
    %15 = arith.truncf %13 : vector<32x16xf32> to vector<32x16xbf16>
    %cst_12 = arith.constant dense<0.000000e+00> : vector<1x16xf32>
    %16 = tpu.matmul %14, %15, %cst_12 {dimension_numbers = #tpu.dot_dimension_numbers<[1], [0], [0], [1], [0, 0, 1, 1], [], []>} : vector<1x32xbf16>, vector<32x16xbf16>, vector<1x16xf32> -> vector<1x16xf32>
    %c0_13 = arith.constant 0 : index
    %c0_14 = arith.constant 0 : index
    %17 = vector.load %arg6[%c0_13, %c0_14] : memref<1x16xf32, #tpu.memory_space<vmem>>, vector<1x16xf32>
    %18 = arith.addf %16, %17 : vector<1x16xf32>
    %cst_15 = arith.constant 0.000000e+00 : f32
    %19 = vector.broadcast %cst_15 : f32 to vector<1x16xf32>
    %20 = arith.subf %19, %18 : vector<1x16xf32>
    %21 = math.exp %20 : vector<1x16xf32>
    %cst_16 = arith.constant 1.000000e+00 : f32
    %22 = vector.broadcast %cst_16 : f32 to vector<1x16xf32>
    %23 = arith.addf %22, %21 : vector<1x16xf32>
    %24 = tpu.reciprocal %23 {approx = true} : vector<1x16xf32> -> vector<1x16xf32>
    %25 = vector.broadcast %24 : vector<1x16xf32> to vector<256x16xf32>
    %26 = arith.mulf %10, %25 : vector<256x16xf32>
    %c0_17 = arith.constant 0 : index
    %c0_18 = arith.constant 0 : index
    %c0_19 = arith.constant 0 : index
    %27 = vector.load %arg7[%c0_17, %c0_18, %c0_19] : memref<1x256x16xf32, #tpu.memory_space<vmem>>, vector<1x256x16xf32>
    %28 = vector.shape_cast %27 : vector<1x256x16xf32> to vector<256x16xf32>
    %29 = vector.shape_cast %26 : vector<256x16xf32> to vector<1x256x16xf32>
    tpu.vector_store %arg7[%c0_17, %c0_18, %c0_19], %29 {strides = array<i32>} : memref<1x256x16xf32, #tpu.memory_space<vmem>>, vector<1x256x16xf32>,
    return
  }
  func.func @transform_0(%arg0: i32) -> (i32, i32, i32) {
    %c0_i32 = arith.constant 0 : i32
    %c0_i32_0 = arith.constant 0 : i32
    %c0_i32_1 = arith.constant 0 : i32
    return %arg0, %c0_i32, %c0_i32_0 : i32, i32, i32
  }
  func.func @transform_1(%arg0: i32) -> (i32, i32) {
    %c0_i32 = arith.constant 0 : i32
    %c0_i32_0 = arith.constant 0 : i32
    %c0_i32_1 = arith.constant 0 : i32
    return %c0_i32, %c0_i32_0 : i32, i32
  }
  func.func @transform_2(%arg0: i32) -> (i32, i32) {
    %c0_i32 = arith.constant 0 : i32
    %c0_i32_0 = arith.constant 0 : i32
    %c0_i32_1 = arith.constant 0 : i32
    return %c0_i32, %c0_i32_0 : i32, i32
  }
  func.func @transform_3(%arg0: i32) -> (i32, i32, i32) {
    %c0_i32 = arith.constant 0 : i32
    %c0_i32_0 = arith.constant 0 : i32
    %c0_i32_1 = arith.constant 0 : i32
    return %arg0, %c0_i32, %c0_i32_0 : i32, i32, i32
  }
  func.func @transform_4(%arg0: i32) -> (i32, i32) {
    %c0_i32 = arith.constant 0 : i32
    %c0_i32_0 = arith.constant 0 : i32
    %c0_i32_1 = arith.constant 0 : i32
    return %c0_i32, %c0_i32_0 : i32, i32
  }
  func.func @transform_5(%arg0: i32) -> (i32, i32) {
    %c0_i32 = arith.constant 0 : i32
    %c0_i32_0 = arith.constant 0 : i32
    %c0_i32_1 = arith.constant 0 : i32
    return %c0_i32, %c0_i32_0 : i32, i32
  }
  func.func @transform_6(%arg0: i32) -> (i32, i32, i32) {
    %c0_i32 = arith.constant 0 : i32
    %c0_i32_0 = arith.constant 0 : i32
    %c0_i32_1 = arith.constant 0 : i32
    return %arg0, %c0_i32, %c0_i32_0 : i32, i32, i32
  }
}

module attributes {stable_mosaic.version = 11 : i64} {
  func.func @_pool_kernel(%arg0: i32, %arg1: memref<2x8x32xf32, #tpu.memory_space<vmem>>, %arg2: memref<2x8x1xf32, #tpu.memory_space<vmem>>, %arg3: memref<2x32xf32, #tpu.memory_space<vmem>>) attributes {dimension_semantics = [#tpu.dimension_semantics<arbitrary>], iteration_bounds = array<i64: 1>, scalar_prefetch = 0 : i64, scratch_operands = 0 : i64, tpu.core_type = #tpu.core_type<tc>, window_params = [{pipeline_mode = #tpu.pipeline_mode<synchronous>, transform_indices = @transform_0, window_bounds = array<i64: 2, 8, 32>}, {pipeline_mode = #tpu.pipeline_mode<synchronous>, transform_indices = @transform_1, window_bounds = array<i64: 2, 8, 1>}, {pipeline_mode = #tpu.pipeline_mode<synchronous>, transform_indices = @transform_2, window_bounds = array<i64: 2, 32>}]} {
    %c0 = arith.constant 0 : index
    %c0_0 = arith.constant 0 : index
    %c0_1 = arith.constant 0 : index
    %0 = vector.load %arg1[%c0, %c0_0, %c0_1] : memref<2x8x32xf32, #tpu.memory_space<vmem>>, vector<2x8x32xf32>
    %c0_2 = arith.constant 0 : index
    %c0_3 = arith.constant 0 : index
    %c0_4 = arith.constant 0 : index
    %1 = vector.load %arg2[%c0_2, %c0_3, %c0_4] : memref<2x8x1xf32, #tpu.memory_space<vmem>>, vector<2x8x1xf32>
    %2 = vector.broadcast %1 : vector<2x8x1xf32> to vector<2x8x32xf32>
    %3 = arith.mulf %0, %2 : vector<2x8x32xf32>
    %cst = arith.constant dense<0.000000e+00> : vector<2x32xf32>
    %4 = vector.multi_reduction <add>, %3, %cst [1] : vector<2x8x32xf32> to vector<2x32xf32>
    %cst_5 = arith.constant dense<0.000000e+00> : vector<2x1xf32>
    %5 = vector.multi_reduction <add>, %1, %cst_5 [1] : vector<2x8x1xf32> to vector<2x1xf32>
    %cst_6 = arith.constant 1.000000e+00 : f32
    %6 = vector.broadcast %cst_6 : f32 to vector<2x1xf32>
    %7 = arith.maximumf %5, %6 : vector<2x1xf32>
    %8 = tpu.reciprocal %7 {approx = true} : vector<2x1xf32> -> vector<2x1xf32>
    %9 = vector.broadcast %8 : vector<2x1xf32> to vector<2x32xf32>
    %10 = arith.mulf %4, %9 : vector<2x32xf32>
    %c0_7 = arith.constant 0 : index
    %c0_8 = arith.constant 0 : index
    %11 = vector.load %arg3[%c0_7, %c0_8] : memref<2x32xf32, #tpu.memory_space<vmem>>, vector<2x32xf32>
    tpu.vector_store %arg3[%c0_7, %c0_8], %10 {strides = array<i32>} : memref<2x32xf32, #tpu.memory_space<vmem>>, vector<2x32xf32>,
    return
  }
  func.func @transform_0(%arg0: i32) -> (i32, i32, i32) {
    %c0_i32 = arith.constant 0 : i32
    %c0_i32_0 = arith.constant 0 : i32
    %c0_i32_1 = arith.constant 0 : i32
    %c0_i32_2 = arith.constant 0 : i32
    return %c0_i32, %c0_i32_0, %c0_i32_1 : i32, i32, i32
  }
  func.func @transform_1(%arg0: i32) -> (i32, i32, i32) {
    %c0_i32 = arith.constant 0 : i32
    %c0_i32_0 = arith.constant 0 : i32
    %c0_i32_1 = arith.constant 0 : i32
    %c0_i32_2 = arith.constant 0 : i32
    return %c0_i32, %c0_i32_0, %c0_i32_1 : i32, i32, i32
  }
  func.func @transform_2(%arg0: i32) -> (i32, i32) {
    %c0_i32 = arith.constant 0 : i32
    %c0_i32_0 = arith.constant 0 : i32
    %c0_i32_1 = arith.constant 0 : i32
    return %c0_i32, %c0_i32_0 : i32, i32
  }
}

module attributes {stable_mosaic.version = 11 : i64} {
  func.func @_conv_stage_kernel(%arg0: i32, %arg1: memref<1x64x144xf32, #tpu.memory_space<vmem>>, %arg2: memref<144x32xf32, #tpu.memory_space<vmem>>, %arg3: memref<1x32xf32, #tpu.memory_space<vmem>>, %arg4: memref<1x1x32xf32, #tpu.memory_space<vmem>>, %arg5: memref<32x32xf32, #tpu.memory_space<vmem>>, %arg6: memref<1x32xf32, #tpu.memory_space<vmem>>, %arg7: memref<1x64x32xf32, #tpu.memory_space<vmem>>) attributes {dimension_semantics = [#tpu.dimension_semantics<parallel>], iteration_bounds = array<i64: 2>, scalar_prefetch = 0 : i64, scratch_operands = 0 : i64, tpu.core_type = #tpu.core_type<tc>, window_params = [{transform_indices = @transform_0, window_bounds = array<i64: 1, 64, 144>}, {pipeline_mode = #tpu.pipeline_mode<synchronous>, transform_indices = @transform_1, window_bounds = array<i64: 144, 32>}, {pipeline_mode = #tpu.pipeline_mode<synchronous>, transform_indices = @transform_2, window_bounds = array<i64: 1, 32>}, {transform_indices = @transform_3, window_bounds = array<i64: 1, 1, 32>}, {pipeline_mode = #tpu.pipeline_mode<synchronous>, transform_indices = @transform_4, window_bounds = array<i64: 32, 32>}, {pipeline_mode = #tpu.pipeline_mode<synchronous>, transform_indices = @transform_5, window_bounds = array<i64: 1, 32>}, {transform_indices = @transform_6, window_bounds = array<i64: 1, 64, 32>}]} {
    %c0 = arith.constant 0 : index
    %c0_0 = arith.constant 0 : index
    %c0_1 = arith.constant 0 : index
    %0 = vector.load %arg1[%c0, %c0_0, %c0_1] : memref<1x64x144xf32, #tpu.memory_space<vmem>>, vector<1x64x144xf32>
    %1 = vector.shape_cast %0 : vector<1x64x144xf32> to vector<64x144xf32>
    %c0_2 = arith.constant 0 : index
    %c0_3 = arith.constant 0 : index
    %2 = vector.load %arg2[%c0_2, %c0_3] : memref<144x32xf32, #tpu.memory_space<vmem>>, vector<144x32xf32>
    %3 = arith.truncf %1 : vector<64x144xf32> to vector<64x144xbf16>
    %4 = arith.truncf %2 : vector<144x32xf32> to vector<144x32xbf16>
    %cst = arith.constant dense<0.000000e+00> : vector<64x32xf32>
    %5 = tpu.matmul %3, %4, %cst {dimension_numbers = #tpu.dot_dimension_numbers<[1], [0], [0], [1], [0, 0, 1, 1], [], []>} : vector<64x144xbf16>, vector<144x32xbf16>, vector<64x32xf32> -> vector<64x32xf32>
    %c0_4 = arith.constant 0 : index
    %c0_5 = arith.constant 0 : index
    %6 = vector.load %arg3[%c0_4, %c0_5] : memref<1x32xf32, #tpu.memory_space<vmem>>, vector<1x32xf32>
    %7 = vector.broadcast %6 : vector<1x32xf32> to vector<64x32xf32>
    %8 = arith.addf %5, %7 : vector<64x32xf32>
    %cst_6 = arith.constant 0.000000e+00 : f32
    %9 = vector.broadcast %cst_6 : f32 to vector<64x32xf32>
    %10 = arith.maximumf %8, %9 : vector<64x32xf32>
    %c0_7 = arith.constant 0 : index
    %c0_8 = arith.constant 0 : index
    %c0_9 = arith.constant 0 : index
    %11 = vector.load %arg4[%c0_7, %c0_8, %c0_9] : memref<1x1x32xf32, #tpu.memory_space<vmem>>, vector<1x1x32xf32>
    %12 = vector.shape_cast %11 : vector<1x1x32xf32> to vector<1x32xf32>
    %c0_10 = arith.constant 0 : index
    %c0_11 = arith.constant 0 : index
    %13 = vector.load %arg5[%c0_10, %c0_11] : memref<32x32xf32, #tpu.memory_space<vmem>>, vector<32x32xf32>
    %14 = arith.truncf %12 : vector<1x32xf32> to vector<1x32xbf16>
    %15 = arith.truncf %13 : vector<32x32xf32> to vector<32x32xbf16>
    %cst_12 = arith.constant dense<0.000000e+00> : vector<1x32xf32>
    %16 = tpu.matmul %14, %15, %cst_12 {dimension_numbers = #tpu.dot_dimension_numbers<[1], [0], [0], [1], [0, 0, 1, 1], [], []>} : vector<1x32xbf16>, vector<32x32xbf16>, vector<1x32xf32> -> vector<1x32xf32>
    %c0_13 = arith.constant 0 : index
    %c0_14 = arith.constant 0 : index
    %17 = vector.load %arg6[%c0_13, %c0_14] : memref<1x32xf32, #tpu.memory_space<vmem>>, vector<1x32xf32>
    %18 = arith.addf %16, %17 : vector<1x32xf32>
    %cst_15 = arith.constant 0.000000e+00 : f32
    %19 = vector.broadcast %cst_15 : f32 to vector<1x32xf32>
    %20 = arith.subf %19, %18 : vector<1x32xf32>
    %21 = math.exp %20 : vector<1x32xf32>
    %cst_16 = arith.constant 1.000000e+00 : f32
    %22 = vector.broadcast %cst_16 : f32 to vector<1x32xf32>
    %23 = arith.addf %22, %21 : vector<1x32xf32>
    %24 = tpu.reciprocal %23 {approx = true} : vector<1x32xf32> -> vector<1x32xf32>
    %25 = vector.broadcast %24 : vector<1x32xf32> to vector<64x32xf32>
    %26 = arith.mulf %10, %25 : vector<64x32xf32>
    %c0_17 = arith.constant 0 : index
    %c0_18 = arith.constant 0 : index
    %c0_19 = arith.constant 0 : index
    %27 = vector.load %arg7[%c0_17, %c0_18, %c0_19] : memref<1x64x32xf32, #tpu.memory_space<vmem>>, vector<1x64x32xf32>
    %28 = vector.shape_cast %27 : vector<1x64x32xf32> to vector<64x32xf32>
    %29 = vector.shape_cast %26 : vector<64x32xf32> to vector<1x64x32xf32>
    tpu.vector_store %arg7[%c0_17, %c0_18, %c0_19], %29 {strides = array<i32>} : memref<1x64x32xf32, #tpu.memory_space<vmem>>, vector<1x64x32xf32>,
    return
  }
  func.func @transform_0(%arg0: i32) -> (i32, i32, i32) {
    %c0_i32 = arith.constant 0 : i32
    %c0_i32_0 = arith.constant 0 : i32
    %c0_i32_1 = arith.constant 0 : i32
    return %arg0, %c0_i32, %c0_i32_0 : i32, i32, i32
  }
  func.func @transform_1(%arg0: i32) -> (i32, i32) {
    %c0_i32 = arith.constant 0 : i32
    %c0_i32_0 = arith.constant 0 : i32
    %c0_i32_1 = arith.constant 0 : i32
    return %c0_i32, %c0_i32_0 : i32, i32
  }
  func.func @transform_2(%arg0: i32) -> (i32, i32) {
    %c0_i32 = arith.constant 0 : i32
    %c0_i32_0 = arith.constant 0 : i32
    %c0_i32_1 = arith.constant 0 : i32
    return %c0_i32, %c0_i32_0 : i32, i32
  }
  func.func @transform_3(%arg0: i32) -> (i32, i32, i32) {
    %c0_i32 = arith.constant 0 : i32
    %c0_i32_0 = arith.constant 0 : i32
    %c0_i32_1 = arith.constant 0 : i32
    return %arg0, %c0_i32, %c0_i32_0 : i32, i32, i32
  }
  func.func @transform_4(%arg0: i32) -> (i32, i32) {
    %c0_i32 = arith.constant 0 : i32
    %c0_i32_0 = arith.constant 0 : i32
    %c0_i32_1 = arith.constant 0 : i32
    return %c0_i32, %c0_i32_0 : i32, i32
  }
  func.func @transform_5(%arg0: i32) -> (i32, i32) {
    %c0_i32 = arith.constant 0 : i32
    %c0_i32_0 = arith.constant 0 : i32
    %c0_i32_1 = arith.constant 0 : i32
    return %c0_i32, %c0_i32_0 : i32, i32
  }
  func.func @transform_6(%arg0: i32) -> (i32, i32, i32) {
    %c0_i32 = arith.constant 0 : i32
    %c0_i32_0 = arith.constant 0 : i32
    %c0_i32_1 = arith.constant 0 : i32
    return %arg0, %c0_i32, %c0_i32_0 : i32, i32, i32
  }
}

module attributes {stable_mosaic.version = 11 : i64} {
  func.func @_conv_stage_kernel(%arg0: i32, %arg1: memref<1x16x288xf32, #tpu.memory_space<vmem>>, %arg2: memref<288x64xf32, #tpu.memory_space<vmem>>, %arg3: memref<1x64xf32, #tpu.memory_space<vmem>>, %arg4: memref<1x1x32xf32, #tpu.memory_space<vmem>>, %arg5: memref<32x64xf32, #tpu.memory_space<vmem>>, %arg6: memref<1x64xf32, #tpu.memory_space<vmem>>, %arg7: memref<1x16x64xf32, #tpu.memory_space<vmem>>) attributes {dimension_semantics = [#tpu.dimension_semantics<parallel>], iteration_bounds = array<i64: 2>, scalar_prefetch = 0 : i64, scratch_operands = 0 : i64, tpu.core_type = #tpu.core_type<tc>, window_params = [{transform_indices = @transform_0, window_bounds = array<i64: 1, 16, 288>}, {pipeline_mode = #tpu.pipeline_mode<synchronous>, transform_indices = @transform_1, window_bounds = array<i64: 288, 64>}, {pipeline_mode = #tpu.pipeline_mode<synchronous>, transform_indices = @transform_2, window_bounds = array<i64: 1, 64>}, {transform_indices = @transform_3, window_bounds = array<i64: 1, 1, 32>}, {pipeline_mode = #tpu.pipeline_mode<synchronous>, transform_indices = @transform_4, window_bounds = array<i64: 32, 64>}, {pipeline_mode = #tpu.pipeline_mode<synchronous>, transform_indices = @transform_5, window_bounds = array<i64: 1, 64>}, {transform_indices = @transform_6, window_bounds = array<i64: 1, 16, 64>}]} {
    %c0 = arith.constant 0 : index
    %c0_0 = arith.constant 0 : index
    %c0_1 = arith.constant 0 : index
    %0 = vector.load %arg1[%c0, %c0_0, %c0_1] : memref<1x16x288xf32, #tpu.memory_space<vmem>>, vector<1x16x288xf32>
    %1 = vector.shape_cast %0 : vector<1x16x288xf32> to vector<16x288xf32>
    %c0_2 = arith.constant 0 : index
    %c0_3 = arith.constant 0 : index
    %2 = vector.load %arg2[%c0_2, %c0_3] : memref<288x64xf32, #tpu.memory_space<vmem>>, vector<288x64xf32>
    %3 = arith.truncf %1 : vector<16x288xf32> to vector<16x288xbf16>
    %4 = arith.truncf %2 : vector<288x64xf32> to vector<288x64xbf16>
    %cst = arith.constant dense<0.000000e+00> : vector<16x64xf32>
    %5 = tpu.matmul %3, %4, %cst {dimension_numbers = #tpu.dot_dimension_numbers<[1], [0], [0], [1], [0, 0, 1, 1], [], []>} : vector<16x288xbf16>, vector<288x64xbf16>, vector<16x64xf32> -> vector<16x64xf32>
    %c0_4 = arith.constant 0 : index
    %c0_5 = arith.constant 0 : index
    %6 = vector.load %arg3[%c0_4, %c0_5] : memref<1x64xf32, #tpu.memory_space<vmem>>, vector<1x64xf32>
    %7 = vector.broadcast %6 : vector<1x64xf32> to vector<16x64xf32>
    %8 = arith.addf %5, %7 : vector<16x64xf32>
    %cst_6 = arith.constant 0.000000e+00 : f32
    %9 = vector.broadcast %cst_6 : f32 to vector<16x64xf32>
    %10 = arith.maximumf %8, %9 : vector<16x64xf32>
    %c0_7 = arith.constant 0 : index
    %c0_8 = arith.constant 0 : index
    %c0_9 = arith.constant 0 : index
    %11 = vector.load %arg4[%c0_7, %c0_8, %c0_9] : memref<1x1x32xf32, #tpu.memory_space<vmem>>, vector<1x1x32xf32>
    %12 = vector.shape_cast %11 : vector<1x1x32xf32> to vector<1x32xf32>
    %c0_10 = arith.constant 0 : index
    %c0_11 = arith.constant 0 : index
    %13 = vector.load %arg5[%c0_10, %c0_11] : memref<32x64xf32, #tpu.memory_space<vmem>>, vector<32x64xf32>
    %14 = arith.truncf %12 : vector<1x32xf32> to vector<1x32xbf16>
    %15 = arith.truncf %13 : vector<32x64xf32> to vector<32x64xbf16>
    %cst_12 = arith.constant dense<0.000000e+00> : vector<1x64xf32>
    %16 = tpu.matmul %14, %15, %cst_12 {dimension_numbers = #tpu.dot_dimension_numbers<[1], [0], [0], [1], [0, 0, 1, 1], [], []>} : vector<1x32xbf16>, vector<32x64xbf16>, vector<1x64xf32> -> vector<1x64xf32>
    %c0_13 = arith.constant 0 : index
    %c0_14 = arith.constant 0 : index
    %17 = vector.load %arg6[%c0_13, %c0_14] : memref<1x64xf32, #tpu.memory_space<vmem>>, vector<1x64xf32>
    %18 = arith.addf %16, %17 : vector<1x64xf32>
    %cst_15 = arith.constant 0.000000e+00 : f32
    %19 = vector.broadcast %cst_15 : f32 to vector<1x64xf32>
    %20 = arith.subf %19, %18 : vector<1x64xf32>
    %21 = math.exp %20 : vector<1x64xf32>
    %cst_16 = arith.constant 1.000000e+00 : f32
    %22 = vector.broadcast %cst_16 : f32 to vector<1x64xf32>
    %23 = arith.addf %22, %21 : vector<1x64xf32>
    %24 = tpu.reciprocal %23 {approx = true} : vector<1x64xf32> -> vector<1x64xf32>
    %25 = vector.broadcast %24 : vector<1x64xf32> to vector<16x64xf32>
    %26 = arith.mulf %10, %25 : vector<16x64xf32>
    %c0_17 = arith.constant 0 : index
    %c0_18 = arith.constant 0 : index
    %c0_19 = arith.constant 0 : index
    %27 = vector.load %arg7[%c0_17, %c0_18, %c0_19] : memref<1x16x64xf32, #tpu.memory_space<vmem>>, vector<1x16x64xf32>
    %28 = vector.shape_cast %27 : vector<1x16x64xf32> to vector<16x64xf32>
    %29 = vector.shape_cast %26 : vector<16x64xf32> to vector<1x16x64xf32>
    tpu.vector_store %arg7[%c0_17, %c0_18, %c0_19], %29 {strides = array<i32>} : memref<1x16x64xf32, #tpu.memory_space<vmem>>, vector<1x16x64xf32>,
    return
  }
  func.func @transform_0(%arg0: i32) -> (i32, i32, i32) {
    %c0_i32 = arith.constant 0 : i32
    %c0_i32_0 = arith.constant 0 : i32
    %c0_i32_1 = arith.constant 0 : i32
    return %arg0, %c0_i32, %c0_i32_0 : i32, i32, i32
  }
  func.func @transform_1(%arg0: i32) -> (i32, i32) {
    %c0_i32 = arith.constant 0 : i32
    %c0_i32_0 = arith.constant 0 : i32
    %c0_i32_1 = arith.constant 0 : i32
    return %c0_i32, %c0_i32_0 : i32, i32
  }
  func.func @transform_2(%arg0: i32) -> (i32, i32) {
    %c0_i32 = arith.constant 0 : i32
    %c0_i32_0 = arith.constant 0 : i32
    %c0_i32_1 = arith.constant 0 : i32
    return %c0_i32, %c0_i32_0 : i32, i32
  }
  func.func @transform_3(%arg0: i32) -> (i32, i32, i32) {
    %c0_i32 = arith.constant 0 : i32
    %c0_i32_0 = arith.constant 0 : i32
    %c0_i32_1 = arith.constant 0 : i32
    return %arg0, %c0_i32, %c0_i32_0 : i32, i32, i32
  }
  func.func @transform_4(%arg0: i32) -> (i32, i32) {
    %c0_i32 = arith.constant 0 : i32
    %c0_i32_0 = arith.constant 0 : i32
    %c0_i32_1 = arith.constant 0 : i32
    return %c0_i32, %c0_i32_0 : i32, i32
  }
  func.func @transform_5(%arg0: i32) -> (i32, i32) {
    %c0_i32 = arith.constant 0 : i32
    %c0_i32_0 = arith.constant 0 : i32
    %c0_i32_1 = arith.constant 0 : i32
    return %c0_i32, %c0_i32_0 : i32, i32
  }
  func.func @transform_6(%arg0: i32) -> (i32, i32, i32) {
    %c0_i32 = arith.constant 0 : i32
    %c0_i32_0 = arith.constant 0 : i32
    %c0_i32_1 = arith.constant 0 : i32
    return %arg0, %c0_i32, %c0_i32_0 : i32, i32, i32
  }
}

module attributes {stable_mosaic.version = 11 : i64} {
  func.func @_mm_relu_res_kernel(%arg0: i32, %arg1: memref<1x64x64xf32, #tpu.memory_space<vmem>>, %arg2: memref<64x32xf32, #tpu.memory_space<vmem>>, %arg3: memref<1x32xf32, #tpu.memory_space<vmem>>, %arg4: memref<1x64x32xf32, #tpu.memory_space<vmem>>, %arg5: memref<1x64x32xf32, #tpu.memory_space<vmem>>) attributes {dimension_semantics = [#tpu.dimension_semantics<parallel>], iteration_bounds = array<i64: 2>, scalar_prefetch = 0 : i64, scratch_operands = 0 : i64, tpu.core_type = #tpu.core_type<tc>, window_params = [{transform_indices = @transform_0, window_bounds = array<i64: 1, 64, 64>}, {pipeline_mode = #tpu.pipeline_mode<synchronous>, transform_indices = @transform_1, window_bounds = array<i64: 64, 32>}, {pipeline_mode = #tpu.pipeline_mode<synchronous>, transform_indices = @transform_2, window_bounds = array<i64: 1, 32>}, {transform_indices = @transform_3, window_bounds = array<i64: 1, 64, 32>}, {transform_indices = @transform_4, window_bounds = array<i64: 1, 64, 32>}]} {
    %c0 = arith.constant 0 : index
    %c0_0 = arith.constant 0 : index
    %c0_1 = arith.constant 0 : index
    %0 = vector.load %arg1[%c0, %c0_0, %c0_1] : memref<1x64x64xf32, #tpu.memory_space<vmem>>, vector<1x64x64xf32>
    %1 = vector.shape_cast %0 : vector<1x64x64xf32> to vector<64x64xf32>
    %c0_2 = arith.constant 0 : index
    %c0_3 = arith.constant 0 : index
    %2 = vector.load %arg2[%c0_2, %c0_3] : memref<64x32xf32, #tpu.memory_space<vmem>>, vector<64x32xf32>
    %3 = arith.truncf %1 : vector<64x64xf32> to vector<64x64xbf16>
    %4 = arith.truncf %2 : vector<64x32xf32> to vector<64x32xbf16>
    %cst = arith.constant dense<0.000000e+00> : vector<64x32xf32>
    %5 = tpu.matmul %3, %4, %cst {dimension_numbers = #tpu.dot_dimension_numbers<[1], [0], [0], [1], [0, 0, 1, 1], [], []>} : vector<64x64xbf16>, vector<64x32xbf16>, vector<64x32xf32> -> vector<64x32xf32>
    %c0_4 = arith.constant 0 : index
    %c0_5 = arith.constant 0 : index
    %6 = vector.load %arg3[%c0_4, %c0_5] : memref<1x32xf32, #tpu.memory_space<vmem>>, vector<1x32xf32>
    %7 = vector.broadcast %6 : vector<1x32xf32> to vector<64x32xf32>
    %8 = arith.addf %5, %7 : vector<64x32xf32>
    %cst_6 = arith.constant 0.000000e+00 : f32
    %9 = vector.broadcast %cst_6 : f32 to vector<64x32xf32>
    %10 = arith.maximumf %8, %9 : vector<64x32xf32>
    %c0_7 = arith.constant 0 : index
    %c0_8 = arith.constant 0 : index
    %c0_9 = arith.constant 0 : index
    %11 = vector.load %arg4[%c0_7, %c0_8, %c0_9] : memref<1x64x32xf32, #tpu.memory_space<vmem>>, vector<1x64x32xf32>
    %12 = vector.shape_cast %11 : vector<1x64x32xf32> to vector<64x32xf32>
    %13 = arith.addf %10, %12 : vector<64x32xf32>
    %c0_10 = arith.constant 0 : index
    %c0_11 = arith.constant 0 : index
    %c0_12 = arith.constant 0 : index
    %14 = vector.load %arg5[%c0_10, %c0_11, %c0_12] : memref<1x64x32xf32, #tpu.memory_space<vmem>>, vector<1x64x32xf32>
    %15 = vector.shape_cast %14 : vector<1x64x32xf32> to vector<64x32xf32>
    %16 = vector.shape_cast %13 : vector<64x32xf32> to vector<1x64x32xf32>
    tpu.vector_store %arg5[%c0_10, %c0_11, %c0_12], %16 {strides = array<i32>} : memref<1x64x32xf32, #tpu.memory_space<vmem>>, vector<1x64x32xf32>,
    return
  }
  func.func @transform_0(%arg0: i32) -> (i32, i32, i32) {
    %c0_i32 = arith.constant 0 : i32
    %c0_i32_0 = arith.constant 0 : i32
    %c0_i32_1 = arith.constant 0 : i32
    return %arg0, %c0_i32, %c0_i32_0 : i32, i32, i32
  }
  func.func @transform_1(%arg0: i32) -> (i32, i32) {
    %c0_i32 = arith.constant 0 : i32
    %c0_i32_0 = arith.constant 0 : i32
    %c0_i32_1 = arith.constant 0 : i32
    return %c0_i32, %c0_i32_0 : i32, i32
  }
  func.func @transform_2(%arg0: i32) -> (i32, i32) {
    %c0_i32 = arith.constant 0 : i32
    %c0_i32_0 = arith.constant 0 : i32
    %c0_i32_1 = arith.constant 0 : i32
    return %c0_i32, %c0_i32_0 : i32, i32
  }
  func.func @transform_3(%arg0: i32) -> (i32, i32, i32) {
    %c0_i32 = arith.constant 0 : i32
    %c0_i32_0 = arith.constant 0 : i32
    %c0_i32_1 = arith.constant 0 : i32
    return %arg0, %c0_i32, %c0_i32_0 : i32, i32, i32
  }
  func.func @transform_4(%arg0: i32) -> (i32, i32, i32) {
    %c0_i32 = arith.constant 0 : i32
    %c0_i32_0 = arith.constant 0 : i32
    %c0_i32_1 = arith.constant 0 : i32
    return %arg0, %c0_i32, %c0_i32_0 : i32, i32, i32
  }
}

module attributes {stable_mosaic.version = 11 : i64} {
  func.func @_mm_relu_res_kernel(%arg0: i32, %arg1: memref<1x256x32xf32, #tpu.memory_space<vmem>>, %arg2: memref<32x16xf32, #tpu.memory_space<vmem>>, %arg3: memref<1x16xf32, #tpu.memory_space<vmem>>, %arg4: memref<1x256x16xf32, #tpu.memory_space<vmem>>, %arg5: memref<1x256x16xf32, #tpu.memory_space<vmem>>) attributes {dimension_semantics = [#tpu.dimension_semantics<parallel>], iteration_bounds = array<i64: 2>, scalar_prefetch = 0 : i64, scratch_operands = 0 : i64, tpu.core_type = #tpu.core_type<tc>, window_params = [{transform_indices = @transform_0, window_bounds = array<i64: 1, 256, 32>}, {pipeline_mode = #tpu.pipeline_mode<synchronous>, transform_indices = @transform_1, window_bounds = array<i64: 32, 16>}, {pipeline_mode = #tpu.pipeline_mode<synchronous>, transform_indices = @transform_2, window_bounds = array<i64: 1, 16>}, {transform_indices = @transform_3, window_bounds = array<i64: 1, 256, 16>}, {transform_indices = @transform_4, window_bounds = array<i64: 1, 256, 16>}]} {
    %c0 = arith.constant 0 : index
    %c0_0 = arith.constant 0 : index
    %c0_1 = arith.constant 0 : index
    %0 = vector.load %arg1[%c0, %c0_0, %c0_1] : memref<1x256x32xf32, #tpu.memory_space<vmem>>, vector<1x256x32xf32>
    %1 = vector.shape_cast %0 : vector<1x256x32xf32> to vector<256x32xf32>
    %c0_2 = arith.constant 0 : index
    %c0_3 = arith.constant 0 : index
    %2 = vector.load %arg2[%c0_2, %c0_3] : memref<32x16xf32, #tpu.memory_space<vmem>>, vector<32x16xf32>
    %3 = arith.truncf %1 : vector<256x32xf32> to vector<256x32xbf16>
    %4 = arith.truncf %2 : vector<32x16xf32> to vector<32x16xbf16>
    %cst = arith.constant dense<0.000000e+00> : vector<256x16xf32>
    %5 = tpu.matmul %3, %4, %cst {dimension_numbers = #tpu.dot_dimension_numbers<[1], [0], [0], [1], [0, 0, 1, 1], [], []>} : vector<256x32xbf16>, vector<32x16xbf16>, vector<256x16xf32> -> vector<256x16xf32>
    %c0_4 = arith.constant 0 : index
    %c0_5 = arith.constant 0 : index
    %6 = vector.load %arg3[%c0_4, %c0_5] : memref<1x16xf32, #tpu.memory_space<vmem>>, vector<1x16xf32>
    %7 = vector.broadcast %6 : vector<1x16xf32> to vector<256x16xf32>
    %8 = arith.addf %5, %7 : vector<256x16xf32>
    %cst_6 = arith.constant 0.000000e+00 : f32
    %9 = vector.broadcast %cst_6 : f32 to vector<256x16xf32>
    %10 = arith.maximumf %8, %9 : vector<256x16xf32>
    %c0_7 = arith.constant 0 : index
    %c0_8 = arith.constant 0 : index
    %c0_9 = arith.constant 0 : index
    %11 = vector.load %arg4[%c0_7, %c0_8, %c0_9] : memref<1x256x16xf32, #tpu.memory_space<vmem>>, vector<1x256x16xf32>
    %12 = vector.shape_cast %11 : vector<1x256x16xf32> to vector<256x16xf32>
    %13 = arith.addf %10, %12 : vector<256x16xf32>
    %c0_10 = arith.constant 0 : index
    %c0_11 = arith.constant 0 : index
    %c0_12 = arith.constant 0 : index
    %14 = vector.load %arg5[%c0_10, %c0_11, %c0_12] : memref<1x256x16xf32, #tpu.memory_space<vmem>>, vector<1x256x16xf32>
    %15 = vector.shape_cast %14 : vector<1x256x16xf32> to vector<256x16xf32>
    %16 = vector.shape_cast %13 : vector<256x16xf32> to vector<1x256x16xf32>
    tpu.vector_store %arg5[%c0_10, %c0_11, %c0_12], %16 {strides = array<i32>} : memref<1x256x16xf32, #tpu.memory_space<vmem>>, vector<1x256x16xf32>,
    return
  }
  func.func @transform_0(%arg0: i32) -> (i32, i32, i32) {
    %c0_i32 = arith.constant 0 : i32
    %c0_i32_0 = arith.constant 0 : i32
    %c0_i32_1 = arith.constant 0 : i32
    return %arg0, %c0_i32, %c0_i32_0 : i32, i32, i32
  }
  func.func @transform_1(%arg0: i32) -> (i32, i32) {
    %c0_i32 = arith.constant 0 : i32
    %c0_i32_0 = arith.constant 0 : i32
    %c0_i32_1 = arith.constant 0 : i32
    return %c0_i32, %c0_i32_0 : i32, i32
  }
  func.func @transform_2(%arg0: i32) -> (i32, i32) {
    %c0_i32 = arith.constant 0 : i32
    %c0_i32_0 = arith.constant 0 : i32
    %c0_i32_1 = arith.constant 0 : i32
    return %c0_i32, %c0_i32_0 : i32, i32
  }
  func.func @transform_3(%arg0: i32) -> (i32, i32, i32) {
    %c0_i32 = arith.constant 0 : i32
    %c0_i32_0 = arith.constant 0 : i32
    %c0_i32_1 = arith.constant 0 : i32
    return %arg0, %c0_i32, %c0_i32_0 : i32, i32, i32
  }
  func.func @transform_4(%arg0: i32) -> (i32, i32, i32) {
    %c0_i32 = arith.constant 0 : i32
    %c0_i32_0 = arith.constant 0 : i32
    %c0_i32_1 = arith.constant 0 : i32
    return %arg0, %c0_i32, %c0_i32_0 : i32, i32, i32
  }
}

module attributes {stable_mosaic.version = 11 : i64} {
  func.func @_head_kernel(%arg0: i32, %arg1: memref<1x256x16xf32, #tpu.memory_space<vmem>>, %arg2: memref<16x96xf32, #tpu.memory_space<vmem>>, %arg3: memref<1x96xf32, #tpu.memory_space<vmem>>, %arg4: memref<96x128xf32, #tpu.memory_space<vmem>>, %arg5: memref<1x128xf32, #tpu.memory_space<vmem>>, %arg6: memref<1x256x128xf32, #tpu.memory_space<vmem>>) attributes {dimension_semantics = [#tpu.dimension_semantics<parallel>], iteration_bounds = array<i64: 2>, scalar_prefetch = 0 : i64, scratch_operands = 0 : i64, tpu.core_type = #tpu.core_type<tc>, window_params = [{transform_indices = @transform_0, window_bounds = array<i64: 1, 256, 16>}, {pipeline_mode = #tpu.pipeline_mode<synchronous>, transform_indices = @transform_1, window_bounds = array<i64: 16, 96>}, {pipeline_mode = #tpu.pipeline_mode<synchronous>, transform_indices = @transform_2, window_bounds = array<i64: 1, 96>}, {pipeline_mode = #tpu.pipeline_mode<synchronous>, transform_indices = @transform_3, window_bounds = array<i64: 96, 128>}, {pipeline_mode = #tpu.pipeline_mode<synchronous>, transform_indices = @transform_4, window_bounds = array<i64: 1, 128>}, {transform_indices = @transform_5, window_bounds = array<i64: 1, 256, 128>}]} {
    %c0 = arith.constant 0 : index
    %c0_0 = arith.constant 0 : index
    %c0_1 = arith.constant 0 : index
    %0 = vector.load %arg1[%c0, %c0_0, %c0_1] : memref<1x256x16xf32, #tpu.memory_space<vmem>>, vector<1x256x16xf32>
    %1 = vector.shape_cast %0 : vector<1x256x16xf32> to vector<256x16xf32>
    %c0_2 = arith.constant 0 : index
    %c0_3 = arith.constant 0 : index
    %2 = vector.load %arg2[%c0_2, %c0_3] : memref<16x96xf32, #tpu.memory_space<vmem>>, vector<16x96xf32>
    %3 = arith.truncf %1 : vector<256x16xf32> to vector<256x16xbf16>
    %4 = arith.truncf %2 : vector<16x96xf32> to vector<16x96xbf16>
    %cst = arith.constant dense<0.000000e+00> : vector<256x96xf32>
    %5 = tpu.matmul %3, %4, %cst {dimension_numbers = #tpu.dot_dimension_numbers<[1], [0], [0], [1], [0, 0, 1, 1], [], []>} : vector<256x16xbf16>, vector<16x96xbf16>, vector<256x96xf32> -> vector<256x96xf32>
    %c0_4 = arith.constant 0 : index
    %c0_5 = arith.constant 0 : index
    %6 = vector.load %arg3[%c0_4, %c0_5] : memref<1x96xf32, #tpu.memory_space<vmem>>, vector<1x96xf32>
    %7 = vector.broadcast %6 : vector<1x96xf32> to vector<256x96xf32>
    %8 = arith.addf %5, %7 : vector<256x96xf32>
    %cst_6 = arith.constant 0.000000e+00 : f32
    %9 = vector.broadcast %cst_6 : f32 to vector<256x96xf32>
    %10 = arith.maximumf %8, %9 : vector<256x96xf32>
    %c0_7 = arith.constant 0 : index
    %c0_8 = arith.constant 0 : index
    %11 = vector.load %arg4[%c0_7, %c0_8] : memref<96x128xf32, #tpu.memory_space<vmem>>, vector<96x128xf32>
    %12 = arith.truncf %10 : vector<256x96xf32> to vector<256x96xbf16>
    %13 = arith.truncf %11 : vector<96x128xf32> to vector<96x128xbf16>
    %cst_9 = arith.constant dense<0.000000e+00> : vector<256x128xf32>
    %14 = tpu.matmul %12, %13, %cst_9 {dimension_numbers = #tpu.dot_dimension_numbers<[1], [0], [0], [1], [0, 0, 1, 1], [], []>} : vector<256x96xbf16>, vector<96x128xbf16>, vector<256x128xf32> -> vector<256x128xf32>
    %c0_10 = arith.constant 0 : index
    %c0_11 = arith.constant 0 : index
    %15 = vector.load %arg5[%c0_10, %c0_11] : memref<1x128xf32, #tpu.memory_space<vmem>>, vector<1x128xf32>
    %16 = vector.broadcast %15 : vector<1x128xf32> to vector<256x128xf32>
    %17 = arith.addf %14, %16 : vector<256x128xf32>
    %c0_12 = arith.constant 0 : index
    %c0_13 = arith.constant 0 : index
    %c0_14 = arith.constant 0 : index
    %18 = vector.load %arg6[%c0_12, %c0_13, %c0_14] : memref<1x256x128xf32, #tpu.memory_space<vmem>>, vector<1x256x128xf32>
    %19 = vector.shape_cast %18 : vector<1x256x128xf32> to vector<256x128xf32>
    %20 = vector.shape_cast %17 : vector<256x128xf32> to vector<1x256x128xf32>
    tpu.vector_store %arg6[%c0_12, %c0_13, %c0_14], %20 {strides = array<i32>} : memref<1x256x128xf32, #tpu.memory_space<vmem>>, vector<1x256x128xf32>,
    return
  }
  func.func @transform_0(%arg0: i32) -> (i32, i32, i32) {
    %c0_i32 = arith.constant 0 : i32
    %c0_i32_0 = arith.constant 0 : i32
    %c0_i32_1 = arith.constant 0 : i32
    return %arg0, %c0_i32, %c0_i32_0 : i32, i32, i32
  }
  func.func @transform_1(%arg0: i32) -> (i32, i32) {
    %c0_i32 = arith.constant 0 : i32
    %c0_i32_0 = arith.constant 0 : i32
    %c0_i32_1 = arith.constant 0 : i32
    return %c0_i32, %c0_i32_0 : i32, i32
  }
  func.func @transform_2(%arg0: i32) -> (i32, i32) {
    %c0_i32 = arith.constant 0 : i32
    %c0_i32_0 = arith.constant 0 : i32
    %c0_i32_1 = arith.constant 0 : i32
    return %c0_i32, %c0_i32_0 : i32, i32
  }
  func.func @transform_3(%arg0: i32) -> (i32, i32) {
    %c0_i32 = arith.constant 0 : i32
    %c0_i32_0 = arith.constant 0 : i32
    %c0_i32_1 = arith.constant 0 : i32
    return %c0_i32, %c0_i32_0 : i32, i32
  }
  func.func @transform_4(%arg0: i32) -> (i32, i32) {
    %c0_i32 = arith.constant 0 : i32
    %c0_i32_0 = arith.constant 0 : i32
    %c0_i32_1 = arith.constant 0 : i32
    return %c0_i32, %c0_i32_0 : i32, i32
  }
  func.func @transform_5(%arg0: i32) -> (i32, i32, i32) {
    %c0_i32 = arith.constant 0 : i32
    %c0_i32_0 = arith.constant 0 : i32
    %c0_i32_1 = arith.constant 0 : i32
    return %arg0, %c0_i32, %c0_i32_0 : i32, i32, i32
  }
}

</mosaic_0001>

<llo_original>
// kernel: plv_forward.10
$region0: #{plv_forward.10}
  #allocation0 [shape = 'u32[]', space=smem, size = 0x4, offset = 0x4, fixed_abs, tag = 'smem constant byte address 0x4 - core index']
  #allocation1 [shape = 'u32[144,128]{1,0:T(1,128)}', space=vmem, size = 0x12000, scoped, tag = 'internal scratch']
  %s0 = inlined_call_operand.vmem [shape: f32[16,32], index: 0, kind: input, shape index: {}]
  %s1 = inlined_call_operand.vmem [shape: f32[1,32], index: 1, kind: input, shape index: {}]
  %s2 = inlined_call_operand.vmem [shape: f32[1,32], index: 2, kind: input, shape index: {}]
  %s3 = inlined_call_operand.vmem [shape: f32[16,32], index: 3, kind: output, shape index: {}]
  %s4 = sld [smem:[#allocation0]]
  $region22: #{plv_forward.10} parent=0
    _
  %s6 = ssub.s32 1, %s4
  %s7 = scalar_select 0, %s6, %s4
  // Predicated region
  $region2: #{plv_forward.10} parent=0 // pred_check
    _
  $region3: #{plv_forward.10} parent=0 // pred_check_branch
    %9 = sbr.rel (0) target = $region5
  $region4: #{plv_forward.10} parent=0 // pred_region
    _
  $region5: #{plv_forward.10} parent=0 // pred_fallthru
    _
  // Predicated region
  $region6: #{plv_forward.10} parent=0 // pred_check
    _
  $region7: #{plv_forward.10} parent=0 // pred_check_branch
    %11 = sbr.rel (0) target = $region9
  $region8: #{plv_forward.10} parent=0 // pred_region
    _
  $region9: #{plv_forward.10} parent=0 // pred_fallthru
    _
  // Predicated region
  $region10: #{plv_forward.10} parent=0 // pred_check
    _
  $region11: #{plv_forward.10} parent=0 // pred_check_branch
    %13 = sbr.rel (0) target = $region13
  $region12: #{plv_forward.10} parent=0 // pred_region
    _
  $region13: #{plv_forward.10} parent=0 // pred_fallthru
    _
  %v14 = vld [vmem:[%s0] sm:$0xff]
  %v15 = vld [vmem:[%s0 + $0x8] sm:$0xff]
  %v16 = vld [vmem:[%s1] sm:$0x1]
  %v17 = vld [vmem:[%s2] sm:$0x1]
  %vm18 = vcmask 261120
  %v19 = vsel %vm18, %v14, 0.0
  %20 = vadd.xlane.f32.xlu0 %v19
  %v21 = vpop.xlane.xlu0 %20
  %v22 = vsel %vm18, %v15, 0.0
  %23 = vadd.xlane.f32.xlu0 %v22
  %v24 = vpop.xlane.xlu0 %23
  %v25 = vrcp.pop 32.0
  %v26 = vmul.f32 %v21, %v25
  %v27 = vmul.f32 %v24, %v25
  %v28 = vsub.f32 %v14, %v26
  %v29 = vsub.f32 %v15, %v27
  %v30 = vmul.f32 %v28, %v28
  %v31 = vmul.f32 %v29, %v29
  %v32 = vsel %vm18, %v30, 0.0
  %33 = vadd.xlane.f32.xlu0 %v32
  %v34 = vpop.xlane.xlu0 %33
  %v35 = vsel %vm18, %v31, 0.0
  %36 = vadd.xlane.f32.xlu0 %v35
  %v37 = vpop.xlane.xlu0 %36
  %v38 = vmul.f32 %v34, %v25
  %v39 = vmul.f32 %v37, %v25
  %v40 = vadd.f32 %v38, 1e-12
  %v41 = vadd.f32 %v39, 1e-12
  %v42 = vrsqrt.pop %v40
  %v43 = vrsqrt.pop %v41
  %v44 = vmul.f32 %v28, %v42
  %v45 = vmul.f32 %v29, %v43
  %v47 = vlaneseq
  %v48 = vshrl.u32 %v47, 7
  %v49 = vsub.s32 0, %v48
  %v50 = vrot.slane %v16, %v49
  %v52 = vmul.f32 %v44, %v50
  %v53 = vmul.f32 %v45, %v50
  %v55 = vlaneseq
  %v56 = vshrl.u32 %v55, 7
  %v57 = vsub.s32 0, %v56
  %v58 = vrot.slane %v17, %v57
  %v60 = vadd.f32 %v52, %v58
  %v61 = vadd.f32 %v53, %v58
  %62 = vst.msk [vmem:[%s3] sm:$0xff] %vm18, %v60
  %63 = vst.msk [vmem:[%s3 + $0x8] sm:$0xff] %vm18, %v61
  // Predicated region
  $region14: #{plv_forward.10} parent=0 // pred_check
    _
  $region15: #{plv_forward.10} parent=0 // pred_check_branch
    %65 = sbr.rel (0) target = $region17
  $region16: #{plv_forward.10} parent=0 // pred_region
    _
  $region17: #{plv_forward.10} parent=0 // pred_fallthru
    _
  // Predicated region
  $region18: #{plv_forward.10} parent=0 // pred_check
    _
  $region19: #{plv_forward.10} parent=0 // pred_check_branch
    %67 = sbr.rel (0) target = $region21
  $region20: #{plv_forward.10} parent=0 // pred_region
    _
  $region21: #{plv_forward.10} parent=0 // pred_fallthru
    _

// kernel: plv_forward.13
$region0: #{plv_forward.13}
  #allocation0 [shape = 'u32[]', space=smem, size = 0x4, offset = 0x4, fixed_abs, tag = 'smem constant byte address 0x4 - core index']
  #allocation1 [shape = 'u32[144,128]{1,0:T(1,128)}', space=vmem, size = 0x12000, scoped, tag = 'internal scratch']
  %s0 = inlined_call_operand.vmem [shape: f32[2,8,32], index: 0, kind: input, shape index: {}]
  %s1 = inlined_call_operand.vmem [shape: f32[2,8,1], index: 1, kind: input, shape index: {}]
  %s2 = inlined_call_operand.vmem [shape: f32[2,32], index: 2, kind: output, shape index: {}]
  %s3 = sld [smem:[#allocation0]]
  $region18: #{plv_forward.13} parent=0
    _
  %s5 = ssub.s32 1, %s3
  %s6 = scalar_select 0, %s5, %s3
  // Predicated region
  $region2: #{plv_forward.13} parent=0 // pred_check
    _
  $region3: #{plv_forward.13} parent=0 // pred_check_branch
    %8 = sbr.rel (0) target = $region5
  $region4: #{plv_forward.13} parent=0 // pred_region
    _
  $region5: #{plv_forward.13} parent=0 // pred_fallthru
    _
  // Predicated region
  $region6: #{plv_forward.13} parent=0 // pred_check
    _
  $region7: #{plv_forward.13} parent=0 // pred_check_branch
    %10 = sbr.rel (0) target = $region9
  $region8: #{plv_forward.13} parent=0 // pred_region
    _
  $region9: #{plv_forward.13} parent=0 // pred_fallthru
    _
  %v11 = vld [vmem:[%s0] sm:$0xff]
  %v12 = vld [vmem:[%s0 + $0x8] sm:$0xff]
  %v13 = vld [vmem:[%s1] sm:$0xff]
  %v14 = vld [vmem:[%s1 + $0x8] sm:$0xff]
  %16 = vset.pattern.permute.xlu0 0
  %17 = vperm.xlu0 %16, %v13
  %v18 = vpop.permute.xlu0 %17
  %21 = vset.pattern.permute.xlu0 0
  %22 = vperm.xlu0 %21, %v14
  %v23 = vpop.permute.xlu0 %22
  %v25 = vmul.f32 %v11, %v18
  %v26 = vmul.f32 %v12, %v23
  %vm27 = vcmask 261120
  %v28 = vsel %vm27, %v25, 0.0
  %v29 = vrot.slane %v28, 4
  %v30 = vadd.f32 %v28, %v29
  %v31 = vrot.slane %v30, 2
  %v32 = vadd.f32 %v30, %v31
  %v33 = vrot.slane %v32, 1
  %v34 = vadd.f32 %v32, %v33
  %v35 = vsel %vm27, %v26, 0.0
  %v36 = vrot.slane %v35, 4
  %v37 = vadd.f32 %v35, %v36
  %v38 = vrot.slane %v37, 2
  %v39 = vadd.f32 %v37, %v38
  %v40 = vrot.slane %v39, 1
  %v41 = vadd.f32 %v39, %v40
  %vm42 = vcmask 7168
  %v43 = vsel %vm42, %v13, 0.0
  %v44 = vrot.slane %v43, 4
  %v45 = vadd.f32 %v43, %v44
  %v46 = vrot.slane %v45, 2
  %v47 = vadd.f32 %v45, %v46
  %v48 = vrot.slane %v47, 1
  %v49 = vadd.f32 %v47, %v48
  %v50 = vsel %vm42, %v14, 0.0
  %v51 = vrot.slane %v50, 4
  %v52 = vadd.f32 %v50, %v51
  %v53 = vrot.slane %v52, 2
  %v54 = vadd.f32 %v52, %v53
  %v55 = vrot.slane %v54, 1
  %v56 = vadd.f32 %v54, %v55
  %v57 = vmax.f32 %v49, 1.0
  %v58 = vmax.f32 %v56, 1.0
  %v59 = vrcp.pop %v57
  %v60 = vrcp.pop %v58
  %62 = vset.pattern.permute.xlu0 0
  %63 = vperm.xlu0 %62, %v59
  %v64 = vpop.permute.xlu0 %63
  %67 = vset.pattern.permute.xlu0 0
  %68 = vperm.xlu0 %67, %v60
  %v69 = vpop.permute.xlu0 %68
  %v71 = vmul.f32 %v34, %v64
  %v72 = vmul.f32 %v41, %v69
  %vm75 = vcmask 1041409
  %v76 = vsel %vm75, %v72, %v71
  %vm78 = vcmask 254976
  %79 = vst.msk [vmem:[%s2] sm:$0x3] %vm78, %v76
  // Predicated region
  $region10: #{plv_forward.13} parent=0 // pred_check
    _
  $region11: #{plv_forward.13} parent=0 // pred_check_branch
    %81 = sbr.rel (0) target = $region13
  $region12: #{plv_forward.13} parent=0 // pred_region
    _
  $region13: #{plv_forward.13} parent=0 // pred_fallthru
    _
  // Predicated region
  $region14: #{plv_forward.13} parent=0 // pred_check
    _
  $region15: #{plv_forward.13} parent=0 // pred_check_branch
    %83 = sbr.rel (0) target = $region17
  $region16: #{plv_forward.13} parent=0 // pred_region
    _
  $region17: #{plv_forward.13} parent=0 // pred_fallthru
    _

// kernel: plv_forward.14
$region0: #{plv_forward.14}
  #allocation0 [shape = 'u32[]', space=smem, size = 0x4, offset = 0x4, fixed_abs, tag = 'smem constant byte address 0x4 - core index']
  #allocation1 [shape = 'u32[144,128]{1,0:T(1,128)}', space=vmem, size = 0x12000, scoped, tag = 'internal scratch']
  %s0 = inlined_call_operand.vmem [shape: f32[2,256,27], index: 0, kind: input, shape index: {}]
  %s1 = inlined_call_operand.vmem [shape: f32[27,16], index: 1, kind: input, shape index: {}]
  %s2 = inlined_call_operand.vmem [shape: f32[1,16], index: 2, kind: input, shape index: {}]
  %s3 = inlined_call_operand.vmem [shape: f32[2,1,32], index: 3, kind: input, shape index: {}]
  %s4 = inlined_call_operand.vmem [shape: f32[32,16], index: 4, kind: input, shape index: {}]
  %s5 = inlined_call_operand.vmem [shape: f32[1,16], index: 5, kind: input, shape index: {}]
  %s6 = inlined_call_operand.vmem [shape: f32[2,256,16], index: 6, kind: output, shape index: {}]
  %s7 = sld [smem:[#allocation0]]
  $region57: #{plv_forward.14} parent=0
    _
  %s9 = ssub.s32 1, %s7
  %s10 = scalar_select 0, %s9, %s7
  loop: start=0, step=1, limit=4
  $region2: #{plv_forward.14} parent=0 // loop_pre_header
    _
  $region3: #{plv_forward.14} parent=0 // loop_header
    %s12 = sphi 0, %s16
    %p13 = scmp.ge.s32.totalorder %s12, 4
    %s22 = sphi 0, %s24
    %s25 = sphi 0, %s22
    %s26 = sphi 0, %s25
    %s42 = sphi 0, %s26
    %s46 = sphi 0, %s46
    %s48 = sphi 0, %s46
    %s49 = sphi 0, %s48
    %s63 = sphi 0, %s49
    %s67 = sphi 0, %s67
    %s69 = sphi 0, %s67
    %s70 = sphi 0, %s69
    %s84 = sphi 0, %s70
    %s90 = sphi 0, %s92
    %s93 = sphi 0, %s90
    %s94 = sphi 0, %s93
    %s110 = sphi 0, %s94
    %s114 = sphi 0, %s114
    %s116 = sphi 0, %s114
    %s117 = sphi 0, %s116
    %s131 = sphi 0, %s117
    %s135 = sphi 0, %s135
    %s137 = sphi 0, %s135
    %s138 = sphi 0, %s137
    %s152 = sphi 0, %s138
    %s158 = sphi 0, %s160
    %s161 = sphi 0, %s158
    %s162 = sphi 0, %s161
    %s178 = sphi 0, %s162
  $region4: #{plv_forward.14} parent=0 // loop_header_branch
    %15 = sbr.rel (%p13) target = $region8
  $region5: #{plv_forward.14} parent=0 // loop_body
    %s17 = ssub.s32 %s12, 1
    %s18 = ssub.s32 %s12, 2
    %s19 = sadd.s32 %s12, 1
    %s20 = ssub.s32 %s12, %s19
    %p21 = scmp.eq.s32.totalorder %s20, 0
    %s23 = sadd.s32 %s22, 1
    %s24 = scalar_select %p21, %s22, %s23
    %p27 = pneg %p21
    %p28 = scmp.eq.s32.totalorder %s12, 1
    %p29 = por %p27, %p28
    %p30 = scmp.ne.s32.totalorder %s22, %s25
    %p31 = scmp.eq.s32.totalorder %s12, 0
    %p32 = por %p30, %p31
    %p33 = scmp.ne.s32.totalorder %s22, %s25
    %p34 = scmp.eq.s32.totalorder %s17, 1
    %p35 = por %p33, %p34
    %p36 = scmp.ne.s32.totalorder %s25, %s26
    %p37 = scmp.eq.s32.totalorder %s17, 0
    %p38 = por %p36, %p37
    %p39 = scmp.ne.s32.totalorder %s25, %s26
    %p40 = scmp.eq.s32.totalorder %s18, 1
    %p41 = por %p39, %p40
    %p43 = scmp.ne.s32.totalorder %s26, %s42
    %p44 = scmp.eq.s32.totalorder %s18, 0
    %p45 = por %p43, %p44
    %s47 = sadd.s32 %s46, 1
    %p50 = scmp.eq.s32.totalorder %s12, 1
    %p51 = scmp.ne.s32.totalorder %s46, %s48
    %p52 = scmp.eq.s32.totalorder %s12, 0
    %p53 = por %p51, %p52
    %p54 = scmp.ne.s32.totalorder %s46, %s48
    %p55 = scmp.eq.s32.totalorder %s17, 1
    %p56 = por %p54, %p55
    %p57 = scmp.ne.s32.totalorder %s48, %s49
    %p58 = scmp.eq.s32.totalorder %s17, 0
    %p59 = por %p57, %p58
    %p60 = scmp.ne.s32.totalorder %s48, %s49
    %p61 = scmp.eq.s32.totalorder %s18, 1
    %p62 = por %p60, %p61
    %p64 = scmp.ne.s32.totalorder %s49, %s63
    %p65 = scmp.eq.s32.totalorder %s18, 0
    %p66 = por %p64, %p65
    %s68 = sadd.s32 %s67, 1
    %p71 = scmp.eq.s32.totalorder %s12, 1
    %p72 = scmp.ne.s32.totalorder %s67, %s69
    %p73 = scmp.eq.s32.totalorder %s12, 0
    %p74 = por %p72, %p73
    %p75 = scmp.ne.s32.totalorder %s67, %s69
    %p76 = scmp.eq.s32.totalorder %s17, 1
    %p77 = por %p75, %p76
    %p78 = scmp.ne.s32.totalorder %s69, %s70
    %p79 = scmp.eq.s32.totalorder %s17, 0
    %p80 = por %p78, %p79
    %p81 = scmp.ne.s32.totalorder %s69, %s70
    %p82 = scmp.eq.s32.totalorder %s18, 1
    %p83 = por %p81, %p82
    %p85 = scmp.ne.s32.totalorder %s70, %s84
    %p86 = scmp.eq.s32.totalorder %s18, 0
    %p87 = por %p85, %p86
    %s88 = ssub.s32 %s12, %s19
    %p89 = scmp.eq.s32.totalorder %s88, 0
    %s91 = sadd.s32 %s90, 1
    %s92 = scalar_select %p89, %s90, %s91
    %p95 = pneg %p89
    %p96 = scmp.eq.s32.totalorder %s12, 1
    %p97 = por %p95, %p96
    %p98 = scmp.ne.s32.totalorder %s90, %s93
    %p99 = scmp.eq.s32.totalorder %s12, 0
    %p100 = por %p98, %p99
    %p101 = scmp.ne.s32.totalorder %s90, %s93
    %p102 = scmp.eq.s32.totalorder %s17, 1
    %p103 = por %p101, %p102
    %p104 = scmp.ne.s32.totalorder %s93, %s94
    %p105 = scmp.eq.s32.totalorder %s17, 0
    %p106 = por %p104, %p105
    %p107 = scmp.ne.s32.totalorder %s93, %s94
    %p108 = scmp.eq.s32.totalorder %s18, 1
    %p109 = por %p107, %p108
    %p111 = scmp.ne.s32.totalorder %s94, %s110
    %p112 = scmp.eq.s32.totalorder %s18, 0
    %p113 = por %p111, %p112
    %s115 = sadd.s32 %s114, 1
    %p118 = scmp.eq.s32.totalorder %s12, 1
    %p119 = scmp.ne.s32.totalorder %s114, %s116
    %p120 = scmp.eq.s32.totalorder %s12, 0
    %p121 = por %p119, %p120
    %p122 = scmp.ne.s32.totalorder %s114, %s116
    %p123 = scmp.eq.s32.totalorder %s17, 1
    %p124 = por %p122, %p123
    %p125 = scmp.ne.s32.totalorder %s116, %s117
    %p126 = scmp.eq.s32.totalorder %s17, 0
    %p127 = por %p125, %p126
    %p128 = scmp.ne.s32.totalorder %s116, %s117
    %p129 = scmp.eq.s32.totalorder %s18, 1
    %p130 = por %p128, %p129
    %p132 = scmp.ne.s32.totalorder %s117, %s131
    %p133 = scmp.eq.s32.totalorder %s18, 0
    %p134 = por %p132, %p133
    %s136 = sadd.s32 %s135, 1
    %p139 = scmp.eq.s32.totalorder %s12, 1
    %p140 = scmp.ne.s32.totalorder %s135, %s137
    %p141 = scmp.eq.s32.totalorder %s12, 0
    %p142 = por %p140, %p141
    %p143 = scmp.ne.s32.totalorder %s135, %s137
    %p144 = scmp.eq.s32.totalorder %s17, 1
    %p145 = por %p143, %p144
    %p146 = scmp.ne.s32.totalorder %s137, %s138
    %p147 = scmp.eq.s32.totalorder %s17, 0
    %p148 = por %p146, %p147
    %p149 = scmp.ne.s32.totalorder %s137, %s138
    %p150 = scmp.eq.s32.totalorder %s18, 1
    %p151 = por %p149, %p150
    %p153 = scmp.ne.s32.totalorder %s138, %s152
    %p154 = scmp.eq.s32.totalorder %s18, 0
    %p155 = por %p153, %p154
    %s156 = ssub.s32 %s12, %s19
    %p157 = scmp.eq.s32.totalorder %s156, 0
    %s159 = sadd.s32 %s158, 1
    %s160 = scalar_select %p157, %s158, %s159
    %p163 = pneg %p157
    %p164 = scmp.eq.s32.totalorder %s12, 1
    %p165 = por %p163, %p164
    %p166 = scmp.ne.s32.totalorder %s158, %s161
    %p167 = scmp.eq.s32.totalorder %s12, 0
    %p168 = por %p166, %p167
    %p169 = scmp.ne.s32.totalorder %s158, %s161
    %p170 = scmp.eq.s32.totalorder %s17, 1
    %p171 = por %p169, %p170
    %p172 = scmp.ne.s32.totalorder %s161, %s162
    %p173 = scmp.eq.s32.totalorder %s17, 0
    %p174 = por %p172, %p173
    %p175 = scmp.ne.s32.totalorder %s161, %s162
    %p176 = scmp.eq.s32.totalorder %s18, 1
    %p177 = por %p175, %p176
    %p179 = scmp.ne.s32.totalorder %s162, %s178
    %p180 = scmp.eq.s32.totalorder %s18, 0
    %p181 = por %p179, %p180
    %p182 = scmp.le.s32.totalorder 1, %s12
    %p183 = scmp.lt.s32.totalorder %s12, 3
    %p184 = pnand %p182, %p183
    %p185 = pneg %p184
    // Predicated region
    $region9: #{plv_forward.14} parent=5 // pred_check
      _
    $region10: #{plv_forward.14} parent=5 // pred_check_branch
      %187 = sbr.rel (%p184) target = $region12
    $region11: #{plv_forward.14} parent=5 // pred_region
      %s188 = ssub.s32 %s12, 1
      // Predicated region
      $region13: #{plv_forward.14} parent=11 // pred_check
        %p189 = pneg %p59
      $region14: #{plv_forward.14} parent=11 // pred_check_branch
        %191 = sbr.rel (%p189) target = $region16
      $region15: #{plv_forward.14} parent=11 // pred_region
        _
      $region16: #{plv_forward.14} parent=11 // pred_fallthru
        _
      // Predicated region
      $region17: #{plv_forward.14} parent=11 // pred_check
        %p192 = pneg %p80
      $region18: #{plv_forward.14} parent=11 // pred_check_branch
        %194 = sbr.rel (%p192) target = $region20
      $region19: #{plv_forward.14} parent=11 // pred_region
        _
      $region20: #{plv_forward.14} parent=11 // pred_fallthru
        _
      // Predicated region
      $region21: #{plv_forward.14} parent=11 // pred_check
        %p195 = pneg %p127
      $region22: #{plv_forward.14} parent=11 // pred_check_branch
        %197 = sbr.rel (%p195) target = $region24
      $region23: #{plv_forward.14} parent=11 // pred_region
        _
      $region24: #{plv_forward.14} parent=11 // pred_fallthru
        _
      // Predicated region
      $region25: #{plv_forward.14} parent=11 // pred_check
        %p198 = pneg %p148
      $region26: #{plv_forward.14} parent=11 // pred_check_branch
        %200 = sbr.rel (%p198) target = $region28
      $region27: #{plv_forward.14} parent=11 // pred_region
        _
      $region28: #{plv_forward.14} parent=11 // pred_fallthru
        _
    $region12: #{plv_forward.14} parent=5 // pred_fallthru
      _
    %p201 = scmp.lt.s32.totalorder %s12, 2
    // Predicated region
    $region29: #{plv_forward.14} parent=5 // pred_check
      %p202 = pneg %p201
    $region30: #{plv_forward.14} parent=5 // pred_check_branch
      %204 = sbr.rel (%p202) target = $region32
    $region31: #{plv_forward.14} parent=5 // pred_region
      // Predicated region
      $region33: #{plv_forward.14} parent=31 // pred_check
        %p205 = pneg %p32
      $region34: #{plv_forward.14} parent=31 // pred_check_branch
        %207 = sbr.rel (%p205) target = $region36
      $region35: #{plv_forward.14} parent=31 // pred_region
        %p208 = scmp.lt.s32.totalorder %s12, 1
        %s209 = scalar_select %p208, %s12, 1
        %s210 = smul.addr %s209, 32
        %s211 = smul.addr %s210, 8
        %s212 = scalar_lea.vmem %s0, %s211
      $region36: #{plv_forward.14} parent=31 // pred_fallthru
        _
      // Predicated region
      $region37: #{plv_forward.14} parent=31 // pred_check
        %p213 = pneg %p100
      $region38: #{plv_forward.14} parent=31 // pred_check_branch
        %215 = sbr.rel (%p213) target = $region40
      $region39: #{plv_forward.14} parent=31 // pred_region
        %p216 = scmp.lt.s32.totalorder %s12, 1
        %s217 = scalar_select %p216, %s12, 1
        %s218 = scalar_lea.vmem %s3, %s217
      $region40: #{plv_forward.14} parent=31 // pred_fallthru
        _
    $region32: #{plv_forward.14} parent=5 // pred_fallthru
      _
    %p219 = scmp.le.s32.totalorder 1, %s12
    %p220 = scmp.lt.s32.totalorder %s12, 3
    %p221 = pnand %p219, %p220
    %p222 = pneg %p221
    // Predicated region
    $region41: #{plv_forward.14} parent=5 // pred_check
      _
    $region42: #{plv_forward.14} parent=5 // pred_check_branch
      %224 = sbr.rel (%p221) target = $region44
    $region43: #{plv_forward.14} parent=5 // pred_region
      %s225 = ssub.s32 %s12, 1
      %p226 = scmp.lt.s32.totalorder %s17, 1
      %s227 = scalar_select %p226, %s17, 1
      %s228 = smul.addr %s227, 32
      %s229 = smul.addr %s228, 8
      %s230 = scalar_lea.vmem %s0, %s229
      %p231 = pneg %p38
      %p232 = pneg %p35
      %p233 = pneg %p59
      %p234 = pneg %p56
      %p235 = pneg %p80
      %p236 = pneg %p77
      %p237 = scmp.lt.s32.totalorder %s17, 1
      %s238 = scalar_select %p237, %s17, 1
      %s239 = scalar_lea.vmem %s3, %s238
      %p240 = pneg %p106
      %p241 = pneg %p103
      %p242 = pneg %p127
      %p243 = pneg %p124
      %p244 = pneg %p148
      %p245 = pneg %p145
      %p246 = pneg %p174
      %p247 = pneg %p171
      %p248 = scmp.lt.s32.totalorder %s17, 1
      %s249 = scalar_select %p248, %s17, 1
      %s250 = smul.addr %s249, 32
      %s251 = smul.addr %s250, 8
      %s252 = scalar_lea.vmem %s6, %s251
      %p253 = scmp.lt.s32.totalorder %s17, 1
      %s254 = scalar_select %p253, %s17, 1
      %s255 = smul.addr %s254, 32
      %s256 = smul.addr %s255, 8
      %s257 = scalar_lea.vmem %s0, %s256
      %p258 = scmp.lt.s32.totalorder %s17, 1
      %s259 = scalar_select %p258, %s17, 1
      %s260 = scalar_lea.vmem %s3, %s259
      %p261 = scmp.lt.s32.totalorder %s17, 1
      %s262 = scalar_select %p261, %s17, 1
      %s263 = smul.addr %s262, 32
      %s264 = smul.addr %s263, 8
      %s265 = scalar_lea.vmem %s6, %s264
      %v267 = vld [vmem:[%s257] sm:$0xff]
      %v268 = vld [vmem:[%s257 + $0x8] sm:$0xff]
      %v269 = vld [vmem:[%s257 + $0x10] sm:$0xff]
      %v270 = vld [vmem:[%s257 + $0x18] sm:$0xff]
      %v271 = vld [vmem:[%s257 + $0x20] sm:$0xff]
      %v272 = vld [vmem:[%s257 + $0x28] sm:$0xff]
      %v273 = vld [vmem:[%s257 + $0x30] sm:$0xff]
      %v274 = vld [vmem:[%s257 + $0x38] sm:$0xff]
      %v275 = vld [vmem:[%s257 + $0x40] sm:$0xff]
      %v276 = vld [vmem:[%s257 + $0x48] sm:$0xff]
      %v277 = vld [vmem:[%s257 + $0x50] sm:$0xff]
      %v278 = vld [vmem:[%s257 + $0x58] sm:$0xff]
      %v279 = vld [vmem:[%s257 + $0x60] sm:$0xff]
      %v280 = vld [vmem:[%s257 + $0x68] sm:$0xff]
      %v281 = vld [vmem:[%s257 + $0x70] sm:$0xff]
      %v282 = vld [vmem:[%s257 + $0x78] sm:$0xff]
      %v283 = vld [vmem:[%s257 + $0x80] sm:$0xff]
      %v284 = vld [vmem:[%s257 + $0x88] sm:$0xff]
      %v285 = vld [vmem:[%s257 + $0x90] sm:$0xff]
      %v286 = vld [vmem:[%s257 + $0x98] sm:$0xff]
      %v287 = vld [vmem:[%s257 + $0xa0] sm:$0xff]
      %v288 = vld [vmem:[%s257 + $0xa8] sm:$0xff]
      %v289 = vld [vmem:[%s257 + $0xb0] sm:$0xff]
      %v290 = vld [vmem:[%s257 + $0xb8] sm:$0xff]
      %v291 = vld [vmem:[%s257 + $0xc0] sm:$0xff]
      %v292 = vld [vmem:[%s257 + $0xc8] sm:$0xff]
      %v293 = vld [vmem:[%s257 + $0xd0] sm:$0xff]
      %v294 = vld [vmem:[%s257 + $0xd8] sm:$0xff]
      %v295 = vld [vmem:[%s257 + $0xe0] sm:$0xff]
      %v296 = vld [vmem:[%s257 + $0xe8] sm:$0xff]
      %v297 = vld [vmem:[%s257 + $0xf0] sm:$0xff]
      %v298 = vld [vmem:[%s257 + $0xf8] sm:$0xff]
      %v299 = vld [vmem:[%s1] sm:$0xff]
      %v300 = vld [vmem:[%s1 + $0x8] sm:$0xff]
      %v301 = vld [vmem:[%s1 + $0x10] sm:$0xff]
      %v302 = vld [vmem:[%s1 + $0x18] sm:$0x7]
      %v303 = vpack.c.bf16 %v268, %v267
      %v304 = vpack.c.bf16 %v270, %v269
      %v305 = vpack.c.bf16 %v272, %v271
      %v306 = vpack.c.bf16 %v274, %v273
      %v307 = vpack.c.bf16 %v276, %v275
      %v308 = vpack.c.bf16 %v278, %v277
      %v309 = vpack.c.bf16 %v280, %v279
      %v310 = vpack.c.bf16 %v282, %v281
      %v311 = vpack.c.bf16 %v284, %v283
      %v312 = vpack.c.bf16 %v286, %v285
      %v313 = vpack.c.bf16 %v288, %v287
      %v314 = vpack.c.bf16 %v290, %v289
      %v315 = vpack.c.bf16 %v292, %v291
      %v316 = vpack.c.bf16 %v294, %v293
      %v317 = vpack.c.bf16 %v296, %v295
      %v318 = vpack.c.bf16 %v298, %v297
      %v319 = vpack.c.bf16 %v300, %v299
      %v320 = vpack.c.bf16 %v302, %v301
      %v321 = vld [vmem:[%s2] sm:$0x1]
      %v323 = vlaneseq
      %v324 = vshrl.u32 %v323, 7
      %v325 = vsub.s32 0, %v324
      %v326 = vrot.slane %v321, %v325
      %vm328 = vcmask 220160
      %v330 = vsel %vm328, %v303, 0
      %v333 = vsel %vm328, %v304, 0
      %v336 = vsel %vm328, %v305, 0
      %v339 = vsel %vm328, %v306, 0
      %v342 = vsel %vm328, %v307, 0
      %v345 = vsel %vm328, %v308, 0
      %v348 = vsel %vm328, %v309, 0
      %v351 = vsel %vm328, %v310, 0
      %v354 = vsel %vm328, %v311, 0
      %v357 = vsel %vm328, %v312, 0
      %v360 = vsel %vm328, %v313, 0
      %v363 = vsel %vm328, %v314, 0
      %v366 = vsel %vm328, %v315, 0
      %v369 = vsel %vm328, %v316, 0
      %v372 = vsel %vm328, %v317, 0
      %v375 = vsel %vm328, %v318, 0
      %vm377 = vcmask 1044480
      %vm378 = vcmask 1045504
      %v379 = vsel %vm377, 4294967295, 65535
      %v380 = vsel %vm378, %v379, 0
      %v382 = vand.u32 %v320, %v380
      %384 = vmatprep.subr.bf16.mxu0 0
      %385 = vmatpush1.bf16.msra.mxu0 0
      %386 = vmatprep.subr.bf16.mxu0 0
      %387 = vmatpush1.bf16.msra.mxu0 0
      %388 = vmatprep.subr.bf16.mxu0 0
      %389 = vmatpush1.bf16.msra.mxu0 0
      %390 = vmatprep.subr.bf16.mxu0 0
      %391 = vmatpush1.bf16.msra.mxu0 0
      %392 = vmatprep.subr.bf16.mxu0 0
      %393 = vmatpush1.bf16.msra.mxu0 0
      %394 = vmatprep.subr.bf16.mxu0 0
      %395 = vmatpush1.bf16.msra.mxu0 0
      %396 = vmatprep.subr.bf16.mxu0 0
      %397 = vmatpush1.bf16.msra.mxu0 %v382
      %398 = vmatprep.subr.bf16.mxu0 0
      %399 = vmatpush1.bf16.msra.mxu0 %v319
      %400 = vmatprep.subr.bf16.mxu0 0
      %401 = vmatpush2.bf16.msra.mxu0 0
      %402 = vmatprep.subr.bf16.mxu0 0
      %403 = vmatpush2.bf16.msra.mxu0 0
      %404 = vmatprep.subr.bf16.mxu0 0
      %405 = vmatpush2.bf16.msra.mxu0 0
      %406 = vmatprep.subr.bf16.mxu0 0
      %407 = vmatpush2.bf16.msra.mxu0 0
      %408 = vmatprep.subr.bf16.mxu0 0
      %409 = vmatpush2.bf16.msra.mxu0 0
      %410 = vmatprep.subr.bf16.mxu0 0
      %411 = vmatpush2.bf16.msra.mxu0 0
      %412 = vmatprep.subr.bf16.mxu0 0
      %413 = vmatpush2.bf16.msra.mxu0 0
      %414 = vmatprep.subr.bf16.mxu0 0
      %415 = vmatpush2.bf16.msra.mxu0 0
      %416 = vmatprep.mubr.bf16.mxu0 0
      %417 = vmatmul.mubr.bf16.gmra.mxu0 %v330
      %v418 = vpop.f32.mrf.mxu0
      %v419 = vadd.f32 %v326, %v418
      %v420 = vpop.f32.mrf.mxu0
      %v421 = vpop.f32.mrf.mxu0
      %v422 = vadd.f32 %v326, %v421
      %v423 = vpop.f32.mrf.mxu0
      %424 = vmatprep.mubr.bf16.mxu0 0
      %425 = vmatmul.mubr.bf16.gmra.mxu0 %v333
      %v426 = vpop.f32.mrf.mxu0
      %v427 = vadd.f32 %v326, %v426
      %v428 = vpop.f32.mrf.mxu0
      %v429 = vpop.f32.mrf.mxu0
      %v430 = vadd.f32 %v326, %v429
      %v431 = vpop.f32.mrf.mxu0
      %432 = vmatprep.mubr.bf16.mxu0 0
      %433 = vmatmul.mubr.bf16.gmra.mxu0 %v336
      %v434 = vpop.f32.mrf.mxu0
      %v435 = vadd.f32 %v326, %v434
      %v436 = vpop.f32.mrf.mxu0
      %v437 = vpop.f32.mrf.mxu0
      %v438 = vadd.f32 %v326, %v437
      %v439 = vpop.f32.mrf.mxu0
      %440 = vmatprep.mubr.bf16.mxu0 0
      %441 = vmatmul.mubr.bf16.gmra.mxu0 %v339
      %v442 = vpop.f32.mrf.mxu0
      %v443 = vadd.f32 %v326, %v442
      %v444 = vpop.f32.mrf.mxu0
      %v445 = vpop.f32.mrf.mxu0
      %v446 = vadd.f32 %v326, %v445
      %v447 = vpop.f32.mrf.mxu0
      %448 = vmatprep.mubr.bf16.mxu0 0
      %449 = vmatmul.mubr.bf16.gmra.mxu0 %v342
      %v450 = vpop.f32.mrf.mxu0
      %v451 = vadd.f32 %v326, %v450
      %v452 = vpop.f32.mrf.mxu0
      %v453 = vpop.f32.mrf.mxu0
      %v454 = vadd.f32 %v326, %v453
      %v455 = vpop.f32.mrf.mxu0
      %456 = vmatprep.mubr.bf16.mxu0 0
      %457 = vmatmul.mubr.bf16.gmra.mxu0 %v345
      %v458 = vpop.f32.mrf.mxu0
      %v459 = vadd.f32 %v326, %v458
      %v460 = vpop.f32.mrf.mxu0
      %v461 = vpop.f32.mrf.mxu0
      %v462 = vadd.f32 %v326, %v461
      %v463 = vpop.f32.mrf.mxu0
      %464 = vmatprep.mubr.bf16.mxu0 0
      %465 = vmatmul.mubr.bf16.gmra.mxu0 %v348
      %v466 = vpop.f32.mrf.mxu0
      %v467 = vadd.f32 %v326, %v466
      %v468 = vpop.f32.mrf.mxu0
      %v469 = vpop.f32.mrf.mxu0
      %v470 = vadd.f32 %v326, %v469
      %v471 = vpop.f32.mrf.mxu0
      %472 = vmatprep.mubr.bf16.mxu0 0
      %473 = vmatmul.mubr.bf16.gmra.mxu0 %v351
      %v474 = vpop.f32.mrf.mxu0
      %v475 = vadd.f32 %v326, %v474
      %v476 = vpop.f32.mrf.mxu0
      %v477 = vpop.f32.mrf.mxu0
      %v478 = vadd.f32 %v326, %v477
      %v479 = vpop.f32.mrf.mxu0
      %480 = vmatprep.mubr.bf16.mxu0 0
      %481 = vmatmul.mubr.bf16.gmra.mxu0 %v354
      %v482 = vpop.f32.mrf.mxu0
      %v483 = vadd.f32 %v326, %v482
      %v484 = vpop.f32.mrf.mxu0
      %v485 = vpop.f32.mrf.mxu0
      %v486 = vadd.f32 %v326, %v485
      %v487 = vpop.f32.mrf.mxu0
      %488 = vmatprep.mubr.bf16.mxu0 0
      %489 = vmatmul.mubr.bf16.gmra.mxu0 %v357
      %v490 = vpop.f32.mrf.mxu0
      %v491 = vadd.f32 %v326, %v490
      %v492 = vpop.f32.mrf.mxu0
      %v493 = vpop.f32.mrf.mxu0
      %v494 = vadd.f32 %v326, %v493
      %v495 = vpop.f32.mrf.mxu0
      %496 = vmatprep.mubr.bf16.mxu0 0
      %497 = vmatmul.mubr.bf16.gmra.mxu0 %v360
      %v498 = vpop.f32.mrf.mxu0
      %v499 = vadd.f32 %v326, %v498
      %v500 = vpop.f32.mrf.mxu0
      %v501 = vpop.f32.mrf.mxu0
      %v502 = vadd.f32 %v326, %v501
      %v503 = vpop.f32.mrf.mxu0
      %504 = vmatprep.mubr.bf16.mxu0 0
      %505 = vmatmul.mubr.bf16.gmra.mxu0 %v363
      %v506 = vpop.f32.mrf.mxu0
      %v507 = vadd.f32 %v326, %v506
      %v508 = vpop.f32.mrf.mxu0
      %v509 = vpop.f32.mrf.mxu0
      %v510 = vadd.f32 %v326, %v509
      %v511 = vpop.f32.mrf.mxu0
      %512 = vmatprep.mubr.bf16.mxu0 0
      %513 = vmatmul.mubr.bf16.gmra.mxu0 %v366
      %v514 = vpop.f32.mrf.mxu0
      %v515 = vadd.f32 %v326, %v514
      %v516 = vpop.f32.mrf.mxu0
      %v517 = vpop.f32.mrf.mxu0
      %v518 = vadd.f32 %v326, %v517
      %v519 = vpop.f32.mrf.mxu0
      %520 = vmatprep.mubr.bf16.mxu0 0
      %521 = vmatmul.mubr.bf16.gmra.mxu0 %v369
      %v522 = vpop.f32.mrf.mxu0
      %v523 = vadd.f32 %v326, %v522
      %v524 = vpop.f32.mrf.mxu0
      %v525 = vpop.f32.mrf.mxu0
      %v526 = vadd.f32 %v326, %v525
      %v527 = vpop.f32.mrf.mxu0
      %528 = vmatprep.mubr.bf16.mxu0 0
      %529 = vmatmul.mubr.bf16.gmra.mxu0 %v372
      %v530 = vpop.f32.mrf.mxu0
      %v531 = vadd.f32 %v326, %v530
      %v532 = vpop.f32.mrf.mxu0
      %v533 = vpop.f32.mrf.mxu0
      %v534 = vadd.f32 %v326, %v533
      %v535 = vpop.f32.mrf.mxu0
      %536 = vmatprep.mubr.bf16.mxu0 0
      %537 = vmatmul.mubr.bf16.gmra.mxu0 %v375
      %v538 = vpop.f32.mrf.mxu0
      %v539 = vadd.f32 %v326, %v538
      %v540 = vpop.f32.mrf.mxu0
      %v541 = vpop.f32.mrf.mxu0
      %v542 = vadd.f32 %v326, %v541
      %v543 = vpop.f32.mrf.mxu0
      %544 = vdwg.mxu0
      %v545 = vmax.f32 %v419, 0.0
      %v546 = vmax.f32 %v422, 0.0
      %v547 = vmax.f32 %v427, 0.0
      %v548 = vmax.f32 %v430, 0.0
      %v549 = vmax.f32 %v435, 0.0
      %v550 = vmax.f32 %v438, 0.0
      %v551 = vmax.f32 %v443, 0.0
      %v552 = vmax.f32 %v446, 0.0
      %v553 = vmax.f32 %v451, 0.0
      %v554 = vmax.f32 %v454, 0.0
      %v555 = vmax.f32 %v459, 0.0
      %v556 = vmax.f32 %v462, 0.0
      %v557 = vmax.f32 %v467, 0.0
      %v558 = vmax.f32 %v470, 0.0
      %v559 = vmax.f32 %v475, 0.0
      %v560 = vmax.f32 %v478, 0.0
      %v561 = vmax.f32 %v483, 0.0
      %v562 = vmax.f32 %v486, 0.0
      %v563 = vmax.f32 %v491, 0.0
      %v564 = vmax.f32 %v494, 0.0
      %v565 = vmax.f32 %v499, 0.0
      %v566 = vmax.f32 %v502, 0.0
      %v567 = vmax.f32 %v507, 0.0
      %v568 = vmax.f32 %v510, 0.0
      %v569 = vmax.f32 %v515, 0.0
      %v570 = vmax.f32 %v518, 0.0
      %v571 = vmax.f32 %v523, 0.0
      %v572 = vmax.f32 %v526, 0.0
      %v573 = vmax.f32 %v531, 0.0
      %v574 = vmax.f32 %v534, 0.0
      %v575 = vmax.f32 %v539, 0.0
      %v576 = vmax.f32 %v542, 0.0
      %v577 = vld [vmem:[%s260] sm:$0x1]
      %v578 = vld [vmem:[%s4] sm:$0xff]
      %v579 = vld [vmem:[%s4 + $0x8] sm:$0xff]
      %v580 = vld [vmem:[%s4 + $0x10] sm:$0xff]
      %v581 = vld [vmem:[%s4 + $0x18] sm:$0xff]
      %v582 = vpack.c.bf16 %v577, %v577
      %v583 = vpack.c.bf16 %v579, %v578
      %v584 = vpack.c.bf16 %v581, %v580
      %v585 = vld [vmem:[%s5] sm:$0x1]
      %vm586 = vcmask 261120
      %v588 = vsel %vm586, %v582, 0
      %590 = vmatprep.subr.bf16.mxu0 0
      %591 = vmatpush1.bf16.msra.mxu0 0
      %592 = vmatprep.subr.bf16.mxu0 0
      %593 = vmatpush1.bf16.msra.mxu0 0
      %594 = vmatprep.subr.bf16.mxu0 0
      %595 = vmatpush1.bf16.msra.mxu0 0
      %596 = vmatprep.subr.bf16.mxu0 0
      %597 = vmatpush1.bf16.msra.mxu0 0
      %598 = vmatprep.subr.bf16.mxu0 0
      %599 = vmatpush1.bf16.msra.mxu0 0
      %600 = vmatprep.subr.bf16.mxu0 0
      %601 = vmatpush1.bf16.msra.mxu0 0
      %602 = vmatprep.subr.bf16.mxu0 0
      %603 = vmatpush1.bf16.msra.mxu0 %v584
      %604 = vmatprep.subr.bf16.mxu0 0
      %605 = vmatpush1.bf16.msra.mxu0 %v583
      %606 = vmatprep.subr.bf16.mxu0 0
      %607 = vmatpush2.bf16.msra.mxu0 0
      %608 = vmatprep.subr.bf16.mxu0 0
      %609 = vmatpush2.bf16.msra.mxu0 0
      %610 = vmatprep.subr.bf16.mxu0 0
      %611 = vmatpush2.bf16.msra.mxu0 0
      %612 = vmatprep.subr.bf16.mxu0 0
      %613 = vmatpush2.bf16.msra.mxu0 0
      %614 = vmatprep.subr.bf16.mxu0 0
      %615 = vmatpush2.bf16.msra.mxu0 0
      %616 = vmatprep.subr.bf16.mxu0 0
      %617 = vmatpush2.bf16.msra.mxu0 0
      %618 = vmatprep.subr.bf16.mxu0 0
      %619 = vmatpush2.bf16.msra.mxu0 0
      %620 = vmatprep.subr.bf16.mxu0 0
      %621 = vmatpush2.bf16.msra.mxu0 0
      %622 = vmatprep.mubr.bf16.mxu0 0
      %623 = vmatmul.mubr.bf16.gmra.mxu0 %v588
      %v624 = vpop.f32.mrf.mxu0
      %v625 = vadd.f32 %v585, %v624
      %v626 = vpop.f32.mrf.mxu0
      %v627 = vpop.f32.mrf.mxu0
      %v628 = vpop.f32.mrf.mxu0
      %629 = vdwg.mxu0
      %v630 = vsub.f32 0.0, %v625
      %v631 = vmul.f32 %v630, 1.442695
      %v632 = vpow.pop %v631
      %v633 = vadd.f32 %v632, 1.0
      %v634 = vrcp.pop %v633
      %v635 = vlaneseq
      %v636 = vshrl.u32 %v635, 7
      %v637 = vsub.s32 0, %v636
      %v638 = vrot.slane %v634, %v637
      %v639 = vmul.f32 %v545, %v638
      %v640 = vmul.f32 %v546, %v638
      %v641 = vmul.f32 %v547, %v638
      %v642 = vmul.f32 %v548, %v638
      %v643 = vmul.f32 %v549, %v638
      %v644 = vmul.f32 %v550, %v638
      %v645 = vmul.f32 %v551, %v638
      %v646 = vmul.f32 %v552, %v638
      %v647 = vmul.f32 %v553, %v638
      %v648 = vmul.f32 %v554, %v638
      %v649 = vmul.f32 %v555, %v638
      %v650 = vmul.f32 %v556, %v638
      %v651 = vmul.f32 %v557, %v638
      %v652 = vmul.f32 %v558, %v638
      %v653 = vmul.f32 %v559, %v638
      %v654 = vmul.f32 %v560, %v638
      %v655 = vmul.f32 %v561, %v638
      %v656 = vmul.f32 %v562, %v638
      %v657 = vmul.f32 %v563, %v638
      %v658 = vmul.f32 %v564, %v638
      %v659 = vmul.f32 %v565, %v638
      %v660 = vmul.f32 %v566, %v638
      %v661 = vmul.f32 %v567, %v638
      %v662 = vmul.f32 %v568, %v638
      %v663 = vmul.f32 %v569, %v638
      %v664 = vmul.f32 %v570, %v638
      %v665 = vmul.f32 %v571, %v638
      %v666 = vmul.f32 %v572, %v638
      %v667 = vmul.f32 %v573, %v638
      %v668 = vmul.f32 %v574, %v638
      %v669 = vmul.f32 %v575, %v638
      %v670 = vmul.f32 %v576, %v638
      %vm671 = vcmask 130048
      %672 = vst.msk [vmem:[%s265] sm:$0xff] %vm671, %v639
      %673 = vst.msk [vmem:[%s265 + $0x8] sm:$0xff] %vm671, %v640
      %674 = vst.msk [vmem:[%s265 + $0x10] sm:$0xff] %vm671, %v641
      %675 = vst.msk [vmem:[%s265 + $0x18] sm:$0xff] %vm671, %v642
      %676 = vst.msk [vmem:[%s265 + $0x20] sm:$0xff] %vm671, %v643
      %677 = vst.msk [vmem:[%s265 + $0x28] sm:$0xff] %vm671, %v644
      %678 = vst.msk [vmem:[%s265 + $0x30] sm:$0xff] %vm671, %v645
      %679 = vst.msk [vmem:[%s265 + $0x38] sm:$0xff] %vm671, %v646
      %680 = vst.msk [vmem:[%s265 + $0x40] sm:$0xff] %vm671, %v647
      %681 = vst.msk [vmem:[%s265 + $0x48] sm:$0xff] %vm671, %v648
      %682 = vst.msk [vmem:[%s265 + $0x50] sm:$0xff] %vm671, %v649
      %683 = vst.msk [vmem:[%s265 + $0x58] sm:$0xff] %vm671, %v650
      %684 = vst.msk [vmem:[%s265 + $0x60] sm:$0xff] %vm671, %v651
      %685 = vst.msk [vmem:[%s265 + $0x68] sm:$0xff] %vm671, %v652
      %686 = vst.msk [vmem:[%s265 + $0x70] sm:$0xff] %vm671, %v653
      %687 = vst.msk [vmem:[%s265 + $0x78] sm:$0xff] %vm671, %v654
      %688 = vst.msk [vmem:[%s265 + $0x80] sm:$0xff] %vm671, %v655
      %689 = vst.msk [vmem:[%s265 + $0x88] sm:$0xff] %vm671, %v656
      %690 = vst.msk [vmem:[%s265 + $0x90] sm:$0xff] %vm671, %v657
      %691 = vst.msk [vmem:[%s265 + $0x98] sm:$0xff] %vm671, %v658
      %692 = vst.msk [vmem:[%s265 + $0xa0] sm:$0xff] %vm671, %v659
      %693 = vst.msk [vmem:[%s265 + $0xa8] sm:$0xff] %vm671, %v660
      %694 = vst.msk [vmem:[%s265 + $0xb0] sm:$0xff] %vm671, %v661
      %695 = vst.msk [vmem:[%s265 + $0xb8] sm:$0xff] %vm671, %v662
      %696 = vst.msk [vmem:[%s265 + $0xc0] sm:$0xff] %vm671, %v663
      %697 = vst.msk [vmem:[%s265 + $0xc8] sm:$0xff] %vm671, %v664
      %698 = vst.msk [vmem:[%s265 + $0xd0] sm:$0xff] %vm671, %v665
      %699 = vst.msk [vmem:[%s265 + $0xd8] sm:$0xff] %vm671, %v666
      %700 = vst.msk [vmem:[%s265 + $0xe0] sm:$0xff] %vm671, %v667
      %701 = vst.msk [vmem:[%s265 + $0xe8] sm:$0xff] %vm671, %v668
      %702 = vst.msk [vmem:[%s265 + $0xf0] sm:$0xff] %vm671, %v669
      %703 = vst.msk [vmem:[%s265 + $0xf8] sm:$0xff] %vm671, %v670
      %p704 = scmp.lt.s32.totalorder %s17, 1
      %s705 = scalar_select %p704, %s17, 1
      %s706 = smul.addr %s705, 32
      %s707 = smul.addr %s706, 8
      %s708 = scalar_lea.vmem %s6, %s707
      // Predicated region
      $region45: #{plv_forward.14} parent=43 // pred_check
        %p709 = pneg %p171
      $region46: #{plv_forward.14} parent=43 // pred_check_branch
        %711 = sbr.rel (%p709) target = $region48
      $region47: #{plv_forward.14} parent=43 // pred_region
        _
      $region48: #{plv_forward.14} parent=43 // pred_fallthru
        _
    $region44: #{plv_forward.14} parent=5 // pred_fallthru
      _
    %p712 = scmp.le.s32.totalorder 2, %s12
    // Predicated region
    $region49: #{plv_forward.14} parent=5 // pred_check
      %p713 = pneg %p712
    $region50: #{plv_forward.14} parent=5 // pred_check_branch
      %715 = sbr.rel (%p713) target = $region52
    $region51: #{plv_forward.14} parent=5 // pred_region
      %s716 = ssub.s32 %s12, 2
      // Predicated region
      $region53: #{plv_forward.14} parent=51 // pred_check
        %p717 = pneg %p177
      $region54: #{plv_forward.14} parent=51 // pred_check_branch
        %719 = sbr.rel (%p717) target = $region56
      $region55: #{plv_forward.14} parent=51 // pred_region
        %p720 = scmp.lt.s32.totalorder %s18, 1
        %s721 = scalar_select %p720, %s18, 1
        %s722 = smul.addr %s721, 32
        %s723 = smul.addr %s722, 8
        %s724 = scalar_lea.vmem %s6, %s723
      $region56: #{plv_forward.14} parent=51 // pred_fallthru
        _
    $region52: #{plv_forward.14} parent=5 // pred_fallthru
      _
  $region6: #{plv_forward.14} parent=0 // loop_footer
    %s16 = sadd.s32 1, %s12
  $region7: #{plv_forward.14} parent=0 // loop_footer_branch
    %11 = sbr.rel target = $region3
  $region8: #{plv_forward.14} parent=0 // loop_exit
    _

// kernel: plv_forward.11
$region0: #{plv_forward.11}
  #allocation0 [shape = 'u32[]', space=smem, size = 0x4, offset = 0x4, fixed_abs, tag = 'smem constant byte address 0x4 - core index']
  #allocation1 [shape = 'u32[144,128]{1,0:T(1,128)}', space=vmem, size = 0x12000, scoped, tag = 'internal scratch']
  %s0 = inlined_call_operand.vmem [shape: f32[2,8,32], index: 0, kind: input, shape index: {}]
  %s1 = inlined_call_operand.vmem [shape: f32[2,1,8], index: 1, kind: input, shape index: {}]
  %s2 = inlined_call_operand.vmem [shape: f32[32,96], index: 2, kind: input, shape index: {}]
  %s3 = inlined_call_operand.vmem [shape: f32[1,96], index: 3, kind: input, shape index: {}]
  %s4 = inlined_call_operand.vmem [shape: f32[32,32], index: 4, kind: input, shape index: {}]
  %s5 = inlined_call_operand.vmem [shape: f32[1,32], index: 5, kind: input, shape index: {}]
  %s6 = inlined_call_operand.vmem [shape: f32[1,32], index: 6, kind: input, shape index: {}]
  %s7 = inlined_call_operand.vmem [shape: f32[1,32], index: 7, kind: input, shape index: {}]
  %s8 = inlined_call_operand.vmem [shape: f32[32,64], index: 8, kind: input, shape index: {}]
  %s9 = inlined_call_operand.vmem [shape: f32[1,64], index: 9, kind: input, shape index: {}]
  %s10 = inlined_call_operand.vmem [shape: f32[64,32], index: 10, kind: input, shape index: {}]
  %s11 = inlined_call_operand.vmem [shape: f32[1,32], index: 11, kind: input, shape index: {}]
  %s12 = inlined_call_operand.vmem [shape: f32[1,32], index: 12, kind: input, shape index: {}]
  %s13 = inlined_call_operand.vmem [shape: f32[1,32], index: 13, kind: input, shape index: {}]
  %s14 = inlined_call_operand.vmem [shape: f32[2,8,32], index: 14, kind: output, shape index: {}]
  %s15 = sld [smem:[#allocation0]]
  $region89: #{plv_forward.11} parent=0
    _
  %s17 = ssub.s32 1, %s15
  %s18 = scalar_select 0, %s17, %s15
  loop: start=0, step=1, limit=4
  $region2: #{plv_forward.11} parent=0 // loop_pre_header
    _
  $region3: #{plv_forward.11} parent=0 // loop_header
    %s20 = sphi 0, %s24
    %p21 = scmp.ge.s32.totalorder %s20, 4
    %s30 = sphi 0, %s32
    %s33 = sphi 0, %s30
    %s34 = sphi 0, %s33
    %s50 = sphi 0, %s34
    %s56 = sphi 0, %s58
    %s59 = sphi 0, %s56
    %s60 = sphi 0, %s59
    %s76 = sphi 0, %s60
    %s80 = sphi 0, %s80
    %s82 = sphi 0, %s80
    %s83 = sphi 0, %s82
    %s97 = sphi 0, %s83
    %s101 = sphi 0, %s101
    %s103 = sphi 0, %s101
    %s104 = sphi 0, %s103
    %s118 = sphi 0, %s104
    %s122 = sphi 0, %s122
    %s124 = sphi 0, %s122
    %s125 = sphi 0, %s124
    %s139 = sphi 0, %s125
    %s143 = sphi 0, %s143
    %s145 = sphi 0, %s143
    %s146 = sphi 0, %s145
    %s160 = sphi 0, %s146
    %s164 = sphi 0, %s164
    %s166 = sphi 0, %s164
    %s167 = sphi 0, %s166
    %s181 = sphi 0, %s167
    %s185 = sphi 0, %s185
    %s187 = sphi 0, %s185
    %s188 = sphi 0, %s187
    %s202 = sphi 0, %s188
    %s206 = sphi 0, %s206
    %s208 = sphi 0, %s206
    %s209 = sphi 0, %s208
    %s223 = sphi 0, %s209
    %s227 = sphi 0, %s227
    %s229 = sphi 0, %s227
    %s230 = sphi 0, %s229
    %s244 = sphi 0, %s230
    %s248 = sphi 0, %s248
    %s250 = sphi 0, %s248
    %s251 = sphi 0, %s250
    %s265 = sphi 0, %s251
    %s269 = sphi 0, %s269
    %s271 = sphi 0, %s269
    %s272 = sphi 0, %s271
    %s286 = sphi 0, %s272
    %s290 = sphi 0, %s290
    %s292 = sphi 0, %s290
    %s293 = sphi 0, %s292
    %s307 = sphi 0, %s293
    %s311 = sphi 0, %s311
    %s313 = sphi 0, %s311
    %s314 = sphi 0, %s313
    %s328 = sphi 0, %s314
    %s334 = sphi 0, %s336
    %s337 = sphi 0, %s334
    %s338 = sphi 0, %s337
    %s354 = sphi 0, %s338
  $region4: #{plv_forward.11} parent=0 // loop_header_branch
    %23 = sbr.rel (%p21) target = $region8
  $region5: #{plv_forward.11} parent=0 // loop_body
    %s25 = ssub.s32 %s20, 1
    %s26 = ssub.s32 %s20, 2
    %s27 = sadd.s32 %s20, 1
    %s28 = ssub.s32 %s20, %s27
    %p29 = scmp.eq.s32.totalorder %s28, 0
    %s31 = sadd.s32 %s30, 1
    %s32 = scalar_select %p29, %s30, %s31
    %p35 = pneg %p29
    %p36 = scmp.eq.s32.totalorder %s20, 1
    %p37 = por %p35, %p36
    %p38 = scmp.ne.s32.totalorder %s30, %s33
    %p39 = scmp.eq.s32.totalorder %s20, 0
    %p40 = por %p38, %p39
    %p41 = scmp.ne.s32.totalorder %s30, %s33
    %p42 = scmp.eq.s32.totalorder %s25, 1
    %p43 = por %p41, %p42
    %p44 = scmp.ne.s32.totalorder %s33, %s34
    %p45 = scmp.eq.s32.totalorder %s25, 0
    %p46 = por %p44, %p45
    %p47 = scmp.ne.s32.totalorder %s33, %s34
    %p48 = scmp.eq.s32.totalorder %s26, 1
    %p49 = por %p47, %p48
    %p51 = scmp.ne.s32.totalorder %s34, %s50
    %p52 = scmp.eq.s32.totalorder %s26, 0
    %p53 = por %p51, %p52
    %s54 = ssub.s32 %s20, %s27
    %p55 = scmp.eq.s32.totalorder %s54, 0
    %s57 = sadd.s32 %s56, 1
    %s58 = scalar_select %p55, %s56, %s57
    %p61 = pneg %p55
    %p62 = scmp.eq.s32.totalorder %s20, 1
    %p63 = por %p61, %p62
    %p64 = scmp.ne.s32.totalorder %s56, %s59
    %p65 = scmp.eq.s32.totalorder %s20, 0
    %p66 = por %p64, %p65
    %p67 = scmp.ne.s32.totalorder %s56, %s59
    %p68 = scmp.eq.s32.totalorder %s25, 1
    %p69 = por %p67, %p68
    %p70 = scmp.ne.s32.totalorder %s59, %s60
    %p71 = scmp.eq.s32.totalorder %s25, 0
    %p72 = por %p70, %p71
    %p73 = scmp.ne.s32.totalorder %s59, %s60
    %p74 = scmp.eq.s32.totalorder %s26, 1
    %p75 = por %p73, %p74
    %p77 = scmp.ne.s32.totalorder %s60, %s76
    %p78 = scmp.eq.s32.totalorder %s26, 0
    %p79 = por %p77, %p78
    %s81 = sadd.s32 %s80, 1
    %p84 = scmp.eq.s32.totalorder %s20, 1
    %p85 = scmp.ne.s32.totalorder %s80, %s82
    %p86 = scmp.eq.s32.totalorder %s20, 0
    %p87 = por %p85, %p86
    %p88 = scmp.ne.s32.totalorder %s80, %s82
    %p89 = scmp.eq.s32.totalorder %s25, 1
    %p90 = por %p88, %p89
    %p91 = scmp.ne.s32.totalorder %s82, %s83
    %p92 = scmp.eq.s32.totalorder %s25, 0
    %p93 = por %p91, %p92
    %p94 = scmp.ne.s32.totalorder %s82, %s83
    %p95 = scmp.eq.s32.totalorder %s26, 1
    %p96 = por %p94, %p95
    %p98 = scmp.ne.s32.totalorder %s83, %s97
    %p99 = scmp.eq.s32.totalorder %s26, 0
    %p100 = por %p98, %p99
    %s102 = sadd.s32 %s101, 1
    %p105 = scmp.eq.s32.totalorder %s20, 1
    %p106 = scmp.ne.s32.totalorder %s101, %s103
    %p107 = scmp.eq.s32.totalorder %s20, 0
    %p108 = por %p106, %p107
    %p109 = scmp.ne.s32.totalorder %s101, %s103
    %p110 = scmp.eq.s32.totalorder %s25, 1
    %p111 = por %p109, %p110
    %p112 = scmp.ne.s32.totalorder %s103, %s104
    %p113 = scmp.eq.s32.totalorder %s25, 0
    %p114 = por %p112, %p113
    %p115 = scmp.ne.s32.totalorder %s103, %s104
    %p116 = scmp.eq.s32.totalorder %s26, 1
    %p117 = por %p115, %p116
    %p119 = scmp.ne.s32.totalorder %s104, %s118
    %p120 = scmp.eq.s32.totalorder %s26, 0
    %p121 = por %p119, %p120
    %s123 = sadd.s32 %s122, 1
    %p126 = scmp.eq.s32.totalorder %s20, 1
    %p127 = scmp.ne.s32.totalorder %s122, %s124
    %p128 = scmp.eq.s32.totalorder %s20, 0
    %p129 = por %p127, %p128
    %p130 = scmp.ne.s32.totalorder %s122, %s124
    %p131 = scmp.eq.s32.totalorder %s25, 1
    %p132 = por %p130, %p131
    %p133 = scmp.ne.s32.totalorder %s124, %s125
    %p134 = scmp.eq.s32.totalorder %s25, 0
    %p135 = por %p133, %p134
    %p136 = scmp.ne.s32.totalorder %s124, %s125
    %p137 = scmp.eq.s32.totalorder %s26, 1
    %p138 = por %p136, %p137
    %p140 = scmp.ne.s32.totalorder %s125, %s139
    %p141 = scmp.eq.s32.totalorder %s26, 0
    %p142 = por %p140, %p141
    %s144 = sadd.s32 %s143, 1
    %p147 = scmp.eq.s32.totalorder %s20, 1
    %p148 = scmp.ne.s32.totalorder %s143, %s145
    %p149 = scmp.eq.s32.totalorder %s20, 0
    %p150 = por %p148, %p149
    %p151 = scmp.ne.s32.totalorder %s143, %s145
    %p152 = scmp.eq.s32.totalorder %s25, 1
    %p153 = por %p151, %p152
    %p154 = scmp.ne.s32.totalorder %s145, %s146
    %p155 = scmp.eq.s32.totalorder %s25, 0
    %p156 = por %p154, %p155
    %p157 = scmp.ne.s32.totalorder %s145, %s146
    %p158 = scmp.eq.s32.totalorder %s26, 1
    %p159 = por %p157, %p158
    %p161 = scmp.ne.s32.totalorder %s146, %s160
    %p162 = scmp.eq.s32.totalorder %s26, 0
    %p163 = por %p161, %p162
    %s165 = sadd.s32 %s164, 1
    %p168 = scmp.eq.s32.totalorder %s20, 1
    %p169 = scmp.ne.s32.totalorder %s164, %s166
    %p170 = scmp.eq.s32.totalorder %s20, 0
    %p171 = por %p169, %p170
    %p172 = scmp.ne.s32.totalorder %s164, %s166
    %p173 = scmp.eq.s32.totalorder %s25, 1
    %p174 = por %p172, %p173
    %p175 = scmp.ne.s32.totalorder %s166, %s167
    %p176 = scmp.eq.s32.totalorder %s25, 0
    %p177 = por %p175, %p176
    %p178 = scmp.ne.s32.totalorder %s166, %s167
    %p179 = scmp.eq.s32.totalorder %s26, 1
    %p180 = por %p178, %p179
    %p182 = scmp.ne.s32.totalorder %s167, %s181
    %p183 = scmp.eq.s32.totalorder %s26, 0
    %p184 = por %p182, %p183
    %s186 = sadd.s32 %s185, 1
    %p189 = scmp.eq.s32.totalorder %s20, 1
    %p190 = scmp.ne.s32.totalorder %s185, %s187
    %p191 = scmp.eq.s32.totalorder %s20, 0
    %p192 = por %p190, %p191
    %p193 = scmp.ne.s32.totalorder %s185, %s187
    %p194 = scmp.eq.s32.totalorder %s25, 1
    %p195 = por %p193, %p194
    %p196 = scmp.ne.s32.totalorder %s187, %s188
    %p197 = scmp.eq.s32.totalorder %s25, 0
    %p198 = por %p196, %p197
    %p199 = scmp.ne.s32.totalorder %s187, %s188
    %p200 = scmp.eq.s32.totalorder %s26, 1
    %p201 = por %p199, %p200
    %p203 = scmp.ne.s32.totalorder %s188, %s202
    %p204 = scmp.eq.s32.totalorder %s26, 0
    %p205 = por %p203, %p204
    %s207 = sadd.s32 %s206, 1
    %p210 = scmp.eq.s32.totalorder %s20, 1
    %p211 = scmp.ne.s32.totalorder %s206, %s208
    %p212 = scmp.eq.s32.totalorder %s20, 0
    %p213 = por %p211, %p212
    %p214 = scmp.ne.s32.totalorder %s206, %s208
    %p215 = scmp.eq.s32.totalorder %s25, 1
    %p216 = por %p214, %p215
    %p217 = scmp.ne.s32.totalorder %s208, %s209
    %p218 = scmp.eq.s32.totalorder %s25, 0
    %p219 = por %p217, %p218
    %p220 = scmp.ne.s32.totalorder %s208, %s209
    %p221 = scmp.eq.s32.totalorder %s26, 1
    %p222 = por %p220, %p221
    %p224 = scmp.ne.s32.totalorder %s209, %s223
    %p225 = scmp.eq.s32.totalorder %s26, 0
    %p226 = por %p224, %p225
    %s228 = sadd.s32 %s227, 1
    %p231 = scmp.eq.s32.totalorder %s20, 1
    %p232 = scmp.ne.s32.totalorder %s227, %s229
    %p233 = scmp.eq.s32.totalorder %s20, 0
    %p234 = por %p232, %p233
    %p235 = scmp.ne.s32.totalorder %s227, %s229
    %p236 = scmp.eq.s32.totalorder %s25, 1
    %p237 = por %p235, %p236
    %p238 = scmp.ne.s32.totalorder %s229, %s230
    %p239 = scmp.eq.s32.totalorder %s25, 0
    %p240 = por %p238, %p239
    %p241 = scmp.ne.s32.totalorder %s229, %s230
    %p242 = scmp.eq.s32.totalorder %s26, 1
    %p243 = por %p241, %p242
    %p245 = scmp.ne.s32.totalorder %s230, %s244
    %p246 = scmp.eq.s32.totalorder %s26, 0
    %p247 = por %p245, %p246
    %s249 = sadd.s32 %s248, 1
    %p252 = scmp.eq.s32.totalorder %s20, 1
    %p253 = scmp.ne.s32.totalorder %s248, %s250
    %p254 = scmp.eq.s32.totalorder %s20, 0
    %p255 = por %p253, %p254
    %p256 = scmp.ne.s32.totalorder %s248, %s250
    %p257 = scmp.eq.s32.totalorder %s25, 1
    %p258 = por %p256, %p257
    %p259 = scmp.ne.s32.totalorder %s250, %s251
    %p260 = scmp.eq.s32.totalorder %s25, 0
    %p261 = por %p259, %p260
    %p262 = scmp.ne.s32.totalorder %s250, %s251
    %p263 = scmp.eq.s32.totalorder %s26, 1
    %p264 = por %p262, %p263
    %p266 = scmp.ne.s32.totalorder %s251, %s265
    %p267 = scmp.eq.s32.totalorder %s26, 0
    %p268 = por %p266, %p267
    %s270 = sadd.s32 %s269, 1
    %p273 = scmp.eq.s32.totalorder %s20, 1
    %p274 = scmp.ne.s32.totalorder %s269, %s271
    %p275 = scmp.eq.s32.totalorder %s20, 0
    %p276 = por %p274, %p275
    %p277 = scmp.ne.s32.totalorder %s269, %s271
    %p278 = scmp.eq.s32.totalorder %s25, 1
    %p279 = por %p277, %p278
    %p280 = scmp.ne.s32.totalorder %s271, %s272
    %p281 = scmp.eq.s32.totalorder %s25, 0
    %p282 = por %p280, %p281
    %p283 = scmp.ne.s32.totalorder %s271, %s272
    %p284 = scmp.eq.s32.totalorder %s26, 1
    %p285 = por %p283, %p284
    %p287 = scmp.ne.s32.totalorder %s272, %s286
    %p288 = scmp.eq.s32.totalorder %s26, 0
    %p289 = por %p287, %p288
    %s291 = sadd.s32 %s290, 1
    %p294 = scmp.eq.s32.totalorder %s20, 1
    %p295 = scmp.ne.s32.totalorder %s290, %s292
    %p296 = scmp.eq.s32.totalorder %s20, 0
    %p297 = por %p295, %p296
    %p298 = scmp.ne.s32.totalorder %s290, %s292
    %p299 = scmp.eq.s32.totalorder %s25, 1
    %p300 = por %p298, %p299
    %p301 = scmp.ne.s32.totalorder %s292, %s293
    %p302 = scmp.eq.s32.totalorder %s25, 0
    %p303 = por %p301, %p302
    %p304 = scmp.ne.s32.totalorder %s292, %s293
    %p305 = scmp.eq.s32.totalorder %s26, 1
    %p306 = por %p304, %p305
    %p308 = scmp.ne.s32.totalorder %s293, %s307
    %p309 = scmp.eq.s32.totalorder %s26, 0
    %p310 = por %p308, %p309
    %s312 = sadd.s32 %s311, 1
    %p315 = scmp.eq.s32.totalorder %s20, 1
    %p316 = scmp.ne.s32.totalorder %s311, %s313
    %p317 = scmp.eq.s32.totalorder %s20, 0
    %p318 = por %p316, %p317
    %p319 = scmp.ne.s32.totalorder %s311, %s313
    %p320 = scmp.eq.s32.totalorder %s25, 1
    %p321 = por %p319, %p320
    %p322 = scmp.ne.s32.totalorder %s313, %s314
    %p323 = scmp.eq.s32.totalorder %s25, 0
    %p324 = por %p322, %p323
    %p325 = scmp.ne.s32.totalorder %s313, %s314
    %p326 = scmp.eq.s32.totalorder %s26, 1
    %p327 = por %p325, %p326
    %p329 = scmp.ne.s32.totalorder %s314, %s328
    %p330 = scmp.eq.s32.totalorder %s26, 0
    %p331 = por %p329, %p330
    %s332 = ssub.s32 %s20, %s27
    %p333 = scmp.eq.s32.totalorder %s332, 0
    %s335 = sadd.s32 %s334, 1
    %s336 = scalar_select %p333, %s334, %s335
    %p339 = pneg %p333
    %p340 = scmp.eq.s32.totalorder %s20, 1
    %p341 = por %p339, %p340
    %p342 = scmp.ne.s32.totalorder %s334, %s337
    %p343 = scmp.eq.s32.totalorder %s20, 0
    %p344 = por %p342, %p343
    %p345 = scmp.ne.s32.totalorder %s334, %s337
    %p346 = scmp.eq.s32.totalorder %s25, 1
    %p347 = por %p345, %p346
    %p348 = scmp.ne.s32.totalorder %s337, %s338
    %p349 = scmp.eq.s32.totalorder %s25, 0
    %p350 = por %p348, %p349
    %p351 = scmp.ne.s32.totalorder %s337, %s338
    %p352 = scmp.eq.s32.totalorder %s26, 1
    %p353 = por %p351, %p352
    %p355 = scmp.ne.s32.totalorder %s338, %s354
    %p356 = scmp.eq.s32.totalorder %s26, 0
    %p357 = por %p355, %p356
    %p358 = scmp.le.s32.totalorder 1, %s20
    %p359 = scmp.lt.s32.totalorder %s20, 3
    %p360 = pnand %p358, %p359
    %p361 = pneg %p360
    // Predicated region
    $region9: #{plv_forward.11} parent=5 // pred_check
      _
    $region10: #{plv_forward.11} parent=5 // pred_check_branch
      %363 = sbr.rel (%p360) target = $region12
    $region11: #{plv_forward.11} parent=5 // pred_region
      %s364 = ssub.s32 %s20, 1
      // Predicated region
      $region13: #{plv_forward.11} parent=11 // pred_check
        %p365 = pneg %p93
      $region14: #{plv_forward.11} parent=11 // pred_check_branch
        %367 = sbr.rel (%p365) target = $region16
      $region15: #{plv_forward.11} parent=11 // pred_region
        _
      $region16: #{plv_forward.11} parent=11 // pred_fallthru
        _
      // Predicated region
      $region17: #{plv_forward.11} parent=11 // pred_check
        %p368 = pneg %p114
      $region18: #{plv_forward.11} parent=11 // pred_check_branch
        %370 = sbr.rel (%p368) target = $region20
      $region19: #{plv_forward.11} parent=11 // pred_region
        _
      $region20: #{plv_forward.11} parent=11 // pred_fallthru
        _
      // Predicated region
      $region21: #{plv_forward.11} parent=11 // pred_check
        %p371 = pneg %p135
      $region22: #{plv_forward.11} parent=11 // pred_check_branch
        %373 = sbr.rel (%p371) target = $region24
      $region23: #{plv_forward.11} parent=11 // pred_region
        _
      $region24: #{plv_forward.11} parent=11 // pred_fallthru
        _
      // Predicated region
      $region25: #{plv_forward.11} parent=11 // pred_check
        %p374 = pneg %p156
      $region26: #{plv_forward.11} parent=11 // pred_check_branch
        %376 = sbr.rel (%p374) target = $region28
      $region27: #{plv_forward.11} parent=11 // pred_region
        _
      $region28: #{plv_forward.11} parent=11 // pred_fallthru
        _
      // Predicated region
      $region29: #{plv_forward.11} parent=11 // pred_check
        %p377 = pneg %p177
      $region30: #{plv_forward.11} parent=11 // pred_check_branch
        %379 = sbr.rel (%p377) target = $region32
      $region31: #{plv_forward.11} parent=11 // pred_region
        _
      $region32: #{plv_forward.11} parent=11 // pred_fallthru
        _
      // Predicated region
      $region33: #{plv_forward.11} parent=11 // pred_check
        %p380 = pneg %p198
      $region34: #{plv_forward.11} parent=11 // pred_check_branch
        %382 = sbr.rel (%p380) target = $region36
      $region35: #{plv_forward.11} parent=11 // pred_region
        _
      $region36: #{plv_forward.11} parent=11 // pred_fallthru
        _
      // Predicated region
      $region37: #{plv_forward.11} parent=11 // pred_check
        %p383 = pneg %p219
      $region38: #{plv_forward.11} parent=11 // pred_check_branch
        %385 = sbr.rel (%p383) target = $region40
      $region39: #{plv_forward.11} parent=11 // pred_region
        _
      $region40: #{plv_forward.11} parent=11 // pred_fallthru
        _
      // Predicated region
      $region41: #{plv_forward.11} parent=11 // pred_check
        %p386 = pneg %p240
      $region42: #{plv_forward.11} parent=11 // pred_check_branch
        %388 = sbr.rel (%p386) target = $region44
      $region43: #{plv_forward.11} parent=11 // pred_region
        _
      $region44: #{plv_forward.11} parent=11 // pred_fallthru
        _
      // Predicated region
      $region45: #{plv_forward.11} parent=11 // pred_check
        %p389 = pneg %p261
      $region46: #{plv_forward.11} parent=11 // pred_check_branch
        %391 = sbr.rel (%p389) target = $region48
      $region47: #{plv_forward.11} parent=11 // pred_region
        _
      $region48: #{plv_forward.11} parent=11 // pred_fallthru
        _
      // Predicated region
      $region49: #{plv_forward.11} parent=11 // pred_check
        %p392 = pneg %p282
      $region50: #{plv_forward.11} parent=11 // pred_check_branch
        %394 = sbr.rel (%p392) target = $region52
      $region51: #{plv_forward.11} parent=11 // pred_region
        _
      $region52: #{plv_forward.11} parent=11 // pred_fallthru
        _
      // Predicated region
      $region53: #{plv_forward.11} parent=11 // pred_check
        %p395 = pneg %p303
      $region54: #{plv_forward.11} parent=11 // pred_check_branch
        %397 = sbr.rel (%p395) target = $region56
      $region55: #{plv_forward.11} parent=11 // pred_region
        _
      $region56: #{plv_forward.11} parent=11 // pred_fallthru
        _
      // Predicated region
      $region57: #{plv_forward.11} parent=11 // pred_check
        %p398 = pneg %p324
      $region58: #{plv_forward.11} parent=11 // pred_check_branch
        %400 = sbr.rel (%p398) target = $region60
      $region59: #{plv_forward.11} parent=11 // pred_region
        _
      $region60: #{plv_forward.11} parent=11 // pred_fallthru
        _
    $region12: #{plv_forward.11} parent=5 // pred_fallthru
      _
    %p401 = scmp.lt.s32.totalorder %s20, 2
    // Predicated region
    $region61: #{plv_forward.11} parent=5 // pred_check
      %p402 = pneg %p401
    $region62: #{plv_forward.11} parent=5 // pred_check_branch
      %404 = sbr.rel (%p402) target = $region64
    $region63: #{plv_forward.11} parent=5 // pred_region
      // Predicated region
      $region65: #{plv_forward.11} parent=63 // pred_check
        %p405 = pneg %p40
      $region66: #{plv_forward.11} parent=63 // pred_check_branch
        %407 = sbr.rel (%p405) target = $region68
      $region67: #{plv_forward.11} parent=63 // pred_region
        %p408 = scmp.lt.s32.totalorder %s20, 1
        %s409 = scalar_select %p408, %s20, 1
        %s410 = smul.addr %s409, 8
        %s411 = scalar_lea.vmem %s0, %s410
      $region68: #{plv_forward.11} parent=63 // pred_fallthru
        _
      // Predicated region
      $region69: #{plv_forward.11} parent=63 // pred_check
        %p412 = pneg %p66
      $region70: #{plv_forward.11} parent=63 // pred_check_branch
        %414 = sbr.rel (%p412) target = $region72
      $region71: #{plv_forward.11} parent=63 // pred_region
        %p415 = scmp.lt.s32.totalorder %s20, 1
        %s416 = scalar_select %p415, %s20, 1
        %s417 = scalar_lea.vmem %s1, %s416
      $region72: #{plv_forward.11} parent=63 // pred_fallthru
        _
    $region64: #{plv_forward.11} parent=5 // pred_fallthru
      _
    %p418 = scmp.le.s32.totalorder 1, %s20
    %p419 = scmp.lt.s32.totalorder %s20, 3
    %p420 = pnand %p418, %p419
    %p421 = pneg %p420
    // Predicated region
    $region73: #{plv_forward.11} parent=5 // pred_check
      _
    $region74: #{plv_forward.11} parent=5 // pred_check_branch
      %423 = sbr.rel (%p420) target = $region76
    $region75: #{plv_forward.11} parent=5 // pred_region
      %s424 = ssub.s32 %s20, 1
      %p425 = scmp.lt.s32.totalorder %s25, 1
      %s426 = scalar_select %p425, %s25, 1
      %s427 = smul.addr %s426, 8
      %s428 = scalar_lea.vmem %s0, %s427
      %p429 = pneg %p46
      %p430 = pneg %p43
      %p431 = scmp.lt.s32.totalorder %s25, 1
      %s432 = scalar_select %p431, %s25, 1
      %s433 = scalar_lea.vmem %s1, %s432
      %p434 = pneg %p72
      %p435 = pneg %p69
      %p436 = pneg %p93
      %p437 = pneg %p90
      %p438 = pneg %p114
      %p439 = pneg %p111
      %p440 = pneg %p135
      %p441 = pneg %p132
      %p442 = pneg %p156
      %p443 = pneg %p153
      %p444 = pneg %p177
      %p445 = pneg %p174
      %p446 = pneg %p198
      %p447 = pneg %p195
      %p448 = pneg %p219
      %p449 = pneg %p216
      %p450 = pneg %p240
      %p451 = pneg %p237
      %p452 = pneg %p261
      %p453 = pneg %p258
      %p454 = pneg %p282
      %p455 = pneg %p279
      %p456 = pneg %p303
      %p457 = pneg %p300
      %p458 = pneg %p324
      %p459 = pneg %p321
      %p460 = pneg %p350
      %p461 = pneg %p347
      %p462 = scmp.lt.s32.totalorder %s25, 1
      %s463 = scalar_select %p462, %s25, 1
      %s464 = smul.addr %s463, 8
      %s465 = scalar_lea.vmem %s14, %s464
      %p466 = scmp.lt.s32.totalorder %s25, 1
      %s467 = scalar_select %p466, %s25, 1
      %s468 = smul.addr %s467, 8
      %s469 = scalar_lea.vmem %s0, %s468
      %p470 = scmp.lt.s32.totalorder %s25, 1
      %s471 = scalar_select %p470, %s25, 1
      %s472 = scalar_lea.vmem %s1, %s471
      %p473 = scmp.lt.s32.totalorder %s25, 1
      %s474 = scalar_select %p473, %s25, 1
      %s475 = smul.addr %s474, 8
      %s476 = scalar_lea.vmem %s14, %s475
      %v478 = vld [vmem:[%s469] sm:$0xff]
      %v479 = vld [vmem:[%s472] sm:$0x1]
      %v480 = vld [vmem:[%s2] sm:$0xff]
      %v481 = vld [vmem:[%s2 + $0x8] sm:$0xff]
      %v482 = vld [vmem:[%s2 + $0x10] sm:$0xff]
      %v483 = vld [vmem:[%s2 + $0x18] sm:$0xff]
      %v484 = vpack.c.bf16 %v478, %v478
      %v485 = vpack.c.bf16 %v481, %v480
      %v486 = vpack.c.bf16 %v483, %v482
      %v487 = vld [vmem:[%s3] sm:$0x1]
      %v489 = vlaneseq
      %v490 = vshrl.u32 %v489, 7
      %v491 = vsub.s32 0, %v490
      %v492 = vrot.slane %v487, %v491
      %vm494 = vcmask 261120
      %v496 = vsel %vm494, %v484, 0
      %498 = vmatprep.subr.bf16.mxu0 0
      %499 = vmatpush1.bf16.msra.mxu0 0
      %500 = vmatprep.subr.bf16.mxu0 0
      %501 = vmatpush1.bf16.msra.mxu0 0
      %502 = vmatprep.subr.bf16.mxu0 0
      %503 = vmatpush1.bf16.msra.mxu0 0
      %504 = vmatprep.subr.bf16.mxu0 0
      %505 = vmatpush1.bf16.msra.mxu0 0
      %506 = vmatprep.subr.bf16.mxu0 0
      %507 = vmatpush1.bf16.msra.mxu0 0
      %508 = vmatprep.subr.bf16.mxu0 0
      %509 = vmatpush1.bf16.msra.mxu0 0
      %510 = vmatprep.subr.bf16.mxu0 0
      %511 = vmatpush1.bf16.msra.mxu0 %v486
      %512 = vmatprep.subr.bf16.mxu0 0
      %513 = vmatpush1.bf16.msra.mxu0 %v485
      %514 = vmatprep.subr.bf16.mxu0 0
      %515 = vmatpush2.bf16.msra.mxu0 0
      %516 = vmatprep.subr.bf16.mxu0 0
      %517 = vmatpush2.bf16.msra.mxu0 0
      %518 = vmatprep.subr.bf16.mxu0 0
      %519 = vmatpush2.bf16.msra.mxu0 0
      %520 = vmatprep.subr.bf16.mxu0 0
      %521 = vmatpush2.bf16.msra.mxu0 0
      %522 = vmatprep.subr.bf16.mxu0 0
      %523 = vmatpush2.bf16.msra.mxu0 0
      %524 = vmatprep.subr.bf16.mxu0 0
      %525 = vmatpush2.bf16.msra.mxu0 0
      %526 = vmatprep.subr.bf16.mxu0 0
      %527 = vmatpush2.bf16.msra.mxu0 0
      %528 = vmatprep.subr.bf16.mxu0 0
      %529 = vmatpush2.bf16.msra.mxu0 0
      %530 = vmatprep.mubr.bf16.mxu0 0
      %531 = vmatmul.mubr.bf16.gmra.mxu0 %v496
      %v532 = vpop.f32.mrf.mxu0
      %v533 = vadd.f32 %v492, %v532
      %v534 = vpop.f32.mrf.mxu0
      %v535 = vpop.f32.mrf.mxu0
      %v536 = vpop.f32.mrf.mxu0
      %537 = vdwg.mxu0
      %v538 = vld [vmem:[%s4] sm:$0xff]
      %v539 = vld [vmem:[%s4 + $0x8] sm:$0xff]
      %v540 = vld [vmem:[%s4 + $0x10] sm:$0xff]
      %v541 = vld [vmem:[%s4 + $0x18] sm:$0xff]
      %v542 = vpack.c.bf16 %v533, %v533
      %544 = vrot.lane.b32.xlu0 %v542, 96
      %v545 = vpop.permute.xlu0 %544
      %vm546 = vcmask 64512
      %v548 = vsel %vm546, %v542, 0
      %v551 = vsel %vm546, %v545, 0
      %553 = vmatprep.subr.bf16.mxu0 0
      %554 = vmatpush1.bf16.xpose.msra.mxu0 0
      %555 = vmatprep.subr.bf16.mxu0 0
      %556 = vmatpush1.bf16.xpose.msra.mxu0 0
      %557 = vmatprep.subr.bf16.mxu0 0
      %558 = vmatpush1.bf16.xpose.msra.mxu0 0
      %559 = vmatprep.subr.bf16.mxu0 0
      %560 = vmatpush1.bf16.xpose.msra.mxu0 0
      %561 = vmatprep.subr.bf16.mxu0 0
      %562 = vmatpush1.bf16.xpose.msra.mxu0 0
      %563 = vmatprep.subr.bf16.mxu0 0
      %564 = vmatpush1.bf16.xpose.msra.mxu0 0
      %565 = vmatprep.subr.bf16.mxu0 0
      %566 = vmatpush1.bf16.xpose.msra.mxu0 0
      %567 = vmatprep.subr.bf16.mxu0 0
      %568 = vmatpush1.bf16.xpose.msra.mxu0 %v551
      %569 = vmatprep.subr.bf16.mxu0 0
      %570 = vmatpush2.bf16.xpose.msra.mxu0 0
      %571 = vmatprep.subr.bf16.mxu0 0
      %572 = vmatpush2.bf16.xpose.msra.mxu0 0
      %573 = vmatprep.subr.bf16.mxu0 0
      %574 = vmatpush2.bf16.xpose.msra.mxu0 0
      %575 = vmatprep.subr.bf16.mxu0 0
      %576 = vmatpush2.bf16.xpose.msra.mxu0 0
      %577 = vmatprep.subr.bf16.mxu0 0
      %578 = vmatpush2.bf16.xpose.msra.mxu0 0
      %579 = vmatprep.subr.bf16.mxu0 0
      %580 = vmatpush2.bf16.xpose.msra.mxu0 0
      %581 = vmatprep.subr.bf16.mxu0 0
      %582 = vmatpush2.bf16.xpose.msra.mxu0 0
      %583 = vmatprep.subr.bf16.mxu0 0
      %584 = vmatpush2.bf16.xpose.msra.mxu0 0
      %585 = vmatprep.mubr.bf16.mxu0 0
      %586 = vmatmul.mubr.bf16.gmra.mxu0 %v548
      %v587 = vpop.f32.mrf.mxu0
      %v588 = vadd.f32 0.0, %v587
      %v589 = vpop.f32.mrf.mxu0
      %v590 = vpop.f32.mrf.mxu0
      %v591 = vpop.f32.mrf.mxu0
      %592 = vdwg.mxu0
      %v593 = vmul.f32 %v588, 0.35355338
      %v595 = vlaneseq
      %v596 = vshrl.u32 %v595, 7
      %v597 = vsub.s32 0, %v596
      %v598 = vrot.slane %v479, %v597
      %v600 = vadd.f32 %v593, %v598
      %v601 = vsel %vm546, %v600, -inf
      %602 = vmax.xlane.f32.xlu0 %v601
      %v603 = vpop.xlane.xlu0 %602
      %v604 = vsub.f32 %v600, %v603
      %v605 = vmul.f32 %v604, 1.442695
      %v606 = vpow.pop %v605
      %v607 = vsel %vm546, %v606, 0.0
      %608 = vadd.xlane.f32.xlu0 %v607
      %v609 = vpop.xlane.xlu0 %608
      %v610 = vrcp.pop %v609
      %v611 = vmul.f32 %v606, %v610
      %v612 = vpack.c.bf16 %v611, %v611
      %613 = vrot.lane.b32.xlu0 %v542, 64
      %v614 = vpop.permute.xlu0 %613
      %v616 = vsel %vm546, %v612, 0
      %vm618 = vcmask 1043456
      %v620 = vsel %vm618, %v614, 0
      %622 = vmatprep.subr.bf16.mxu0 0
      %623 = vmatpush1.bf16.msra.mxu0 0
      %624 = vmatprep.subr.bf16.mxu0 0
      %625 = vmatpush1.bf16.msra.mxu0 0
      %626 = vmatprep.subr.bf16.mxu0 0
      %627 = vmatpush1.bf16.msra.mxu0 0
      %628 = vmatprep.subr.bf16.mxu0 0
      %629 = vmatpush1.bf16.msra.mxu0 0
      %630 = vmatprep.subr.bf16.mxu0 0
      %631 = vmatpush1.bf16.msra.mxu0 0
      %632 = vmatprep.subr.bf16.mxu0 0
      %633 = vmatpush1.bf16.msra.mxu0 0
      %634 = vmatprep.subr.bf16.mxu0 0
      %635 = vmatpush1.bf16.msra.mxu0 0
      %636 = vmatprep.subr.bf16.mxu0 0
      %637 = vmatpush1.bf16.msra.mxu0 %v620
      %638 = vmatprep.subr.bf16.mxu0 0
      %639 = vmatpush2.bf16.msra.mxu0 0
      %640 = vmatprep.subr.bf16.mxu0 0
      %641 = vmatpush2.bf16.msra.mxu0 0
      %642 = vmatprep.subr.bf16.mxu0 0
      %643 = vmatpush2.bf16.msra.mxu0 0
      %644 = vmatprep.subr.bf16.mxu0 0
      %645 = vmatpush2.bf16.msra.mxu0 0
      %646 = vmatprep.subr.bf16.mxu0 0
      %647 = vmatpush2.bf16.msra.mxu0 0
      %648 = vmatprep.subr.bf16.mxu0 0
      %649 = vmatpush2.bf16.msra.mxu0 0
      %650 = vmatprep.subr.bf16.mxu0 0
      %651 = vmatpush2.bf16.msra.mxu0 0
      %652 = vmatprep.subr.bf16.mxu0 0
      %653 = vmatpush2.bf16.msra.mxu0 0
      %654 = vmatprep.mubr.bf16.mxu0 0
      %655 = vmatmul.mubr.bf16.gmra.mxu0 %v616
      %v656 = vpop.f32.mrf.mxu0
      %v657 = vadd.f32 0.0, %v656
      %v658 = vpop.f32.mrf.mxu0
      %v659 = vpop.f32.mrf.mxu0
      %v660 = vpop.f32.mrf.mxu0
      %661 = vdwg.mxu0
      %v662 = vpack.c.bf16 %v657, %v657
      %v663 = vpack.c.bf16 %v538, %v538
      %664 = vrot.lane.b32.xlu0 %v542, 120
      %v665 = vpop.permute.xlu0 %664
      %666 = vrot.lane.b32.xlu0 %v542, 88
      %v667 = vpop.permute.xlu0 %666
      %v669 = vsel %vm546, %v665, 0
      %v672 = vsel %vm546, %v667, 0
      %674 = vmatprep.subr.bf16.mxu0 0
      %675 = vmatpush1.bf16.xpose.msra.mxu0 0
      %676 = vmatprep.subr.bf16.mxu0 0
      %677 = vmatpush1.bf16.xpose.msra.mxu0 0
      %678 = vmatprep.subr.bf16.mxu0 0
      %679 = vmatpush1.bf16.xpose.msra.mxu0 0
      %680 = vmatprep.subr.bf16.mxu0 0
      %681 = vmatpush1.bf16.xpose.msra.mxu0 0
      %682 = vmatprep.subr.bf16.mxu0 0
      %683 = vmatpush1.bf16.xpose.msra.mxu0 0
      %684 = vmatprep.subr.bf16.mxu0 0
      %685 = vmatpush1.bf16.xpose.msra.mxu0 0
      %686 = vmatprep.subr.bf16.mxu0 0
      %687 = vmatpush1.bf16.xpose.msra.mxu0 0
      %688 = vmatprep.subr.bf16.mxu0 0
      %689 = vmatpush1.bf16.xpose.msra.mxu0 %v672
      %690 = vmatprep.subr.bf16.mxu0 0
      %691 = vmatpush2.bf16.xpose.msra.mxu0 0
      %692 = vmatprep.subr.bf16.mxu0 0
      %693 = vmatpush2.bf16.xpose.msra.mxu0 0
      %694 = vmatprep.subr.bf16.mxu0 0
      %695 = vmatpush2.bf16.xpose.msra.mxu0 0
      %696 = vmatprep.subr.bf16.mxu0 0
      %697 = vmatpush2.bf16.xpose.msra.mxu0 0
      %698 = vmatprep.subr.bf16.mxu0 0
      %699 = vmatpush2.bf16.xpose.msra.mxu0 0
      %700 = vmatprep.subr.bf16.mxu0 0
      %701 = vmatpush2.bf16.xpose.msra.mxu0 0
      %702 = vmatprep.subr.bf16.mxu0 0
      %703 = vmatpush2.bf16.xpose.msra.mxu0 0
      %704 = vmatprep.subr.bf16.mxu0 0
      %705 = vmatpush2.bf16.xpose.msra.mxu0 0
      %706 = vmatprep.mubr.bf16.mxu0 0
      %707 = vmatmul.mubr.bf16.gmra.mxu0 %v669
      %v708 = vpop.f32.mrf.mxu0
      %v709 = vadd.f32 0.0, %v708
      %v710 = vpop.f32.mrf.mxu0
      %v711 = vpop.f32.mrf.mxu0
      %v712 = vpop.f32.mrf.mxu0
      %713 = vdwg.mxu0
      %v714 = vmul.f32 %v709, 0.35355338
      %v715 = vadd.f32 %v714, %v598
      %v716 = vsel %vm546, %v715, -inf
      %717 = vmax.xlane.f32.xlu0 %v716
      %v718 = vpop.xlane.xlu0 %717
      %v719 = vsub.f32 %v715, %v718
      %v720 = vmul.f32 %v719, 1.442695
      %v721 = vpow.pop %v720
      %v722 = vsel %vm546, %v721, 0.0
      %723 = vadd.xlane.f32.xlu0 %v722
      %v724 = vpop.xlane.xlu0 %723
      %v725 = vrcp.pop %v724
      %v726 = vmul.f32 %v721, %v725
      %v727 = vpack.c.bf16 %v726, %v726
      %728 = vrot.lane.b32.xlu0 %v542, 56
      %v729 = vpop.permute.xlu0 %728
      %v731 = vsel %vm546, %v727, 0
      %v734 = vsel %vm618, %v729, 0
      %736 = vmatprep.subr.bf16.mxu0 0
      %737 = vmatpush1.bf16.msra.mxu0 0
      %738 = vmatprep.subr.bf16.mxu0 0
      %739 = vmatpush1.bf16.msra.mxu0 0
      %740 = vmatprep.subr.bf16.mxu0 0
      %741 = vmatpush1.bf16.msra.mxu0 0
      %742 = vmatprep.subr.bf16.mxu0 0
      %743 = vmatpush1.bf16.msra.mxu0 0
      %744 = vmatprep.subr.bf16.mxu0 0
      %745 = vmatpush1.bf16.msra.mxu0 0
      %746 = vmatprep.subr.bf16.mxu0 0
      %747 = vmatpush1.bf16.msra.mxu0 0
      %748 = vmatprep.subr.bf16.mxu0 0
      %749 = vmatpush1.bf16.msra.mxu0 0
      %750 = vmatprep.subr.bf16.mxu0 0
      %751 = vmatpush1.bf16.msra.mxu0 %v734
      %752 = vmatprep.subr.bf16.mxu0 0
      %753 = vmatpush2.bf16.msra.mxu0 0
      %754 = vmatprep.subr.bf16.mxu0 0
      %755 = vmatpush2.bf16.msra.mxu0 0
      %756 = vmatprep.subr.bf16.mxu0 0
      %757 = vmatpush2.bf16.msra.mxu0 0
      %758 = vmatprep.subr.bf16.mxu0 0
      %759 = vmatpush2.bf16.msra.mxu0 0
      %760 = vmatprep.subr.bf16.mxu0 0
      %761 = vmatpush2.bf16.msra.mxu0 0
      %762 = vmatprep.subr.bf16.mxu0 0
      %763 = vmatpush2.bf16.msra.mxu0 0
      %764 = vmatprep.subr.bf16.mxu0 0
      %765 = vmatpush2.bf16.msra.mxu0 0
      %766 = vmatprep.subr.bf16.mxu0 0
      %767 = vmatpush2.bf16.msra.mxu0 0
      %768 = vmatprep.mubr.bf16.mxu0 0
      %769 = vmatmul.mubr.bf16.gmra.mxu0 %v731
      %v770 = vpop.f32.mrf.mxu0
      %v771 = vadd.f32 0.0, %v770
      %v772 = vpop.f32.mrf.mxu0
      %v773 = vpop.f32.mrf.mxu0
      %v774 = vpop.f32.mrf.mxu0
      %775 = vdwg.mxu0
      %v776 = vpack.c.bf16 %v771, %v771
      %v777 = vpack.c.bf16 %v539, %v539
      %v779 = vsel %vm546, %v776, 0
      %v782 = vsel %vm618, %v777, 0
      %784 = vmatprep.subr.bf16.mxu0 0
      %785 = vmatpush1.bf16.msra.mxu0 0
      %786 = vmatprep.subr.bf16.mxu0 0
      %787 = vmatpush1.bf16.msra.mxu0 0
      %788 = vmatprep.subr.bf16.mxu0 0
      %789 = vmatpush1.bf16.msra.mxu0 0
      %790 = vmatprep.subr.bf16.mxu0 0
      %791 = vmatpush1.bf16.msra.mxu0 0
      %792 = vmatprep.subr.bf16.mxu0 0
      %793 = vmatpush1.bf16.msra.mxu0 0
      %794 = vmatprep.subr.bf16.mxu0 0
      %795 = vmatpush1.bf16.msra.mxu0 0
      %796 = vmatprep.subr.bf16.mxu0 0
      %797 = vmatpush1.bf16.msra.mxu0 0
      %798 = vmatprep.subr.bf16.mxu0 0
      %799 = vmatpush1.bf16.msra.mxu0 %v782
      %800 = vmatprep.subr.bf16.mxu0 0
      %801 = vmatpush2.bf16.msra.mxu0 0
      %802 = vmatprep.subr.bf16.mxu0 0
      %803 = vmatpush2.bf16.msra.mxu0 0
      %804 = vmatprep.subr.bf16.mxu0 0
      %805 = vmatpush2.bf16.msra.mxu0 0
      %806 = vmatprep.subr.bf16.mxu0 0
      %807 = vmatpush2.bf16.msra.mxu0 0
      %808 = vmatprep.subr.bf16.mxu0 0
      %809 = vmatpush2.bf16.msra.mxu0 0
      %810 = vmatprep.subr.bf16.mxu0 0
      %811 = vmatpush2.bf16.msra.mxu0 0
      %812 = vmatprep.subr.bf16.mxu0 0
      %813 = vmatpush2.bf16.msra.mxu0 0
      %814 = vmatprep.subr.bf16.mxu0 0
      %815 = vmatpush2.bf16.msra.mxu0 0
      %816 = vmatprep.mubr.bf16.mxu0 0
      %817 = vmatmul.mubr.bf16.gmra.mxu0 %v779
      %v818 = vpop.f32.mrf.mxu0
      %v819 = vadd.f32 0.0, %v818
      %v820 = vpop.f32.mrf.mxu0
      %v821 = vpop.f32.mrf.mxu0
      %v822 = vpop.f32.mrf.mxu0
      %823 = vdwg.mxu0
      %v825 = vsel %vm546, %v662, 0
      %v828 = vsel %vm618, %v663, 0
      %830 = vmatprep.subr.bf16.mxu0 0
      %831 = vmatpush1.bf16.msra.mxu0 0
      %832 = vmatprep.subr.bf16.mxu0 0
      %833 = vmatpush1.bf16.msra.mxu0 0
      %834 = vmatprep.subr.bf16.mxu0 0
      %835 = vmatpush1.bf16.msra.mxu0 0
      %836 = vmatprep.subr.bf16.mxu0 0
      %837 = vmatpush1.bf16.msra.mxu0 0
      %838 = vmatprep.subr.bf16.mxu0 0
      %839 = vmatpush1.bf16.msra.mxu0 0
      %840 = vmatprep.subr.bf16.mxu0 0
      %841 = vmatpush1.bf16.msra.mxu0 0
      %842 = vmatprep.subr.bf16.mxu0 0
      %843 = vmatpush1.bf16.msra.mxu0 0
      %844 = vmatprep.subr.bf16.mxu0 0
      %845 = vmatpush1.bf16.msra.mxu0 %v828
      %846 = vmatprep.subr.bf16.mxu0 0
      %847 = vmatpush2.bf16.msra.mxu0 0
      %848 = vmatprep.subr.bf16.mxu0 0
      %849 = vmatpush2.bf16.msra.mxu0 0
      %850 = vmatprep.subr.bf16.mxu0 0
      %851 = vmatpush2.bf16.msra.mxu0 0
      %852 = vmatprep.subr.bf16.mxu0 0
      %853 = vmatpush2.bf16.msra.mxu0 0
      %854 = vmatprep.subr.bf16.mxu0 0
      %855 = vmatpush2.bf16.msra.mxu0 0
      %856 = vmatprep.subr.bf16.mxu0 0
      %857 = vmatpush2.bf16.msra.mxu0 0
      %858 = vmatprep.subr.bf16.mxu0 0
      %859 = vmatpush2.bf16.msra.mxu0 0
      %860 = vmatprep.subr.bf16.mxu0 0
      %861 = vmatpush2.bf16.msra.mxu0 0
      %862 = vmatprep.mubr.bf16.mxu0 0
      %863 = vmatmul.mubr.bf16.gmra.mxu0 %v825
      %v864 = vpop.f32.mrf.mxu0
      %v865 = vadd.f32 %v819, %v864
      %v866 = vpop.f32.mrf.mxu0
      %v867 = vpop.f32.mrf.mxu0
      %v868 = vpop.f32.mrf.mxu0
      %869 = vdwg.mxu0
      %870 = vrot.lane.b32.xlu0 %v542, 112
      %v871 = vpop.permute.xlu0 %870
      %872 = vrot.lane.b32.xlu0 %v542, 80
      %v873 = vpop.permute.xlu0 %872
      %v875 = vsel %vm546, %v871, 0
      %v878 = vsel %vm546, %v873, 0
      %880 = vmatprep.subr.bf16.mxu0 0
      %881 = vmatpush1.bf16.xpose.msra.mxu0 0
      %882 = vmatprep.subr.bf16.mxu0 0
      %883 = vmatpush1.bf16.xpose.msra.mxu0 0
      %884 = vmatprep.subr.bf16.mxu0 0
      %885 = vmatpush1.bf16.xpose.msra.mxu0 0
      %886 = vmatprep.subr.bf16.mxu0 0
      %887 = vmatpush1.bf16.xpose.msra.mxu0 0
      %888 = vmatprep.subr.bf16.mxu0 0
      %889 = vmatpush1.bf16.xpose.msra.mxu0 0
      %890 = vmatprep.subr.bf16.mxu0 0
      %891 = vmatpush1.bf16.xpose.msra.mxu0 0
      %892 = vmatprep.subr.bf16.mxu0 0
      %893 = vmatpush1.bf16.xpose.msra.mxu0 0
      %894 = vmatprep.subr.bf16.mxu0 0
      %895 = vmatpush1.bf16.xpose.msra.mxu0 %v878
      %896 = vmatprep.subr.bf16.mxu0 0
      %897 = vmatpush2.bf16.xpose.msra.mxu0 0
      %898 = vmatprep.subr.bf16.mxu0 0
      %899 = vmatpush2.bf16.xpose.msra.mxu0 0
      %900 = vmatprep.subr.bf16.mxu0 0
      %901 = vmatpush2.bf16.xpose.msra.mxu0 0
      %902 = vmatprep.subr.bf16.mxu0 0
      %903 = vmatpush2.bf16.xpose.msra.mxu0 0
      %904 = vmatprep.subr.bf16.mxu0 0
      %905 = vmatpush2.bf16.xpose.msra.mxu0 0
      %906 = vmatprep.subr.bf16.mxu0 0
      %907 = vmatpush2.bf16.xpose.msra.mxu0 0
      %908 = vmatprep.subr.bf16.mxu0 0
      %909 = vmatpush2.bf16.xpose.msra.mxu0 0
      %910 = vmatprep.subr.bf16.mxu0 0
      %911 = vmatpush2.bf16.xpose.msra.mxu0 0
      %912 = vmatprep.mubr.bf16.mxu0 0
      %913 = vmatmul.mubr.bf16.gmra.mxu0 %v875
      %v914 = vpop.f32.mrf.mxu0
      %v915 = vadd.f32 0.0, %v914
      %v916 = vpop.f32.mrf.mxu0
      %v917 = vpop.f32.mrf.mxu0
      %v918 = vpop.f32.mrf.mxu0
      %919 = vdwg.mxu0
      %v920 = vmul.f32 %v915, 0.35355338
      %v921 = vadd.f32 %v920, %v598
      %v922 = vsel %vm546, %v921, -inf
      %923 = vmax.xlane.f32.xlu0 %v922
      %v924 = vpop.xlane.xlu0 %923
      %v925 = vsub.f32 %v921, %v924
      %v926 = vmul.f32 %v925, 1.442695
      %v927 = vpow.pop %v926
      %v928 = vsel %vm546, %v927, 0.0
      %929 = vadd.xlane.f32.xlu0 %v928
      %v930 = vpop.xlane.xlu0 %929
      %v931 = vrcp.pop %v930
      %v932 = vmul.f32 %v927, %v931
      %v933 = vpack.c.bf16 %v932, %v932
      %934 = vrot.lane.b32.xlu0 %v542, 48
      %v935 = vpop.permute.xlu0 %934
      %v937 = vsel %vm546, %v933, 0
      %v940 = vsel %vm618, %v935, 0
      %942 = vmatprep.subr.bf16.mxu0 0
      %943 = vmatpush1.bf16.msra.mxu0 0
      %944 = vmatprep.subr.bf16.mxu0 0
      %945 = vmatpush1.bf16.msra.mxu0 0
      %946 = vmatprep.subr.bf16.mxu0 0
      %947 = vmatpush1.bf16.msra.mxu0 0
      %948 = vmatprep.subr.bf16.mxu0 0
      %949 = vmatpush1.bf16.msra.mxu0 0
      %950 = vmatprep.subr.bf16.mxu0 0
      %951 = vmatpush1.bf16.msra.mxu0 0
      %952 = vmatprep.subr.bf16.mxu0 0
      %953 = vmatpush1.bf16.msra.mxu0 0
      %954 = vmatprep.subr.bf16.mxu0 0
      %955 = vmatpush1.bf16.msra.mxu0 0
      %956 = vmatprep.subr.bf16.mxu0 0
      %957 = vmatpush1.bf16.msra.mxu0 %v940
      %958 = vmatprep.subr.bf16.mxu0 0
      %959 = vmatpush2.bf16.msra.mxu0 0
      %960 = vmatprep.subr.bf16.mxu0 0
      %961 = vmatpush2.bf16.msra.mxu0 0
      %962 = vmatprep.subr.bf16.mxu0 0
      %963 = vmatpush2.bf16.msra.mxu0 0
      %964 = vmatprep.subr.bf16.mxu0 0
      %965 = vmatpush2.bf16.msra.mxu0 0
      %966 = vmatprep.subr.bf16.mxu0 0
      %967 = vmatpush2.bf16.msra.mxu0 0
      %968 = vmatprep.subr.bf16.mxu0 0
      %969 = vmatpush2.bf16.msra.mxu0 0
      %970 = vmatprep.subr.bf16.mxu0 0
      %971 = vmatpush2.bf16.msra.mxu0 0
      %972 = vmatprep.subr.bf16.mxu0 0
      %973 = vmatpush2.bf16.msra.mxu0 0
      %974 = vmatprep.mubr.bf16.mxu0 0
      %975 = vmatmul.mubr.bf16.gmra.mxu0 %v937
      %v976 = vpop.f32.mrf.mxu0
      %v977 = vadd.f32 0.0, %v976
      %v978 = vpop.f32.mrf.mxu0
      %v979 = vpop.f32.mrf.mxu0
      %v980 = vpop.f32.mrf.mxu0
      %981 = vdwg.mxu0
      %v982 = vpack.c.bf16 %v977, %v977
      %v983 = vpack.c.bf16 %v540, %v540
      %v985 = vsel %vm546, %v982, 0
      %v988 = vsel %vm618, %v983, 0
      %990 = vmatprep.subr.bf16.mxu0 0
      %991 = vmatpush1.bf16.msra.mxu0 0
      %992 = vmatprep.subr.bf16.mxu0 0
      %993 = vmatpush1.bf16.msra.mxu0 0
      %994 = vmatprep.subr.bf16.mxu0 0
      %995 = vmatpush1.bf16.msra.mxu0 0
      %996 = vmatprep.subr.bf16.mxu0 0
      %997 = vmatpush1.bf16.msra.mxu0 0
      %998 = vmatprep.subr.bf16.mxu0 0
      %999 = vmatpush1.bf16.msra.mxu0 0
      %1000 = vmatprep.subr.bf16.mxu0 0
      %1001 = vmatpush1.bf16.msra.mxu0 0
      %1002 = vmatprep.subr.bf16.mxu0 0
      %1003 = vmatpush1.bf16.msra.mxu0 0
      %1004 = vmatprep.subr.bf16.mxu0 0
      %1005 = vmatpush1.bf16.msra.mxu0 %v988
      %1006 = vmatprep.subr.bf16.mxu0 0
      %1007 = vmatpush2.bf16.msra.mxu0 0
      %1008 = vmatprep.subr.bf16.mxu0 0
      %1009 = vmatpush2.bf16.msra.mxu0 0
      %1010 = vmatprep.subr.bf16.mxu0 0
      %1011 = vmatpush2.bf16.msra.mxu0 0
      %1012 = vmatprep.subr.bf16.mxu0 0
      %1013 = vmatpush2.bf16.msra.mxu0 0
      %1014 = vmatprep.subr.bf16.mxu0 0
      %1015 = vmatpush2.bf16.msra.mxu0 0
      %1016 = vmatprep.subr.bf16.mxu0 0
      %1017 = vmatpush2.bf16.msra.mxu0 0
      %1018 = vmatprep.subr.bf16.mxu0 0
      %1019 = vmatpush2.bf16.msra.mxu0 0
      %1020 = vmatprep.subr.bf16.mxu0 0
      %1021 = vmatpush2.bf16.msra.mxu0 0
      %1022 = vmatprep.mubr.bf16.mxu0 0
      %1023 = vmatmul.mubr.bf16.gmra.mxu0 %v985
      %v1024 = vpop.f32.mrf.mxu0
      %v1025 = vadd.f32 0.0, %v1024
      %v1026 = vpop.f32.mrf.mxu0
      %v1027 = vpop.f32.mrf.mxu0
      %v1028 = vpop.f32.mrf.mxu0
      %1029 = vdwg.mxu0
      %v1030 = vadd.f32 %v865, %v1025
      %1031 = vrot.lane.b32.xlu0 %v542, 104
      %v1032 = vpop.permute.xlu0 %1031
      %1033 = vrot.lane.b32.xlu0 %v542, 72
      %v1034 = vpop.permute.xlu0 %1033
      %v1036 = vsel %vm546, %v1032, 0
      %v1039 = vsel %vm546, %v1034, 0
      %1041 = vmatprep.subr.bf16.mxu0 0
      %1042 = vmatpush1.bf16.xpose.msra.mxu0 0
      %1043 = vmatprep.subr.bf16.mxu0 0
      %1044 = vmatpush1.bf16.xpose.msra.mxu0 0
      %1045 = vmatprep.subr.bf16.mxu0 0
      %1046 = vmatpush1.bf16.xpose.msra.mxu0 0
      %1047 = vmatprep.subr.bf16.mxu0 0
      %1048 = vmatpush1.bf16.xpose.msra.mxu0 0
      %1049 = vmatprep.subr.bf16.mxu0 0
      %1050 = vmatpush1.bf16.xpose.msra.mxu0 0
      %1051 = vmatprep.subr.bf16.mxu0 0
      %1052 = vmatpush1.bf16.xpose.msra.mxu0 0
      %1053 = vmatprep.subr.bf16.mxu0 0
      %1054 = vmatpush1.bf16.xpose.msra.mxu0 0
      %1055 = vmatprep.subr.bf16.mxu0 0
      %1056 = vmatpush1.bf16.xpose.msra.mxu0 %v1039
      %1057 = vmatprep.subr.bf16.mxu0 0
      %1058 = vmatpush2.bf16.xpose.msra.mxu0 0
      %1059 = vmatprep.subr.bf16.mxu0 0
      %1060 = vmatpush2.bf16.xpose.msra.mxu0 0
      %1061 = vmatprep.subr.bf16.mxu0 0
      %1062 = vmatpush2.bf16.xpose.msra.mxu0 0
      %1063 = vmatprep.subr.bf16.mxu0 0
      %1064 = vmatpush2.bf16.xpose.msra.mxu0 0
      %1065 = vmatprep.subr.bf16.mxu0 0
      %1066 = vmatpush2.bf16.xpose.msra.mxu0 0
      %1067 = vmatprep.subr.bf16.mxu0 0
      %1068 = vmatpush2.bf16.xpose.msra.mxu0 0
      %1069 = vmatprep.subr.bf16.mxu0 0
      %1070 = vmatpush2.bf16.xpose.msra.mxu0 0
      %1071 = vmatprep.subr.bf16.mxu0 0
      %1072 = vmatpush2.bf16.xpose.msra.mxu0 0
      %1073 = vmatprep.mubr.bf16.mxu0 0
      %1074 = vmatmul.mubr.bf16.gmra.mxu0 %v1036
      %v1075 = vpop.f32.mrf.mxu0
      %v1076 = vadd.f32 0.0, %v1075
      %v1077 = vpop.f32.mrf.mxu0
      %v1078 = vpop.f32.mrf.mxu0
      %v1079 = vpop.f32.mrf.mxu0
      %1080 = vdwg.mxu0
      %v1081 = vmul.f32 %v1076, 0.35355338
      %v1082 = vadd.f32 %v1081, %v598
      %v1083 = vsel %vm546, %v1082, -inf
      %1084 = vmax.xlane.f32.xlu0 %v1083
      %v1085 = vpop.xlane.xlu0 %1084
      %v1086 = vsub.f32 %v1082, %v1085
      %v1087 = vmul.f32 %v1086, 1.442695
      %v1088 = vpow.pop %v1087
      %v1089 = vsel %vm546, %v1088, 0.0
      %1090 = vadd.xlane.f32.xlu0 %v1089
      %v1091 = vpop.xlane.xlu0 %1090
      %v1092 = vrcp.pop %v1091
      %v1093 = vmul.f32 %v1088, %v1092
      %v1094 = vpack.c.bf16 %v1093, %v1093
      %1095 = vrot.lane.b32.xlu0 %v542, 40
      %v1096 = vpop.permute.xlu0 %1095
      %v1098 = vsel %vm546, %v1094, 0
      %v1101 = vsel %vm618, %v1096, 0
      %1103 = vmatprep.subr.bf16.mxu0 0
      %1104 = vmatpush1.bf16.msra.mxu0 0
      %1105 = vmatprep.subr.bf16.mxu0 0
      %1106 = vmatpush1.bf16.msra.mxu0 0
      %1107 = vmatprep.subr.bf16.mxu0 0
      %1108 = vmatpush1.bf16.msra.mxu0 0
      %1109 = vmatprep.subr.bf16.mxu0 0
      %1110 = vmatpush1.bf16.msra.mxu0 0
      %1111 = vmatprep.subr.bf16.mxu0 0
      %1112 = vmatpush1.bf16.msra.mxu0 0
      %1113 = vmatprep.subr.bf16.mxu0 0
      %1114 = vmatpush1.bf16.msra.mxu0 0
      %1115 = vmatprep.subr.bf16.mxu0 0
      %1116 = vmatpush1.bf16.msra.mxu0 0
      %1117 = vmatprep.subr.bf16.mxu0 0
      %1118 = vmatpush1.bf16.msra.mxu0 %v1101
      %1119 = vmatprep.subr.bf16.mxu0 0
      %1120 = vmatpush2.bf16.msra.mxu0 0
      %1121 = vmatprep.subr.bf16.mxu0 0
      %1122 = vmatpush2.bf16.msra.mxu0 0
      %1123 = vmatprep.subr.bf16.mxu0 0
      %1124 = vmatpush2.bf16.msra.mxu0 0
      %1125 = vmatprep.subr.bf16.mxu0 0
      %1126 = vmatpush2.bf16.msra.mxu0 0
      %1127 = vmatprep.subr.bf16.mxu0 0
      %1128 = vmatpush2.bf16.msra.mxu0 0
      %1129 = vmatprep.subr.bf16.mxu0 0
      %1130 = vmatpush2.bf16.msra.mxu0 0
      %1131 = vmatprep.subr.bf16.mxu0 0
      %1132 = vmatpush2.bf16.msra.mxu0 0
      %1133 = vmatprep.subr.bf16.mxu0 0
      %1134 = vmatpush2.bf16.msra.mxu0 0
      %1135 = vmatprep.mubr.bf16.mxu0 0
      %1136 = vmatmul.mubr.bf16.gmra.mxu0 %v1098
      %v1137 = vpop.f32.mrf.mxu0
      %v1138 = vadd.f32 0.0, %v1137
      %v1139 = vpop.f32.mrf.mxu0
      %v1140 = vpop.f32.mrf.mxu0
      %v1141 = vpop.f32.mrf.mxu0
      %1142 = vdwg.mxu0
      %v1143 = vpack.c.bf16 %v1138, %v1138
      %v1144 = vpack.c.bf16 %v541, %v541
      %v1146 = vsel %vm546, %v1143, 0
      %v1149 = vsel %vm618, %v1144, 0
      %1151 = vmatprep.subr.bf16.mxu0 0
      %1152 = vmatpush1.bf16.msra.mxu0 0
      %1153 = vmatprep.subr.bf16.mxu0 0
      %1154 = vmatpush1.bf16.msra.mxu0 0
      %1155 = vmatprep.subr.bf16.mxu0 0
      %1156 = vmatpush1.bf16.msra.mxu0 0
      %1157 = vmatprep.subr.bf16.mxu0 0
      %1158 = vmatpush1.bf16.msra.mxu0 0
      %1159 = vmatprep.subr.bf16.mxu0 0
      %1160 = vmatpush1.bf16.msra.mxu0 0
      %1161 = vmatprep.subr.bf16.mxu0 0
      %1162 = vmatpush1.bf16.msra.mxu0 0
      %1163 = vmatprep.subr.bf16.mxu0 0
      %1164 = vmatpush1.bf16.msra.mxu0 0
      %1165 = vmatprep.subr.bf16.mxu0 0
      %1166 = vmatpush1.bf16.msra.mxu0 %v1149
      %1167 = vmatprep.subr.bf16.mxu0 0
      %1168 = vmatpush2.bf16.msra.mxu0 0
      %1169 = vmatprep.subr.bf16.mxu0 0
      %1170 = vmatpush2.bf16.msra.mxu0 0
      %1171 = vmatprep.subr.bf16.mxu0 0
      %1172 = vmatpush2.bf16.msra.mxu0 0
      %1173 = vmatprep.subr.bf16.mxu0 0
      %1174 = vmatpush2.bf16.msra.mxu0 0
      %1175 = vmatprep.subr.bf16.mxu0 0
      %1176 = vmatpush2.bf16.msra.mxu0 0
      %1177 = vmatprep.subr.bf16.mxu0 0
      %1178 = vmatpush2.bf16.msra.mxu0 0
      %1179 = vmatprep.subr.bf16.mxu0 0
      %1180 = vmatpush2.bf16.msra.mxu0 0
      %1181 = vmatprep.subr.bf16.mxu0 0
      %1182 = vmatpush2.bf16.msra.mxu0 0
      %1183 = vmatprep.mubr.bf16.mxu0 0
      %1184 = vmatmul.mubr.bf16.gmra.mxu0 %v1146
      %v1185 = vpop.f32.mrf.mxu0
      %v1186 = vadd.f32 0.0, %v1185
      %v1187 = vpop.f32.mrf.mxu0
      %v1188 = vpop.f32.mrf.mxu0
      %v1189 = vpop.f32.mrf.mxu0
      %1190 = vdwg.mxu0
      %v1191 = vadd.f32 %v1030, %v1186
      %v1192 = vld [vmem:[%s5] sm:$0x1]
      %v1194 = vlaneseq
      %v1195 = vshrl.u32 %v1194, 7
      %v1196 = vsub.s32 0, %v1195
      %v1197 = vrot.slane %v1192, %v1196
      %v1199 = vadd.f32 %v1191, %v1197
      %v1200 = vadd.f32 %v478, %v1199
      %v1201 = vld [vmem:[%s6] sm:$0x1]
      %v1202 = vld [vmem:[%s7] sm:$0x1]
      %v1203 = vsel %vm494, %v1200, 0.0
      %1204 = vadd.xlane.f32.xlu0 %v1203
      %v1205 = vpop.xlane.xlu0 %1204
      %v1206 = vrcp.pop 32.0
      %v1207 = vmul.f32 %v1205, %v1206
      %v1208 = vsub.f32 %v1200, %v1207
      %v1209 = vmul.f32 %v1208, %v1208
      %v1210 = vsel %vm494, %v1209, 0.0
      %1211 = vadd.xlane.f32.xlu0 %v1210
      %v1212 = vpop.xlane.xlu0 %1211
      %v1213 = vmul.f32 %v1212, %v1206
      %v1214 = vadd.f32 %v1213, 1e-12
      %v1215 = vrsqrt.pop %v1214
      %v1216 = vmul.f32 %v1208, %v1215
      %v1218 = vlaneseq
      %v1219 = vshrl.u32 %v1218, 7
      %v1220 = vsub.s32 0, %v1219
      %v1221 = vrot.slane %v1201, %v1220
      %v1223 = vmul.f32 %v1216, %v1221
      %v1225 = vlaneseq
      %v1226 = vshrl.u32 %v1225, 7
      %v1227 = vsub.s32 0, %v1226
      %v1228 = vrot.slane %v1202, %v1227
      %v1230 = vadd.f32 %v1223, %v1228
      %v1231 = vld [vmem:[%s8] sm:$0xff]
      %v1232 = vld [vmem:[%s8 + $0x8] sm:$0xff]
      %v1233 = vld [vmem:[%s8 + $0x10] sm:$0xff]
      %v1234 = vld [vmem:[%s8 + $0x18] sm:$0xff]
      %v1235 = vpack.c.bf16 %v1230, %v1230
      %v1236 = vpack.c.bf16 %v1232, %v1231
      %v1237 = vpack.c.bf16 %v1234, %v1233
      %v1238 = vld [vmem:[%s9] sm:$0x1]
      %v1240 = vlaneseq
      %v1241 = vshrl.u32 %v1240, 7
      %v1242 = vsub.s32 0, %v1241
      %v1243 = vrot.slane %v1238, %v1242
      %v1246 = vsel %vm494, %v1235, 0
      %1248 = vmatprep.subr.bf16.mxu0 0
      %1249 = vmatpush1.bf16.msra.mxu0 0
      %1250 = vmatprep.subr.bf16.mxu0 0
      %1251 = vmatpush1.bf16.msra.mxu0 0
      %1252 = vmatprep.subr.bf16.mxu0 0
      %1253 = vmatpush1.bf16.msra.mxu0 0
      %1254 = vmatprep.subr.bf16.mxu0 0
      %1255 = vmatpush1.bf16.msra.mxu0 0
      %1256 = vmatprep.subr.bf16.mxu0 0
      %1257 = vmatpush1.bf16.msra.mxu0 0
      %1258 = vmatprep.subr.bf16.mxu0 0
      %1259 = vmatpush1.bf16.msra.mxu0 0
      %1260 = vmatprep.subr.bf16.mxu0 0
      %1261 = vmatpush1.bf16.msra.mxu0 %v1237
      %1262 = vmatprep.subr.bf16.mxu0 0
      %1263 = vmatpush1.bf16.msra.mxu0 %v1236
      %1264 = vmatprep.subr.bf16.mxu0 0
      %1265 = vmatpush2.bf16.msra.mxu0 0
      %1266 = vmatprep.subr.bf16.mxu0 0
      %1267 = vmatpush2.bf16.msra.mxu0 0
      %1268 = vmatprep.subr.bf16.mxu0 0
      %1269 = vmatpush2.bf16.msra.mxu0 0
      %1270 = vmatprep.subr.bf16.mxu0 0
      %1271 = vmatpush2.bf16.msra.mxu0 0
      %1272 = vmatprep.subr.bf16.mxu0 0
      %1273 = vmatpush2.bf16.msra.mxu0 0
      %1274 = vmatprep.subr.bf16.mxu0 0
      %1275 = vmatpush2.bf16.msra.mxu0 0
      %1276 = vmatprep.subr.bf16.mxu0 0
      %1277 = vmatpush2.bf16.msra.mxu0 0
      %1278 = vmatprep.subr.bf16.mxu0 0
      %1279 = vmatpush2.bf16.msra.mxu0 0
      %1280 = vmatprep.mubr.bf16.mxu0 0
      %1281 = vmatmul.mubr.bf16.gmra.mxu0 %v1246
      %v1282 = vpop.f32.mrf.mxu0
      %v1283 = vadd.f32 %v1243, %v1282
      %v1284 = vpop.f32.mrf.mxu0
      %v1285 = vpop.f32.mrf.mxu0
      %v1286 = vpop.f32.mrf.mxu0
      %1287 = vdwg.mxu0
      %v1288 = vmul.f32 %v1283, 0.5
      %v1289 = vmul.f32 %v1283, 0.044715
      %v1290 = vmul.f32 %v1289, %v1283
      %v1291 = vmul.f32 %v1290, %v1283
      %v1292 = vadd.f32 %v1283, %v1291
      %v1293 = vmul.f32 %v1292, 0.7978846
      %v1294 = vtanh.pop %v1293
      %v1295 = vadd.f32 %v1294, 1.0
      %v1296 = vmul.f32 %v1288, %v1295
      %v1297 = vld [vmem:[%s10] sm:$0xff]
      %v1298 = vld [vmem:[%s10 + $0x8] sm:$0xff]
      %v1299 = vld [vmem:[%s10 + $0x10] sm:$0xff]
      %v1300 = vld [vmem:[%s10 + $0x18] sm:$0xff]
      %v1301 = vld [vmem:[%s10 + $0x20] sm:$0xff]
      %v1302 = vld [vmem:[%s10 + $0x28] sm:$0xff]
      %v1303 = vld [vmem:[%s10 + $0x30] sm:$0xff]
      %v1304 = vld [vmem:[%s10 + $0x38] sm:$0xff]
      %v1305 = vpack.c.bf16 %v1296, %v1296
      %v1306 = vpack.c.bf16 %v1298, %v1297
      %v1307 = vpack.c.bf16 %v1300, %v1299
      %v1308 = vpack.c.bf16 %v1302, %v1301
      %v1309 = vpack.c.bf16 %v1304, %v1303
      %v1310 = vld [vmem:[%s11] sm:$0x1]
      %v1312 = vlaneseq
      %v1313 = vshrl.u32 %v1312, 7
      %v1314 = vsub.s32 0, %v1313
      %v1315 = vrot.slane %v1310, %v1314
      %vm1317 = vcmask 523264
      %v1319 = vsel %vm1317, %v1305, 0
      %1321 = vmatprep.subr.bf16.mxu0 0
      %1322 = vmatpush1.bf16.msra.mxu0 0
      %1323 = vmatprep.subr.bf16.mxu0 0
      %1324 = vmatpush1.bf16.msra.mxu0 0
      %1325 = vmatprep.subr.bf16.mxu0 0
      %1326 = vmatpush1.bf16.msra.mxu0 0
      %1327 = vmatprep.subr.bf16.mxu0 0
      %1328 = vmatpush1.bf16.msra.mxu0 0
      %1329 = vmatprep.subr.bf16.mxu0 0
      %1330 = vmatpush1.bf16.msra.mxu0 %v1309
      %1331 = vmatprep.subr.bf16.mxu0 0
      %1332 = vmatpush1.bf16.msra.mxu0 %v1308
      %1333 = vmatprep.subr.bf16.mxu0 0
      %1334 = vmatpush1.bf16.msra.mxu0 %v1307
      %1335 = vmatprep.subr.bf16.mxu0 0
      %1336 = vmatpush1.bf16.msra.mxu0 %v1306
      %1337 = vmatprep.subr.bf16.mxu0 0
      %1338 = vmatpush2.bf16.msra.mxu0 0
      %1339 = vmatprep.subr.bf16.mxu0 0
      %1340 = vmatpush2.bf16.msra.mxu0 0
      %1341 = vmatprep.subr.bf16.mxu0 0
      %1342 = vmatpush2.bf16.msra.mxu0 0
      %1343 = vmatprep.subr.bf16.mxu0 0
      %1344 = vmatpush2.bf16.msra.mxu0 0
      %1345 = vmatprep.subr.bf16.mxu0 0
      %1346 = vmatpush2.bf16.msra.mxu0 0
      %1347 = vmatprep.subr.bf16.mxu0 0
      %1348 = vmatpush2.bf16.msra.mxu0 0
      %1349 = vmatprep.subr.bf16.mxu0 0
      %1350 = vmatpush2.bf16.msra.mxu0 0
      %1351 = vmatprep.subr.bf16.mxu0 0
      %1352 = vmatpush2.bf16.msra.mxu0 0
      %1353 = vmatprep.mubr.bf16.mxu0 0
      %1354 = vmatmul.mubr.bf16.gmra.mxu0 %v1319
      %v1355 = vpop.f32.mrf.mxu0
      %v1356 = vadd.f32 %v1315, %v1355
      %v1357 = vpop.f32.mrf.mxu0
      %v1358 = vpop.f32.mrf.mxu0
      %v1359 = vpop.f32.mrf.mxu0
      %1360 = vdwg.mxu0
      %v1361 = vadd.f32 %v1230, %v1356
      %v1362 = vld [vmem:[%s12] sm:$0x1]
      %v1363 = vld [vmem:[%s13] sm:$0x1]
      %v1364 = vsel %vm494, %v1361, 0.0
      %1365 = vadd.xlane.f32.xlu0 %v1364
      %v1366 = vpop.xlane.xlu0 %1365
      %v1367 = vmul.f32 %v1366, %v1206
      %v1368 = vsub.f32 %v1361, %v1367
      %v1369 = vmul.f32 %v1368, %v1368
      %v1370 = vsel %vm494, %v1369, 0.0
      %1371 = vadd.xlane.f32.xlu0 %v1370
      %v1372 = vpop.xlane.xlu0 %1371
      %v1373 = vmul.f32 %v1372, %v1206
      %v1374 = vadd.f32 %v1373, 1e-12
      %v1375 = vrsqrt.pop %v1374
      %v1376 = vmul.f32 %v1368, %v1375
      %v1378 = vlaneseq
      %v1379 = vshrl.u32 %v1378, 7
      %v1380 = vsub.s32 0, %v1379
      %v1381 = vrot.slane %v1362, %v1380
      %v1383 = vmul.f32 %v1376, %v1381
      %v1385 = vlaneseq
      %v1386 = vshrl.u32 %v1385, 7
      %v1387 = vsub.s32 0, %v1386
      %v1388 = vrot.slane %v1363, %v1387
      %v1390 = vadd.f32 %v1383, %v1388
      %1391 = vst.msk [vmem:[%s476] sm:$0xff] %vm494, %v1390
      %p1392 = scmp.lt.s32.totalorder %s25, 1
      %s1393 = scalar_select %p1392, %s25, 1
      %s1394 = smul.addr %s1393, 8
      %s1395 = scalar_lea.vmem %s14, %s1394
      // Predicated region
      $region77: #{plv_forward.11} parent=75 // pred_check
        %p1396 = pneg %p347
      $region78: #{plv_forward.11} parent=75 // pred_check_branch
        %1398 = sbr.rel (%p1396) target = $region80
      $region79: #{plv_forward.11} parent=75 // pred_region
        _
      $region80: #{plv_forward.11} parent=75 // pred_fallthru
        _
    $region76: #{plv_forward.11} parent=5 // pred_fallthru
      _
    %p1399 = scmp.le.s32.totalorder 2, %s20
    // Predicated region
    $region81: #{plv_forward.11} parent=5 // pred_check
      %p1400 = pneg %p1399
    $region82: #{plv_forward.11} parent=5 // pred_check_branch
      %1402 = sbr.rel (%p1400) target = $region84
    $region83: #{plv_forward.11} parent=5 // pred_region
      %s1403 = ssub.s32 %s20, 2
      // Predicated region
      $region85: #{plv_forward.11} parent=83 // pred_check
        %p1404 = pneg %p353
      $region86: #{plv_forward.11} parent=83 // pred_check_branch
        %1406 = sbr.rel (%p1404) target = $region88
      $region87: #{plv_forward.11} parent=83 // pred_region
        %p1407 = scmp.lt.s32.totalorder %s26, 1
        %s1408 = scalar_select %p1407, %s26, 1
        %s1409 = smul.addr %s1408, 8
        %s1410 = scalar_lea.vmem %s14, %s1409
      $region88: #{plv_forward.11} parent=83 // pred_fallthru
        _
    $region84: #{plv_forward.11} parent=5 // pred_fallthru
      _
  $region6: #{plv_forward.11} parent=0 // loop_footer
    %s24 = sadd.s32 1, %s20
  $region7: #{plv_forward.11} parent=0 // loop_footer_branch
    %19 = sbr.rel target = $region3
  $region8: #{plv_forward.11} parent=0 // loop_exit
    _

// kernel: plv_forward.15
$region0: #{plv_forward.15}
  #allocation0 [shape = 'u32[]', space=smem, size = 0x4, offset = 0x4, fixed_abs, tag = 'smem constant byte address 0x4 - core index']
  #allocation1 [shape = 'u32[144,128]{1,0:T(1,128)}', space=vmem, size = 0x12000, scoped, tag = 'internal scratch']
  %s0 = inlined_call_operand.vmem [shape: f32[2,64,144], index: 0, kind: input, shape index: {}]
  %s1 = inlined_call_operand.vmem [shape: f32[144,32], index: 1, kind: input, shape index: {}]
  %s2 = inlined_call_operand.vmem [shape: f32[1,32], index: 2, kind: input, shape index: {}]
  %s3 = inlined_call_operand.vmem [shape: f32[2,1,32], index: 3, kind: input, shape index: {}]
  %s4 = inlined_call_operand.vmem [shape: f32[32,32], index: 4, kind: input, shape index: {}]
  %s5 = inlined_call_operand.vmem [shape: f32[1,32], index: 5, kind: input, shape index: {}]
  %s6 = inlined_call_operand.vmem [shape: f32[2,64,32], index: 6, kind: output, shape index: {}]
  %s7 = sld [smem:[#allocation0]]
  $region57: #{plv_forward.15} parent=0
    _
  %s9 = ssub.s32 1, %s7
  %s10 = scalar_select 0, %s9, %s7
  loop: start=0, step=1, limit=4
  $region2: #{plv_forward.15} parent=0 // loop_pre_header
    _
  $region3: #{plv_forward.15} parent=0 // loop_header
    %s12 = sphi 0, %s16
    %p13 = scmp.ge.s32.totalorder %s12, 4
    %s22 = sphi 0, %s24
    %s25 = sphi 0, %s22
    %s26 = sphi 0, %s25
    %s42 = sphi 0, %s26
    %s46 = sphi 0, %s46
    %s48 = sphi 0, %s46
    %s49 = sphi 0, %s48
    %s63 = sphi 0, %s49
    %s67 = sphi 0, %s67
    %s69 = sphi 0, %s67
    %s70 = sphi 0, %s69
    %s84 = sphi 0, %s70
    %s90 = sphi 0, %s92
    %s93 = sphi 0, %s90
    %s94 = sphi 0, %s93
    %s110 = sphi 0, %s94
    %s114 = sphi 0, %s114
    %s116 = sphi 0, %s114
    %s117 = sphi 0, %s116
    %s131 = sphi 0, %s117
    %s135 = sphi 0, %s135
    %s137 = sphi 0, %s135
    %s138 = sphi 0, %s137
    %s152 = sphi 0, %s138
    %s158 = sphi 0, %s160
    %s161 = sphi 0, %s158
    %s162 = sphi 0, %s161
    %s178 = sphi 0, %s162
  $region4: #{plv_forward.15} parent=0 // loop_header_branch
    %15 = sbr.rel (%p13) target = $region8
  $region5: #{plv_forward.15} parent=0 // loop_body
    %s17 = ssub.s32 %s12, 1
    %s18 = ssub.s32 %s12, 2
    %s19 = sadd.s32 %s12, 1
    %s20 = ssub.s32 %s12, %s19
    %p21 = scmp.eq.s32.totalorder %s20, 0
    %s23 = sadd.s32 %s22, 1
    %s24 = scalar_select %p21, %s22, %s23
    %p27 = pneg %p21
    %p28 = scmp.eq.s32.totalorder %s12, 1
    %p29 = por %p27, %p28
    %p30 = scmp.ne.s32.totalorder %s22, %s25
    %p31 = scmp.eq.s32.totalorder %s12, 0
    %p32 = por %p30, %p31
    %p33 = scmp.ne.s32.totalorder %s22, %s25
    %p34 = scmp.eq.s32.totalorder %s17, 1
    %p35 = por %p33, %p34
    %p36 = scmp.ne.s32.totalorder %s25, %s26
    %p37 = scmp.eq.s32.totalorder %s17, 0
    %p38 = por %p36, %p37
    %p39 = scmp.ne.s32.totalorder %s25, %s26
    %p40 = scmp.eq.s32.totalorder %s18, 1
    %p41 = por %p39, %p40
    %p43 = scmp.ne.s32.totalorder %s26, %s42
    %p44 = scmp.eq.s32.totalorder %s18, 0
    %p45 = por %p43, %p44
    %s47 = sadd.s32 %s46, 1
    %p50 = scmp.eq.s32.totalorder %s12, 1
    %p51 = scmp.ne.s32.totalorder %s46, %s48
    %p52 = scmp.eq.s32.totalorder %s12, 0
    %p53 = por %p51, %p52
    %p54 = scmp.ne.s32.totalorder %s46, %s48
    %p55 = scmp.eq.s32.totalorder %s17, 1
    %p56 = por %p54, %p55
    %p57 = scmp.ne.s32.totalorder %s48, %s49
    %p58 = scmp.eq.s32.totalorder %s17, 0
    %p59 = por %p57, %p58
    %p60 = scmp.ne.s32.totalorder %s48, %s49
    %p61 = scmp.eq.s32.totalorder %s18, 1
    %p62 = por %p60, %p61
    %p64 = scmp.ne.s32.totalorder %s49, %s63
    %p65 = scmp.eq.s32.totalorder %s18, 0
    %p66 = por %p64, %p65
    %s68 = sadd.s32 %s67, 1
    %p71 = scmp.eq.s32.totalorder %s12, 1
    %p72 = scmp.ne.s32.totalorder %s67, %s69
    %p73 = scmp.eq.s32.totalorder %s12, 0
    %p74 = por %p72, %p73
    %p75 = scmp.ne.s32.totalorder %s67, %s69
    %p76 = scmp.eq.s32.totalorder %s17, 1
    %p77 = por %p75, %p76
    %p78 = scmp.ne.s32.totalorder %s69, %s70
    %p79 = scmp.eq.s32.totalorder %s17, 0
    %p80 = por %p78, %p79
    %p81 = scmp.ne.s32.totalorder %s69, %s70
    %p82 = scmp.eq.s32.totalorder %s18, 1
    %p83 = por %p81, %p82
    %p85 = scmp.ne.s32.totalorder %s70, %s84
    %p86 = scmp.eq.s32.totalorder %s18, 0
    %p87 = por %p85, %p86
    %s88 = ssub.s32 %s12, %s19
    %p89 = scmp.eq.s32.totalorder %s88, 0
    %s91 = sadd.s32 %s90, 1
    %s92 = scalar_select %p89, %s90, %s91
    %p95 = pneg %p89
    %p96 = scmp.eq.s32.totalorder %s12, 1
    %p97 = por %p95, %p96
    %p98 = scmp.ne.s32.totalorder %s90, %s93
    %p99 = scmp.eq.s32.totalorder %s12, 0
    %p100 = por %p98, %p99
    %p101 = scmp.ne.s32.totalorder %s90, %s93
    %p102 = scmp.eq.s32.totalorder %s17, 1
    %p103 = por %p101, %p102
    %p104 = scmp.ne.s32.totalorder %s93, %s94
    %p105 = scmp.eq.s32.totalorder %s17, 0
    %p106 = por %p104, %p105
    %p107 = scmp.ne.s32.totalorder %s93, %s94
    %p108 = scmp.eq.s32.totalorder %s18, 1
    %p109 = por %p107, %p108
    %p111 = scmp.ne.s32.totalorder %s94, %s110
    %p112 = scmp.eq.s32.totalorder %s18, 0
    %p113 = por %p111, %p112
    %s115 = sadd.s32 %s114, 1
    %p118 = scmp.eq.s32.totalorder %s12, 1
    %p119 = scmp.ne.s32.totalorder %s114, %s116
    %p120 = scmp.eq.s32.totalorder %s12, 0
    %p121 = por %p119, %p120
    %p122 = scmp.ne.s32.totalorder %s114, %s116
    %p123 = scmp.eq.s32.totalorder %s17, 1
    %p124 = por %p122, %p123
    %p125 = scmp.ne.s32.totalorder %s116, %s117
    %p126 = scmp.eq.s32.totalorder %s17, 0
    %p127 = por %p125, %p126
    %p128 = scmp.ne.s32.totalorder %s116, %s117
    %p129 = scmp.eq.s32.totalorder %s18, 1
    %p130 = por %p128, %p129
    %p132 = scmp.ne.s32.totalorder %s117, %s131
    %p133 = scmp.eq.s32.totalorder %s18, 0
    %p134 = por %p132, %p133
    %s136 = sadd.s32 %s135, 1
    %p139 = scmp.eq.s32.totalorder %s12, 1
    %p140 = scmp.ne.s32.totalorder %s135, %s137
    %p141 = scmp.eq.s32.totalorder %s12, 0
    %p142 = por %p140, %p141
    %p143 = scmp.ne.s32.totalorder %s135, %s137
    %p144 = scmp.eq.s32.totalorder %s17, 1
    %p145 = por %p143, %p144
    %p146 = scmp.ne.s32.totalorder %s137, %s138
    %p147 = scmp.eq.s32.totalorder %s17, 0
    %p148 = por %p146, %p147
    %p149 = scmp.ne.s32.totalorder %s137, %s138
    %p150 = scmp.eq.s32.totalorder %s18, 1
    %p151 = por %p149, %p150
    %p153 = scmp.ne.s32.totalorder %s138, %s152
    %p154 = scmp.eq.s32.totalorder %s18, 0
    %p155 = por %p153, %p154
    %s156 = ssub.s32 %s12, %s19
    %p157 = scmp.eq.s32.totalorder %s156, 0
    %s159 = sadd.s32 %s158, 1
    %s160 = scalar_select %p157, %s158, %s159
    %p163 = pneg %p157
    %p164 = scmp.eq.s32.totalorder %s12, 1
    %p165 = por %p163, %p164
    %p166 = scmp.ne.s32.totalorder %s158, %s161
    %p167 = scmp.eq.s32.totalorder %s12, 0
    %p168 = por %p166, %p167
    %p169 = scmp.ne.s32.totalorder %s158, %s161
    %p170 = scmp.eq.s32.totalorder %s17, 1
    %p171 = por %p169, %p170
    %p172 = scmp.ne.s32.totalorder %s161, %s162
    %p173 = scmp.eq.s32.totalorder %s17, 0
    %p174 = por %p172, %p173
    %p175 = scmp.ne.s32.totalorder %s161, %s162
    %p176 = scmp.eq.s32.totalorder %s18, 1
    %p177 = por %p175, %p176
    %p179 = scmp.ne.s32.totalorder %s162, %s178
    %p180 = scmp.eq.s32.totalorder %s18, 0
    %p181 = por %p179, %p180
    %p182 = scmp.le.s32.totalorder 1, %s12
    %p183 = scmp.lt.s32.totalorder %s12, 3
    %p184 = pnand %p182, %p183
    %p185 = pneg %p184
    // Predicated region
    $region9: #{plv_forward.15} parent=5 // pred_check
      _
    $region10: #{plv_forward.15} parent=5 // pred_check_branch
      %187 = sbr.rel (%p184) target = $region12
    $region11: #{plv_forward.15} parent=5 // pred_region
      %s188 = ssub.s32 %s12, 1
      // Predicated region
      $region13: #{plv_forward.15} parent=11 // pred_check
        %p189 = pneg %p59
      $region14: #{plv_forward.15} parent=11 // pred_check_branch
        %191 = sbr.rel (%p189) target = $region16
      $region15: #{plv_forward.15} parent=11 // pred_region
        _
      $region16: #{plv_forward.15} parent=11 // pred_fallthru
        _
      // Predicated region
      $region17: #{plv_forward.15} parent=11 // pred_check
        %p192 = pneg %p80
      $region18: #{plv_forward.15} parent=11 // pred_check_branch
        %194 = sbr.rel (%p192) target = $region20
      $region19: #{plv_forward.15} parent=11 // pred_region
        _
      $region20: #{plv_forward.15} parent=11 // pred_fallthru
        _
      // Predicated region
      $region21: #{plv_forward.15} parent=11 // pred_check
        %p195 = pneg %p127
      $region22: #{plv_forward.15} parent=11 // pred_check_branch
        %197 = sbr.rel (%p195) target = $region24
      $region23: #{plv_forward.15} parent=11 // pred_region
        _
      $region24: #{plv_forward.15} parent=11 // pred_fallthru
        _
      // Predicated region
      $region25: #{plv_forward.15} parent=11 // pred_check
        %p198 = pneg %p148
      $region26: #{plv_forward.15} parent=11 // pred_check_branch
        %200 = sbr.rel (%p198) target = $region28
      $region27: #{plv_forward.15} parent=11 // pred_region
        _
      $region28: #{plv_forward.15} parent=11 // pred_fallthru
        _
    $region12: #{plv_forward.15} parent=5 // pred_fallthru
      _
    %p201 = scmp.lt.s32.totalorder %s12, 2
    // Predicated region
    $region29: #{plv_forward.15} parent=5 // pred_check
      %p202 = pneg %p201
    $region30: #{plv_forward.15} parent=5 // pred_check_branch
      %204 = sbr.rel (%p202) target = $region32
    $region31: #{plv_forward.15} parent=5 // pred_region
      // Predicated region
      $region33: #{plv_forward.15} parent=31 // pred_check
        %p205 = pneg %p32
      $region34: #{plv_forward.15} parent=31 // pred_check_branch
        %207 = sbr.rel (%p205) target = $region36
      $region35: #{plv_forward.15} parent=31 // pred_region
        %p208 = scmp.lt.s32.totalorder %s12, 1
        %s209 = scalar_select %p208, %s12, 1
        %s210 = smul.addr %s209, 16
        %s211 = smul.addr %s210, 8
        %s212 = scalar_lea.vmem %s0, %s211
      $region36: #{plv_forward.15} parent=31 // pred_fallthru
        _
      // Predicated region
      $region37: #{plv_forward.15} parent=31 // pred_check
        %p213 = pneg %p100
      $region38: #{plv_forward.15} parent=31 // pred_check_branch
        %215 = sbr.rel (%p213) target = $region40
      $region39: #{plv_forward.15} parent=31 // pred_region
        %p216 = scmp.lt.s32.totalorder %s12, 1
        %s217 = scalar_select %p216, %s12, 1
        %s218 = scalar_lea.vmem %s3, %s217
      $region40: #{plv_forward.15} parent=31 // pred_fallthru
        _
    $region32: #{plv_forward.15} parent=5 // pred_fallthru
      _
    %p219 = scmp.le.s32.totalorder 1, %s12
    %p220 = scmp.lt.s32.totalorder %s12, 3
    %p221 = pnand %p219, %p220
    %p222 = pneg %p221
    // Predicated region
    $region41: #{plv_forward.15} parent=5 // pred_check
      _
    $region42: #{plv_forward.15} parent=5 // pred_check_branch
      %224 = sbr.rel (%p221) target = $region44
    $region43: #{plv_forward.15} parent=5 // pred_region
      %s225 = ssub.s32 %s12, 1
      %p226 = scmp.lt.s32.totalorder %s17, 1
      %s227 = scalar_select %p226, %s17, 1
      %s228 = smul.addr %s227, 16
      %s229 = smul.addr %s228, 8
      %s230 = scalar_lea.vmem %s0, %s229
      %p231 = pneg %p38
      %p232 = pneg %p35
      %p233 = pneg %p59
      %p234 = pneg %p56
      %p235 = pneg %p80
      %p236 = pneg %p77
      %p237 = scmp.lt.s32.totalorder %s17, 1
      %s238 = scalar_select %p237, %s17, 1
      %s239 = scalar_lea.vmem %s3, %s238
      %p240 = pneg %p106
      %p241 = pneg %p103
      %p242 = pneg %p127
      %p243 = pneg %p124
      %p244 = pneg %p148
      %p245 = pneg %p145
      %p246 = pneg %p174
      %p247 = pneg %p171
      %p248 = scmp.lt.s32.totalorder %s17, 1
      %s249 = scalar_select %p248, %s17, 1
      %s250 = smul.addr %s249, 8
      %s251 = smul.addr %s250, 8
      %s252 = scalar_lea.vmem %s6, %s251
      %p253 = scmp.lt.s32.totalorder %s17, 1
      %s254 = scalar_select %p253, %s17, 1
      %s255 = smul.addr %s254, 16
      %s256 = smul.addr %s255, 8
      %s257 = scalar_lea.vmem %s0, %s256
      %p258 = scmp.lt.s32.totalorder %s17, 1
      %s259 = scalar_select %p258, %s17, 1
      %s260 = scalar_lea.vmem %s3, %s259
      %p261 = scmp.lt.s32.totalorder %s17, 1
      %s262 = scalar_select %p261, %s17, 1
      %s263 = smul.addr %s262, 8
      %s264 = smul.addr %s263, 8
      %s265 = scalar_lea.vmem %s6, %s264
      %v267 = vld [vmem:[%s257] sm:$0xff]
      %v268 = vld [vmem:[%s257 + $0x8] sm:$0xff]
      %v269 = vld [vmem:[%s257 + $0x10] sm:$0xff]
      %v270 = vld [vmem:[%s257 + $0x18] sm:$0xff]
      %v271 = vld [vmem:[%s257 + $0x20] sm:$0xff]
      %v272 = vld [vmem:[%s257 + $0x28] sm:$0xff]
      %v273 = vld [vmem:[%s257 + $0x30] sm:$0xff]
      %v274 = vld [vmem:[%s257 + $0x38] sm:$0xff]
      %v275 = vld [vmem:[%s257 + $0x40] sm:$0xff]
      %v276 = vld [vmem:[%s257 + $0x48] sm:$0xff]
      %v277 = vld [vmem:[%s257 + $0x50] sm:$0xff]
      %v278 = vld [vmem:[%s257 + $0x58] sm:$0xff]
      %v279 = vld [vmem:[%s257 + $0x60] sm:$0xff]
      %v280 = vld [vmem:[%s257 + $0x68] sm:$0xff]
      %v281 = vld [vmem:[%s257 + $0x70] sm:$0xff]
      %v282 = vld [vmem:[%s257 + $0x78] sm:$0xff]
      %v283 = vld [vmem:[%s1] sm:$0xff]
      %v284 = vld [vmem:[%s1 + $0x8] sm:$0xff]
      %v285 = vld [vmem:[%s1 + $0x10] sm:$0xff]
      %v286 = vld [vmem:[%s1 + $0x18] sm:$0xff]
      %v287 = vld [vmem:[%s1 + $0x20] sm:$0xff]
      %v288 = vld [vmem:[%s1 + $0x28] sm:$0xff]
      %v289 = vld [vmem:[%s1 + $0x30] sm:$0xff]
      %v290 = vld [vmem:[%s1 + $0x38] sm:$0xff]
      %v291 = vld [vmem:[%s1 + $0x40] sm:$0xff]
      %v292 = vld [vmem:[%s1 + $0x48] sm:$0xff]
      %v293 = vld [vmem:[%s1 + $0x50] sm:$0xff]
      %v294 = vld [vmem:[%s1 + $0x58] sm:$0xff]
      %v295 = vld [vmem:[%s1 + $0x60] sm:$0xff]
      %v296 = vld [vmem:[%s1 + $0x68] sm:$0xff]
      %v297 = vld [vmem:[%s1 + $0x70] sm:$0xff]
      %v298 = vld [vmem:[%s1 + $0x78] sm:$0xff]
      %v299 = vld [vmem:[%s1 + $0x80] sm:$0xff]
      %v300 = vld [vmem:[%s1 + $0x88] sm:$0xff]
      %v301 = vpack.c.bf16 %v269, %v267
      %v302 = vpack.c.bf16 %v270, %v268
      %v303 = vpack.c.bf16 %v273, %v271
      %v304 = vpack.c.bf16 %v274, %v272
      %v305 = vpack.c.bf16 %v277, %v275
      %v306 = vpack.c.bf16 %v278, %v276
      %v307 = vpack.c.bf16 %v281, %v279
      %v308 = vpack.c.bf16 %v282, %v280
      %v309 = vpack.c.bf16 %v284, %v283
      %v310 = vpack.c.bf16 %v286, %v285
      %v311 = vpack.c.bf16 %v288, %v287
      %v312 = vpack.c.bf16 %v290, %v289
      %v313 = vpack.c.bf16 %v292, %v291
      %v314 = vpack.c.bf16 %v294, %v293
      %v315 = vpack.c.bf16 %v296, %v295
      %v316 = vpack.c.bf16 %v298, %v297
      %v317 = vpack.c.bf16 %v300, %v299
      %v318 = vld [vmem:[%s2] sm:$0x1]
      %v320 = vlaneseq
      %v321 = vshrl.u32 %v320, 7
      %v322 = vsub.s32 0, %v321
      %v323 = vrot.slane %v318, %v322
      %vm325 = vcmask 130048
      %v327 = vsel %vm325, %v302, 0
      %v330 = vsel %vm325, %v304, 0
      %v333 = vsel %vm325, %v306, 0
      %v336 = vsel %vm325, %v308, 0
      %338 = vmatprep.subr.bf16.mxu0 0
      %339 = vmatpush1.bf16.msra.mxu0 %v316
      %340 = vmatprep.subr.bf16.mxu0 0
      %341 = vmatpush1.bf16.msra.mxu0 %v315
      %342 = vmatprep.subr.bf16.mxu0 0
      %343 = vmatpush1.bf16.msra.mxu0 %v314
      %344 = vmatprep.subr.bf16.mxu0 0
      %345 = vmatpush1.bf16.msra.mxu0 %v313
      %346 = vmatprep.subr.bf16.mxu0 0
      %347 = vmatpush1.bf16.msra.mxu0 %v312
      %348 = vmatprep.subr.bf16.mxu0 0
      %349 = vmatpush1.bf16.msra.mxu0 %v311
      %350 = vmatprep.subr.bf16.mxu0 0
      %351 = vmatpush1.bf16.msra.mxu0 %v310
      %352 = vmatprep.subr.bf16.mxu0 0
      %353 = vmatpush1.bf16.msra.mxu0 %v309
      %354 = vmatprep.subr.bf16.mxu0 0
      %355 = vmatpush2.bf16.msra.mxu0 0
      %356 = vmatprep.subr.bf16.mxu0 0
      %357 = vmatpush2.bf16.msra.mxu0 0
      %358 = vmatprep.subr.bf16.mxu0 0
      %359 = vmatpush2.bf16.msra.mxu0 0
      %360 = vmatprep.subr.bf16.mxu0 0
      %361 = vmatpush2.bf16.msra.mxu0 0
      %362 = vmatprep.subr.bf16.mxu0 0
      %363 = vmatpush2.bf16.msra.mxu0 0
      %364 = vmatprep.subr.bf16.mxu0 0
      %365 = vmatpush2.bf16.msra.mxu0 0
      %366 = vmatprep.subr.bf16.mxu0 0
      %367 = vmatpush2.bf16.msra.mxu0 0
      %368 = vmatprep.subr.bf16.mxu0 0
      %369 = vmatpush2.bf16.msra.mxu0 %v317
      %370 = vmatprep.mubr.bf16.mxu0 %v327
      %371 = vmatmul.mubr.bf16.gmra.mxu0 %v301
      %v372 = vpop.f32.mrf.mxu0
      %v373 = vadd.f32 %v323, %v372
      %v374 = vpop.f32.mrf.mxu0
      %v375 = vpop.f32.mrf.mxu0
      %v376 = vadd.f32 %v323, %v375
      %v377 = vpop.f32.mrf.mxu0
      %378 = vmatprep.mubr.bf16.mxu0 %v330
      %379 = vmatmul.mubr.bf16.gmra.mxu0 %v303
      %v380 = vpop.f32.mrf.mxu0
      %v381 = vadd.f32 %v323, %v380
      %v382 = vpop.f32.mrf.mxu0
      %v383 = vpop.f32.mrf.mxu0
      %v384 = vadd.f32 %v323, %v383
      %v385 = vpop.f32.mrf.mxu0
      %386 = vmatprep.mubr.bf16.mxu0 %v333
      %387 = vmatmul.mubr.bf16.gmra.mxu0 %v305
      %v388 = vpop.f32.mrf.mxu0
      %v389 = vadd.f32 %v323, %v388
      %v390 = vpop.f32.mrf.mxu0
      %v391 = vpop.f32.mrf.mxu0
      %v392 = vadd.f32 %v323, %v391
      %v393 = vpop.f32.mrf.mxu0
      %394 = vmatprep.mubr.bf16.mxu0 %v336
      %395 = vmatmul.mubr.bf16.gmra.mxu0 %v307
      %v396 = vpop.f32.mrf.mxu0
      %v397 = vadd.f32 %v323, %v396
      %v398 = vpop.f32.mrf.mxu0
      %v399 = vpop.f32.mrf.mxu0
      %v400 = vadd.f32 %v323, %v399
      %v401 = vpop.f32.mrf.mxu0
      %402 = vdwg.mxu0
      %v403 = vmax.f32 %v373, 0.0
      %v404 = vmax.f32 %v376, 0.0
      %v405 = vmax.f32 %v381, 0.0
      %v406 = vmax.f32 %v384, 0.0
      %v407 = vmax.f32 %v389, 0.0
      %v408 = vmax.f32 %v392, 0.0
      %v409 = vmax.f32 %v397, 0.0
      %v410 = vmax.f32 %v400, 0.0
      %v411 = vld [vmem:[%s260] sm:$0x1]
      %v412 = vld [vmem:[%s4] sm:$0xff]
      %v413 = vld [vmem:[%s4 + $0x8] sm:$0xff]
      %v414 = vld [vmem:[%s4 + $0x10] sm:$0xff]
      %v415 = vld [vmem:[%s4 + $0x18] sm:$0xff]
      %v416 = vpack.c.bf16 %v411, %v411
      %v417 = vpack.c.bf16 %v413, %v412
      %v418 = vpack.c.bf16 %v415, %v414
      %v419 = vld [vmem:[%s5] sm:$0x1]
      %vm420 = vcmask 261120
      %v422 = vsel %vm420, %v416, 0
      %424 = vmatprep.subr.bf16.mxu0 0
      %425 = vmatpush1.bf16.msra.mxu0 0
      %426 = vmatprep.subr.bf16.mxu0 0
      %427 = vmatpush1.bf16.msra.mxu0 0
      %428 = vmatprep.subr.bf16.mxu0 0
      %429 = vmatpush1.bf16.msra.mxu0 0
      %430 = vmatprep.subr.bf16.mxu0 0
      %431 = vmatpush1.bf16.msra.mxu0 0
      %432 = vmatprep.subr.bf16.mxu0 0
      %433 = vmatpush1.bf16.msra.mxu0 0
      %434 = vmatprep.subr.bf16.mxu0 0
      %435 = vmatpush1.bf16.msra.mxu0 0
      %436 = vmatprep.subr.bf16.mxu0 0
      %437 = vmatpush1.bf16.msra.mxu0 %v418
      %438 = vmatprep.subr.bf16.mxu0 0
      %439 = vmatpush1.bf16.msra.mxu0 %v417
      %440 = vmatprep.subr.bf16.mxu0 0
      %441 = vmatpush2.bf16.msra.mxu0 0
      %442 = vmatprep.subr.bf16.mxu0 0
      %443 = vmatpush2.bf16.msra.mxu0 0
      %444 = vmatprep.subr.bf16.mxu0 0
      %445 = vmatpush2.bf16.msra.mxu0 0
      %446 = vmatprep.subr.bf16.mxu0 0
      %447 = vmatpush2.bf16.msra.mxu0 0
      %448 = vmatprep.subr.bf16.mxu0 0
      %449 = vmatpush2.bf16.msra.mxu0 0
      %450 = vmatprep.subr.bf16.mxu0 0
      %451 = vmatpush2.bf16.msra.mxu0 0
      %452 = vmatprep.subr.bf16.mxu0 0
      %453 = vmatpush2.bf16.msra.mxu0 0
      %454 = vmatprep.subr.bf16.mxu0 0
      %455 = vmatpush2.bf16.msra.mxu0 0
      %456 = vmatprep.mubr.bf16.mxu0 0
      %457 = vmatmul.mubr.bf16.gmra.mxu0 %v422
      %v458 = vpop.f32.mrf.mxu0
      %v459 = vadd.f32 %v419, %v458
      %v460 = vpop.f32.mrf.mxu0
      %v461 = vpop.f32.mrf.mxu0
      %v462 = vpop.f32.mrf.mxu0
      %463 = vdwg.mxu0
      %v464 = vsub.f32 0.0, %v459
      %v465 = vmul.f32 %v464, 1.442695
      %v466 = vpow.pop %v465
      %v467 = vadd.f32 %v466, 1.0
      %v468 = vrcp.pop %v467
      %v469 = vlaneseq
      %v470 = vshrl.u32 %v469, 7
      %v471 = vsub.s32 0, %v470
      %v472 = vrot.slane %v468, %v471
      %v473 = vmul.f32 %v403, %v472
      %v474 = vmul.f32 %v404, %v472
      %v475 = vmul.f32 %v405, %v472
      %v476 = vmul.f32 %v406, %v472
      %v477 = vmul.f32 %v407, %v472
      %v478 = vmul.f32 %v408, %v472
      %v479 = vmul.f32 %v409, %v472
      %v480 = vmul.f32 %v410, %v472
      %481 = vst.msk [vmem:[%s265] sm:$0xff] %vm420, %v473
      %482 = vst.msk [vmem:[%s265 + $0x8] sm:$0xff] %vm420, %v474
      %483 = vst.msk [vmem:[%s265 + $0x10] sm:$0xff] %vm420, %v475
      %484 = vst.msk [vmem:[%s265 + $0x18] sm:$0xff] %vm420, %v476
      %485 = vst.msk [vmem:[%s265 + $0x20] sm:$0xff] %vm420, %v477
      %486 = vst.msk [vmem:[%s265 + $0x28] sm:$0xff] %vm420, %v478
      %487 = vst.msk [vmem:[%s265 + $0x30] sm:$0xff] %vm420, %v479
      %488 = vst.msk [vmem:[%s265 + $0x38] sm:$0xff] %vm420, %v480
      %p489 = scmp.lt.s32.totalorder %s17, 1
      %s490 = scalar_select %p489, %s17, 1
      %s491 = smul.addr %s490, 8
      %s492 = smul.addr %s491, 8
      %s493 = scalar_lea.vmem %s6, %s492
      // Predicated region
      $region45: #{plv_forward.15} parent=43 // pred_check
        %p494 = pneg %p171
      $region46: #{plv_forward.15} parent=43 // pred_check_branch
        %496 = sbr.rel (%p494) target = $region48
      $region47: #{plv_forward.15} parent=43 // pred_region
        _
      $region48: #{plv_forward.15} parent=43 // pred_fallthru
        _
    $region44: #{plv_forward.15} parent=5 // pred_fallthru
      _
    %p497 = scmp.le.s32.totalorder 2, %s12
    // Predicated region
    $region49: #{plv_forward.15} parent=5 // pred_check
      %p498 = pneg %p497
    $region50: #{plv_forward.15} parent=5 // pred_check_branch
      %500 = sbr.rel (%p498) target = $region52
    $region51: #{plv_forward.15} parent=5 // pred_region
      %s501 = ssub.s32 %s12, 2
      // Predicated region
      $region53: #{plv_forward.15} parent=51 // pred_check
        %p502 = pneg %p177
      $region54: #{plv_forward.15} parent=51 // pred_check_branch
        %504 = sbr.rel (%p502) target = $region56
      $region55: #{plv_forward.15} parent=51 // pred_region
        %p505 = scmp.lt.s32.totalorder %s18, 1
        %s506 = scalar_select %p505, %s18, 1
        %s507 = smul.addr %s506, 8
        %s508 = smul.addr %s507, 8
        %s509 = scalar_lea.vmem %s6, %s508
      $region56: #{plv_forward.15} parent=51 // pred_fallthru
        _
    $region52: #{plv_forward.15} parent=5 // pred_fallthru
      _
  $region6: #{plv_forward.15} parent=0 // loop_footer
    %s16 = sadd.s32 1, %s12
  $region7: #{plv_forward.15} parent=0 // loop_footer_branch
    %11 = sbr.rel target = $region3
  $region8: #{plv_forward.15} parent=0 // loop_exit
    _

// kernel: plv_forward.16
$region0: #{plv_forward.16}
  #allocation0 [shape = 'u32[]', space=smem, size = 0x4, offset = 0x4, fixed_abs, tag = 'smem constant byte address 0x4 - core index']
  #allocation1 [shape = 'u32[144,128]{1,0:T(1,128)}', space=vmem, size = 0x12000, scoped, tag = 'internal scratch']
  %s0 = inlined_call_operand.vmem [shape: f32[2,16,288], index: 0, kind: input, shape index: {}]
  %s1 = inlined_call_operand.vmem [shape: f32[288,64], index: 1, kind: input, shape index: {}]
  %s2 = inlined_call_operand.vmem [shape: f32[1,64], index: 2, kind: input, shape index: {}]
  %s3 = inlined_call_operand.vmem [shape: f32[2,1,32], index: 3, kind: input, shape index: {}]
  %s4 = inlined_call_operand.vmem [shape: f32[32,64], index: 4, kind: input, shape index: {}]
  %s5 = inlined_call_operand.vmem [shape: f32[1,64], index: 5, kind: input, shape index: {}]
  %s6 = inlined_call_operand.vmem [shape: f32[2,16,64], index: 6, kind: output, shape index: {}]
  %s7 = sld [smem:[#allocation0]]
  $region57: #{plv_forward.16} parent=0
    _
  %s9 = ssub.s32 1, %s7
  %s10 = scalar_select 0, %s9, %s7
  loop: start=0, step=1, limit=4
  $region2: #{plv_forward.16} parent=0 // loop_pre_header
    _
  $region3: #{plv_forward.16} parent=0 // loop_header
    %s12 = sphi 0, %s16
    %p13 = scmp.ge.s32.totalorder %s12, 4
    %s22 = sphi 0, %s24
    %s25 = sphi 0, %s22
    %s26 = sphi 0, %s25
    %s42 = sphi 0, %s26
    %s46 = sphi 0, %s46
    %s48 = sphi 0, %s46
    %s49 = sphi 0, %s48
    %s63 = sphi 0, %s49
    %s67 = sphi 0, %s67
    %s69 = sphi 0, %s67
    %s70 = sphi 0, %s69
    %s84 = sphi 0, %s70
    %s90 = sphi 0, %s92
    %s93 = sphi 0, %s90
    %s94 = sphi 0, %s93
    %s110 = sphi 0, %s94
    %s114 = sphi 0, %s114
    %s116 = sphi 0, %s114
    %s117 = sphi 0, %s116
    %s131 = sphi 0, %s117
    %s135 = sphi 0, %s135
    %s137 = sphi 0, %s135
    %s138 = sphi 0, %s137
    %s152 = sphi 0, %s138
    %s158 = sphi 0, %s160
    %s161 = sphi 0, %s158
    %s162 = sphi 0, %s161
    %s178 = sphi 0, %s162
  $region4: #{plv_forward.16} parent=0 // loop_header_branch
    %15 = sbr.rel (%p13) target = $region8
  $region5: #{plv_forward.16} parent=0 // loop_body
    %s17 = ssub.s32 %s12, 1
    %s18 = ssub.s32 %s12, 2
    %s19 = sadd.s32 %s12, 1
    %s20 = ssub.s32 %s12, %s19
    %p21 = scmp.eq.s32.totalorder %s20, 0
    %s23 = sadd.s32 %s22, 1
    %s24 = scalar_select %p21, %s22, %s23
    %p27 = pneg %p21
    %p28 = scmp.eq.s32.totalorder %s12, 1
    %p29 = por %p27, %p28
    %p30 = scmp.ne.s32.totalorder %s22, %s25
    %p31 = scmp.eq.s32.totalorder %s12, 0
    %p32 = por %p30, %p31
    %p33 = scmp.ne.s32.totalorder %s22, %s25
    %p34 = scmp.eq.s32.totalorder %s17, 1
    %p35 = por %p33, %p34
    %p36 = scmp.ne.s32.totalorder %s25, %s26
    %p37 = scmp.eq.s32.totalorder %s17, 0
    %p38 = por %p36, %p37
    %p39 = scmp.ne.s32.totalorder %s25, %s26
    %p40 = scmp.eq.s32.totalorder %s18, 1
    %p41 = por %p39, %p40
    %p43 = scmp.ne.s32.totalorder %s26, %s42
    %p44 = scmp.eq.s32.totalorder %s18, 0
    %p45 = por %p43, %p44
    %s47 = sadd.s32 %s46, 1
    %p50 = scmp.eq.s32.totalorder %s12, 1
    %p51 = scmp.ne.s32.totalorder %s46, %s48
    %p52 = scmp.eq.s32.totalorder %s12, 0
    %p53 = por %p51, %p52
    %p54 = scmp.ne.s32.totalorder %s46, %s48
    %p55 = scmp.eq.s32.totalorder %s17, 1
    %p56 = por %p54, %p55
    %p57 = scmp.ne.s32.totalorder %s48, %s49
    %p58 = scmp.eq.s32.totalorder %s17, 0
    %p59 = por %p57, %p58
    %p60 = scmp.ne.s32.totalorder %s48, %s49
    %p61 = scmp.eq.s32.totalorder %s18, 1
    %p62 = por %p60, %p61
    %p64 = scmp.ne.s32.totalorder %s49, %s63
    %p65 = scmp.eq.s32.totalorder %s18, 0
    %p66 = por %p64, %p65
    %s68 = sadd.s32 %s67, 1
    %p71 = scmp.eq.s32.totalorder %s12, 1
    %p72 = scmp.ne.s32.totalorder %s67, %s69
    %p73 = scmp.eq.s32.totalorder %s12, 0
    %p74 = por %p72, %p73
    %p75 = scmp.ne.s32.totalorder %s67, %s69
    %p76 = scmp.eq.s32.totalorder %s17, 1
    %p77 = por %p75, %p76
    %p78 = scmp.ne.s32.totalorder %s69, %s70
    %p79 = scmp.eq.s32.totalorder %s17, 0
    %p80 = por %p78, %p79
    %p81 = scmp.ne.s32.totalorder %s69, %s70
    %p82 = scmp.eq.s32.totalorder %s18, 1
    %p83 = por %p81, %p82
    %p85 = scmp.ne.s32.totalorder %s70, %s84
    %p86 = scmp.eq.s32.totalorder %s18, 0
    %p87 = por %p85, %p86
    %s88 = ssub.s32 %s12, %s19
    %p89 = scmp.eq.s32.totalorder %s88, 0
    %s91 = sadd.s32 %s90, 1
    %s92 = scalar_select %p89, %s90, %s91
    %p95 = pneg %p89
    %p96 = scmp.eq.s32.totalorder %s12, 1
    %p97 = por %p95, %p96
    %p98 = scmp.ne.s32.totalorder %s90, %s93
    %p99 = scmp.eq.s32.totalorder %s12, 0
    %p100 = por %p98, %p99
    %p101 = scmp.ne.s32.totalorder %s90, %s93
    %p102 = scmp.eq.s32.totalorder %s17, 1
    %p103 = por %p101, %p102
    %p104 = scmp.ne.s32.totalorder %s93, %s94
    %p105 = scmp.eq.s32.totalorder %s17, 0
    %p106 = por %p104, %p105
    %p107 = scmp.ne.s32.totalorder %s93, %s94
    %p108 = scmp.eq.s32.totalorder %s18, 1
    %p109 = por %p107, %p108
    %p111 = scmp.ne.s32.totalorder %s94, %s110
    %p112 = scmp.eq.s32.totalorder %s18, 0
    %p113 = por %p111, %p112
    %s115 = sadd.s32 %s114, 1
    %p118 = scmp.eq.s32.totalorder %s12, 1
    %p119 = scmp.ne.s32.totalorder %s114, %s116
    %p120 = scmp.eq.s32.totalorder %s12, 0
    %p121 = por %p119, %p120
    %p122 = scmp.ne.s32.totalorder %s114, %s116
    %p123 = scmp.eq.s32.totalorder %s17, 1
    %p124 = por %p122, %p123
    %p125 = scmp.ne.s32.totalorder %s116, %s117
    %p126 = scmp.eq.s32.totalorder %s17, 0
    %p127 = por %p125, %p126
    %p128 = scmp.ne.s32.totalorder %s116, %s117
    %p129 = scmp.eq.s32.totalorder %s18, 1
    %p130 = por %p128, %p129
    %p132 = scmp.ne.s32.totalorder %s117, %s131
    %p133 = scmp.eq.s32.totalorder %s18, 0
    %p134 = por %p132, %p133
    %s136 = sadd.s32 %s135, 1
    %p139 = scmp.eq.s32.totalorder %s12, 1
    %p140 = scmp.ne.s32.totalorder %s135, %s137
    %p141 = scmp.eq.s32.totalorder %s12, 0
    %p142 = por %p140, %p141
    %p143 = scmp.ne.s32.totalorder %s135, %s137
    %p144 = scmp.eq.s32.totalorder %s17, 1
    %p145 = por %p143, %p144
    %p146 = scmp.ne.s32.totalorder %s137, %s138
    %p147 = scmp.eq.s32.totalorder %s17, 0
    %p148 = por %p146, %p147
    %p149 = scmp.ne.s32.totalorder %s137, %s138
    %p150 = scmp.eq.s32.totalorder %s18, 1
    %p151 = por %p149, %p150
    %p153 = scmp.ne.s32.totalorder %s138, %s152
    %p154 = scmp.eq.s32.totalorder %s18, 0
    %p155 = por %p153, %p154
    %s156 = ssub.s32 %s12, %s19
    %p157 = scmp.eq.s32.totalorder %s156, 0
    %s159 = sadd.s32 %s158, 1
    %s160 = scalar_select %p157, %s158, %s159
    %p163 = pneg %p157
    %p164 = scmp.eq.s32.totalorder %s12, 1
    %p165 = por %p163, %p164
    %p166 = scmp.ne.s32.totalorder %s158, %s161
    %p167 = scmp.eq.s32.totalorder %s12, 0
    %p168 = por %p166, %p167
    %p169 = scmp.ne.s32.totalorder %s158, %s161
    %p170 = scmp.eq.s32.totalorder %s17, 1
    %p171 = por %p169, %p170
    %p172 = scmp.ne.s32.totalorder %s161, %s162
    %p173 = scmp.eq.s32.totalorder %s17, 0
    %p174 = por %p172, %p173
    %p175 = scmp.ne.s32.totalorder %s161, %s162
    %p176 = scmp.eq.s32.totalorder %s18, 1
    %p177 = por %p175, %p176
    %p179 = scmp.ne.s32.totalorder %s162, %s178
    %p180 = scmp.eq.s32.totalorder %s18, 0
    %p181 = por %p179, %p180
    %p182 = scmp.le.s32.totalorder 1, %s12
    %p183 = scmp.lt.s32.totalorder %s12, 3
    %p184 = pnand %p182, %p183
    %p185 = pneg %p184
    // Predicated region
    $region9: #{plv_forward.16} parent=5 // pred_check
      _
    $region10: #{plv_forward.16} parent=5 // pred_check_branch
      %187 = sbr.rel (%p184) target = $region12
    $region11: #{plv_forward.16} parent=5 // pred_region
      %s188 = ssub.s32 %s12, 1
      // Predicated region
      $region13: #{plv_forward.16} parent=11 // pred_check
        %p189 = pneg %p59
      $region14: #{plv_forward.16} parent=11 // pred_check_branch
        %191 = sbr.rel (%p189) target = $region16
      $region15: #{plv_forward.16} parent=11 // pred_region
        _
      $region16: #{plv_forward.16} parent=11 // pred_fallthru
        _
      // Predicated region
      $region17: #{plv_forward.16} parent=11 // pred_check
        %p192 = pneg %p80
      $region18: #{plv_forward.16} parent=11 // pred_check_branch
        %194 = sbr.rel (%p192) target = $region20
      $region19: #{plv_forward.16} parent=11 // pred_region
        _
      $region20: #{plv_forward.16} parent=11 // pred_fallthru
        _
      // Predicated region
      $region21: #{plv_forward.16} parent=11 // pred_check
        %p195 = pneg %p127
      $region22: #{plv_forward.16} parent=11 // pred_check_branch
        %197 = sbr.rel (%p195) target = $region24
      $region23: #{plv_forward.16} parent=11 // pred_region
        _
      $region24: #{plv_forward.16} parent=11 // pred_fallthru
        _
      // Predicated region
      $region25: #{plv_forward.16} parent=11 // pred_check
        %p198 = pneg %p148
      $region26: #{plv_forward.16} parent=11 // pred_check_branch
        %200 = sbr.rel (%p198) target = $region28
      $region27: #{plv_forward.16} parent=11 // pred_region
        _
      $region28: #{plv_forward.16} parent=11 // pred_fallthru
        _
    $region12: #{plv_forward.16} parent=5 // pred_fallthru
      _
    %p201 = scmp.lt.s32.totalorder %s12, 2
    // Predicated region
    $region29: #{plv_forward.16} parent=5 // pred_check
      %p202 = pneg %p201
    $region30: #{plv_forward.16} parent=5 // pred_check_branch
      %204 = sbr.rel (%p202) target = $region32
    $region31: #{plv_forward.16} parent=5 // pred_region
      // Predicated region
      $region33: #{plv_forward.16} parent=31 // pred_check
        %p205 = pneg %p32
      $region34: #{plv_forward.16} parent=31 // pred_check_branch
        %207 = sbr.rel (%p205) target = $region36
      $region35: #{plv_forward.16} parent=31 // pred_region
        %p208 = scmp.lt.s32.totalorder %s12, 1
        %s209 = scalar_select %p208, %s12, 1
        %s210 = smul.addr %s209, 6
        %s211 = smul.addr %s210, 8
        %s212 = scalar_lea.vmem %s0, %s211
      $region36: #{plv_forward.16} parent=31 // pred_fallthru
        _
      // Predicated region
      $region37: #{plv_forward.16} parent=31 // pred_check
        %p213 = pneg %p100
      $region38: #{plv_forward.16} parent=31 // pred_check_branch
        %215 = sbr.rel (%p213) target = $region40
      $region39: #{plv_forward.16} parent=31 // pred_region
        %p216 = scmp.lt.s32.totalorder %s12, 1
        %s217 = scalar_select %p216, %s12, 1
        %s218 = scalar_lea.vmem %s3, %s217
      $region40: #{plv_forward.16} parent=31 // pred_fallthru
        _
    $region32: #{plv_forward.16} parent=5 // pred_fallthru
      _
    %p219 = scmp.le.s32.totalorder 1, %s12
    %p220 = scmp.lt.s32.totalorder %s12, 3
    %p221 = pnand %p219, %p220
    %p222 = pneg %p221
    // Predicated region
    $region41: #{plv_forward.16} parent=5 // pred_check
      _
    $region42: #{plv_forward.16} parent=5 // pred_check_branch
      %224 = sbr.rel (%p221) target = $region44
    $region43: #{plv_forward.16} parent=5 // pred_region
      %s225 = ssub.s32 %s12, 1
      %p226 = scmp.lt.s32.totalorder %s17, 1
      %s227 = scalar_select %p226, %s17, 1
      %s228 = smul.addr %s227, 6
      %s229 = smul.addr %s228, 8
      %s230 = scalar_lea.vmem %s0, %s229
      %p231 = pneg %p38
      %p232 = pneg %p35
      %p233 = pneg %p59
      %p234 = pneg %p56
      %p235 = pneg %p80
      %p236 = pneg %p77
      %p237 = scmp.lt.s32.totalorder %s17, 1
      %s238 = scalar_select %p237, %s17, 1
      %s239 = scalar_lea.vmem %s3, %s238
      %p240 = pneg %p106
      %p241 = pneg %p103
      %p242 = pneg %p127
      %p243 = pneg %p124
      %p244 = pneg %p148
      %p245 = pneg %p145
      %p246 = pneg %p174
      %p247 = pneg %p171
      %p248 = scmp.lt.s32.totalorder %s17, 1
      %s249 = scalar_select %p248, %s17, 1
      %s250 = smul.addr %s249, 2
      %s251 = smul.addr %s250, 8
      %s252 = scalar_lea.vmem %s6, %s251
      %p253 = scmp.lt.s32.totalorder %s17, 1
      %s254 = scalar_select %p253, %s17, 1
      %s255 = smul.addr %s254, 6
      %s256 = smul.addr %s255, 8
      %s257 = scalar_lea.vmem %s0, %s256
      %p258 = scmp.lt.s32.totalorder %s17, 1
      %s259 = scalar_select %p258, %s17, 1
      %s260 = scalar_lea.vmem %s3, %s259
      %p261 = scmp.lt.s32.totalorder %s17, 1
      %s262 = scalar_select %p261, %s17, 1
      %s263 = smul.addr %s262, 2
      %s264 = smul.addr %s263, 8
      %s265 = scalar_lea.vmem %s6, %s264
      %v267 = vld [vmem:[%s257] sm:$0xff]
      %v268 = vld [vmem:[%s257 + $0x8] sm:$0xff]
      %v269 = vld [vmem:[%s257 + $0x10] sm:$0xff]
      %v270 = vld [vmem:[%s257 + $0x18] sm:$0xff]
      %v271 = vld [vmem:[%s257 + $0x20] sm:$0xff]
      %v272 = vld [vmem:[%s257 + $0x28] sm:$0xff]
      %v273 = vld [vmem:[%s1] sm:$0xff]
      %v274 = vld [vmem:[%s1 + $0x8] sm:$0xff]
      %v275 = vld [vmem:[%s1 + $0x10] sm:$0xff]
      %v276 = vld [vmem:[%s1 + $0x18] sm:$0xff]
      %v277 = vld [vmem:[%s1 + $0x20] sm:$0xff]
      %v278 = vld [vmem:[%s1 + $0x28] sm:$0xff]
      %v279 = vld [vmem:[%s1 + $0x30] sm:$0xff]
      %v280 = vld [vmem:[%s1 + $0x38] sm:$0xff]
      %v281 = vld [vmem:[%s1 + $0x40] sm:$0xff]
      %v282 = vld [vmem:[%s1 + $0x48] sm:$0xff]
      %v283 = vld [vmem:[%s1 + $0x50] sm:$0xff]
      %v284 = vld [vmem:[%s1 + $0x58] sm:$0xff]
      %v285 = vld [vmem:[%s1 + $0x60] sm:$0xff]
      %v286 = vld [vmem:[%s1 + $0x68] sm:$0xff]
      %v287 = vld [vmem:[%s1 + $0x70] sm:$0xff]
      %v288 = vld [vmem:[%s1 + $0x78] sm:$0xff]
      %v289 = vld [vmem:[%s1 + $0x80] sm:$0xff]
      %v290 = vld [vmem:[%s1 + $0x88] sm:$0xff]
      %v291 = vld [vmem:[%s1 + $0x90] sm:$0xff]
      %v292 = vld [vmem:[%s1 + $0x98] sm:$0xff]
      %v293 = vld [vmem:[%s1 + $0xa0] sm:$0xff]
      %v294 = vld [vmem:[%s1 + $0xa8] sm:$0xff]
      %v295 = vld [vmem:[%s1 + $0xb0] sm:$0xff]
      %v296 = vld [vmem:[%s1 + $0xb8] sm:$0xff]
      %v297 = vld [vmem:[%s1 + $0xc0] sm:$0xff]
      %v298 = vld [vmem:[%s1 + $0xc8] sm:$0xff]
      %v299 = vld [vmem:[%s1 + $0xd0] sm:$0xff]
      %v300 = vld [vmem:[%s1 + $0xd8] sm:$0xff]
      %v301 = vld [vmem:[%s1 + $0xe0] sm:$0xff]
      %v302 = vld [vmem:[%s1 + $0xe8] sm:$0xff]
      %v303 = vld [vmem:[%s1 + $0xf0] sm:$0xff]
      %v304 = vld [vmem:[%s1 + $0xf8] sm:$0xff]
      %v305 = vld [vmem:[%s1 + $0x100] sm:$0xff]
      %v306 = vld [vmem:[%s1 + $0x108] sm:$0xff]
      %v307 = vld [vmem:[%s1 + $0x110] sm:$0xff]
      %v308 = vld [vmem:[%s1 + $0x118] sm:$0xff]
      %v309 = vpack.c.bf16 %v270, %v267
      %v310 = vpack.c.bf16 %v271, %v268
      %v311 = vpack.c.bf16 %v272, %v269
      %v312 = vpack.c.bf16 %v274, %v273
      %v313 = vpack.c.bf16 %v276, %v275
      %v314 = vpack.c.bf16 %v278, %v277
      %v315 = vpack.c.bf16 %v280, %v279
      %v316 = vpack.c.bf16 %v282, %v281
      %v317 = vpack.c.bf16 %v284, %v283
      %v318 = vpack.c.bf16 %v286, %v285
      %v319 = vpack.c.bf16 %v288, %v287
      %v320 = vpack.c.bf16 %v290, %v289
      %v321 = vpack.c.bf16 %v292, %v291
      %v322 = vpack.c.bf16 %v294, %v293
      %v323 = vpack.c.bf16 %v296, %v295
      %v324 = vpack.c.bf16 %v298, %v297
      %v325 = vpack.c.bf16 %v300, %v299
      %v326 = vpack.c.bf16 %v302, %v301
      %v327 = vpack.c.bf16 %v304, %v303
      %v328 = vpack.c.bf16 %v306, %v305
      %v329 = vpack.c.bf16 %v308, %v307
      %v330 = vld [vmem:[%s2] sm:$0x1]
      %v332 = vlaneseq
      %v333 = vshrl.u32 %v332, 7
      %v334 = vsub.s32 0, %v333
      %v335 = vrot.slane %v330, %v334
      %vm337 = vcmask 261120
      %v339 = vsel %vm337, %v311, 0
      %341 = vmatprep.subr.bf16.mxu0 0
      %342 = vmatpush1.bf16.msra.mxu0 %v319
      %343 = vmatprep.subr.bf16.mxu0 0
      %344 = vmatpush1.bf16.msra.mxu0 %v318
      %345 = vmatprep.subr.bf16.mxu0 0
      %346 = vmatpush1.bf16.msra.mxu0 %v317
      %347 = vmatprep.subr.bf16.mxu0 0
      %348 = vmatpush1.bf16.msra.mxu0 %v316
      %349 = vmatprep.subr.bf16.mxu0 0
      %350 = vmatpush1.bf16.msra.mxu0 %v315
      %351 = vmatprep.subr.bf16.mxu0 0
      %352 = vmatpush1.bf16.msra.mxu0 %v314
      %353 = vmatprep.subr.bf16.mxu0 0
      %354 = vmatpush1.bf16.msra.mxu0 %v313
      %355 = vmatprep.subr.bf16.mxu0 0
      %356 = vmatpush1.bf16.msra.mxu0 %v312
      %357 = vmatprep.subr.bf16.mxu0 0
      %358 = vmatpush2.bf16.msra.mxu0 %v327
      %359 = vmatprep.subr.bf16.mxu0 0
      %360 = vmatpush2.bf16.msra.mxu0 %v326
      %361 = vmatprep.subr.bf16.mxu0 0
      %362 = vmatpush2.bf16.msra.mxu0 %v325
      %363 = vmatprep.subr.bf16.mxu0 0
      %364 = vmatpush2.bf16.msra.mxu0 %v324
      %365 = vmatprep.subr.bf16.mxu0 0
      %366 = vmatpush2.bf16.msra.mxu0 %v323
      %367 = vmatprep.subr.bf16.mxu0 0
      %368 = vmatpush2.bf16.msra.mxu0 %v322
      %369 = vmatprep.subr.bf16.mxu0 0
      %370 = vmatpush2.bf16.msra.mxu0 %v321
      %371 = vmatprep.subr.bf16.mxu0 0
      %372 = vmatpush2.bf16.msra.mxu0 %v320
      %373 = vmatprep.mubr.bf16.mxu0 %v310
      %374 = vmatmul.mubr.bf16.gmra.mxu0 %v309
      %v375 = vpop.f32.mrf.mxu0
      %v376 = vadd.f32 %v335, %v375
      %v377 = vpop.f32.mrf.mxu0
      %v378 = vpop.f32.mrf.mxu0
      %v379 = vadd.f32 %v335, %v378
      %v380 = vpop.f32.mrf.mxu0
      %381 = vdwg.mxu0
      %382 = vmatprep.subr.bf16.mxu0 0
      %383 = vmatpush1.bf16.msra.mxu0 0
      %384 = vmatprep.subr.bf16.mxu0 0
      %385 = vmatpush1.bf16.msra.mxu0 0
      %386 = vmatprep.subr.bf16.mxu0 0
      %387 = vmatpush1.bf16.msra.mxu0 0
      %388 = vmatprep.subr.bf16.mxu0 0
      %389 = vmatpush1.bf16.msra.mxu0 0
      %390 = vmatprep.subr.bf16.mxu0 0
      %391 = vmatpush1.bf16.msra.mxu0 0
      %392 = vmatprep.subr.bf16.mxu0 0
      %393 = vmatpush1.bf16.msra.mxu0 0
      %394 = vmatprep.subr.bf16.mxu0 0
      %395 = vmatpush1.bf16.msra.mxu0 %v329
      %396 = vmatprep.subr.bf16.mxu0 0
      %397 = vmatpush1.bf16.msra.mxu0 %v328
      %398 = vmatprep.subr.bf16.mxu0 0
      %399 = vmatpush2.bf16.msra.mxu0 0
      %400 = vmatprep.subr.bf16.mxu0 0
      %401 = vmatpush2.bf16.msra.mxu0 0
      %402 = vmatprep.subr.bf16.mxu0 0
      %403 = vmatpush2.bf16.msra.mxu0 0
      %404 = vmatprep.subr.bf16.mxu0 0
      %405 = vmatpush2.bf16.msra.mxu0 0
      %406 = vmatprep.subr.bf16.mxu0 0
      %407 = vmatpush2.bf16.msra.mxu0 0
      %408 = vmatprep.subr.bf16.mxu0 0
      %409 = vmatpush2.bf16.msra.mxu0 0
      %410 = vmatprep.subr.bf16.mxu0 0
      %411 = vmatpush2.bf16.msra.mxu0 0
      %412 = vmatprep.subr.bf16.mxu0 0
      %413 = vmatpush2.bf16.msra.mxu0 0
      %414 = vmatprep.mubr.bf16.mxu0 0
      %415 = vmatmul.mubr.bf16.gmra.mxu0 %v339
      %v416 = vpop.f32.mrf.mxu0
      %v417 = vadd.f32 %v376, %v416
      %v418 = vpop.f32.mrf.mxu0
      %v419 = vpop.f32.mrf.mxu0
      %v420 = vadd.f32 %v379, %v419
      %v421 = vpop.f32.mrf.mxu0
      %422 = vdwg.mxu0
      %v423 = vmax.f32 %v417, 0.0
      %v424 = vmax.f32 %v420, 0.0
      %v425 = vld [vmem:[%s260] sm:$0x1]
      %v426 = vld [vmem:[%s4] sm:$0xff]
      %v427 = vld [vmem:[%s4 + $0x8] sm:$0xff]
      %v428 = vld [vmem:[%s4 + $0x10] sm:$0xff]
      %v429 = vld [vmem:[%s4 + $0x18] sm:$0xff]
      %v430 = vpack.c.bf16 %v425, %v425
      %v431 = vpack.c.bf16 %v427, %v426
      %v432 = vpack.c.bf16 %v429, %v428
      %v433 = vld [vmem:[%s5] sm:$0x1]
      %v435 = vsel %vm337, %v430, 0
      %437 = vmatprep.subr.bf16.mxu0 0
      %438 = vmatpush1.bf16.msra.mxu0 0
      %439 = vmatprep.subr.bf16.mxu0 0
      %440 = vmatpush1.bf16.msra.mxu0 0
      %441 = vmatprep.subr.bf16.mxu0 0
      %442 = vmatpush1.bf16.msra.mxu0 0
      %443 = vmatprep.subr.bf16.mxu0 0
      %444 = vmatpush1.bf16.msra.mxu0 0
      %445 = vmatprep.subr.bf16.mxu0 0
      %446 = vmatpush1.bf16.msra.mxu0 0
      %447 = vmatprep.subr.bf16.mxu0 0
      %448 = vmatpush1.bf16.msra.mxu0 0
      %449 = vmatprep.subr.bf16.mxu0 0
      %450 = vmatpush1.bf16.msra.mxu0 %v432
      %451 = vmatprep.subr.bf16.mxu0 0
      %452 = vmatpush1.bf16.msra.mxu0 %v431
      %453 = vmatprep.subr.bf16.mxu0 0
      %454 = vmatpush2.bf16.msra.mxu0 0
      %455 = vmatprep.subr.bf16.mxu0 0
      %456 = vmatpush2.bf16.msra.mxu0 0
      %457 = vmatprep.subr.bf16.mxu0 0
      %458 = vmatpush2.bf16.msra.mxu0 0
      %459 = vmatprep.subr.bf16.mxu0 0
      %460 = vmatpush2.bf16.msra.mxu0 0
      %461 = vmatprep.subr.bf16.mxu0 0
      %462 = vmatpush2.bf16.msra.mxu0 0
      %463 = vmatprep.subr.bf16.mxu0 0
      %464 = vmatpush2.bf16.msra.mxu0 0
      %465 = vmatprep.subr.bf16.mxu0 0
      %466 = vmatpush2.bf16.msra.mxu0 0
      %467 = vmatprep.subr.bf16.mxu0 0
      %468 = vmatpush2.bf16.msra.mxu0 0
      %469 = vmatprep.mubr.bf16.mxu0 0
      %470 = vmatmul.mubr.bf16.gmra.mxu0 %v435
      %v471 = vpop.f32.mrf.mxu0
      %v472 = vadd.f32 %v433, %v471
      %v473 = vpop.f32.mrf.mxu0
      %v474 = vpop.f32.mrf.mxu0
      %v475 = vpop.f32.mrf.mxu0
      %476 = vdwg.mxu0
      %v477 = vsub.f32 0.0, %v472
      %v478 = vmul.f32 %v477, 1.442695
      %v479 = vpow.pop %v478
      %v480 = vadd.f32 %v479, 1.0
      %v481 = vrcp.pop %v480
      %v482 = vlaneseq
      %v483 = vshrl.u32 %v482, 7
      %v484 = vsub.s32 0, %v483
      %v485 = vrot.slane %v481, %v484
      %v486 = vmul.f32 %v423, %v485
      %v487 = vmul.f32 %v424, %v485
      %vm488 = vcmask 523264
      %489 = vst.msk [vmem:[%s265] sm:$0xff] %vm488, %v486
      %490 = vst.msk [vmem:[%s265 + $0x8] sm:$0xff] %vm488, %v487
      %p491 = scmp.lt.s32.totalorder %s17, 1
      %s492 = scalar_select %p491, %s17, 1
      %s493 = smul.addr %s492, 2
      %s494 = smul.addr %s493, 8
      %s495 = scalar_lea.vmem %s6, %s494
      // Predicated region
      $region45: #{plv_forward.16} parent=43 // pred_check
        %p496 = pneg %p171
      $region46: #{plv_forward.16} parent=43 // pred_check_branch
        %498 = sbr.rel (%p496) target = $region48
      $region47: #{plv_forward.16} parent=43 // pred_region
        _
      $region48: #{plv_forward.16} parent=43 // pred_fallthru
        _
    $region44: #{plv_forward.16} parent=5 // pred_fallthru
      _
    %p499 = scmp.le.s32.totalorder 2, %s12
    // Predicated region
    $region49: #{plv_forward.16} parent=5 // pred_check
      %p500 = pneg %p499
    $region50: #{plv_forward.16} parent=5 // pred_check_branch
      %502 = sbr.rel (%p500) target = $region52
    $region51: #{plv_forward.16} parent=5 // pred_region
      %s503 = ssub.s32 %s12, 2
      // Predicated region
      $region53: #{plv_forward.16} parent=51 // pred_check
        %p504 = pneg %p177
      $region54: #{plv_forward.16} parent=51 // pred_check_branch
        %506 = sbr.rel (%p504) target = $region56
      $region55: #{plv_forward.16} parent=51 // pred_region
        %p507 = scmp.lt.s32.totalorder %s18, 1
        %s508 = scalar_select %p507, %s18, 1
        %s509 = smul.addr %s508, 2
        %s510 = smul.addr %s509, 8
        %s511 = scalar_lea.vmem %s6, %s510
      $region56: #{plv_forward.16} parent=51 // pred_fallthru
        _
    $region52: #{plv_forward.16} parent=5 // pred_fallthru
      _
  $region6: #{plv_forward.16} parent=0 // loop_footer
    %s16 = sadd.s32 1, %s12
  $region7: #{plv_forward.16} parent=0 // loop_footer_branch
    %11 = sbr.rel target = $region3
  $region8: #{plv_forward.16} parent=0 // loop_exit
    _

// kernel: plv_forward.17
$region0: #{plv_forward.17}
  #allocation0 [shape = 'u32[]', space=smem, size = 0x4, offset = 0x4, fixed_abs, tag = 'smem constant byte address 0x4 - core index']
  #allocation1 [shape = 'u32[144,128]{1,0:T(1,128)}', space=vmem, size = 0x12000, scoped, tag = 'internal scratch']
  %s0 = inlined_call_operand.vmem [shape: f32[2,64,64], index: 0, kind: input, shape index: {}]
  %s1 = inlined_call_operand.vmem [shape: f32[64,32], index: 1, kind: input, shape index: {}]
  %s2 = inlined_call_operand.vmem [shape: f32[1,32], index: 2, kind: input, shape index: {}]
  %s3 = inlined_call_operand.vmem [shape: f32[2,64,32], index: 3, kind: input, shape index: {}]
  %s4 = inlined_call_operand.vmem [shape: f32[2,64,32], index: 4, kind: output, shape index: {}]
  %s5 = sld [smem:[#allocation0]]
  $region49: #{plv_forward.17} parent=0
    _
  %s7 = ssub.s32 1, %s5
  %s8 = scalar_select 0, %s7, %s5
  loop: start=0, step=1, limit=4
  $region2: #{plv_forward.17} parent=0 // loop_pre_header
    _
  $region3: #{plv_forward.17} parent=0 // loop_header
    %s10 = sphi 0, %s14
    %p11 = scmp.ge.s32.totalorder %s10, 4
    %s20 = sphi 0, %s22
    %s23 = sphi 0, %s20
    %s24 = sphi 0, %s23
    %s40 = sphi 0, %s24
    %s44 = sphi 0, %s44
    %s46 = sphi 0, %s44
    %s47 = sphi 0, %s46
    %s61 = sphi 0, %s47
    %s65 = sphi 0, %s65
    %s67 = sphi 0, %s65
    %s68 = sphi 0, %s67
    %s82 = sphi 0, %s68
    %s88 = sphi 0, %s90
    %s91 = sphi 0, %s88
    %s92 = sphi 0, %s91
    %s108 = sphi 0, %s92
    %s114 = sphi 0, %s116
    %s117 = sphi 0, %s114
    %s118 = sphi 0, %s117
    %s134 = sphi 0, %s118
  $region4: #{plv_forward.17} parent=0 // loop_header_branch
    %13 = sbr.rel (%p11) target = $region8
  $region5: #{plv_forward.17} parent=0 // loop_body
    %s15 = ssub.s32 %s10, 1
    %s16 = ssub.s32 %s10, 2
    %s17 = sadd.s32 %s10, 1
    %s18 = ssub.s32 %s10, %s17
    %p19 = scmp.eq.s32.totalorder %s18, 0
    %s21 = sadd.s32 %s20, 1
    %s22 = scalar_select %p19, %s20, %s21
    %p25 = pneg %p19
    %p26 = scmp.eq.s32.totalorder %s10, 1
    %p27 = por %p25, %p26
    %p28 = scmp.ne.s32.totalorder %s20, %s23
    %p29 = scmp.eq.s32.totalorder %s10, 0
    %p30 = por %p28, %p29
    %p31 = scmp.ne.s32.totalorder %s20, %s23
    %p32 = scmp.eq.s32.totalorder %s15, 1
    %p33 = por %p31, %p32
    %p34 = scmp.ne.s32.totalorder %s23, %s24
    %p35 = scmp.eq.s32.totalorder %s15, 0
    %p36 = por %p34, %p35
    %p37 = scmp.ne.s32.totalorder %s23, %s24
    %p38 = scmp.eq.s32.totalorder %s16, 1
    %p39 = por %p37, %p38
    %p41 = scmp.ne.s32.totalorder %s24, %s40
    %p42 = scmp.eq.s32.totalorder %s16, 0
    %p43 = por %p41, %p42
    %s45 = sadd.s32 %s44, 1
    %p48 = scmp.eq.s32.totalorder %s10, 1
    %p49 = scmp.ne.s32.totalorder %s44, %s46
    %p50 = scmp.eq.s32.totalorder %s10, 0
    %p51 = por %p49, %p50
    %p52 = scmp.ne.s32.totalorder %s44, %s46
    %p53 = scmp.eq.s32.totalorder %s15, 1
    %p54 = por %p52, %p53
    %p55 = scmp.ne.s32.totalorder %s46, %s47
    %p56 = scmp.eq.s32.totalorder %s15, 0
    %p57 = por %p55, %p56
    %p58 = scmp.ne.s32.totalorder %s46, %s47
    %p59 = scmp.eq.s32.totalorder %s16, 1
    %p60 = por %p58, %p59
    %p62 = scmp.ne.s32.totalorder %s47, %s61
    %p63 = scmp.eq.s32.totalorder %s16, 0
    %p64 = por %p62, %p63
    %s66 = sadd.s32 %s65, 1
    %p69 = scmp.eq.s32.totalorder %s10, 1
    %p70 = scmp.ne.s32.totalorder %s65, %s67
    %p71 = scmp.eq.s32.totalorder %s10, 0
    %p72 = por %p70, %p71
    %p73 = scmp.ne.s32.totalorder %s65, %s67
    %p74 = scmp.eq.s32.totalorder %s15, 1
    %p75 = por %p73, %p74
    %p76 = scmp.ne.s32.totalorder %s67, %s68
    %p77 = scmp.eq.s32.totalorder %s15, 0
    %p78 = por %p76, %p77
    %p79 = scmp.ne.s32.totalorder %s67, %s68
    %p80 = scmp.eq.s32.totalorder %s16, 1
    %p81 = por %p79, %p80
    %p83 = scmp.ne.s32.totalorder %s68, %s82
    %p84 = scmp.eq.s32.totalorder %s16, 0
    %p85 = por %p83, %p84
    %s86 = ssub.s32 %s10, %s17
    %p87 = scmp.eq.s32.totalorder %s86, 0
    %s89 = sadd.s32 %s88, 1
    %s90 = scalar_select %p87, %s88, %s89
    %p93 = pneg %p87
    %p94 = scmp.eq.s32.totalorder %s10, 1
    %p95 = por %p93, %p94
    %p96 = scmp.ne.s32.totalorder %s88, %s91
    %p97 = scmp.eq.s32.totalorder %s10, 0
    %p98 = por %p96, %p97
    %p99 = scmp.ne.s32.totalorder %s88, %s91
    %p100 = scmp.eq.s32.totalorder %s15, 1
    %p101 = por %p99, %p100
    %p102 = scmp.ne.s32.totalorder %s91, %s92
    %p103 = scmp.eq.s32.totalorder %s15, 0
    %p104 = por %p102, %p103
    %p105 = scmp.ne.s32.totalorder %s91, %s92
    %p106 = scmp.eq.s32.totalorder %s16, 1
    %p107 = por %p105, %p106
    %p109 = scmp.ne.s32.totalorder %s92, %s108
    %p110 = scmp.eq.s32.totalorder %s16, 0
    %p111 = por %p109, %p110
    %s112 = ssub.s32 %s10, %s17
    %p113 = scmp.eq.s32.totalorder %s112, 0
    %s115 = sadd.s32 %s114, 1
    %s116 = scalar_select %p113, %s114, %s115
    %p119 = pneg %p113
    %p120 = scmp.eq.s32.totalorder %s10, 1
    %p121 = por %p119, %p120
    %p122 = scmp.ne.s32.totalorder %s114, %s117
    %p123 = scmp.eq.s32.totalorder %s10, 0
    %p124 = por %p122, %p123
    %p125 = scmp.ne.s32.totalorder %s114, %s117
    %p126 = scmp.eq.s32.totalorder %s15, 1
    %p127 = por %p125, %p126
    %p128 = scmp.ne.s32.totalorder %s117, %s118
    %p129 = scmp.eq.s32.totalorder %s15, 0
    %p130 = por %p128, %p129
    %p131 = scmp.ne.s32.totalorder %s117, %s118
    %p132 = scmp.eq.s32.totalorder %s16, 1
    %p133 = por %p131, %p132
    %p135 = scmp.ne.s32.totalorder %s118, %s134
    %p136 = scmp.eq.s32.totalorder %s16, 0
    %p137 = por %p135, %p136
    %p138 = scmp.le.s32.totalorder 1, %s10
    %p139 = scmp.lt.s32.totalorder %s10, 3
    %p140 = pnand %p138, %p139
    %p141 = pneg %p140
    // Predicated region
    $region9: #{plv_forward.17} parent=5 // pred_check
      _
    $region10: #{plv_forward.17} parent=5 // pred_check_branch
      %143 = sbr.rel (%p140) target = $region12
    $region11: #{plv_forward.17} parent=5 // pred_region
      %s144 = ssub.s32 %s10, 1
      // Predicated region
      $region13: #{plv_forward.17} parent=11 // pred_check
        %p145 = pneg %p57
      $region14: #{plv_forward.17} parent=11 // pred_check_branch
        %147 = sbr.rel (%p145) target = $region16
      $region15: #{plv_forward.17} parent=11 // pred_region
        _
      $region16: #{plv_forward.17} parent=11 // pred_fallthru
        _
      // Predicated region
      $region17: #{plv_forward.17} parent=11 // pred_check
        %p148 = pneg %p78
      $region18: #{plv_forward.17} parent=11 // pred_check_branch
        %150 = sbr.rel (%p148) target = $region20
      $region19: #{plv_forward.17} parent=11 // pred_region
        _
      $region20: #{plv_forward.17} parent=11 // pred_fallthru
        _
    $region12: #{plv_forward.17} parent=5 // pred_fallthru
      _
    %p151 = scmp.lt.s32.totalorder %s10, 2
    // Predicated region
    $region21: #{plv_forward.17} parent=5 // pred_check
      %p152 = pneg %p151
    $region22: #{plv_forward.17} parent=5 // pred_check_branch
      %154 = sbr.rel (%p152) target = $region24
    $region23: #{plv_forward.17} parent=5 // pred_region
      // Predicated region
      $region25: #{plv_forward.17} parent=23 // pred_check
        %p155 = pneg %p30
      $region26: #{plv_forward.17} parent=23 // pred_check_branch
        %157 = sbr.rel (%p155) target = $region28
      $region27: #{plv_forward.17} parent=23 // pred_region
        %p158 = scmp.lt.s32.totalorder %s10, 1
        %s159 = scalar_select %p158, %s10, 1
        %s160 = smul.addr %s159, 8
        %s161 = smul.addr %s160, 8
        %s162 = scalar_lea.vmem %s0, %s161
      $region28: #{plv_forward.17} parent=23 // pred_fallthru
        _
      // Predicated region
      $region29: #{plv_forward.17} parent=23 // pred_check
        %p163 = pneg %p98
      $region30: #{plv_forward.17} parent=23 // pred_check_branch
        %165 = sbr.rel (%p163) target = $region32
      $region31: #{plv_forward.17} parent=23 // pred_region
        %p166 = scmp.lt.s32.totalorder %s10, 1
        %s167 = scalar_select %p166, %s10, 1
        %s168 = smul.addr %s167, 8
        %s169 = smul.addr %s168, 8
        %s170 = scalar_lea.vmem %s3, %s169
      $region32: #{plv_forward.17} parent=23 // pred_fallthru
        _
    $region24: #{plv_forward.17} parent=5 // pred_fallthru
      _
    %p171 = scmp.le.s32.totalorder 1, %s10
    %p172 = scmp.lt.s32.totalorder %s10, 3
    %p173 = pnand %p171, %p172
    %p174 = pneg %p173
    // Predicated region
    $region33: #{plv_forward.17} parent=5 // pred_check
      _
    $region34: #{plv_forward.17} parent=5 // pred_check_branch
      %176 = sbr.rel (%p173) target = $region36
    $region35: #{plv_forward.17} parent=5 // pred_region
      %s177 = ssub.s32 %s10, 1
      %p178 = scmp.lt.s32.totalorder %s15, 1
      %s179 = scalar_select %p178, %s15, 1
      %s180 = smul.addr %s179, 8
      %s181 = smul.addr %s180, 8
      %s182 = scalar_lea.vmem %s0, %s181
      %p183 = pneg %p36
      %p184 = pneg %p33
      %p185 = pneg %p57
      %p186 = pneg %p54
      %p187 = pneg %p78
      %p188 = pneg %p75
      %p189 = scmp.lt.s32.totalorder %s15, 1
      %s190 = scalar_select %p189, %s15, 1
      %s191 = smul.addr %s190, 8
      %s192 = smul.addr %s191, 8
      %s193 = scalar_lea.vmem %s3, %s192
      %p194 = pneg %p104
      %p195 = pneg %p101
      %p196 = pneg %p130
      %p197 = pneg %p127
      %p198 = scmp.lt.s32.totalorder %s15, 1
      %s199 = scalar_select %p198, %s15, 1
      %s200 = smul.addr %s199, 8
      %s201 = smul.addr %s200, 8
      %s202 = scalar_lea.vmem %s4, %s201
      %p203 = scmp.lt.s32.totalorder %s15, 1
      %s204 = scalar_select %p203, %s15, 1
      %s205 = smul.addr %s204, 8
      %s206 = smul.addr %s205, 8
      %s207 = scalar_lea.vmem %s0, %s206
      %p208 = scmp.lt.s32.totalorder %s15, 1
      %s209 = scalar_select %p208, %s15, 1
      %s210 = smul.addr %s209, 8
      %s211 = smul.addr %s210, 8
      %s212 = scalar_lea.vmem %s3, %s211
      %p213 = scmp.lt.s32.totalorder %s15, 1
      %s214 = scalar_select %p213, %s15, 1
      %s215 = smul.addr %s214, 8
      %s216 = smul.addr %s215, 8
      %s217 = scalar_lea.vmem %s4, %s216
      %v219 = vld [vmem:[%s207] sm:$0xff]
      %v220 = vld [vmem:[%s207 + $0x8] sm:$0xff]
      %v221 = vld [vmem:[%s207 + $0x10] sm:$0xff]
      %v222 = vld [vmem:[%s207 + $0x18] sm:$0xff]
      %v223 = vld [vmem:[%s207 + $0x20] sm:$0xff]
      %v224 = vld [vmem:[%s207 + $0x28] sm:$0xff]
      %v225 = vld [vmem:[%s207 + $0x30] sm:$0xff]
      %v226 = vld [vmem:[%s207 + $0x38] sm:$0xff]
      %v227 = vld [vmem:[%s1] sm:$0xff]
      %v228 = vld [vmem:[%s1 + $0x8] sm:$0xff]
      %v229 = vld [vmem:[%s1 + $0x10] sm:$0xff]
      %v230 = vld [vmem:[%s1 + $0x18] sm:$0xff]
      %v231 = vld [vmem:[%s1 + $0x20] sm:$0xff]
      %v232 = vld [vmem:[%s1 + $0x28] sm:$0xff]
      %v233 = vld [vmem:[%s1 + $0x30] sm:$0xff]
      %v234 = vld [vmem:[%s1 + $0x38] sm:$0xff]
      %v235 = vpack.c.bf16 %v220, %v219
      %v236 = vpack.c.bf16 %v222, %v221
      %v237 = vpack.c.bf16 %v224, %v223
      %v238 = vpack.c.bf16 %v226, %v225
      %v239 = vpack.c.bf16 %v228, %v227
      %v240 = vpack.c.bf16 %v230, %v229
      %v241 = vpack.c.bf16 %v232, %v231
      %v242 = vpack.c.bf16 %v234, %v233
      %v243 = vld [vmem:[%s2] sm:$0x1]
      %v245 = vlaneseq
      %v246 = vshrl.u32 %v245, 7
      %v247 = vsub.s32 0, %v246
      %v248 = vrot.slane %v243, %v247
      %vm250 = vcmask 523264
      %v252 = vsel %vm250, %v235, 0
      %v255 = vsel %vm250, %v236, 0
      %v258 = vsel %vm250, %v237, 0
      %v261 = vsel %vm250, %v238, 0
      %263 = vmatprep.subr.bf16.mxu0 0
      %264 = vmatpush1.bf16.msra.mxu0 0
      %265 = vmatprep.subr.bf16.mxu0 0
      %266 = vmatpush1.bf16.msra.mxu0 0
      %267 = vmatprep.subr.bf16.mxu0 0
      %268 = vmatpush1.bf16.msra.mxu0 0
      %269 = vmatprep.subr.bf16.mxu0 0
      %270 = vmatpush1.bf16.msra.mxu0 0
      %271 = vmatprep.subr.bf16.mxu0 0
      %272 = vmatpush1.bf16.msra.mxu0 %v242
      %273 = vmatprep.subr.bf16.mxu0 0
      %274 = vmatpush1.bf16.msra.mxu0 %v241
      %275 = vmatprep.subr.bf16.mxu0 0
      %276 = vmatpush1.bf16.msra.mxu0 %v240
      %277 = vmatprep.subr.bf16.mxu0 0
      %278 = vmatpush1.bf16.msra.mxu0 %v239
      %279 = vmatprep.subr.bf16.mxu0 0
      %280 = vmatpush2.bf16.msra.mxu0 0
      %281 = vmatprep.subr.bf16.mxu0 0
      %282 = vmatpush2.bf16.msra.mxu0 0
      %283 = vmatprep.subr.bf16.mxu0 0
      %284 = vmatpush2.bf16.msra.mxu0 0
      %285 = vmatprep.subr.bf16.mxu0 0
      %286 = vmatpush2.bf16.msra.mxu0 0
      %287 = vmatprep.subr.bf16.mxu0 0
      %288 = vmatpush2.bf16.msra.mxu0 0
      %289 = vmatprep.subr.bf16.mxu0 0
      %290 = vmatpush2.bf16.msra.mxu0 0
      %291 = vmatprep.subr.bf16.mxu0 0
      %292 = vmatpush2.bf16.msra.mxu0 0
      %293 = vmatprep.subr.bf16.mxu0 0
      %294 = vmatpush2.bf16.msra.mxu0 0
      %295 = vmatprep.mubr.bf16.mxu0 0
      %296 = vmatmul.mubr.bf16.gmra.mxu0 %v252
      %v297 = vpop.f32.mrf.mxu0
      %v298 = vadd.f32 %v248, %v297
      %v299 = vpop.f32.mrf.mxu0
      %v300 = vpop.f32.mrf.mxu0
      %v301 = vadd.f32 %v248, %v300
      %v302 = vpop.f32.mrf.mxu0
      %303 = vmatprep.mubr.bf16.mxu0 0
      %304 = vmatmul.mubr.bf16.gmra.mxu0 %v255
      %v305 = vpop.f32.mrf.mxu0
      %v306 = vadd.f32 %v248, %v305
      %v307 = vpop.f32.mrf.mxu0
      %v308 = vpop.f32.mrf.mxu0
      %v309 = vadd.f32 %v248, %v308
      %v310 = vpop.f32.mrf.mxu0
      %311 = vmatprep.mubr.bf16.mxu0 0
      %312 = vmatmul.mubr.bf16.gmra.mxu0 %v258
      %v313 = vpop.f32.mrf.mxu0
      %v314 = vadd.f32 %v248, %v313
      %v315 = vpop.f32.mrf.mxu0
      %v316 = vpop.f32.mrf.mxu0
      %v317 = vadd.f32 %v248, %v316
      %v318 = vpop.f32.mrf.mxu0
      %319 = vmatprep.mubr.bf16.mxu0 0
      %320 = vmatmul.mubr.bf16.gmra.mxu0 %v261
      %v321 = vpop.f32.mrf.mxu0
      %v322 = vadd.f32 %v248, %v321
      %v323 = vpop.f32.mrf.mxu0
      %v324 = vpop.f32.mrf.mxu0
      %v325 = vadd.f32 %v248, %v324
      %v326 = vpop.f32.mrf.mxu0
      %327 = vdwg.mxu0
      %v328 = vmax.f32 %v298, 0.0
      %v329 = vmax.f32 %v301, 0.0
      %v330 = vmax.f32 %v306, 0.0
      %v331 = vmax.f32 %v309, 0.0
      %v332 = vmax.f32 %v314, 0.0
      %v333 = vmax.f32 %v317, 0.0
      %v334 = vmax.f32 %v322, 0.0
      %v335 = vmax.f32 %v325, 0.0
      %v336 = vld [vmem:[%s212] sm:$0xff]
      %v337 = vld [vmem:[%s212 + $0x8] sm:$0xff]
      %v338 = vld [vmem:[%s212 + $0x10] sm:$0xff]
      %v339 = vld [vmem:[%s212 + $0x18] sm:$0xff]
      %v340 = vld [vmem:[%s212 + $0x20] sm:$0xff]
      %v341 = vld [vmem:[%s212 + $0x28] sm:$0xff]
      %v342 = vld [vmem:[%s212 + $0x30] sm:$0xff]
      %v343 = vld [vmem:[%s212 + $0x38] sm:$0xff]
      %v344 = vadd.f32 %v328, %v336
      %v345 = vadd.f32 %v329, %v337
      %v346 = vadd.f32 %v330, %v338
      %v347 = vadd.f32 %v331, %v339
      %v348 = vadd.f32 %v332, %v340
      %v349 = vadd.f32 %v333, %v341
      %v350 = vadd.f32 %v334, %v342
      %v351 = vadd.f32 %v335, %v343
      %vm352 = vcmask 261120
      %353 = vst.msk [vmem:[%s217] sm:$0xff] %vm352, %v344
      %354 = vst.msk [vmem:[%s217 + $0x8] sm:$0xff] %vm352, %v345
      %355 = vst.msk [vmem:[%s217 + $0x10] sm:$0xff] %vm352, %v346
      %356 = vst.msk [vmem:[%s217 + $0x18] sm:$0xff] %vm352, %v347
      %357 = vst.msk [vmem:[%s217 + $0x20] sm:$0xff] %vm352, %v348
      %358 = vst.msk [vmem:[%s217 + $0x28] sm:$0xff] %vm352, %v349
      %359 = vst.msk [vmem:[%s217 + $0x30] sm:$0xff] %vm352, %v350
      %360 = vst.msk [vmem:[%s217 + $0x38] sm:$0xff] %vm352, %v351
      %p361 = scmp.lt.s32.totalorder %s15, 1
      %s362 = scalar_select %p361, %s15, 1
      %s363 = smul.addr %s362, 8
      %s364 = smul.addr %s363, 8
      %s365 = scalar_lea.vmem %s4, %s364
      // Predicated region
      $region37: #{plv_forward.17} parent=35 // pred_check
        %p366 = pneg %p127
      $region38: #{plv_forward.17} parent=35 // pred_check_branch
        %368 = sbr.rel (%p366) target = $region40
      $region39: #{plv_forward.17} parent=35 // pred_region
        _
      $region40: #{plv_forward.17} parent=35 // pred_fallthru
        _
    $region36: #{plv_forward.17} parent=5 // pred_fallthru
      _
    %p369 = scmp.le.s32.totalorder 2, %s10
    // Predicated region
    $region41: #{plv_forward.17} parent=5 // pred_check
      %p370 = pneg %p369
    $region42: #{plv_forward.17} parent=5 // pred_check_branch
      %372 = sbr.rel (%p370) target = $region44
    $region43: #{plv_forward.17} parent=5 // pred_region
      %s373 = ssub.s32 %s10, 2
      // Predicated region
      $region45: #{plv_forward.17} parent=43 // pred_check
        %p374 = pneg %p133
      $region46: #{plv_forward.17} parent=43 // pred_check_branch
        %376 = sbr.rel (%p374) target = $region48
      $region47: #{plv_forward.17} parent=43 // pred_region
        %p377 = scmp.lt.s32.totalorder %s16, 1
        %s378 = scalar_select %p377, %s16, 1
        %s379 = smul.addr %s378, 8
        %s380 = smul.addr %s379, 8
        %s381 = scalar_lea.vmem %s4, %s380
      $region48: #{plv_forward.17} parent=43 // pred_fallthru
        _
    $region44: #{plv_forward.17} parent=5 // pred_fallthru
      _
  $region6: #{plv_forward.17} parent=0 // loop_footer
    %s14 = sadd.s32 1, %s10
  $region7: #{plv_forward.17} parent=0 // loop_footer_branch
    %9 = sbr.rel target = $region3
  $region8: #{plv_forward.17} parent=0 // loop_exit
    _

// kernel: plv_forward.18
$region0: #{plv_forward.18}
  #allocation0 [shape = 'u32[]', space=smem, size = 0x4, offset = 0x4, fixed_abs, tag = 'smem constant byte address 0x4 - core index']
  #allocation1 [shape = 'u32[144,128]{1,0:T(1,128)}', space=vmem, size = 0x12000, scoped, tag = 'internal scratch']
  %s0 = inlined_call_operand.vmem [shape: f32[2,256,32], index: 0, kind: input, shape index: {}]
  %s1 = inlined_call_operand.vmem [shape: f32[32,16], index: 1, kind: input, shape index: {}]
  %s2 = inlined_call_operand.vmem [shape: f32[1,16], index: 2, kind: input, shape index: {}]
  %s3 = inlined_call_operand.vmem [shape: f32[2,256,16], index: 3, kind: input, shape index: {}]
  %s4 = inlined_call_operand.vmem [shape: f32[2,256,16], index: 4, kind: output, shape index: {}]
  %s5 = sld [smem:[#allocation0]]
  $region49: #{plv_forward.18} parent=0
    _
  %s7 = ssub.s32 1, %s5
  %s8 = scalar_select 0, %s7, %s5
  loop: start=0, step=1, limit=4
  $region2: #{plv_forward.18} parent=0 // loop_pre_header
    _
  $region3: #{plv_forward.18} parent=0 // loop_header
    %s10 = sphi 0, %s14
    %p11 = scmp.ge.s32.totalorder %s10, 4
    %s20 = sphi 0, %s22
    %s23 = sphi 0, %s20
    %s24 = sphi 0, %s23
    %s40 = sphi 0, %s24
    %s44 = sphi 0, %s44
    %s46 = sphi 0, %s44
    %s47 = sphi 0, %s46
    %s61 = sphi 0, %s47
    %s65 = sphi 0, %s65
    %s67 = sphi 0, %s65
    %s68 = sphi 0, %s67
    %s82 = sphi 0, %s68
    %s88 = sphi 0, %s90
    %s91 = sphi 0, %s88
    %s92 = sphi 0, %s91
    %s108 = sphi 0, %s92
    %s114 = sphi 0, %s116
    %s117 = sphi 0, %s114
    %s118 = sphi 0, %s117
    %s134 = sphi 0, %s118
  $region4: #{plv_forward.18} parent=0 // loop_header_branch
    %13 = sbr.rel (%p11) target = $region8
  $region5: #{plv_forward.18} parent=0 // loop_body
    %s15 = ssub.s32 %s10, 1
    %s16 = ssub.s32 %s10, 2
    %s17 = sadd.s32 %s10, 1
    %s18 = ssub.s32 %s10, %s17
    %p19 = scmp.eq.s32.totalorder %s18, 0
    %s21 = sadd.s32 %s20, 1
    %s22 = scalar_select %p19, %s20, %s21
    %p25 = pneg %p19
    %p26 = scmp.eq.s32.totalorder %s10, 1
    %p27 = por %p25, %p26
    %p28 = scmp.ne.s32.totalorder %s20, %s23
    %p29 = scmp.eq.s32.totalorder %s10, 0
    %p30 = por %p28, %p29
    %p31 = scmp.ne.s32.totalorder %s20, %s23
    %p32 = scmp.eq.s32.totalorder %s15, 1
    %p33 = por %p31, %p32
    %p34 = scmp.ne.s32.totalorder %s23, %s24
    %p35 = scmp.eq.s32.totalorder %s15, 0
    %p36 = por %p34, %p35
    %p37 = scmp.ne.s32.totalorder %s23, %s24
    %p38 = scmp.eq.s32.totalorder %s16, 1
    %p39 = por %p37, %p38
    %p41 = scmp.ne.s32.totalorder %s24, %s40
    %p42 = scmp.eq.s32.totalorder %s16, 0
    %p43 = por %p41, %p42
    %s45 = sadd.s32 %s44, 1
    %p48 = scmp.eq.s32.totalorder %s10, 1
    %p49 = scmp.ne.s32.totalorder %s44, %s46
    %p50 = scmp.eq.s32.totalorder %s10, 0
    %p51 = por %p49, %p50
    %p52 = scmp.ne.s32.totalorder %s44, %s46
    %p53 = scmp.eq.s32.totalorder %s15, 1
    %p54 = por %p52, %p53
    %p55 = scmp.ne.s32.totalorder %s46, %s47
    %p56 = scmp.eq.s32.totalorder %s15, 0
    %p57 = por %p55, %p56
    %p58 = scmp.ne.s32.totalorder %s46, %s47
    %p59 = scmp.eq.s32.totalorder %s16, 1
    %p60 = por %p58, %p59
    %p62 = scmp.ne.s32.totalorder %s47, %s61
    %p63 = scmp.eq.s32.totalorder %s16, 0
    %p64 = por %p62, %p63
    %s66 = sadd.s32 %s65, 1
    %p69 = scmp.eq.s32.totalorder %s10, 1
    %p70 = scmp.ne.s32.totalorder %s65, %s67
    %p71 = scmp.eq.s32.totalorder %s10, 0
    %p72 = por %p70, %p71
    %p73 = scmp.ne.s32.totalorder %s65, %s67
    %p74 = scmp.eq.s32.totalorder %s15, 1
    %p75 = por %p73, %p74
    %p76 = scmp.ne.s32.totalorder %s67, %s68
    %p77 = scmp.eq.s32.totalorder %s15, 0
    %p78 = por %p76, %p77
    %p79 = scmp.ne.s32.totalorder %s67, %s68
    %p80 = scmp.eq.s32.totalorder %s16, 1
    %p81 = por %p79, %p80
    %p83 = scmp.ne.s32.totalorder %s68, %s82
    %p84 = scmp.eq.s32.totalorder %s16, 0
    %p85 = por %p83, %p84
    %s86 = ssub.s32 %s10, %s17
    %p87 = scmp.eq.s32.totalorder %s86, 0
    %s89 = sadd.s32 %s88, 1
    %s90 = scalar_select %p87, %s88, %s89
    %p93 = pneg %p87
    %p94 = scmp.eq.s32.totalorder %s10, 1
    %p95 = por %p93, %p94
    %p96 = scmp.ne.s32.totalorder %s88, %s91
    %p97 = scmp.eq.s32.totalorder %s10, 0
    %p98 = por %p96, %p97
    %p99 = scmp.ne.s32.totalorder %s88, %s91
    %p100 = scmp.eq.s32.totalorder %s15, 1
    %p101 = por %p99, %p100
    %p102 = scmp.ne.s32.totalorder %s91, %s92
    %p103 = scmp.eq.s32.totalorder %s15, 0
    %p104 = por %p102, %p103
    %p105 = scmp.ne.s32.totalorder %s91, %s92
    %p106 = scmp.eq.s32.totalorder %s16, 1
    %p107 = por %p105, %p106
    %p109 = scmp.ne.s32.totalorder %s92, %s108
    %p110 = scmp.eq.s32.totalorder %s16, 0
    %p111 = por %p109, %p110
    %s112 = ssub.s32 %s10, %s17
    %p113 = scmp.eq.s32.totalorder %s112, 0
    %s115 = sadd.s32 %s114, 1
    %s116 = scalar_select %p113, %s114, %s115
    %p119 = pneg %p113
    %p120 = scmp.eq.s32.totalorder %s10, 1
    %p121 = por %p119, %p120
    %p122 = scmp.ne.s32.totalorder %s114, %s117
    %p123 = scmp.eq.s32.totalorder %s10, 0
    %p124 = por %p122, %p123
    %p125 = scmp.ne.s32.totalorder %s114, %s117
    %p126 = scmp.eq.s32.totalorder %s15, 1
    %p127 = por %p125, %p126
    %p128 = scmp.ne.s32.totalorder %s117, %s118
    %p129 = scmp.eq.s32.totalorder %s15, 0
    %p130 = por %p128, %p129
    %p131 = scmp.ne.s32.totalorder %s117, %s118
    %p132 = scmp.eq.s32.totalorder %s16, 1
    %p133 = por %p131, %p132
    %p135 = scmp.ne.s32.totalorder %s118, %s134
    %p136 = scmp.eq.s32.totalorder %s16, 0
    %p137 = por %p135, %p136
    %p138 = scmp.le.s32.totalorder 1, %s10
    %p139 = scmp.lt.s32.totalorder %s10, 3
    %p140 = pnand %p138, %p139
    %p141 = pneg %p140
    // Predicated region
    $region9: #{plv_forward.18} parent=5 // pred_check
      _
    $region10: #{plv_forward.18} parent=5 // pred_check_branch
      %143 = sbr.rel (%p140) target = $region12
    $region11: #{plv_forward.18} parent=5 // pred_region
      %s144 = ssub.s32 %s10, 1
      // Predicated region
      $region13: #{plv_forward.18} parent=11 // pred_check
        %p145 = pneg %p57
      $region14: #{plv_forward.18} parent=11 // pred_check_branch
        %147 = sbr.rel (%p145) target = $region16
      $region15: #{plv_forward.18} parent=11 // pred_region
        _
      $region16: #{plv_forward.18} parent=11 // pred_fallthru
        _
      // Predicated region
      $region17: #{plv_forward.18} parent=11 // pred_check
        %p148 = pneg %p78
      $region18: #{plv_forward.18} parent=11 // pred_check_branch
        %150 = sbr.rel (%p148) target = $region20
      $region19: #{plv_forward.18} parent=11 // pred_region
        _
      $region20: #{plv_forward.18} parent=11 // pred_fallthru
        _
    $region12: #{plv_forward.18} parent=5 // pred_fallthru
      _
    %p151 = scmp.lt.s32.totalorder %s10, 2
    // Predicated region
    $region21: #{plv_forward.18} parent=5 // pred_check
      %p152 = pneg %p151
    $region22: #{plv_forward.18} parent=5 // pred_check_branch
      %154 = sbr.rel (%p152) target = $region24
    $region23: #{plv_forward.18} parent=5 // pred_region
      // Predicated region
      $region25: #{plv_forward.18} parent=23 // pred_check
        %p155 = pneg %p30
      $region26: #{plv_forward.18} parent=23 // pred_check_branch
        %157 = sbr.rel (%p155) target = $region28
      $region27: #{plv_forward.18} parent=23 // pred_region
        %p158 = scmp.lt.s32.totalorder %s10, 1
        %s159 = scalar_select %p158, %s10, 1
        %s160 = smul.addr %s159, 32
        %s161 = smul.addr %s160, 8
        %s162 = scalar_lea.vmem %s0, %s161
      $region28: #{plv_forward.18} parent=23 // pred_fallthru
        _
      // Predicated region
      $region29: #{plv_forward.18} parent=23 // pred_check
        %p163 = pneg %p98
      $region30: #{plv_forward.18} parent=23 // pred_check_branch
        %165 = sbr.rel (%p163) target = $region32
      $region31: #{plv_forward.18} parent=23 // pred_region
        %p166 = scmp.lt.s32.totalorder %s10, 1
        %s167 = scalar_select %p166, %s10, 1
        %s168 = smul.addr %s167, 32
        %s169 = smul.addr %s168, 8
        %s170 = scalar_lea.vmem %s3, %s169
      $region32: #{plv_forward.18} parent=23 // pred_fallthru
        _
    $region24: #{plv_forward.18} parent=5 // pred_fallthru
      _
    %p171 = scmp.le.s32.totalorder 1, %s10
    %p172 = scmp.lt.s32.totalorder %s10, 3
    %p173 = pnand %p171, %p172
    %p174 = pneg %p173
    // Predicated region
    $region33: #{plv_forward.18} parent=5 // pred_check
      _
    $region34: #{plv_forward.18} parent=5 // pred_check_branch
      %176 = sbr.rel (%p173) target = $region36
    $region35: #{plv_forward.18} parent=5 // pred_region
      %s177 = ssub.s32 %s10, 1
      %p178 = scmp.lt.s32.totalorder %s15, 1
      %s179 = scalar_select %p178, %s15, 1
      %s180 = smul.addr %s179, 32
      %s181 = smul.addr %s180, 8
      %s182 = scalar_lea.vmem %s0, %s181
      %p183 = pneg %p36
      %p184 = pneg %p33
      %p185 = pneg %p57
      %p186 = pneg %p54
      %p187 = pneg %p78
      %p188 = pneg %p75
      %p189 = scmp.lt.s32.totalorder %s15, 1
      %s190 = scalar_select %p189, %s15, 1
      %s191 = smul.addr %s190, 32
      %s192 = smul.addr %s191, 8
      %s193 = scalar_lea.vmem %s3, %s192
      %p194 = pneg %p104
      %p195 = pneg %p101
      %p196 = pneg %p130
      %p197 = pneg %p127
      %p198 = scmp.lt.s32.totalorder %s15, 1
      %s199 = scalar_select %p198, %s15, 1
      %s200 = smul.addr %s199, 32
      %s201 = smul.addr %s200, 8
      %s202 = scalar_lea.vmem %s4, %s201
      %p203 = scmp.lt.s32.totalorder %s15, 1
      %s204 = scalar_select %p203, %s15, 1
      %s205 = smul.addr %s204, 32
      %s206 = smul.addr %s205, 8
      %s207 = scalar_lea.vmem %s0, %s206
      %p208 = scmp.lt.s32.totalorder %s15, 1
      %s209 = scalar_select %p208, %s15, 1
      %s210 = smul.addr %s209, 32
      %s211 = smul.addr %s210, 8
      %s212 = scalar_lea.vmem %s3, %s211
      %p213 = scmp.lt.s32.totalorder %s15, 1
      %s214 = scalar_select %p213, %s15, 1
      %s215 = smul.addr %s214, 32
      %s216 = smul.addr %s215, 8
      %s217 = scalar_lea.vmem %s4, %s216
      %v219 = vld [vmem:[%s207] sm:$0xff]
      %v220 = vld [vmem:[%s207 + $0x8] sm:$0xff]
      %v221 = vld [vmem:[%s207 + $0x10] sm:$0xff]
      %v222 = vld [vmem:[%s207 + $0x18] sm:$0xff]
      %v223 = vld [vmem:[%s207 + $0x20] sm:$0xff]
      %v224 = vld [vmem:[%s207 + $0x28] sm:$0xff]
      %v225 = vld [vmem:[%s207 + $0x30] sm:$0xff]
      %v226 = vld [vmem:[%s207 + $0x38] sm:$0xff]
      %v227 = vld [vmem:[%s207 + $0x40] sm:$0xff]
      %v228 = vld [vmem:[%s207 + $0x48] sm:$0xff]
      %v229 = vld [vmem:[%s207 + $0x50] sm:$0xff]
      %v230 = vld [vmem:[%s207 + $0x58] sm:$0xff]
      %v231 = vld [vmem:[%s207 + $0x60] sm:$0xff]
      %v232 = vld [vmem:[%s207 + $0x68] sm:$0xff]
      %v233 = vld [vmem:[%s207 + $0x70] sm:$0xff]
      %v234 = vld [vmem:[%s207 + $0x78] sm:$0xff]
      %v235 = vld [vmem:[%s207 + $0x80] sm:$0xff]
      %v236 = vld [vmem:[%s207 + $0x88] sm:$0xff]
      %v237 = vld [vmem:[%s207 + $0x90] sm:$0xff]
      %v238 = vld [vmem:[%s207 + $0x98] sm:$0xff]
      %v239 = vld [vmem:[%s207 + $0xa0] sm:$0xff]
      %v240 = vld [vmem:[%s207 + $0xa8] sm:$0xff]
      %v241 = vld [vmem:[%s207 + $0xb0] sm:$0xff]
      %v242 = vld [vmem:[%s207 + $0xb8] sm:$0xff]
      %v243 = vld [vmem:[%s207 + $0xc0] sm:$0xff]
      %v244 = vld [vmem:[%s207 + $0xc8] sm:$0xff]
      %v245 = vld [vmem:[%s207 + $0xd0] sm:$0xff]
      %v246 = vld [vmem:[%s207 + $0xd8] sm:$0xff]
      %v247 = vld [vmem:[%s207 + $0xe0] sm:$0xff]
      %v248 = vld [vmem:[%s207 + $0xe8] sm:$0xff]
      %v249 = vld [vmem:[%s207 + $0xf0] sm:$0xff]
      %v250 = vld [vmem:[%s207 + $0xf8] sm:$0xff]
      %v251 = vld [vmem:[%s1] sm:$0xff]
      %v252 = vld [vmem:[%s1 + $0x8] sm:$0xff]
      %v253 = vld [vmem:[%s1 + $0x10] sm:$0xff]
      %v254 = vld [vmem:[%s1 + $0x18] sm:$0xff]
      %v255 = vpack.c.bf16 %v220, %v219
      %v256 = vpack.c.bf16 %v222, %v221
      %v257 = vpack.c.bf16 %v224, %v223
      %v258 = vpack.c.bf16 %v226, %v225
      %v259 = vpack.c.bf16 %v228, %v227
      %v260 = vpack.c.bf16 %v230, %v229
      %v261 = vpack.c.bf16 %v232, %v231
      %v262 = vpack.c.bf16 %v234, %v233
      %v263 = vpack.c.bf16 %v236, %v235
      %v264 = vpack.c.bf16 %v238, %v237
      %v265 = vpack.c.bf16 %v240, %v239
      %v266 = vpack.c.bf16 %v242, %v241
      %v267 = vpack.c.bf16 %v244, %v243
      %v268 = vpack.c.bf16 %v246, %v245
      %v269 = vpack.c.bf16 %v248, %v247
      %v270 = vpack.c.bf16 %v250, %v249
      %v271 = vpack.c.bf16 %v252, %v251
      %v272 = vpack.c.bf16 %v254, %v253
      %v273 = vld [vmem:[%s2] sm:$0x1]
      %v275 = vlaneseq
      %v276 = vshrl.u32 %v275, 7
      %v277 = vsub.s32 0, %v276
      %v278 = vrot.slane %v273, %v277
      %vm280 = vcmask 261120
      %v282 = vsel %vm280, %v255, 0
      %v285 = vsel %vm280, %v256, 0
      %v288 = vsel %vm280, %v257, 0
      %v291 = vsel %vm280, %v258, 0
      %v294 = vsel %vm280, %v259, 0
      %v297 = vsel %vm280, %v260, 0
      %v300 = vsel %vm280, %v261, 0
      %v303 = vsel %vm280, %v262, 0
      %v306 = vsel %vm280, %v263, 0
      %v309 = vsel %vm280, %v264, 0
      %v312 = vsel %vm280, %v265, 0
      %v315 = vsel %vm280, %v266, 0
      %v318 = vsel %vm280, %v267, 0
      %v321 = vsel %vm280, %v268, 0
      %v324 = vsel %vm280, %v269, 0
      %v327 = vsel %vm280, %v270, 0
      %329 = vmatprep.subr.bf16.mxu0 0
      %330 = vmatpush1.bf16.msra.mxu0 0
      %331 = vmatprep.subr.bf16.mxu0 0
      %332 = vmatpush1.bf16.msra.mxu0 0
      %333 = vmatprep.subr.bf16.mxu0 0
      %334 = vmatpush1.bf16.msra.mxu0 0
      %335 = vmatprep.subr.bf16.mxu0 0
      %336 = vmatpush1.bf16.msra.mxu0 0
      %337 = vmatprep.subr.bf16.mxu0 0
      %338 = vmatpush1.bf16.msra.mxu0 0
      %339 = vmatprep.subr.bf16.mxu0 0
      %340 = vmatpush1.bf16.msra.mxu0 0
      %341 = vmatprep.subr.bf16.mxu0 0
      %342 = vmatpush1.bf16.msra.mxu0 %v272
      %343 = vmatprep.subr.bf16.mxu0 0
      %344 = vmatpush1.bf16.msra.mxu0 %v271
      %345 = vmatprep.subr.bf16.mxu0 0
      %346 = vmatpush2.bf16.msra.mxu0 0
      %347 = vmatprep.subr.bf16.mxu0 0
      %348 = vmatpush2.bf16.msra.mxu0 0
      %349 = vmatprep.subr.bf16.mxu0 0
      %350 = vmatpush2.bf16.msra.mxu0 0
      %351 = vmatprep.subr.bf16.mxu0 0
      %352 = vmatpush2.bf16.msra.mxu0 0
      %353 = vmatprep.subr.bf16.mxu0 0
      %354 = vmatpush2.bf16.msra.mxu0 0
      %355 = vmatprep.subr.bf16.mxu0 0
      %356 = vmatpush2.bf16.msra.mxu0 0
      %357 = vmatprep.subr.bf16.mxu0 0
      %358 = vmatpush2.bf16.msra.mxu0 0
      %359 = vmatprep.subr.bf16.mxu0 0
      %360 = vmatpush2.bf16.msra.mxu0 0
      %361 = vmatprep.mubr.bf16.mxu0 0
      %362 = vmatmul.mubr.bf16.gmra.mxu0 %v282
      %v363 = vpop.f32.mrf.mxu0
      %v364 = vadd.f32 %v278, %v363
      %v365 = vpop.f32.mrf.mxu0
      %v366 = vpop.f32.mrf.mxu0
      %v367 = vadd.f32 %v278, %v366
      %v368 = vpop.f32.mrf.mxu0
      %369 = vmatprep.mubr.bf16.mxu0 0
      %370 = vmatmul.mubr.bf16.gmra.mxu0 %v285
      %v371 = vpop.f32.mrf.mxu0
      %v372 = vadd.f32 %v278, %v371
      %v373 = vpop.f32.mrf.mxu0
      %v374 = vpop.f32.mrf.mxu0
      %v375 = vadd.f32 %v278, %v374
      %v376 = vpop.f32.mrf.mxu0
      %377 = vmatprep.mubr.bf16.mxu0 0
      %378 = vmatmul.mubr.bf16.gmra.mxu0 %v288
      %v379 = vpop.f32.mrf.mxu0
      %v380 = vadd.f32 %v278, %v379
      %v381 = vpop.f32.mrf.mxu0
      %v382 = vpop.f32.mrf.mxu0
      %v383 = vadd.f32 %v278, %v382
      %v384 = vpop.f32.mrf.mxu0
      %385 = vmatprep.mubr.bf16.mxu0 0
      %386 = vmatmul.mubr.bf16.gmra.mxu0 %v291
      %v387 = vpop.f32.mrf.mxu0
      %v388 = vadd.f32 %v278, %v387
      %v389 = vpop.f32.mrf.mxu0
      %v390 = vpop.f32.mrf.mxu0
      %v391 = vadd.f32 %v278, %v390
      %v392 = vpop.f32.mrf.mxu0
      %393 = vmatprep.mubr.bf16.mxu0 0
      %394 = vmatmul.mubr.bf16.gmra.mxu0 %v294
      %v395 = vpop.f32.mrf.mxu0
      %v396 = vadd.f32 %v278, %v395
      %v397 = vpop.f32.mrf.mxu0
      %v398 = vpop.f32.mrf.mxu0
      %v399 = vadd.f32 %v278, %v398
      %v400 = vpop.f32.mrf.mxu0
      %401 = vmatprep.mubr.bf16.mxu0 0
      %402 = vmatmul.mubr.bf16.gmra.mxu0 %v297
      %v403 = vpop.f32.mrf.mxu0
      %v404 = vadd.f32 %v278, %v403
      %v405 = vpop.f32.mrf.mxu0
      %v406 = vpop.f32.mrf.mxu0
      %v407 = vadd.f32 %v278, %v406
      %v408 = vpop.f32.mrf.mxu0
      %409 = vmatprep.mubr.bf16.mxu0 0
      %410 = vmatmul.mubr.bf16.gmra.mxu0 %v300
      %v411 = vpop.f32.mrf.mxu0
      %v412 = vadd.f32 %v278, %v411
      %v413 = vpop.f32.mrf.mxu0
      %v414 = vpop.f32.mrf.mxu0
      %v415 = vadd.f32 %v278, %v414
      %v416 = vpop.f32.mrf.mxu0
      %417 = vmatprep.mubr.bf16.mxu0 0
      %418 = vmatmul.mubr.bf16.gmra.mxu0 %v303
      %v419 = vpop.f32.mrf.mxu0
      %v420 = vadd.f32 %v278, %v419
      %v421 = vpop.f32.mrf.mxu0
      %v422 = vpop.f32.mrf.mxu0
      %v423 = vadd.f32 %v278, %v422
      %v424 = vpop.f32.mrf.mxu0
      %425 = vmatprep.mubr.bf16.mxu0 0
      %426 = vmatmul.mubr.bf16.gmra.mxu0 %v306
      %v427 = vpop.f32.mrf.mxu0
      %v428 = vadd.f32 %v278, %v427
      %v429 = vpop.f32.mrf.mxu0
      %v430 = vpop.f32.mrf.mxu0
      %v431 = vadd.f32 %v278, %v430
      %v432 = vpop.f32.mrf.mxu0
      %433 = vmatprep.mubr.bf16.mxu0 0
      %434 = vmatmul.mubr.bf16.gmra.mxu0 %v309
      %v435 = vpop.f32.mrf.mxu0
      %v436 = vadd.f32 %v278, %v435
      %v437 = vpop.f32.mrf.mxu0
      %v438 = vpop.f32.mrf.mxu0
      %v439 = vadd.f32 %v278, %v438
      %v440 = vpop.f32.mrf.mxu0
      %441 = vmatprep.mubr.bf16.mxu0 0
      %442 = vmatmul.mubr.bf16.gmra.mxu0 %v312
      %v443 = vpop.f32.mrf.mxu0
      %v444 = vadd.f32 %v278, %v443
      %v445 = vpop.f32.mrf.mxu0
      %v446 = vpop.f32.mrf.mxu0
      %v447 = vadd.f32 %v278, %v446
      %v448 = vpop.f32.mrf.mxu0
      %449 = vmatprep.mubr.bf16.mxu0 0
      %450 = vmatmul.mubr.bf16.gmra.mxu0 %v315
      %v451 = vpop.f32.mrf.mxu0
      %v452 = vadd.f32 %v278, %v451
      %v453 = vpop.f32.mrf.mxu0
      %v454 = vpop.f32.mrf.mxu0
      %v455 = vadd.f32 %v278, %v454
      %v456 = vpop.f32.mrf.mxu0
      %457 = vmatprep.mubr.bf16.mxu0 0
      %458 = vmatmul.mubr.bf16.gmra.mxu0 %v318
      %v459 = vpop.f32.mrf.mxu0
      %v460 = vadd.f32 %v278, %v459
      %v461 = vpop.f32.mrf.mxu0
      %v462 = vpop.f32.mrf.mxu0
      %v463 = vadd.f32 %v278, %v462
      %v464 = vpop.f32.mrf.mxu0
      %465 = vmatprep.mubr.bf16.mxu0 0
      %466 = vmatmul.mubr.bf16.gmra.mxu0 %v321
      %v467 = vpop.f32.mrf.mxu0
      %v468 = vadd.f32 %v278, %v467
      %v469 = vpop.f32.mrf.mxu0
      %v470 = vpop.f32.mrf.mxu0
      %v471 = vadd.f32 %v278, %v470
      %v472 = vpop.f32.mrf.mxu0
      %473 = vmatprep.mubr.bf16.mxu0 0
      %474 = vmatmul.mubr.bf16.gmra.mxu0 %v324
      %v475 = vpop.f32.mrf.mxu0
      %v476 = vadd.f32 %v278, %v475
      %v477 = vpop.f32.mrf.mxu0
      %v478 = vpop.f32.mrf.mxu0
      %v479 = vadd.f32 %v278, %v478
      %v480 = vpop.f32.mrf.mxu0
      %481 = vmatprep.mubr.bf16.mxu0 0
      %482 = vmatmul.mubr.bf16.gmra.mxu0 %v327
      %v483 = vpop.f32.mrf.mxu0
      %v484 = vadd.f32 %v278, %v483
      %v485 = vpop.f32.mrf.mxu0
      %v486 = vpop.f32.mrf.mxu0
      %v487 = vadd.f32 %v278, %v486
      %v488 = vpop.f32.mrf.mxu0
      %489 = vdwg.mxu0
      %v490 = vmax.f32 %v364, 0.0
      %v491 = vmax.f32 %v367, 0.0
      %v492 = vmax.f32 %v372, 0.0
      %v493 = vmax.f32 %v375, 0.0
      %v494 = vmax.f32 %v380, 0.0
      %v495 = vmax.f32 %v383, 0.0
      %v496 = vmax.f32 %v388, 0.0
      %v497 = vmax.f32 %v391, 0.0
      %v498 = vmax.f32 %v396, 0.0
      %v499 = vmax.f32 %v399, 0.0
      %v500 = vmax.f32 %v404, 0.0
      %v501 = vmax.f32 %v407, 0.0
      %v502 = vmax.f32 %v412, 0.0
      %v503 = vmax.f32 %v415, 0.0
      %v504 = vmax.f32 %v420, 0.0
      %v505 = vmax.f32 %v423, 0.0
      %v506 = vmax.f32 %v428, 0.0
      %v507 = vmax.f32 %v431, 0.0
      %v508 = vmax.f32 %v436, 0.0
      %v509 = vmax.f32 %v439, 0.0
      %v510 = vmax.f32 %v444, 0.0
      %v511 = vmax.f32 %v447, 0.0
      %v512 = vmax.f32 %v452, 0.0
      %v513 = vmax.f32 %v455, 0.0
      %v514 = vmax.f32 %v460, 0.0
      %v515 = vmax.f32 %v463, 0.0
      %v516 = vmax.f32 %v468, 0.0
      %v517 = vmax.f32 %v471, 0.0
      %v518 = vmax.f32 %v476, 0.0
      %v519 = vmax.f32 %v479, 0.0
      %v520 = vmax.f32 %v484, 0.0
      %v521 = vmax.f32 %v487, 0.0
      %v522 = vld [vmem:[%s212] sm:$0xff]
      %v523 = vld [vmem:[%s212 + $0x8] sm:$0xff]
      %v524 = vld [vmem:[%s212 + $0x10] sm:$0xff]
      %v525 = vld [vmem:[%s212 + $0x18] sm:$0xff]
      %v526 = vld [vmem:[%s212 + $0x20] sm:$0xff]
      %v527 = vld [vmem:[%s212 + $0x28] sm:$0xff]
      %v528 = vld [vmem:[%s212 + $0x30] sm:$0xff]
      %v529 = vld [vmem:[%s212 + $0x38] sm:$0xff]
      %v530 = vld [vmem:[%s212 + $0x40] sm:$0xff]
      %v531 = vld [vmem:[%s212 + $0x48] sm:$0xff]
      %v532 = vld [vmem:[%s212 + $0x50] sm:$0xff]
      %v533 = vld [vmem:[%s212 + $0x58] sm:$0xff]
      %v534 = vld [vmem:[%s212 + $0x60] sm:$0xff]
      %v535 = vld [vmem:[%s212 + $0x68] sm:$0xff]
      %v536 = vld [vmem:[%s212 + $0x70] sm:$0xff]
      %v537 = vld [vmem:[%s212 + $0x78] sm:$0xff]
      %v538 = vld [vmem:[%s212 + $0x80] sm:$0xff]
      %v539 = vld [vmem:[%s212 + $0x88] sm:$0xff]
      %v540 = vld [vmem:[%s212 + $0x90] sm:$0xff]
      %v541 = vld [vmem:[%s212 + $0x98] sm:$0xff]
      %v542 = vld [vmem:[%s212 + $0xa0] sm:$0xff]
      %v543 = vld [vmem:[%s212 + $0xa8] sm:$0xff]
      %v544 = vld [vmem:[%s212 + $0xb0] sm:$0xff]
      %v545 = vld [vmem:[%s212 + $0xb8] sm:$0xff]
      %v546 = vld [vmem:[%s212 + $0xc0] sm:$0xff]
      %v547 = vld [vmem:[%s212 + $0xc8] sm:$0xff]
      %v548 = vld [vmem:[%s212 + $0xd0] sm:$0xff]
      %v549 = vld [vmem:[%s212 + $0xd8] sm:$0xff]
      %v550 = vld [vmem:[%s212 + $0xe0] sm:$0xff]
      %v551 = vld [vmem:[%s212 + $0xe8] sm:$0xff]
      %v552 = vld [vmem:[%s212 + $0xf0] sm:$0xff]
      %v553 = vld [vmem:[%s212 + $0xf8] sm:$0xff]
      %v554 = vadd.f32 %v490, %v522
      %v555 = vadd.f32 %v491, %v523
      %v556 = vadd.f32 %v492, %v524
      %v557 = vadd.f32 %v493, %v525
      %v558 = vadd.f32 %v494, %v526
      %v559 = vadd.f32 %v495, %v527
      %v560 = vadd.f32 %v496, %v528
      %v561 = vadd.f32 %v497, %v529
      %v562 = vadd.f32 %v498, %v530
      %v563 = vadd.f32 %v499, %v531
      %v564 = vadd.f32 %v500, %v532
      %v565 = vadd.f32 %v501, %v533
      %v566 = vadd.f32 %v502, %v534
      %v567 = vadd.f32 %v503, %v535
      %v568 = vadd.f32 %v504, %v536
      %v569 = vadd.f32 %v505, %v537
      %v570 = vadd.f32 %v506, %v538
      %v571 = vadd.f32 %v507, %v539
      %v572 = vadd.f32 %v508, %v540
      %v573 = vadd.f32 %v509, %v541
      %v574 = vadd.f32 %v510, %v542
      %v575 = vadd.f32 %v511, %v543
      %v576 = vadd.f32 %v512, %v544
      %v577 = vadd.f32 %v513, %v545
      %v578 = vadd.f32 %v514, %v546
      %v579 = vadd.f32 %v515, %v547
      %v580 = vadd.f32 %v516, %v548
      %v581 = vadd.f32 %v517, %v549
      %v582 = vadd.f32 %v518, %v550
      %v583 = vadd.f32 %v519, %v551
      %v584 = vadd.f32 %v520, %v552
      %v585 = vadd.f32 %v521, %v553
      %vm586 = vcmask 130048
      %587 = vst.msk [vmem:[%s217] sm:$0xff] %vm586, %v554
      %588 = vst.msk [vmem:[%s217 + $0x8] sm:$0xff] %vm586, %v555
      %589 = vst.msk [vmem:[%s217 + $0x10] sm:$0xff] %vm586, %v556
      %590 = vst.msk [vmem:[%s217 + $0x18] sm:$0xff] %vm586, %v557
      %591 = vst.msk [vmem:[%s217 + $0x20] sm:$0xff] %vm586, %v558
      %592 = vst.msk [vmem:[%s217 + $0x28] sm:$0xff] %vm586, %v559
      %593 = vst.msk [vmem:[%s217 + $0x30] sm:$0xff] %vm586, %v560
      %594 = vst.msk [vmem:[%s217 + $0x38] sm:$0xff] %vm586, %v561
      %595 = vst.msk [vmem:[%s217 + $0x40] sm:$0xff] %vm586, %v562
      %596 = vst.msk [vmem:[%s217 + $0x48] sm:$0xff] %vm586, %v563
      %597 = vst.msk [vmem:[%s217 + $0x50] sm:$0xff] %vm586, %v564
      %598 = vst.msk [vmem:[%s217 + $0x58] sm:$0xff] %vm586, %v565
      %599 = vst.msk [vmem:[%s217 + $0x60] sm:$0xff] %vm586, %v566
      %600 = vst.msk [vmem:[%s217 + $0x68] sm:$0xff] %vm586, %v567
      %601 = vst.msk [vmem:[%s217 + $0x70] sm:$0xff] %vm586, %v568
      %602 = vst.msk [vmem:[%s217 + $0x78] sm:$0xff] %vm586, %v569
      %603 = vst.msk [vmem:[%s217 + $0x80] sm:$0xff] %vm586, %v570
      %604 = vst.msk [vmem:[%s217 + $0x88] sm:$0xff] %vm586, %v571
      %605 = vst.msk [vmem:[%s217 + $0x90] sm:$0xff] %vm586, %v572
      %606 = vst.msk [vmem:[%s217 + $0x98] sm:$0xff] %vm586, %v573
      %607 = vst.msk [vmem:[%s217 + $0xa0] sm:$0xff] %vm586, %v574
      %608 = vst.msk [vmem:[%s217 + $0xa8] sm:$0xff] %vm586, %v575
      %609 = vst.msk [vmem:[%s217 + $0xb0] sm:$0xff] %vm586, %v576
      %610 = vst.msk [vmem:[%s217 + $0xb8] sm:$0xff] %vm586, %v577
      %611 = vst.msk [vmem:[%s217 + $0xc0] sm:$0xff] %vm586, %v578
      %612 = vst.msk [vmem:[%s217 + $0xc8] sm:$0xff] %vm586, %v579
      %613 = vst.msk [vmem:[%s217 + $0xd0] sm:$0xff] %vm586, %v580
      %614 = vst.msk [vmem:[%s217 + $0xd8] sm:$0xff] %vm586, %v581
      %615 = vst.msk [vmem:[%s217 + $0xe0] sm:$0xff] %vm586, %v582
      %616 = vst.msk [vmem:[%s217 + $0xe8] sm:$0xff] %vm586, %v583
      %617 = vst.msk [vmem:[%s217 + $0xf0] sm:$0xff] %vm586, %v584
      %618 = vst.msk [vmem:[%s217 + $0xf8] sm:$0xff] %vm586, %v585
      %p619 = scmp.lt.s32.totalorder %s15, 1
      %s620 = scalar_select %p619, %s15, 1
      %s621 = smul.addr %s620, 32
      %s622 = smul.addr %s621, 8
      %s623 = scalar_lea.vmem %s4, %s622
      // Predicated region
      $region37: #{plv_forward.18} parent=35 // pred_check
        %p624 = pneg %p127
      $region38: #{plv_forward.18} parent=35 // pred_check_branch
        %626 = sbr.rel (%p624) target = $region40
      $region39: #{plv_forward.18} parent=35 // pred_region
        _
      $region40: #{plv_forward.18} parent=35 // pred_fallthru
        _
    $region36: #{plv_forward.18} parent=5 // pred_fallthru
      _
    %p627 = scmp.le.s32.totalorder 2, %s10
    // Predicated region
    $region41: #{plv_forward.18} parent=5 // pred_check
      %p628 = pneg %p627
    $region42: #{plv_forward.18} parent=5 // pred_check_branch
      %630 = sbr.rel (%p628) target = $region44
    $region43: #{plv_forward.18} parent=5 // pred_region
      %s631 = ssub.s32 %s10, 2
      // Predicated region
      $region45: #{plv_forward.18} parent=43 // pred_check
        %p632 = pneg %p133
      $region46: #{plv_forward.18} parent=43 // pred_check_branch
        %634 = sbr.rel (%p632) target = $region48
      $region47: #{plv_forward.18} parent=43 // pred_region
        %p635 = scmp.lt.s32.totalorder %s16, 1
        %s636 = scalar_select %p635, %s16, 1
        %s637 = smul.addr %s636, 32
        %s638 = smul.addr %s637, 8
        %s639 = scalar_lea.vmem %s4, %s638
      $region48: #{plv_forward.18} parent=43 // pred_fallthru
        _
    $region44: #{plv_forward.18} parent=5 // pred_fallthru
      _
  $region6: #{plv_forward.18} parent=0 // loop_footer
    %s14 = sadd.s32 1, %s10
  $region7: #{plv_forward.18} parent=0 // loop_footer_branch
    %9 = sbr.rel target = $region3
  $region8: #{plv_forward.18} parent=0 // loop_exit
    _

// kernel: plv_forward.19
$region0: #{plv_forward.19}
  #allocation0 [shape = 'u32[]', space=smem, size = 0x4, offset = 0x4, fixed_abs, tag = 'smem constant byte address 0x4 - core index']
  #allocation1 [shape = 'u32[144,128]{1,0:T(1,128)}', space=vmem, size = 0x12000, scoped, tag = 'internal scratch']
  %s0 = inlined_call_operand.vmem [shape: f32[2,256,16], index: 0, kind: input, shape index: {}]
  %s1 = inlined_call_operand.vmem [shape: f32[16,96], index: 1, kind: input, shape index: {}]
  %s2 = inlined_call_operand.vmem [shape: f32[1,96], index: 2, kind: input, shape index: {}]
  %s3 = inlined_call_operand.vmem [shape: f32[96,128], index: 3, kind: input, shape index: {}]
  %s4 = inlined_call_operand.vmem [shape: f32[1,128], index: 4, kind: input, shape index: {}]
  %s5 = inlined_call_operand.vmem [shape: f32[2,256,128], index: 5, kind: output, shape index: {}]
  %s6 = sld [smem:[#allocation0]]
  $region53: #{plv_forward.19} parent=0
    _
  %s8 = ssub.s32 1, %s6
  %s9 = scalar_select 0, %s8, %s6
  loop: start=0, step=1, limit=4
  $region2: #{plv_forward.19} parent=0 // loop_pre_header
    _
  $region3: #{plv_forward.19} parent=0 // loop_header
    %s11 = sphi 0, %s15
    %p12 = scmp.ge.s32.totalorder %s11, 4
    %s21 = sphi 0, %s23
    %s24 = sphi 0, %s21
    %s25 = sphi 0, %s24
    %s41 = sphi 0, %s25
    %s45 = sphi 0, %s45
    %s47 = sphi 0, %s45
    %s48 = sphi 0, %s47
    %s62 = sphi 0, %s48
    %s66 = sphi 0, %s66
    %s68 = sphi 0, %s66
    %s69 = sphi 0, %s68
    %s83 = sphi 0, %s69
    %s87 = sphi 0, %s87
    %s89 = sphi 0, %s87
    %s90 = sphi 0, %s89
    %s104 = sphi 0, %s90
    %s108 = sphi 0, %s108
    %s110 = sphi 0, %s108
    %s111 = sphi 0, %s110
    %s125 = sphi 0, %s111
    %s131 = sphi 0, %s133
    %s134 = sphi 0, %s131
    %s135 = sphi 0, %s134
    %s151 = sphi 0, %s135
  $region4: #{plv_forward.19} parent=0 // loop_header_branch
    %14 = sbr.rel (%p12) target = $region8
  $region5: #{plv_forward.19} parent=0 // loop_body
    %s16 = ssub.s32 %s11, 1
    %s17 = ssub.s32 %s11, 2
    %s18 = sadd.s32 %s11, 1
    %s19 = ssub.s32 %s11, %s18
    %p20 = scmp.eq.s32.totalorder %s19, 0
    %s22 = sadd.s32 %s21, 1
    %s23 = scalar_select %p20, %s21, %s22
    %p26 = pneg %p20
    %p27 = scmp.eq.s32.totalorder %s11, 1
    %p28 = por %p26, %p27
    %p29 = scmp.ne.s32.totalorder %s21, %s24
    %p30 = scmp.eq.s32.totalorder %s11, 0
    %p31 = por %p29, %p30
    %p32 = scmp.ne.s32.totalorder %s21, %s24
    %p33 = scmp.eq.s32.totalorder %s16, 1
    %p34 = por %p32, %p33
    %p35 = scmp.ne.s32.totalorder %s24, %s25
    %p36 = scmp.eq.s32.totalorder %s16, 0
    %p37 = por %p35, %p36
    %p38 = scmp.ne.s32.totalorder %s24, %s25
    %p39 = scmp.eq.s32.totalorder %s17, 1
    %p40 = por %p38, %p39
    %p42 = scmp.ne.s32.totalorder %s25, %s41
    %p43 = scmp.eq.s32.totalorder %s17, 0
    %p44 = por %p42, %p43
    %s46 = sadd.s32 %s45, 1
    %p49 = scmp.eq.s32.totalorder %s11, 1
    %p50 = scmp.ne.s32.totalorder %s45, %s47
    %p51 = scmp.eq.s32.totalorder %s11, 0
    %p52 = por %p50, %p51
    %p53 = scmp.ne.s32.totalorder %s45, %s47
    %p54 = scmp.eq.s32.totalorder %s16, 1
    %p55 = por %p53, %p54
    %p56 = scmp.ne.s32.totalorder %s47, %s48
    %p57 = scmp.eq.s32.totalorder %s16, 0
    %p58 = por %p56, %p57
    %p59 = scmp.ne.s32.totalorder %s47, %s48
    %p60 = scmp.eq.s32.totalorder %s17, 1
    %p61 = por %p59, %p60
    %p63 = scmp.ne.s32.totalorder %s48, %s62
    %p64 = scmp.eq.s32.totalorder %s17, 0
    %p65 = por %p63, %p64
    %s67 = sadd.s32 %s66, 1
    %p70 = scmp.eq.s32.totalorder %s11, 1
    %p71 = scmp.ne.s32.totalorder %s66, %s68
    %p72 = scmp.eq.s32.totalorder %s11, 0
    %p73 = por %p71, %p72
    %p74 = scmp.ne.s32.totalorder %s66, %s68
    %p75 = scmp.eq.s32.totalorder %s16, 1
    %p76 = por %p74, %p75
    %p77 = scmp.ne.s32.totalorder %s68, %s69
    %p78 = scmp.eq.s32.totalorder %s16, 0
    %p79 = por %p77, %p78
    %p80 = scmp.ne.s32.totalorder %s68, %s69
    %p81 = scmp.eq.s32.totalorder %s17, 1
    %p82 = por %p80, %p81
    %p84 = scmp.ne.s32.totalorder %s69, %s83
    %p85 = scmp.eq.s32.totalorder %s17, 0
    %p86 = por %p84, %p85
    %s88 = sadd.s32 %s87, 1
    %p91 = scmp.eq.s32.totalorder %s11, 1
    %p92 = scmp.ne.s32.totalorder %s87, %s89
    %p93 = scmp.eq.s32.totalorder %s11, 0
    %p94 = por %p92, %p93
    %p95 = scmp.ne.s32.totalorder %s87, %s89
    %p96 = scmp.eq.s32.totalorder %s16, 1
    %p97 = por %p95, %p96
    %p98 = scmp.ne.s32.totalorder %s89, %s90
    %p99 = scmp.eq.s32.totalorder %s16, 0
    %p100 = por %p98, %p99
    %p101 = scmp.ne.s32.totalorder %s89, %s90
    %p102 = scmp.eq.s32.totalorder %s17, 1
    %p103 = por %p101, %p102
    %p105 = scmp.ne.s32.totalorder %s90, %s104
    %p106 = scmp.eq.s32.totalorder %s17, 0
    %p107 = por %p105, %p106
    %s109 = sadd.s32 %s108, 1
    %p112 = scmp.eq.s32.totalorder %s11, 1
    %p113 = scmp.ne.s32.totalorder %s108, %s110
    %p114 = scmp.eq.s32.totalorder %s11, 0
    %p115 = por %p113, %p114
    %p116 = scmp.ne.s32.totalorder %s108, %s110
    %p117 = scmp.eq.s32.totalorder %s16, 1
    %p118 = por %p116, %p117
    %p119 = scmp.ne.s32.totalorder %s110, %s111
    %p120 = scmp.eq.s32.totalorder %s16, 0
    %p121 = por %p119, %p120
    %p122 = scmp.ne.s32.totalorder %s110, %s111
    %p123 = scmp.eq.s32.totalorder %s17, 1
    %p124 = por %p122, %p123
    %p126 = scmp.ne.s32.totalorder %s111, %s125
    %p127 = scmp.eq.s32.totalorder %s17, 0
    %p128 = por %p126, %p127
    %s129 = ssub.s32 %s11, %s18
    %p130 = scmp.eq.s32.totalorder %s129, 0
    %s132 = sadd.s32 %s131, 1
    %s133 = scalar_select %p130, %s131, %s132
    %p136 = pneg %p130
    %p137 = scmp.eq.s32.totalorder %s11, 1
    %p138 = por %p136, %p137
    %p139 = scmp.ne.s32.totalorder %s131, %s134
    %p140 = scmp.eq.s32.totalorder %s11, 0
    %p141 = por %p139, %p140
    %p142 = scmp.ne.s32.totalorder %s131, %s134
    %p143 = scmp.eq.s32.totalorder %s16, 1
    %p144 = por %p142, %p143
    %p145 = scmp.ne.s32.totalorder %s134, %s135
    %p146 = scmp.eq.s32.totalorder %s16, 0
    %p147 = por %p145, %p146
    %p148 = scmp.ne.s32.totalorder %s134, %s135
    %p149 = scmp.eq.s32.totalorder %s17, 1
    %p150 = por %p148, %p149
    %p152 = scmp.ne.s32.totalorder %s135, %s151
    %p153 = scmp.eq.s32.totalorder %s17, 0
    %p154 = por %p152, %p153
    %p155 = scmp.le.s32.totalorder 1, %s11
    %p156 = scmp.lt.s32.totalorder %s11, 3
    %p157 = pnand %p155, %p156
    %p158 = pneg %p157
    // Predicated region
    $region9: #{plv_forward.19} parent=5 // pred_check
      _
    $region10: #{plv_forward.19} parent=5 // pred_check_branch
      %160 = sbr.rel (%p157) target = $region12
    $region11: #{plv_forward.19} parent=5 // pred_region
      %s161 = ssub.s32 %s11, 1
      // Predicated region
      $region13: #{plv_forward.19} parent=11 // pred_check
        %p162 = pneg %p58
      $region14: #{plv_forward.19} parent=11 // pred_check_branch
        %164 = sbr.rel (%p162) target = $region16
      $region15: #{plv_forward.19} parent=11 // pred_region
        _
      $region16: #{plv_forward.19} parent=11 // pred_fallthru
        _
      // Predicated region
      $region17: #{plv_forward.19} parent=11 // pred_check
        %p165 = pneg %p79
      $region18: #{plv_forward.19} parent=11 // pred_check_branch
        %167 = sbr.rel (%p165) target = $region20
      $region19: #{plv_forward.19} parent=11 // pred_region
        _
      $region20: #{plv_forward.19} parent=11 // pred_fallthru
        _
      // Predicated region
      $region21: #{plv_forward.19} parent=11 // pred_check
        %p168 = pneg %p100
      $region22: #{plv_forward.19} parent=11 // pred_check_branch
        %170 = sbr.rel (%p168) target = $region24
      $region23: #{plv_forward.19} parent=11 // pred_region
        _
      $region24: #{plv_forward.19} parent=11 // pred_fallthru
        _
      // Predicated region
      $region25: #{plv_forward.19} parent=11 // pred_check
        %p171 = pneg %p121
      $region26: #{plv_forward.19} parent=11 // pred_check_branch
        %173 = sbr.rel (%p171) target = $region28
      $region27: #{plv_forward.19} parent=11 // pred_region
        _
      $region28: #{plv_forward.19} parent=11 // pred_fallthru
        _
    $region12: #{plv_forward.19} parent=5 // pred_fallthru
      _
    %p174 = scmp.lt.s32.totalorder %s11, 2
    // Predicated region
    $region29: #{plv_forward.19} parent=5 // pred_check
      %p175 = pneg %p174
    $region30: #{plv_forward.19} parent=5 // pred_check_branch
      %177 = sbr.rel (%p175) target = $region32
    $region31: #{plv_forward.19} parent=5 // pred_region
      // Predicated region
      $region33: #{plv_forward.19} parent=31 // pred_check
        %p178 = pneg %p31
      $region34: #{plv_forward.19} parent=31 // pred_check_branch
        %180 = sbr.rel (%p178) target = $region36
      $region35: #{plv_forward.19} parent=31 // pred_region
        %p181 = scmp.lt.s32.totalorder %s11, 1
        %s182 = scalar_select %p181, %s11, 1
        %s183 = smul.addr %s182, 32
        %s184 = smul.addr %s183, 8
        %s185 = scalar_lea.vmem %s0, %s184
      $region36: #{plv_forward.19} parent=31 // pred_fallthru
        _
    $region32: #{plv_forward.19} parent=5 // pred_fallthru
      _
    %p186 = scmp.le.s32.totalorder 1, %s11
    %p187 = scmp.lt.s32.totalorder %s11, 3
    %p188 = pnand %p186, %p187
    %p189 = pneg %p188
    // Predicated region
    $region37: #{plv_forward.19} parent=5 // pred_check
      _
    $region38: #{plv_forward.19} parent=5 // pred_check_branch
      %191 = sbr.rel (%p188) target = $region40
    $region39: #{plv_forward.19} parent=5 // pred_region
      %s192 = ssub.s32 %s11, 1
      %p193 = scmp.lt.s32.totalorder %s16, 1
      %s194 = scalar_select %p193, %s16, 1
      %s195 = smul.addr %s194, 32
      %s196 = smul.addr %s195, 8
      %s197 = scalar_lea.vmem %s0, %s196
      %p198 = pneg %p37
      %p199 = pneg %p34
      %p200 = pneg %p58
      %p201 = pneg %p55
      %p202 = pneg %p79
      %p203 = pneg %p76
      %p204 = pneg %p100
      %p205 = pneg %p97
      %p206 = pneg %p121
      %p207 = pneg %p118
      %p208 = pneg %p147
      %p209 = pneg %p144
      %p210 = scmp.lt.s32.totalorder %s16, 1
      %s211 = scalar_select %p210, %s16, 1
      %s212 = smul.addr %s211, 32
      %s213 = smul.addr %s212, 8
      %s214 = scalar_lea.vmem %s5, %s213
      %p215 = scmp.lt.s32.totalorder %s16, 1
      %s216 = scalar_select %p215, %s16, 1
      %s217 = smul.addr %s216, 32
      %s218 = smul.addr %s217, 8
      %s219 = scalar_lea.vmem %s0, %s218
      %p220 = scmp.lt.s32.totalorder %s16, 1
      %s221 = scalar_select %p220, %s16, 1
      %s222 = smul.addr %s221, 32
      %s223 = smul.addr %s222, 8
      %s224 = scalar_lea.vmem %s5, %s223
      %v226 = vld [vmem:[%s219] sm:$0xff]
      %v227 = vld [vmem:[%s219 + $0x8] sm:$0xff]
      %v228 = vld [vmem:[%s219 + $0x10] sm:$0xff]
      %v229 = vld [vmem:[%s219 + $0x18] sm:$0xff]
      %v230 = vld [vmem:[%s219 + $0x20] sm:$0xff]
      %v231 = vld [vmem:[%s219 + $0x28] sm:$0xff]
      %v232 = vld [vmem:[%s219 + $0x30] sm:$0xff]
      %v233 = vld [vmem:[%s219 + $0x38] sm:$0xff]
      %v234 = vld [vmem:[%s219 + $0x40] sm:$0xff]
      %v235 = vld [vmem:[%s219 + $0x48] sm:$0xff]
      %v236 = vld [vmem:[%s219 + $0x50] sm:$0xff]
      %v237 = vld [vmem:[%s219 + $0x58] sm:$0xff]
      %v238 = vld [vmem:[%s219 + $0x60] sm:$0xff]
      %v239 = vld [vmem:[%s219 + $0x68] sm:$0xff]
      %v240 = vld [vmem:[%s219 + $0x70] sm:$0xff]
      %v241 = vld [vmem:[%s219 + $0x78] sm:$0xff]
      %v242 = vld [vmem:[%s219 + $0x80] sm:$0xff]
      %v243 = vld [vmem:[%s219 + $0x88] sm:$0xff]
      %v244 = vld [vmem:[%s219 + $0x90] sm:$0xff]
      %v245 = vld [vmem:[%s219 + $0x98] sm:$0xff]
      %v246 = vld [vmem:[%s219 + $0xa0] sm:$0xff]
      %v247 = vld [vmem:[%s219 + $0xa8] sm:$0xff]
      %v248 = vld [vmem:[%s219 + $0xb0] sm:$0xff]
      %v249 = vld [vmem:[%s219 + $0xb8] sm:$0xff]
      %v250 = vld [vmem:[%s219 + $0xc0] sm:$0xff]
      %v251 = vld [vmem:[%s219 + $0xc8] sm:$0xff]
      %v252 = vld [vmem:[%s219 + $0xd0] sm:$0xff]
      %v253 = vld [vmem:[%s219 + $0xd8] sm:$0xff]
      %v254 = vld [vmem:[%s219 + $0xe0] sm:$0xff]
      %v255 = vld [vmem:[%s219 + $0xe8] sm:$0xff]
      %v256 = vld [vmem:[%s219 + $0xf0] sm:$0xff]
      %v257 = vld [vmem:[%s219 + $0xf8] sm:$0xff]
      %v258 = vld [vmem:[%s1] sm:$0xff]
      %v259 = vld [vmem:[%s1 + $0x8] sm:$0xff]
      %v260 = vpack.c.bf16 %v227, %v226
      %v261 = vpack.c.bf16 %v229, %v228
      %v262 = vpack.c.bf16 %v231, %v230
      %v263 = vpack.c.bf16 %v233, %v232
      %v264 = vpack.c.bf16 %v235, %v234
      %v265 = vpack.c.bf16 %v237, %v236
      %v266 = vpack.c.bf16 %v239, %v238
      %v267 = vpack.c.bf16 %v241, %v240
      %v268 = vpack.c.bf16 %v243, %v242
      %v269 = vpack.c.bf16 %v245, %v244
      %v270 = vpack.c.bf16 %v247, %v246
      %v271 = vpack.c.bf16 %v249, %v248
      %v272 = vpack.c.bf16 %v251, %v250
      %v273 = vpack.c.bf16 %v253, %v252
      %v274 = vpack.c.bf16 %v255, %v254
      %v275 = vpack.c.bf16 %v257, %v256
      %v276 = vpack.c.bf16 %v259, %v258
      %v277 = vld [vmem:[%s2] sm:$0x1]
      %v279 = vlaneseq
      %v280 = vshrl.u32 %v279, 7
      %v281 = vsub.s32 0, %v280
      %v282 = vrot.slane %v277, %v281
      %vm284 = vcmask 130048
      %v286 = vsel %vm284, %v260, 0
      %v289 = vsel %vm284, %v261, 0
      %v292 = vsel %vm284, %v262, 0
      %v295 = vsel %vm284, %v263, 0
      %v298 = vsel %vm284, %v264, 0
      %v301 = vsel %vm284, %v265, 0
      %v304 = vsel %vm284, %v266, 0
      %v307 = vsel %vm284, %v267, 0
      %v310 = vsel %vm284, %v268, 0
      %v313 = vsel %vm284, %v269, 0
      %v316 = vsel %vm284, %v270, 0
      %v319 = vsel %vm284, %v271, 0
      %v322 = vsel %vm284, %v272, 0
      %v325 = vsel %vm284, %v273, 0
      %v328 = vsel %vm284, %v274, 0
      %v331 = vsel %vm284, %v275, 0
      %333 = vmatprep.subr.bf16.mxu0 0
      %334 = vmatpush1.bf16.msra.mxu0 0
      %335 = vmatprep.subr.bf16.mxu0 0
      %336 = vmatpush1.bf16.msra.mxu0 0
      %337 = vmatprep.subr.bf16.mxu0 0
      %338 = vmatpush1.bf16.msra.mxu0 0
      %339 = vmatprep.subr.bf16.mxu0 0
      %340 = vmatpush1.bf16.msra.mxu0 0
      %341 = vmatprep.subr.bf16.mxu0 0
      %342 = vmatpush1.bf16.msra.mxu0 0
      %343 = vmatprep.subr.bf16.mxu0 0
      %344 = vmatpush1.bf16.msra.mxu0 0
      %345 = vmatprep.subr.bf16.mxu0 0
      %346 = vmatpush1.bf16.msra.mxu0 0
      %347 = vmatprep.subr.bf16.mxu0 0
      %348 = vmatpush1.bf16.msra.mxu0 %v276
      %349 = vmatprep.subr.bf16.mxu0 0
      %350 = vmatpush2.bf16.msra.mxu0 0
      %351 = vmatprep.subr.bf16.mxu0 0
      %352 = vmatpush2.bf16.msra.mxu0 0
      %353 = vmatprep.subr.bf16.mxu0 0
      %354 = vmatpush2.bf16.msra.mxu0 0
      %355 = vmatprep.subr.bf16.mxu0 0
      %356 = vmatpush2.bf16.msra.mxu0 0
      %357 = vmatprep.subr.bf16.mxu0 0
      %358 = vmatpush2.bf16.msra.mxu0 0
      %359 = vmatprep.subr.bf16.mxu0 0
      %360 = vmatpush2.bf16.msra.mxu0 0
      %361 = vmatprep.subr.bf16.mxu0 0
      %362 = vmatpush2.bf16.msra.mxu0 0
      %363 = vmatprep.subr.bf16.mxu0 0
      %364 = vmatpush2.bf16.msra.mxu0 0
      %365 = vmatprep.mubr.bf16.mxu0 0
      %366 = vmatmul.mubr.bf16.gmra.mxu0 %v286
      %v367 = vpop.f32.mrf.mxu0
      %v368 = vadd.f32 %v282, %v367
      %v369 = vpop.f32.mrf.mxu0
      %v370 = vpop.f32.mrf.mxu0
      %v371 = vadd.f32 %v282, %v370
      %v372 = vpop.f32.mrf.mxu0
      %373 = vmatprep.mubr.bf16.mxu0 0
      %374 = vmatmul.mubr.bf16.gmra.mxu0 %v289
      %v375 = vpop.f32.mrf.mxu0
      %v376 = vadd.f32 %v282, %v375
      %v377 = vpop.f32.mrf.mxu0
      %v378 = vpop.f32.mrf.mxu0
      %v379 = vadd.f32 %v282, %v378
      %v380 = vpop.f32.mrf.mxu0
      %381 = vmatprep.mubr.bf16.mxu0 0
      %382 = vmatmul.mubr.bf16.gmra.mxu0 %v292
      %v383 = vpop.f32.mrf.mxu0
      %v384 = vadd.f32 %v282, %v383
      %v385 = vpop.f32.mrf.mxu0
      %v386 = vpop.f32.mrf.mxu0
      %v387 = vadd.f32 %v282, %v386
      %v388 = vpop.f32.mrf.mxu0
      %389 = vmatprep.mubr.bf16.mxu0 0
      %390 = vmatmul.mubr.bf16.gmra.mxu0 %v295
      %v391 = vpop.f32.mrf.mxu0
      %v392 = vadd.f32 %v282, %v391
      %v393 = vpop.f32.mrf.mxu0
      %v394 = vpop.f32.mrf.mxu0
      %v395 = vadd.f32 %v282, %v394
      %v396 = vpop.f32.mrf.mxu0
      %397 = vmatprep.mubr.bf16.mxu0 0
      %398 = vmatmul.mubr.bf16.gmra.mxu0 %v298
      %v399 = vpop.f32.mrf.mxu0
      %v400 = vadd.f32 %v282, %v399
      %v401 = vpop.f32.mrf.mxu0
      %v402 = vpop.f32.mrf.mxu0
      %v403 = vadd.f32 %v282, %v402
      %v404 = vpop.f32.mrf.mxu0
      %405 = vmatprep.mubr.bf16.mxu0 0
      %406 = vmatmul.mubr.bf16.gmra.mxu0 %v301
      %v407 = vpop.f32.mrf.mxu0
      %v408 = vadd.f32 %v282, %v407
      %v409 = vpop.f32.mrf.mxu0
      %v410 = vpop.f32.mrf.mxu0
      %v411 = vadd.f32 %v282, %v410
      %v412 = vpop.f32.mrf.mxu0
      %413 = vmatprep.mubr.bf16.mxu0 0
      %414 = vmatmul.mubr.bf16.gmra.mxu0 %v304
      %v415 = vpop.f32.mrf.mxu0
      %v416 = vadd.f32 %v282, %v415
      %v417 = vpop.f32.mrf.mxu0
      %v418 = vpop.f32.mrf.mxu0
      %v419 = vadd.f32 %v282, %v418
      %v420 = vpop.f32.mrf.mxu0
      %421 = vmatprep.mubr.bf16.mxu0 0
      %422 = vmatmul.mubr.bf16.gmra.mxu0 %v307
      %v423 = vpop.f32.mrf.mxu0
      %v424 = vadd.f32 %v282, %v423
      %v425 = vpop.f32.mrf.mxu0
      %v426 = vpop.f32.mrf.mxu0
      %v427 = vadd.f32 %v282, %v426
      %v428 = vpop.f32.mrf.mxu0
      %429 = vmatprep.mubr.bf16.mxu0 0
      %430 = vmatmul.mubr.bf16.gmra.mxu0 %v310
      %v431 = vpop.f32.mrf.mxu0
      %v432 = vadd.f32 %v282, %v431
      %v433 = vpop.f32.mrf.mxu0
      %v434 = vpop.f32.mrf.mxu0
      %v435 = vadd.f32 %v282, %v434
      %v436 = vpop.f32.mrf.mxu0
      %437 = vmatprep.mubr.bf16.mxu0 0
      %438 = vmatmul.mubr.bf16.gmra.mxu0 %v313
      %v439 = vpop.f32.mrf.mxu0
      %v440 = vadd.f32 %v282, %v439
      %v441 = vpop.f32.mrf.mxu0
      %v442 = vpop.f32.mrf.mxu0
      %v443 = vadd.f32 %v282, %v442
      %v444 = vpop.f32.mrf.mxu0
      %445 = vmatprep.mubr.bf16.mxu0 0
      %446 = vmatmul.mubr.bf16.gmra.mxu0 %v316
      %v447 = vpop.f32.mrf.mxu0
      %v448 = vadd.f32 %v282, %v447
      %v449 = vpop.f32.mrf.mxu0
      %v450 = vpop.f32.mrf.mxu0
      %v451 = vadd.f32 %v282, %v450
      %v452 = vpop.f32.mrf.mxu0
      %453 = vmatprep.mubr.bf16.mxu0 0
      %454 = vmatmul.mubr.bf16.gmra.mxu0 %v319
      %v455 = vpop.f32.mrf.mxu0
      %v456 = vadd.f32 %v282, %v455
      %v457 = vpop.f32.mrf.mxu0
      %v458 = vpop.f32.mrf.mxu0
      %v459 = vadd.f32 %v282, %v458
      %v460 = vpop.f32.mrf.mxu0
      %461 = vmatprep.mubr.bf16.mxu0 0
      %462 = vmatmul.mubr.bf16.gmra.mxu0 %v322
      %v463 = vpop.f32.mrf.mxu0
      %v464 = vadd.f32 %v282, %v463
      %v465 = vpop.f32.mrf.mxu0
      %v466 = vpop.f32.mrf.mxu0
      %v467 = vadd.f32 %v282, %v466
      %v468 = vpop.f32.mrf.mxu0
      %469 = vmatprep.mubr.bf16.mxu0 0
      %470 = vmatmul.mubr.bf16.gmra.mxu0 %v325
      %v471 = vpop.f32.mrf.mxu0
      %v472 = vadd.f32 %v282, %v471
      %v473 = vpop.f32.mrf.mxu0
      %v474 = vpop.f32.mrf.mxu0
      %v475 = vadd.f32 %v282, %v474
      %v476 = vpop.f32.mrf.mxu0
      %477 = vmatprep.mubr.bf16.mxu0 0
      %478 = vmatmul.mubr.bf16.gmra.mxu0 %v328
      %v479 = vpop.f32.mrf.mxu0
      %v480 = vadd.f32 %v282, %v479
      %v481 = vpop.f32.mrf.mxu0
      %v482 = vpop.f32.mrf.mxu0
      %v483 = vadd.f32 %v282, %v482
      %v484 = vpop.f32.mrf.mxu0
      %485 = vmatprep.mubr.bf16.mxu0 0
      %486 = vmatmul.mubr.bf16.gmra.mxu0 %v331
      %v487 = vpop.f32.mrf.mxu0
      %v488 = vadd.f32 %v282, %v487
      %v489 = vpop.f32.mrf.mxu0
      %v490 = vpop.f32.mrf.mxu0
      %v491 = vadd.f32 %v282, %v490
      %v492 = vpop.f32.mrf.mxu0
      %493 = vdwg.mxu0
      %v494 = vmax.f32 %v368, 0.0
      %v495 = vmax.f32 %v371, 0.0
      %v496 = vmax.f32 %v376, 0.0
      %v497 = vmax.f32 %v379, 0.0
      %v498 = vmax.f32 %v384, 0.0
      %v499 = vmax.f32 %v387, 0.0
      %v500 = vmax.f32 %v392, 0.0
      %v501 = vmax.f32 %v395, 0.0
      %v502 = vmax.f32 %v400, 0.0
      %v503 = vmax.f32 %v403, 0.0
      %v504 = vmax.f32 %v408, 0.0
      %v505 = vmax.f32 %v411, 0.0
      %v506 = vmax.f32 %v416, 0.0
      %v507 = vmax.f32 %v419, 0.0
      %v508 = vmax.f32 %v424, 0.0
      %v509 = vmax.f32 %v427, 0.0
      %v510 = vmax.f32 %v432, 0.0
      %v511 = vmax.f32 %v435, 0.0
      %v512 = vmax.f32 %v440, 0.0
      %v513 = vmax.f32 %v443, 0.0
      %v514 = vmax.f32 %v448, 0.0
      %v515 = vmax.f32 %v451, 0.0
      %v516 = vmax.f32 %v456, 0.0
      %v517 = vmax.f32 %v459, 0.0
      %v518 = vmax.f32 %v464, 0.0
      %v519 = vmax.f32 %v467, 0.0
      %v520 = vmax.f32 %v472, 0.0
      %v521 = vmax.f32 %v475, 0.0
      %v522 = vmax.f32 %v480, 0.0
      %v523 = vmax.f32 %v483, 0.0
      %v524 = vmax.f32 %v488, 0.0
      %v525 = vmax.f32 %v491, 0.0
      %v526 = vld [vmem:[%s3] sm:$0xff]
      %v527 = vld [vmem:[%s3 + $0x8] sm:$0xff]
      %v528 = vld [vmem:[%s3 + $0x10] sm:$0xff]
      %v529 = vld [vmem:[%s3 + $0x18] sm:$0xff]
      %v530 = vld [vmem:[%s3 + $0x20] sm:$0xff]
      %v531 = vld [vmem:[%s3 + $0x28] sm:$0xff]
      %v532 = vld [vmem:[%s3 + $0x30] sm:$0xff]
      %v533 = vld [vmem:[%s3 + $0x38] sm:$0xff]
      %v534 = vld [vmem:[%s3 + $0x40] sm:$0xff]
      %v535 = vld [vmem:[%s3 + $0x48] sm:$0xff]
      %v536 = vld [vmem:[%s3 + $0x50] sm:$0xff]
      %v537 = vld [vmem:[%s3 + $0x58] sm:$0xff]
      %v538 = vpack.c.bf16 %v495, %v494
      %v539 = vpack.c.bf16 %v497, %v496
      %v540 = vpack.c.bf16 %v499, %v498
      %v541 = vpack.c.bf16 %v501, %v500
      %v542 = vpack.c.bf16 %v503, %v502
      %v543 = vpack.c.bf16 %v505, %v504
      %v544 = vpack.c.bf16 %v507, %v506
      %v545 = vpack.c.bf16 %v509, %v508
      %v546 = vpack.c.bf16 %v511, %v510
      %v547 = vpack.c.bf16 %v513, %v512
      %v548 = vpack.c.bf16 %v515, %v514
      %v549 = vpack.c.bf16 %v517, %v516
      %v550 = vpack.c.bf16 %v519, %v518
      %v551 = vpack.c.bf16 %v521, %v520
      %v552 = vpack.c.bf16 %v523, %v522
      %v553 = vpack.c.bf16 %v525, %v524
      %v554 = vpack.c.bf16 %v527, %v526
      %v555 = vpack.c.bf16 %v529, %v528
      %v556 = vpack.c.bf16 %v531, %v530
      %v557 = vpack.c.bf16 %v533, %v532
      %v558 = vpack.c.bf16 %v535, %v534
      %v559 = vpack.c.bf16 %v537, %v536
      %v560 = vld [vmem:[%s4] sm:$0x1]
      %v562 = vlaneseq
      %v563 = vshrl.u32 %v562, 7
      %v564 = vsub.s32 0, %v563
      %v565 = vrot.slane %v560, %v564
      %vm567 = vcmask 785408
      %v569 = vsel %vm567, %v538, 0
      %v572 = vsel %vm567, %v539, 0
      %v575 = vsel %vm567, %v540, 0
      %v578 = vsel %vm567, %v541, 0
      %v581 = vsel %vm567, %v542, 0
      %v584 = vsel %vm567, %v543, 0
      %v587 = vsel %vm567, %v544, 0
      %v590 = vsel %vm567, %v545, 0
      %v593 = vsel %vm567, %v546, 0
      %v596 = vsel %vm567, %v547, 0
      %v599 = vsel %vm567, %v548, 0
      %v602 = vsel %vm567, %v549, 0
      %v605 = vsel %vm567, %v550, 0
      %v608 = vsel %vm567, %v551, 0
      %v611 = vsel %vm567, %v552, 0
      %v614 = vsel %vm567, %v553, 0
      %616 = vmatprep.subr.bf16.mxu0 0
      %617 = vmatpush1.bf16.msra.mxu0 0
      %618 = vmatprep.subr.bf16.mxu0 0
      %619 = vmatpush1.bf16.msra.mxu0 0
      %620 = vmatprep.subr.bf16.mxu0 0
      %621 = vmatpush1.bf16.msra.mxu0 %v559
      %622 = vmatprep.subr.bf16.mxu0 0
      %623 = vmatpush1.bf16.msra.mxu0 %v558
      %624 = vmatprep.subr.bf16.mxu0 0
      %625 = vmatpush1.bf16.msra.mxu0 %v557
      %626 = vmatprep.subr.bf16.mxu0 0
      %627 = vmatpush1.bf16.msra.mxu0 %v556
      %628 = vmatprep.subr.bf16.mxu0 0
      %629 = vmatpush1.bf16.msra.mxu0 %v555
      %630 = vmatprep.subr.bf16.mxu0 0
      %631 = vmatpush1.bf16.msra.mxu0 %v554
      %632 = vmatprep.subr.bf16.mxu0 0
      %633 = vmatpush2.bf16.msra.mxu0 0
      %634 = vmatprep.subr.bf16.mxu0 0
      %635 = vmatpush2.bf16.msra.mxu0 0
      %636 = vmatprep.subr.bf16.mxu0 0
      %637 = vmatpush2.bf16.msra.mxu0 0
      %638 = vmatprep.subr.bf16.mxu0 0
      %639 = vmatpush2.bf16.msra.mxu0 0
      %640 = vmatprep.subr.bf16.mxu0 0
      %641 = vmatpush2.bf16.msra.mxu0 0
      %642 = vmatprep.subr.bf16.mxu0 0
      %643 = vmatpush2.bf16.msra.mxu0 0
      %644 = vmatprep.subr.bf16.mxu0 0
      %645 = vmatpush2.bf16.msra.mxu0 0
      %646 = vmatprep.subr.bf16.mxu0 0
      %647 = vmatpush2.bf16.msra.mxu0 0
      %648 = vmatprep.mubr.bf16.mxu0 0
      %649 = vmatmul.mubr.bf16.gmra.mxu0 %v569
      %v650 = vpop.f32.mrf.mxu0
      %v651 = vadd.f32 %v565, %v650
      %v652 = vpop.f32.mrf.mxu0
      %v653 = vpop.f32.mrf.mxu0
      %v654 = vadd.f32 %v565, %v653
      %v655 = vpop.f32.mrf.mxu0
      %656 = vmatprep.mubr.bf16.mxu0 0
      %657 = vmatmul.mubr.bf16.gmra.mxu0 %v572
      %v658 = vpop.f32.mrf.mxu0
      %v659 = vadd.f32 %v565, %v658
      %v660 = vpop.f32.mrf.mxu0
      %v661 = vpop.f32.mrf.mxu0
      %v662 = vadd.f32 %v565, %v661
      %v663 = vpop.f32.mrf.mxu0
      %664 = vmatprep.mubr.bf16.mxu0 0
      %665 = vmatmul.mubr.bf16.gmra.mxu0 %v575
      %v666 = vpop.f32.mrf.mxu0
      %v667 = vadd.f32 %v565, %v666
      %v668 = vpop.f32.mrf.mxu0
      %v669 = vpop.f32.mrf.mxu0
      %v670 = vadd.f32 %v565, %v669
      %v671 = vpop.f32.mrf.mxu0
      %672 = vmatprep.mubr.bf16.mxu0 0
      %673 = vmatmul.mubr.bf16.gmra.mxu0 %v578
      %v674 = vpop.f32.mrf.mxu0
      %v675 = vadd.f32 %v565, %v674
      %v676 = vpop.f32.mrf.mxu0
      %v677 = vpop.f32.mrf.mxu0
      %v678 = vadd.f32 %v565, %v677
      %v679 = vpop.f32.mrf.mxu0
      %680 = vmatprep.mubr.bf16.mxu0 0
      %681 = vmatmul.mubr.bf16.gmra.mxu0 %v581
      %v682 = vpop.f32.mrf.mxu0
      %v683 = vadd.f32 %v565, %v682
      %v684 = vpop.f32.mrf.mxu0
      %v685 = vpop.f32.mrf.mxu0
      %v686 = vadd.f32 %v565, %v685
      %v687 = vpop.f32.mrf.mxu0
      %688 = vmatprep.mubr.bf16.mxu0 0
      %689 = vmatmul.mubr.bf16.gmra.mxu0 %v584
      %v690 = vpop.f32.mrf.mxu0
      %v691 = vadd.f32 %v565, %v690
      %v692 = vpop.f32.mrf.mxu0
      %v693 = vpop.f32.mrf.mxu0
      %v694 = vadd.f32 %v565, %v693
      %v695 = vpop.f32.mrf.mxu0
      %696 = vmatprep.mubr.bf16.mxu0 0
      %697 = vmatmul.mubr.bf16.gmra.mxu0 %v587
      %v698 = vpop.f32.mrf.mxu0
      %v699 = vadd.f32 %v565, %v698
      %v700 = vpop.f32.mrf.mxu0
      %v701 = vpop.f32.mrf.mxu0
      %v702 = vadd.f32 %v565, %v701
      %v703 = vpop.f32.mrf.mxu0
      %704 = vmatprep.mubr.bf16.mxu0 0
      %705 = vmatmul.mubr.bf16.gmra.mxu0 %v590
      %v706 = vpop.f32.mrf.mxu0
      %v707 = vadd.f32 %v565, %v706
      %v708 = vpop.f32.mrf.mxu0
      %v709 = vpop.f32.mrf.mxu0
      %v710 = vadd.f32 %v565, %v709
      %v711 = vpop.f32.mrf.mxu0
      %712 = vmatprep.mubr.bf16.mxu0 0
      %713 = vmatmul.mubr.bf16.gmra.mxu0 %v593
      %v714 = vpop.f32.mrf.mxu0
      %v715 = vadd.f32 %v565, %v714
      %v716 = vpop.f32.mrf.mxu0
      %v717 = vpop.f32.mrf.mxu0
      %v718 = vadd.f32 %v565, %v717
      %v719 = vpop.f32.mrf.mxu0
      %720 = vmatprep.mubr.bf16.mxu0 0
      %721 = vmatmul.mubr.bf16.gmra.mxu0 %v596
      %v722 = vpop.f32.mrf.mxu0
      %v723 = vadd.f32 %v565, %v722
      %v724 = vpop.f32.mrf.mxu0
      %v725 = vpop.f32.mrf.mxu0
      %v726 = vadd.f32 %v565, %v725
      %v727 = vpop.f32.mrf.mxu0
      %728 = vmatprep.mubr.bf16.mxu0 0
      %729 = vmatmul.mubr.bf16.gmra.mxu0 %v599
      %v730 = vpop.f32.mrf.mxu0
      %v731 = vadd.f32 %v565, %v730
      %v732 = vpop.f32.mrf.mxu0
      %v733 = vpop.f32.mrf.mxu0
      %v734 = vadd.f32 %v565, %v733
      %v735 = vpop.f32.mrf.mxu0
      %736 = vmatprep.mubr.bf16.mxu0 0
      %737 = vmatmul.mubr.bf16.gmra.mxu0 %v602
      %v738 = vpop.f32.mrf.mxu0
      %v739 = vadd.f32 %v565, %v738
      %v740 = vpop.f32.mrf.mxu0
      %v741 = vpop.f32.mrf.mxu0
      %v742 = vadd.f32 %v565, %v741
      %v743 = vpop.f32.mrf.mxu0
      %744 = vmatprep.mubr.bf16.mxu0 0
      %745 = vmatmul.mubr.bf16.gmra.mxu0 %v605
      %v746 = vpop.f32.mrf.mxu0
      %v747 = vadd.f32 %v565, %v746
      %v748 = vpop.f32.mrf.mxu0
      %v749 = vpop.f32.mrf.mxu0
      %v750 = vadd.f32 %v565, %v749
      %v751 = vpop.f32.mrf.mxu0
      %752 = vmatprep.mubr.bf16.mxu0 0
      %753 = vmatmul.mubr.bf16.gmra.mxu0 %v608
      %v754 = vpop.f32.mrf.mxu0
      %v755 = vadd.f32 %v565, %v754
      %v756 = vpop.f32.mrf.mxu0
      %v757 = vpop.f32.mrf.mxu0
      %v758 = vadd.f32 %v565, %v757
      %v759 = vpop.f32.mrf.mxu0
      %760 = vmatprep.mubr.bf16.mxu0 0
      %761 = vmatmul.mubr.bf16.gmra.mxu0 %v611
      %v762 = vpop.f32.mrf.mxu0
      %v763 = vadd.f32 %v565, %v762
      %v764 = vpop.f32.mrf.mxu0
      %v765 = vpop.f32.mrf.mxu0
      %v766 = vadd.f32 %v565, %v765
      %v767 = vpop.f32.mrf.mxu0
      %768 = vmatprep.mubr.bf16.mxu0 0
      %769 = vmatmul.mubr.bf16.gmra.mxu0 %v614
      %v770 = vpop.f32.mrf.mxu0
      %v771 = vadd.f32 %v565, %v770
      %v772 = vpop.f32.mrf.mxu0
      %v773 = vpop.f32.mrf.mxu0
      %v774 = vadd.f32 %v565, %v773
      %v775 = vpop.f32.mrf.mxu0
      %776 = vdwg.mxu0
      %777 = vst [vmem:[%s224] sm:$0xff] %v651
      %778 = vst [vmem:[%s224 + $0x8] sm:$0xff] %v654
      %779 = vst [vmem:[%s224 + $0x10] sm:$0xff] %v659
      %780 = vst [vmem:[%s224 + $0x18] sm:$0xff] %v662
      %781 = vst [vmem:[%s224 + $0x20] sm:$0xff] %v667
      %782 = vst [vmem:[%s224 + $0x28] sm:$0xff] %v670
      %783 = vst [vmem:[%s224 + $0x30] sm:$0xff] %v675
      %784 = vst [vmem:[%s224 + $0x38] sm:$0xff] %v678
      %785 = vst [vmem:[%s224 + $0x40] sm:$0xff] %v683
      %786 = vst [vmem:[%s224 + $0x48] sm:$0xff] %v686
      %787 = vst [vmem:[%s224 + $0x50] sm:$0xff] %v691
      %788 = vst [vmem:[%s224 + $0x58] sm:$0xff] %v694
      %789 = vst [vmem:[%s224 + $0x60] sm:$0xff] %v699
      %790 = vst [vmem:[%s224 + $0x68] sm:$0xff] %v702
      %791 = vst [vmem:[%s224 + $0x70] sm:$0xff] %v707
      %792 = vst [vmem:[%s224 + $0x78] sm:$0xff] %v710
      %793 = vst [vmem:[%s224 + $0x80] sm:$0xff] %v715
      %794 = vst [vmem:[%s224 + $0x88] sm:$0xff] %v718
      %795 = vst [vmem:[%s224 + $0x90] sm:$0xff] %v723
      %796 = vst [vmem:[%s224 + $0x98] sm:$0xff] %v726
      %797 = vst [vmem:[%s224 + $0xa0] sm:$0xff] %v731
      %798 = vst [vmem:[%s224 + $0xa8] sm:$0xff] %v734
      %799 = vst [vmem:[%s224 + $0xb0] sm:$0xff] %v739
      %800 = vst [vmem:[%s224 + $0xb8] sm:$0xff] %v742
      %801 = vst [vmem:[%s224 + $0xc0] sm:$0xff] %v747
      %802 = vst [vmem:[%s224 + $0xc8] sm:$0xff] %v750
      %803 = vst [vmem:[%s224 + $0xd0] sm:$0xff] %v755
      %804 = vst [vmem:[%s224 + $0xd8] sm:$0xff] %v758
      %805 = vst [vmem:[%s224 + $0xe0] sm:$0xff] %v763
      %806 = vst [vmem:[%s224 + $0xe8] sm:$0xff] %v766
      %807 = vst [vmem:[%s224 + $0xf0] sm:$0xff] %v771
      %808 = vst [vmem:[%s224 + $0xf8] sm:$0xff] %v774
      %p809 = scmp.lt.s32.totalorder %s16, 1
      %s810 = scalar_select %p809, %s16, 1
      %s811 = smul.addr %s810, 32
      %s812 = smul.addr %s811, 8
      %s813 = scalar_lea.vmem %s5, %s812
      // Predicated region
      $region41: #{plv_forward.19} parent=39 // pred_check
        %p814 = pneg %p144
      $region42: #{plv_forward.19} parent=39 // pred_check_branch
        %816 = sbr.rel (%p814) target = $region44
      $region43: #{plv_forward.19} parent=39 // pred_region
        _
      $region44: #{plv_forward.19} parent=39 // pred_fallthru
        _
    $region40: #{plv_forward.19} parent=5 // pred_fallthru
      _
    %p817 = scmp.le.s32.totalorder 2, %s11
    // Predicated region
    $region45: #{plv_forward.19} parent=5 // pred_check
      %p818 = pneg %p817
    $region46: #{plv_forward.19} parent=5 // pred_check_branch
      %820 = sbr.rel (%p818) target = $region48
    $region47: #{plv_forward.19} parent=5 // pred_region
      %s821 = ssub.s32 %s11, 2
      // Predicated region
      $region49: #{plv_forward.19} parent=47 // pred_check
        %p822 = pneg %p150
      $region50: #{plv_forward.19} parent=47 // pred_check_branch
        %824 = sbr.rel (%p822) target = $region52
      $region51: #{plv_forward.19} parent=47 // pred_region
        %p825 = scmp.lt.s32.totalorder %s17, 1
        %s826 = scalar_select %p825, %s17, 1
        %s827 = smul.addr %s826, 32
        %s828 = smul.addr %s827, 8
        %s829 = scalar_lea.vmem %s5, %s828
      $region52: #{plv_forward.19} parent=47 // pred_fallthru
        _
    $region48: #{plv_forward.19} parent=5 // pred_fallthru
      _
  $region6: #{plv_forward.19} parent=0 // loop_footer
    %s15 = sadd.s32 1, %s11
  $region7: #{plv_forward.19} parent=0 // loop_footer_branch
    %10 = sbr.rel target = $region3
  $region8: #{plv_forward.19} parent=0 // loop_exit
    _

</llo_original>
